<compile_context>
chip_gen: v6e
topology: v6e:2x2x1
jax: 0.10.0
libtpu: 0.0.40
codegen_flags: <defaults>
</compile_context>

<pallas_src>
import math

import jax
import jax.numpy as jnp
from jax.experimental import pallas as pl
from jax.experimental.pallas import tpu as pltpu

# ----------------------------- config -------------------------------------
D_MODEL = 32
NHEAD = 4
DIM_FF = 64                 # dim_feedforward == MHA num_hiddens (per reference)
HEAD_DIM = DIM_FF // NHEAD
N_ENC = 2
N_DEC = 2
N_LAYERS = N_ENC + N_DEC
LN_EPS = 1e-5

# Set to jnp.bfloat16 on v6e/v7x (bf16-native MXU, ~3x fewer MXU passes,
# f32 accumulation kept). Keep f32 on v5e and for exact reference matching.
MXU_INPUT_DTYPE = jnp.float32
# Approximate EUP reciprocal in the softmax normalization (probs sum to 1
# within ~1e-3 relative). Set False for an exact divide.
APPROX_SOFTMAX_RECIP = True

# vecs-slab row layout
_ENC_VROWS = 6              # ln1_g, ln1_b, ln2_g, ln2_b, b2, b1
_DEC_VROWS = 8              # ln1_g, ln1_b, ln2_g, ln2_b, ln3_g, ln3_b, b2, b1
_FINAL_ROW = N_ENC * _ENC_VROWS + N_DEC * _DEC_VROWS   # enc_norm_g/b, dec_norm_g/b


# --------------------------- fused Pallas kernel ----------------------------
def _transformer_kernel(x0_ref, pos_ref, qemb_ref, w_in_ref, w_out_ref,
                        vecs_ref, out_ref):
    # Per grid step (one batch element): x0/pos (S, D), qemb (Nq, D),
    # w_in (D, NL*4F), w_out (F, NL*2D), vecs (32, F), out (N_DEC, Nq*D).
    S = x0_ref.shape[0]
    Nq = qemb_ref.shape[0]
    D, F, NH, HD = D_MODEL, DIM_FF, NHEAD, HEAD_DIM

    def cast(x):
        return x.astype(MXU_INPUT_DTYPE)

    def mm(a, b):
        return jnp.dot(cast(a), cast(b), preferred_element_type=jnp.float32)

    def layer_norm(x, row):
        # gamma at `row`, beta at `row + 1` in the vecs slab (always adjacent).
        g = vecs_ref[row:row + 1, 0:D]
        b = vecs_ref[row + 1:row + 2, 0:D]
        mean = jnp.mean(x, axis=-1, keepdims=True)
        xc = x - mean
        var = jnp.mean(xc * xc, axis=-1, keepdims=True)
        return xc * jax.lax.rsqrt(var + LN_EPS) * g + b

    def split_heads(x):
        # (L, F) -> (NH, L, HD): heads become a leading batch axis so all the
        # attention math is batched einsums (no per-head serialized matmuls).
        return jnp.stack([x[:, h * HD:(h + 1) * HD] for h in range(NH)], axis=0)

    def attend(Qh, Kh, Vh, wo):
        # Qh (NH, Lq, HD), Kh/Vh (NH, Lk, HD), wo (F, D). Wq was pre-scaled by
        # 1/sqrt(HD) at pack time, so no per-score multiply here.
        s = jnp.einsum("hqc,hkc->hqk", cast(Qh), cast(Kh),
                       preferred_element_type=jnp.float32)
        s = s - jnp.max(s, axis=-1, keepdims=True)
        p = jnp.exp(s)
        denom = jnp.sum(p, axis=-1, keepdims=True)
        if APPROX_SOFTMAX_RECIP:
            p = p * pl.reciprocal(denom, approx=True)
        else:
            p = p / denom
        o = jnp.einsum("hqk,hkc->hqc", cast(p), cast(Vh),
                       preferred_element_type=jnp.float32)
        # Head merge == per-head output projection, summed over heads
        # (equivalent to concat(heads) @ Wo, but with no lane-axis concat).
        oh = jnp.einsum("hqc,hcd->hqd", cast(o), cast(wo.reshape(NH, HD, D)),
                        preferred_element_type=jnp.float32)
        return jnp.sum(oh, axis=0)                                   # (Lq, D)

    def layer_weights(l):
        c0, o0 = l * 4 * F, l * 2 * D
        return (w_in_ref[:, c0:c0 + 3 * F],           # fused [Wq|Wk|Wv] (D, 3F)
                w_in_ref[:, c0 + 3 * F:c0 + 4 * F],   # W1               (D, F)
                w_out_ref[:, o0:o0 + D],              # Wo               (F, D)
                w_out_ref[:, o0 + D:o0 + 2 * D])      # W2               (F, D)

    # ------------------------------ encoder --------------------------------
    x = x0_ref[...]                                   # (S, D) = src + pos
    for i in range(N_ENC):
        wqkv, w1, wo, w2 = layer_weights(i)
        vr = i * _ENC_VROWS
        # pre-norm self-attention
        x1 = layer_norm(x, vr)
        qkv = mm(x1, wqkv)                            # one fused QKV projection
        x = x + attend(split_heads(qkv[:, 0:F]),
                       split_heads(qkv[:, F:2 * F]),
                       split_heads(qkv[:, 2 * F:3 * F]), wo)
        # pre-norm feed-forward
        x2 = layer_norm(x, vr + 2)
        h = jnp.maximum(mm(x2, w1) + vecs_ref[vr + 5:vr + 6, 0:F], 0.0)
        x = x + mm(h, w2) + vecs_ref[vr + 4:vr + 5, 0:D]
    memory = layer_norm(x, _FINAL_ROW)                # encoder final norm (S, D)

    # ------------------------------ decoder --------------------------------
    mem_pos = memory + pos_ref[...]                   # with_pos_embed(memory, pos)
    qpos = qemb_ref[...]                              # (Nq, D) query_pos
    t = jnp.zeros((Nq, D), jnp.float32)               # tgt = zeros
    for i in range(N_DEC):
        wqkv, w1, wo, w2 = layer_weights(N_ENC + i)
        wq, wk, wv = wqkv[:, 0:F], wqkv[:, F:2 * F], wqkv[:, 2 * F:3 * F]
        vr = N_ENC * _ENC_VROWS + i * _DEC_VROWS

        q = t + qpos                                  # with_pos_embed(tgt, query_pos)
        Qh = split_heads(mm(q, wq))                   # shared by self & cross attn

        # self-attention: selfAttn(q, q, tgt), post-norm residual
        t2 = attend(Qh, split_heads(mm(q, wk)), split_heads(mm(t, wv)), wo)
        t = layer_norm(t + t2, vr)

        # cross-attention: same MHA weights, q from the PRE-self-attention tgt
        t2 = attend(Qh, split_heads(mm(mem_pos, wk)),
                    split_heads(mm(memory, wv)), wo)
        t = layer_norm(t + t2, vr + 2)

        # feed-forward, post-norm residual
        h = jnp.maximum(mm(t, w1) + vecs_ref[vr + 7:vr + 8, 0:F], 0.0)
        t = layer_norm(t + mm(h, w2) + vecs_ref[vr + 6:vr + 7, 0:D], vr + 4)

        # decoder final norm on the intermediate output (return_intermediate)
        n = layer_norm(t, _FINAL_ROW + 2)             # (Nq, D)
        # lane-dense store: pack the (Nq, D) rows into one (1, Nq*D) row.
        flat = jnp.concatenate([n[r:r + 1, :] for r in range(Nq)], axis=1)
        out_ref[i:i + 1, :] = flat


# ------------------------------ wrapper -------------------------------------
def transformer_forward(packed, src, mask, query_embed, pos_embed):
    """Matches Transformer.forward(src, mask, query_embed, pos_embed)."""
    del mask  # unused by the reference forward
    bs, c, hh, ww = src.shape
    S = hh * ww
    Nq = query_embed.shape[0]

    # NCHW -> (bs, S, d) batch-first (reference flatten(2).permute(2,0,1)
    # followed by the encoder/decoder-layer .transpose(0,1) calls).
    x0 = (src + pos_embed).reshape(bs, c, S).transpose(0, 2, 1)
    pos_bf = pos_embed.reshape(bs, c, S).transpose(0, 2, 1)

    w_in, w_out, vecs = packed["w_in"], packed["w_out"], packed["vecs"]

    out_flat = pl.pallas_call(
        _transformer_kernel,
        out_shape=jax.ShapeDtypeStruct((bs, N_DEC, Nq * c), jnp.float32),
        grid=(bs,),
        in_specs=[
            pl.BlockSpec((None, S, c), lambda b: (b, 0, 0)),   # src + pos
            pl.BlockSpec((None, S, c), lambda b: (b, 0, 0)),   # pos (batch-first)
            pl.BlockSpec((Nq, c), lambda b: (0, 0)),           # query_embed
            pl.BlockSpec(w_in.shape, lambda b: (0, 0)),        # weight slab (D rows)
            pl.BlockSpec(w_out.shape, lambda b: (0, 0)),       # weight slab (F rows)
            pl.BlockSpec(vecs.shape, lambda b: (0, 0)),        # LN/bias vectors
        ],
        out_specs=pl.BlockSpec((None, N_DEC, Nq * c), lambda b: (b, 0, 0)),
        compiler_params=pltpu.CompilerParams(
            dimension_semantics=("parallel",)),   # batch across TCs on v7x
    )(x0, pos_bf, query_embed, w_in, w_out, vecs)

    # (bs, N_DEC, Nq*d) -> (N_DEC, bs, Nq, d), matching the reference
    # hs.transpose(1, 2) output layout.
    return out_flat.reshape(bs, N_DEC, Nq, c).transpose(1, 0, 2, 3)


# ----------------------------- parameters ----------------------------------
def init_params(key):
    keys = iter(jax.random.split(key, 64))

    def nrm(shape, scale=0.05):
        return scale * jax.random.normal(next(keys), shape, jnp.float32)

    p = {}
    for stack, n in (("enc", N_ENC), ("dec", N_DEC)):
        p[f"{stack}_wq"] = nrm((n, D_MODEL, DIM_FF))    # MHA W_q (bias=False)
        p[f"{stack}_wk"] = nrm((n, D_MODEL, DIM_FF))
        p[f"{stack}_wv"] = nrm((n, D_MODEL, DIM_FF))
        p[f"{stack}_wo"] = nrm((n, DIM_FF, D_MODEL))
        p[f"{stack}_w1"] = nrm((n, D_MODEL, DIM_FF))    # FFN linear_1
        p[f"{stack}_b1"] = nrm((n, 1, DIM_FF))
        p[f"{stack}_w2"] = nrm((n, DIM_FF, D_MODEL))    # FFN linear_2
        p[f"{stack}_b2"] = nrm((n, 1, D_MODEL))
    p["enc_ln_g"] = 1.0 + nrm((N_ENC, 2, D_MODEL), 0.01)
    p["enc_ln_b"] = nrm((N_ENC, 2, D_MODEL), 0.01)
    p["dec_ln_g"] = 1.0 + nrm((N_DEC, 3, D_MODEL), 0.01)
    p["dec_ln_b"] = nrm((N_DEC, 3, D_MODEL), 0.01)
    p["enc_norm_g"] = 1.0 + nrm((1, D_MODEL), 0.01)
    p["enc_norm_b"] = nrm((1, D_MODEL), 0.01)
    p["dec_norm_g"] = 1.0 + nrm((1, D_MODEL), 0.01)
    p["dec_norm_b"] = nrm((1, D_MODEL), 0.01)
    return p


def pack_params(p):
    """One-time host-side packing into 3 lane-dense slabs (one DMA each).

    w_in  (D, NL*4F): per layer [Wq * 1/sqrt(HD) | Wk | Wv | W1]
    w_out (F, NL*2D): per layer [Wo | W2]
    vecs  (32, F):    one vector per row; D-wide vectors in cols [0:D), b1 in
                      cols [0:F). Row layout matches _transformer_kernel.
    """
    scale = 1.0 / math.sqrt(HEAD_DIM)
    w_in_blocks, w_out_blocks = [], []
    for stack, n in (("enc", N_ENC), ("dec", N_DEC)):
        for i in range(n):
            w_in_blocks.append(jnp.concatenate(
                [p[f"{stack}_wq"][i] * scale, p[f"{stack}_wk"][i],
                 p[f"{stack}_wv"][i], p[f"{stack}_w1"][i]], axis=1))
            w_out_blocks.append(jnp.concatenate(
                [p[f"{stack}_wo"][i], p[f"{stack}_w2"][i]], axis=1))
    w_in = jnp.concatenate(w_in_blocks, axis=1)        # (32, 1024)
    w_out = jnp.concatenate(w_out_blocks, axis=1)      # (64, 256)

    def pad_d(v):                                      # (1, D) -> (1, F)
        return jnp.pad(v, ((0, 0), (0, DIM_FF - v.shape[-1])))

    rows = []
    for i in range(N_ENC):
        rows += [pad_d(p["enc_ln_g"][i, 0:1]), pad_d(p["enc_ln_b"][i, 0:1]),
                 pad_d(p["enc_ln_g"][i, 1:2]), pad_d(p["enc_ln_b"][i, 1:2]),
                 pad_d(p["enc_b2"][i]), p["enc_b1"][i]]
    for i in range(N_DEC):
        rows += [pad_d(p["dec_ln_g"][i, 0:1]), pad_d(p["dec_ln_b"][i, 0:1]),
                 pad_d(p["dec_ln_g"][i, 1:2]), pad_d(p["dec_ln_b"][i, 1:2]),
                 pad_d(p["dec_ln_g"][i, 2:3]), pad_d(p["dec_ln_b"][i, 2:3]),
                 pad_d(p["dec_b2"][i]), p["dec_b1"][i]]
    rows += [pad_d(p["enc_norm_g"]), pad_d(p["enc_norm_b"]),
             pad_d(p["dec_norm_g"]), pad_d(p["dec_norm_b"])]
    vecs = jnp.concatenate(rows, axis=0)               # (32, 64)
    return {"w_in": w_in, "w_out": w_out, "vecs": vecs}


# -------------------------------- main --------------------------------------
if __name__ == "__main__":
    key = jax.random.PRNGKey(0)
    kp, ks, kq, kpe = jax.random.split(key, 4)
    params = pack_params(init_params(kp))   # one-time pack (folds 1/sqrt(hd) into Wq)

    bs, h, w, Nq = 2, 4, 4, 8
    src = jax.random.normal(ks, (bs, D_MODEL, h, w), jnp.float32)          # NCHW
    pos_embed = jax.random.normal(kpe, (bs, D_MODEL, h, w), jnp.float32)   # NCHW
    query_embed = jax.random.normal(kq, (Nq, D_MODEL), jnp.float32)
    mask = None                                                            # unused

    fwd = jax.jit(transformer_forward)
    out = fwd(params, src, mask, query_embed, pos_embed)
    out = jax.block_until_ready(out)

    assert out.shape == (N_DEC, bs, Nq, D_MODEL), out.shape
    assert bool(jnp.all(jnp.isfinite(out)))
    print("KERNEL_OK")
</pallas_src>

<mosaic_0001>
module attributes {stable_mosaic.version = 11 : i64} {
  func.func @_transformer_kernel(%arg0: i32, %arg1: memref<1x16x32xf32, #tpu.memory_space<vmem>>, %arg2: memref<1x16x32xf32, #tpu.memory_space<vmem>>, %arg3: memref<8x32xf32, #tpu.memory_space<vmem>>, %arg4: memref<32x1024xf32, #tpu.memory_space<vmem>>, %arg5: memref<64x256xf32, #tpu.memory_space<vmem>>, %arg6: memref<32x64xf32, #tpu.memory_space<vmem>>, %arg7: memref<1x2x256xf32, #tpu.memory_space<vmem>>) attributes {dimension_semantics = [#tpu.dimension_semantics<parallel>], iteration_bounds = array<i64: 2>, scalar_prefetch = 0 : i64, scratch_operands = 0 : i64, tpu.core_type = #tpu.core_type<tc>, window_params = [{transform_indices = @transform_0, window_bounds = array<i64: 1, 16, 32>}, {transform_indices = @transform_1, window_bounds = array<i64: 1, 16, 32>}, {pipeline_mode = #tpu.pipeline_mode<synchronous>, transform_indices = @transform_2, window_bounds = array<i64: 8, 32>}, {pipeline_mode = #tpu.pipeline_mode<synchronous>, transform_indices = @transform_3, window_bounds = array<i64: 32, 1024>}, {pipeline_mode = #tpu.pipeline_mode<synchronous>, transform_indices = @transform_4, window_bounds = array<i64: 64, 256>}, {pipeline_mode = #tpu.pipeline_mode<synchronous>, transform_indices = @transform_5, window_bounds = array<i64: 32, 64>}, {transform_indices = @transform_6, window_bounds = array<i64: 1, 2, 256>}]} {
    %c0 = arith.constant 0 : index
    %c0_0 = arith.constant 0 : index
    %c0_1 = arith.constant 0 : index
    %0 = vector.load %arg1[%c0, %c0_0, %c0_1] : memref<1x16x32xf32, #tpu.memory_space<vmem>>, vector<1x16x32xf32>
    %1 = vector.shape_cast %0 : vector<1x16x32xf32> to vector<16x32xf32>
    %c0_2 = arith.constant 0 : index
    %c0_3 = arith.constant 0 : index
    %2 = vector.load %arg4[%c0_2, %c0_3] : memref<32x1024xf32, #tpu.memory_space<vmem>>, vector<32x192xf32>
    %c0_4 = arith.constant 0 : index
    %c192 = arith.constant 192 : index
    %3 = vector.load %arg4[%c0_4, %c192] : memref<32x1024xf32, #tpu.memory_space<vmem>>, vector<32x64xf32>
    %c0_5 = arith.constant 0 : index
    %c0_6 = arith.constant 0 : index
    %4 = vector.load %arg5[%c0_5, %c0_6] : memref<64x256xf32, #tpu.memory_space<vmem>>, vector<64x32xf32>
    %c0_7 = arith.constant 0 : index
    %c32 = arith.constant 32 : index
    %5 = vector.load %arg5[%c0_7, %c32] : memref<64x256xf32, #tpu.memory_space<vmem>>, vector<64x32xf32>
    %c0_8 = arith.constant 0 : index
    %c0_9 = arith.constant 0 : index
    %6 = vector.load %arg6[%c0_8, %c0_9] : memref<32x64xf32, #tpu.memory_space<vmem>>, vector<1x32xf32>
    %c1 = arith.constant 1 : index
    %c0_10 = arith.constant 0 : index
    %7 = vector.load %arg6[%c1, %c0_10] : memref<32x64xf32, #tpu.memory_space<vmem>>, vector<1x32xf32>
    %cst = arith.constant dense<0.000000e+00> : vector<16xf32>
    %8 = vector.multi_reduction <add>, %1, %cst [1] : vector<16x32xf32> to vector<16xf32>
    %9 = vector.shape_cast %8 : vector<16xf32> to vector<16x1xf32>
    %cst_11 = arith.constant 3.200000e+01 : f32
    %10 = vector.broadcast %cst_11 : f32 to vector<16x1xf32>
    %11 = arith.divf %9, %10 : vector<16x1xf32>
    %12 = vector.broadcast %11 : vector<16x1xf32> to vector<16x32xf32>
    %13 = arith.subf %1, %12 : vector<16x32xf32>
    %14 = arith.mulf %13, %13 : vector<16x32xf32>
    %cst_12 = arith.constant dense<0.000000e+00> : vector<16xf32>
    %15 = vector.multi_reduction <add>, %14, %cst_12 [1] : vector<16x32xf32> to vector<16xf32>
    %16 = vector.shape_cast %15 : vector<16xf32> to vector<16x1xf32>
    %cst_13 = arith.constant 3.200000e+01 : f32
    %17 = vector.broadcast %cst_13 : f32 to vector<16x1xf32>
    %18 = arith.divf %16, %17 : vector<16x1xf32>
    %cst_14 = arith.constant 9.99999974E-6 : f32
    %19 = vector.broadcast %cst_14 : f32 to vector<16x1xf32>
    %20 = arith.addf %18, %19 : vector<16x1xf32>
    %21 = math.rsqrt %20 : vector<16x1xf32>
    %22 = vector.broadcast %21 : vector<16x1xf32> to vector<16x32xf32>
    %23 = arith.mulf %13, %22 : vector<16x32xf32>
    %24 = vector.broadcast %6 : vector<1x32xf32> to vector<16x32xf32>
    %25 = arith.mulf %23, %24 : vector<16x32xf32>
    %26 = vector.broadcast %7 : vector<1x32xf32> to vector<16x32xf32>
    %27 = arith.addf %25, %26 : vector<16x32xf32>
    %cst_15 = arith.constant dense<0.000000e+00> : vector<16x192xf32>
    %28 = tpu.matmul %27, %2, %cst_15 {dimension_numbers = #tpu.dot_dimension_numbers<[1], [0], [0], [1], [0, 0, 1, 1], [], []>} : vector<16x32xf32>, vector<32x192xf32>, vector<16x192xf32> -> vector<16x192xf32>
    %29 = vector.extract_strided_slice %28 {offsets = [0, 0], sizes = [16, 64], strides = [1, 1]} : vector<16x192xf32> to vector<16x64xf32>
    %30 = vector.extract_strided_slice %29 {offsets = [0, 0], sizes = [16, 16], strides = [1, 1]} : vector<16x64xf32> to vector<16x16xf32>
    %31 = vector.extract_strided_slice %29 {offsets = [0, 16], sizes = [16, 16], strides = [1, 1]} : vector<16x64xf32> to vector<16x16xf32>
    %32 = vector.extract_strided_slice %29 {offsets = [0, 32], sizes = [16, 16], strides = [1, 1]} : vector<16x64xf32> to vector<16x16xf32>
    %33 = vector.extract_strided_slice %29 {offsets = [0, 48], sizes = [16, 16], strides = [1, 1]} : vector<16x64xf32> to vector<16x16xf32>
    %34 = vector.shape_cast %30 : vector<16x16xf32> to vector<1x16x16xf32>
    %35 = vector.shape_cast %31 : vector<16x16xf32> to vector<1x16x16xf32>
    %36 = vector.shape_cast %32 : vector<16x16xf32> to vector<1x16x16xf32>
    %37 = vector.shape_cast %33 : vector<16x16xf32> to vector<1x16x16xf32>
    %38 = tpu.concatenate %34, %35, %36, %37 in 0 : vector<1x16x16xf32>, vector<1x16x16xf32>, vector<1x16x16xf32>, vector<1x16x16xf32> -> vector<4x16x16xf32>
    %39 = vector.extract_strided_slice %28 {offsets = [0, 64], sizes = [16, 64], strides = [1, 1]} : vector<16x192xf32> to vector<16x64xf32>
    %40 = vector.extract_strided_slice %39 {offsets = [0, 0], sizes = [16, 16], strides = [1, 1]} : vector<16x64xf32> to vector<16x16xf32>
    %41 = vector.extract_strided_slice %39 {offsets = [0, 16], sizes = [16, 16], strides = [1, 1]} : vector<16x64xf32> to vector<16x16xf32>
    %42 = vector.extract_strided_slice %39 {offsets = [0, 32], sizes = [16, 16], strides = [1, 1]} : vector<16x64xf32> to vector<16x16xf32>
    %43 = vector.extract_strided_slice %39 {offsets = [0, 48], sizes = [16, 16], strides = [1, 1]} : vector<16x64xf32> to vector<16x16xf32>
    %44 = vector.shape_cast %40 : vector<16x16xf32> to vector<1x16x16xf32>
    %45 = vector.shape_cast %41 : vector<16x16xf32> to vector<1x16x16xf32>
    %46 = vector.shape_cast %42 : vector<16x16xf32> to vector<1x16x16xf32>
    %47 = vector.shape_cast %43 : vector<16x16xf32> to vector<1x16x16xf32>
    %48 = tpu.concatenate %44, %45, %46, %47 in 0 : vector<1x16x16xf32>, vector<1x16x16xf32>, vector<1x16x16xf32>, vector<1x16x16xf32> -> vector<4x16x16xf32>
    %49 = vector.extract_strided_slice %28 {offsets = [0, 128], sizes = [16, 64], strides = [1, 1]} : vector<16x192xf32> to vector<16x64xf32>
    %50 = vector.extract_strided_slice %49 {offsets = [0, 0], sizes = [16, 16], strides = [1, 1]} : vector<16x64xf32> to vector<16x16xf32>
    %51 = vector.extract_strided_slice %49 {offsets = [0, 16], sizes = [16, 16], strides = [1, 1]} : vector<16x64xf32> to vector<16x16xf32>
    %52 = vector.extract_strided_slice %49 {offsets = [0, 32], sizes = [16, 16], strides = [1, 1]} : vector<16x64xf32> to vector<16x16xf32>
    %53 = vector.extract_strided_slice %49 {offsets = [0, 48], sizes = [16, 16], strides = [1, 1]} : vector<16x64xf32> to vector<16x16xf32>
    %54 = vector.shape_cast %50 : vector<16x16xf32> to vector<1x16x16xf32>
    %55 = vector.shape_cast %51 : vector<16x16xf32> to vector<1x16x16xf32>
    %56 = vector.shape_cast %52 : vector<16x16xf32> to vector<1x16x16xf32>
    %57 = vector.shape_cast %53 : vector<16x16xf32> to vector<1x16x16xf32>
    %58 = tpu.concatenate %54, %55, %56, %57 in 0 : vector<1x16x16xf32>, vector<1x16x16xf32>, vector<1x16x16xf32>, vector<1x16x16xf32> -> vector<4x16x16xf32>
    "tpu.trace_start"() <{level = 10 : i32, message = "hqc,hkc->hqk"}> : () -> ()
    %cst_16 = arith.constant dense<0.000000e+00> : vector<4x16x16xf32>
    %59 = tpu.matmul %38, %48, %cst_16 {dimension_numbers = #tpu.dot_dimension_numbers<[2], [2], [1], [1], [0, 0, 0, 1, 1, 1], [0], [0]>} : vector<4x16x16xf32>, vector<4x16x16xf32>, vector<4x16x16xf32> -> vector<4x16x16xf32>
    "tpu.trace_stop"() : () -> ()
    %cst_17 = arith.constant dense<0xFF800000> : vector<4x16xf32>
    %60 = vector.multi_reduction <maximumf>, %59, %cst_17 [2] : vector<4x16x16xf32> to vector<4x16xf32>
    %61 = vector.shape_cast %60 : vector<4x16xf32> to vector<4x16x1xf32>
    %62 = vector.broadcast %61 : vector<4x16x1xf32> to vector<4x16x16xf32>
    %63 = arith.subf %59, %62 : vector<4x16x16xf32>
    %64 = math.exp %63 : vector<4x16x16xf32>
    %cst_18 = arith.constant dense<0.000000e+00> : vector<4x16xf32>
    %65 = vector.multi_reduction <add>, %64, %cst_18 [2] : vector<4x16x16xf32> to vector<4x16xf32>
    %66 = vector.shape_cast %65 : vector<4x16xf32> to vector<4x16x1xf32>
    %67 = tpu.reciprocal %66 {approx = true} : vector<4x16x1xf32> -> vector<4x16x1xf32>
    %68 = vector.broadcast %67 : vector<4x16x1xf32> to vector<4x16x16xf32>
    %69 = arith.mulf %64, %68 : vector<4x16x16xf32>
    "tpu.trace_start"() <{level = 10 : i32, message = "hqk,hkc->hqc"}> : () -> ()
    %cst_19 = arith.constant dense<0.000000e+00> : vector<4x16x16xf32>
    %70 = tpu.matmul %69, %58, %cst_19 {dimension_numbers = #tpu.dot_dimension_numbers<[2], [1], [1], [2], [0, 0, 0, 1, 1, 2], [0], [0]>} : vector<4x16x16xf32>, vector<4x16x16xf32>, vector<4x16x16xf32> -> vector<4x16x16xf32>
    "tpu.trace_stop"() : () -> ()
    %71 = vector.shape_cast %4 : vector<64x32xf32> to vector<4x16x32xf32>
    "tpu.trace_start"() <{level = 10 : i32, message = "hqc,hcd->hqd"}> : () -> ()
    %cst_20 = arith.constant dense<0.000000e+00> : vector<4x16x32xf32>
    %72 = tpu.matmul %70, %71, %cst_20 {dimension_numbers = #tpu.dot_dimension_numbers<[2], [1], [1], [2], [0, 0, 0, 1, 1, 2], [0], [0]>} : vector<4x16x16xf32>, vector<4x16x32xf32>, vector<4x16x32xf32> -> vector<4x16x32xf32>
    "tpu.trace_stop"() : () -> ()
    %cst_21 = arith.constant dense<0.000000e+00> : vector<16x32xf32>
    %73 = vector.multi_reduction <add>, %72, %cst_21 [0] : vector<4x16x32xf32> to vector<16x32xf32>
    %74 = arith.addf %1, %73 : vector<16x32xf32>
    %c2 = arith.constant 2 : index
    %c0_22 = arith.constant 0 : index
    %75 = vector.load %arg6[%c2, %c0_22] : memref<32x64xf32, #tpu.memory_space<vmem>>, vector<1x32xf32>
    %c3 = arith.constant 3 : index
    %c0_23 = arith.constant 0 : index
    %76 = vector.load %arg6[%c3, %c0_23] : memref<32x64xf32, #tpu.memory_space<vmem>>, vector<1x32xf32>
    %cst_24 = arith.constant dense<0.000000e+00> : vector<16xf32>
    %77 = vector.multi_reduction <add>, %74, %cst_24 [1] : vector<16x32xf32> to vector<16xf32>
    %78 = vector.shape_cast %77 : vector<16xf32> to vector<16x1xf32>
    %cst_25 = arith.constant 3.200000e+01 : f32
    %79 = vector.broadcast %cst_25 : f32 to vector<16x1xf32>
    %80 = arith.divf %78, %79 : vector<16x1xf32>
    %81 = vector.broadcast %80 : vector<16x1xf32> to vector<16x32xf32>
    %82 = arith.subf %74, %81 : vector<16x32xf32>
    %83 = arith.mulf %82, %82 : vector<16x32xf32>
    %cst_26 = arith.constant dense<0.000000e+00> : vector<16xf32>
    %84 = vector.multi_reduction <add>, %83, %cst_26 [1] : vector<16x32xf32> to vector<16xf32>
    %85 = vector.shape_cast %84 : vector<16xf32> to vector<16x1xf32>
    %cst_27 = arith.constant 3.200000e+01 : f32
    %86 = vector.broadcast %cst_27 : f32 to vector<16x1xf32>
    %87 = arith.divf %85, %86 : vector<16x1xf32>
    %cst_28 = arith.constant 9.99999974E-6 : f32
    %88 = vector.broadcast %cst_28 : f32 to vector<16x1xf32>
    %89 = arith.addf %87, %88 : vector<16x1xf32>
    %90 = math.rsqrt %89 : vector<16x1xf32>
    %91 = vector.broadcast %90 : vector<16x1xf32> to vector<16x32xf32>
    %92 = arith.mulf %82, %91 : vector<16x32xf32>
    %93 = vector.broadcast %75 : vector<1x32xf32> to vector<16x32xf32>
    %94 = arith.mulf %92, %93 : vector<16x32xf32>
    %95 = vector.broadcast %76 : vector<1x32xf32> to vector<16x32xf32>
    %96 = arith.addf %94, %95 : vector<16x32xf32>
    %cst_29 = arith.constant dense<0.000000e+00> : vector<16x64xf32>
    %97 = tpu.matmul %96, %3, %cst_29 {dimension_numbers = #tpu.dot_dimension_numbers<[1], [0], [0], [1], [0, 0, 1, 1], [], []>} : vector<16x32xf32>, vector<32x64xf32>, vector<16x64xf32> -> vector<16x64xf32>
    %c5 = arith.constant 5 : index
    %c0_30 = arith.constant 0 : index
    %98 = vector.load %arg6[%c5, %c0_30] : memref<32x64xf32, #tpu.memory_space<vmem>>, vector<1x64xf32>
    %99 = vector.broadcast %98 : vector<1x64xf32> to vector<16x64xf32>
    %100 = arith.addf %97, %99 : vector<16x64xf32>
    %cst_31 = arith.constant 0.000000e+00 : f32
    %101 = vector.broadcast %cst_31 : f32 to vector<16x64xf32>
    %102 = arith.maximumf %100, %101 : vector<16x64xf32>
    %cst_32 = arith.constant dense<0.000000e+00> : vector<16x32xf32>
    %103 = tpu.matmul %102, %5, %cst_32 {dimension_numbers = #tpu.dot_dimension_numbers<[1], [0], [0], [1], [0, 0, 1, 1], [], []>} : vector<16x64xf32>, vector<64x32xf32>, vector<16x32xf32> -> vector<16x32xf32>
    %104 = arith.addf %74, %103 : vector<16x32xf32>
    %c4 = arith.constant 4 : index
    %c0_33 = arith.constant 0 : index
    %105 = vector.load %arg6[%c4, %c0_33] : memref<32x64xf32, #tpu.memory_space<vmem>>, vector<1x32xf32>
    %106 = vector.broadcast %105 : vector<1x32xf32> to vector<16x32xf32>
    %107 = arith.addf %104, %106 : vector<16x32xf32>
    %c0_34 = arith.constant 0 : index
    %c256 = arith.constant 256 : index
    %108 = vector.load %arg4[%c0_34, %c256] : memref<32x1024xf32, #tpu.memory_space<vmem>>, vector<32x192xf32>
    %c0_35 = arith.constant 0 : index
    %c448 = arith.constant 448 : index
    %109 = vector.load %arg4[%c0_35, %c448] : memref<32x1024xf32, #tpu.memory_space<vmem>>, vector<32x64xf32>
    %c0_36 = arith.constant 0 : index
    %c64 = arith.constant 64 : index
    %110 = vector.load %arg5[%c0_36, %c64] : memref<64x256xf32, #tpu.memory_space<vmem>>, vector<64x32xf32>
    %c0_37 = arith.constant 0 : index
    %c96 = arith.constant 96 : index
    %111 = vector.load %arg5[%c0_37, %c96] : memref<64x256xf32, #tpu.memory_space<vmem>>, vector<64x32xf32>
    %c6 = arith.constant 6 : index
    %c0_38 = arith.constant 0 : index
    %112 = vector.load %arg6[%c6, %c0_38] : memref<32x64xf32, #tpu.memory_space<vmem>>, vector<1x32xf32>
    %c7 = arith.constant 7 : index
    %c0_39 = arith.constant 0 : index
    %113 = vector.load %arg6[%c7, %c0_39] : memref<32x64xf32, #tpu.memory_space<vmem>>, vector<1x32xf32>
    %cst_40 = arith.constant dense<0.000000e+00> : vector<16xf32>
    %114 = vector.multi_reduction <add>, %107, %cst_40 [1] : vector<16x32xf32> to vector<16xf32>
    %115 = vector.shape_cast %114 : vector<16xf32> to vector<16x1xf32>
    %cst_41 = arith.constant 3.200000e+01 : f32
    %116 = vector.broadcast %cst_41 : f32 to vector<16x1xf32>
    %117 = arith.divf %115, %116 : vector<16x1xf32>
    %118 = vector.broadcast %117 : vector<16x1xf32> to vector<16x32xf32>
    %119 = arith.subf %107, %118 : vector<16x32xf32>
    %120 = arith.mulf %119, %119 : vector<16x32xf32>
    %cst_42 = arith.constant dense<0.000000e+00> : vector<16xf32>
    %121 = vector.multi_reduction <add>, %120, %cst_42 [1] : vector<16x32xf32> to vector<16xf32>
    %122 = vector.shape_cast %121 : vector<16xf32> to vector<16x1xf32>
    %cst_43 = arith.constant 3.200000e+01 : f32
    %123 = vector.broadcast %cst_43 : f32 to vector<16x1xf32>
    %124 = arith.divf %122, %123 : vector<16x1xf32>
    %cst_44 = arith.constant 9.99999974E-6 : f32
    %125 = vector.broadcast %cst_44 : f32 to vector<16x1xf32>
    %126 = arith.addf %124, %125 : vector<16x1xf32>
    %127 = math.rsqrt %126 : vector<16x1xf32>
    %128 = vector.broadcast %127 : vector<16x1xf32> to vector<16x32xf32>
    %129 = arith.mulf %119, %128 : vector<16x32xf32>
    %130 = vector.broadcast %112 : vector<1x32xf32> to vector<16x32xf32>
    %131 = arith.mulf %129, %130 : vector<16x32xf32>
    %132 = vector.broadcast %113 : vector<1x32xf32> to vector<16x32xf32>
    %133 = arith.addf %131, %132 : vector<16x32xf32>
    %cst_45 = arith.constant dense<0.000000e+00> : vector<16x192xf32>
    %134 = tpu.matmul %133, %108, %cst_45 {dimension_numbers = #tpu.dot_dimension_numbers<[1], [0], [0], [1], [0, 0, 1, 1], [], []>} : vector<16x32xf32>, vector<32x192xf32>, vector<16x192xf32> -> vector<16x192xf32>
    %135 = vector.extract_strided_slice %134 {offsets = [0, 0], sizes = [16, 64], strides = [1, 1]} : vector<16x192xf32> to vector<16x64xf32>
    %136 = vector.extract_strided_slice %135 {offsets = [0, 0], sizes = [16, 16], strides = [1, 1]} : vector<16x64xf32> to vector<16x16xf32>
    %137 = vector.extract_strided_slice %135 {offsets = [0, 16], sizes = [16, 16], strides = [1, 1]} : vector<16x64xf32> to vector<16x16xf32>
    %138 = vector.extract_strided_slice %135 {offsets = [0, 32], sizes = [16, 16], strides = [1, 1]} : vector<16x64xf32> to vector<16x16xf32>
    %139 = vector.extract_strided_slice %135 {offsets = [0, 48], sizes = [16, 16], strides = [1, 1]} : vector<16x64xf32> to vector<16x16xf32>
    %140 = vector.shape_cast %136 : vector<16x16xf32> to vector<1x16x16xf32>
    %141 = vector.shape_cast %137 : vector<16x16xf32> to vector<1x16x16xf32>
    %142 = vector.shape_cast %138 : vector<16x16xf32> to vector<1x16x16xf32>
    %143 = vector.shape_cast %139 : vector<16x16xf32> to vector<1x16x16xf32>
    %144 = tpu.concatenate %140, %141, %142, %143 in 0 : vector<1x16x16xf32>, vector<1x16x16xf32>, vector<1x16x16xf32>, vector<1x16x16xf32> -> vector<4x16x16xf32>
    %145 = vector.extract_strided_slice %134 {offsets = [0, 64], sizes = [16, 64], strides = [1, 1]} : vector<16x192xf32> to vector<16x64xf32>
    %146 = vector.extract_strided_slice %145 {offsets = [0, 0], sizes = [16, 16], strides = [1, 1]} : vector<16x64xf32> to vector<16x16xf32>
    %147 = vector.extract_strided_slice %145 {offsets = [0, 16], sizes = [16, 16], strides = [1, 1]} : vector<16x64xf32> to vector<16x16xf32>
    %148 = vector.extract_strided_slice %145 {offsets = [0, 32], sizes = [16, 16], strides = [1, 1]} : vector<16x64xf32> to vector<16x16xf32>
    %149 = vector.extract_strided_slice %145 {offsets = [0, 48], sizes = [16, 16], strides = [1, 1]} : vector<16x64xf32> to vector<16x16xf32>
    %150 = vector.shape_cast %146 : vector<16x16xf32> to vector<1x16x16xf32>
    %151 = vector.shape_cast %147 : vector<16x16xf32> to vector<1x16x16xf32>
    %152 = vector.shape_cast %148 : vector<16x16xf32> to vector<1x16x16xf32>
    %153 = vector.shape_cast %149 : vector<16x16xf32> to vector<1x16x16xf32>
    %154 = tpu.concatenate %150, %151, %152, %153 in 0 : vector<1x16x16xf32>, vector<1x16x16xf32>, vector<1x16x16xf32>, vector<1x16x16xf32> -> vector<4x16x16xf32>
    %155 = vector.extract_strided_slice %134 {offsets = [0, 128], sizes = [16, 64], strides = [1, 1]} : vector<16x192xf32> to vector<16x64xf32>
    %156 = vector.extract_strided_slice %155 {offsets = [0, 0], sizes = [16, 16], strides = [1, 1]} : vector<16x64xf32> to vector<16x16xf32>
    %157 = vector.extract_strided_slice %155 {offsets = [0, 16], sizes = [16, 16], strides = [1, 1]} : vector<16x64xf32> to vector<16x16xf32>
    %158 = vector.extract_strided_slice %155 {offsets = [0, 32], sizes = [16, 16], strides = [1, 1]} : vector<16x64xf32> to vector<16x16xf32>
    %159 = vector.extract_strided_slice %155 {offsets = [0, 48], sizes = [16, 16], strides = [1, 1]} : vector<16x64xf32> to vector<16x16xf32>
    %160 = vector.shape_cast %156 : vector<16x16xf32> to vector<1x16x16xf32>
    %161 = vector.shape_cast %157 : vector<16x16xf32> to vector<1x16x16xf32>
    %162 = vector.shape_cast %158 : vector<16x16xf32> to vector<1x16x16xf32>
    %163 = vector.shape_cast %159 : vector<16x16xf32> to vector<1x16x16xf32>
    %164 = tpu.concatenate %160, %161, %162, %163 in 0 : vector<1x16x16xf32>, vector<1x16x16xf32>, vector<1x16x16xf32>, vector<1x16x16xf32> -> vector<4x16x16xf32>
    "tpu.trace_start"() <{level = 10 : i32, message = "hqc,hkc->hqk"}> : () -> ()
    %cst_46 = arith.constant dense<0.000000e+00> : vector<4x16x16xf32>
    %165 = tpu.matmul %144, %154, %cst_46 {dimension_numbers = #tpu.dot_dimension_numbers<[2], [2], [1], [1], [0, 0, 0, 1, 1, 1], [0], [0]>} : vector<4x16x16xf32>, vector<4x16x16xf32>, vector<4x16x16xf32> -> vector<4x16x16xf32>
    "tpu.trace_stop"() : () -> ()
    %cst_47 = arith.constant dense<0xFF800000> : vector<4x16xf32>
    %166 = vector.multi_reduction <maximumf>, %165, %cst_47 [2] : vector<4x16x16xf32> to vector<4x16xf32>
    %167 = vector.shape_cast %166 : vector<4x16xf32> to vector<4x16x1xf32>
    %168 = vector.broadcast %167 : vector<4x16x1xf32> to vector<4x16x16xf32>
    %169 = arith.subf %165, %168 : vector<4x16x16xf32>
    %170 = math.exp %169 : vector<4x16x16xf32>
    %cst_48 = arith.constant dense<0.000000e+00> : vector<4x16xf32>
    %171 = vector.multi_reduction <add>, %170, %cst_48 [2] : vector<4x16x16xf32> to vector<4x16xf32>
    %172 = vector.shape_cast %171 : vector<4x16xf32> to vector<4x16x1xf32>
    %173 = tpu.reciprocal %172 {approx = true} : vector<4x16x1xf32> -> vector<4x16x1xf32>
    %174 = vector.broadcast %173 : vector<4x16x1xf32> to vector<4x16x16xf32>
    %175 = arith.mulf %170, %174 : vector<4x16x16xf32>
    "tpu.trace_start"() <{level = 10 : i32, message = "hqk,hkc->hqc"}> : () -> ()
    %cst_49 = arith.constant dense<0.000000e+00> : vector<4x16x16xf32>
    %176 = tpu.matmul %175, %164, %cst_49 {dimension_numbers = #tpu.dot_dimension_numbers<[2], [1], [1], [2], [0, 0, 0, 1, 1, 2], [0], [0]>} : vector<4x16x16xf32>, vector<4x16x16xf32>, vector<4x16x16xf32> -> vector<4x16x16xf32>
    "tpu.trace_stop"() : () -> ()
    %177 = vector.shape_cast %110 : vector<64x32xf32> to vector<4x16x32xf32>
    "tpu.trace_start"() <{level = 10 : i32, message = "hqc,hcd->hqd"}> : () -> ()
    %cst_50 = arith.constant dense<0.000000e+00> : vector<4x16x32xf32>
    %178 = tpu.matmul %176, %177, %cst_50 {dimension_numbers = #tpu.dot_dimension_numbers<[2], [1], [1], [2], [0, 0, 0, 1, 1, 2], [0], [0]>} : vector<4x16x16xf32>, vector<4x16x32xf32>, vector<4x16x32xf32> -> vector<4x16x32xf32>
    "tpu.trace_stop"() : () -> ()
    %cst_51 = arith.constant dense<0.000000e+00> : vector<16x32xf32>
    %179 = vector.multi_reduction <add>, %178, %cst_51 [0] : vector<4x16x32xf32> to vector<16x32xf32>
    %180 = arith.addf %107, %179 : vector<16x32xf32>
    %c8 = arith.constant 8 : index
    %c0_52 = arith.constant 0 : index
    %181 = vector.load %arg6[%c8, %c0_52] : memref<32x64xf32, #tpu.memory_space<vmem>>, vector<1x32xf32>
    %c9 = arith.constant 9 : index
    %c0_53 = arith.constant 0 : index
    %182 = vector.load %arg6[%c9, %c0_53] : memref<32x64xf32, #tpu.memory_space<vmem>>, vector<1x32xf32>
    %cst_54 = arith.constant dense<0.000000e+00> : vector<16xf32>
    %183 = vector.multi_reduction <add>, %180, %cst_54 [1] : vector<16x32xf32> to vector<16xf32>
    %184 = vector.shape_cast %183 : vector<16xf32> to vector<16x1xf32>
    %cst_55 = arith.constant 3.200000e+01 : f32
    %185 = vector.broadcast %cst_55 : f32 to vector<16x1xf32>
    %186 = arith.divf %184, %185 : vector<16x1xf32>
    %187 = vector.broadcast %186 : vector<16x1xf32> to vector<16x32xf32>
    %188 = arith.subf %180, %187 : vector<16x32xf32>
    %189 = arith.mulf %188, %188 : vector<16x32xf32>
    %cst_56 = arith.constant dense<0.000000e+00> : vector<16xf32>
    %190 = vector.multi_reduction <add>, %189, %cst_56 [1] : vector<16x32xf32> to vector<16xf32>
    %191 = vector.shape_cast %190 : vector<16xf32> to vector<16x1xf32>
    %cst_57 = arith.constant 3.200000e+01 : f32
    %192 = vector.broadcast %cst_57 : f32 to vector<16x1xf32>
    %193 = arith.divf %191, %192 : vector<16x1xf32>
    %cst_58 = arith.constant 9.99999974E-6 : f32
    %194 = vector.broadcast %cst_58 : f32 to vector<16x1xf32>
    %195 = arith.addf %193, %194 : vector<16x1xf32>
    %196 = math.rsqrt %195 : vector<16x1xf32>
    %197 = vector.broadcast %196 : vector<16x1xf32> to vector<16x32xf32>
    %198 = arith.mulf %188, %197 : vector<16x32xf32>
    %199 = vector.broadcast %181 : vector<1x32xf32> to vector<16x32xf32>
    %200 = arith.mulf %198, %199 : vector<16x32xf32>
    %201 = vector.broadcast %182 : vector<1x32xf32> to vector<16x32xf32>
    %202 = arith.addf %200, %201 : vector<16x32xf32>
    %cst_59 = arith.constant dense<0.000000e+00> : vector<16x64xf32>
    %203 = tpu.matmul %202, %109, %cst_59 {dimension_numbers = #tpu.dot_dimension_numbers<[1], [0], [0], [1], [0, 0, 1, 1], [], []>} : vector<16x32xf32>, vector<32x64xf32>, vector<16x64xf32> -> vector<16x64xf32>
    %c11 = arith.constant 11 : index
    %c0_60 = arith.constant 0 : index
    %204 = vector.load %arg6[%c11, %c0_60] : memref<32x64xf32, #tpu.memory_space<vmem>>, vector<1x64xf32>
    %205 = vector.broadcast %204 : vector<1x64xf32> to vector<16x64xf32>
    %206 = arith.addf %203, %205 : vector<16x64xf32>
    %cst_61 = arith.constant 0.000000e+00 : f32
    %207 = vector.broadcast %cst_61 : f32 to vector<16x64xf32>
    %208 = arith.maximumf %206, %207 : vector<16x64xf32>
    %cst_62 = arith.constant dense<0.000000e+00> : vector<16x32xf32>
    %209 = tpu.matmul %208, %111, %cst_62 {dimension_numbers = #tpu.dot_dimension_numbers<[1], [0], [0], [1], [0, 0, 1, 1], [], []>} : vector<16x64xf32>, vector<64x32xf32>, vector<16x32xf32> -> vector<16x32xf32>
    %210 = arith.addf %180, %209 : vector<16x32xf32>
    %c10 = arith.constant 10 : index
    %c0_63 = arith.constant 0 : index
    %211 = vector.load %arg6[%c10, %c0_63] : memref<32x64xf32, #tpu.memory_space<vmem>>, vector<1x32xf32>
    %212 = vector.broadcast %211 : vector<1x32xf32> to vector<16x32xf32>
    %213 = arith.addf %210, %212 : vector<16x32xf32>
    %c28 = arith.constant 28 : index
    %c0_64 = arith.constant 0 : index
    %214 = vector.load %arg6[%c28, %c0_64] : memref<32x64xf32, #tpu.memory_space<vmem>>, vector<1x32xf32>
    %c29 = arith.constant 29 : index
    %c0_65 = arith.constant 0 : index
    %215 = vector.load %arg6[%c29, %c0_65] : memref<32x64xf32, #tpu.memory_space<vmem>>, vector<1x32xf32>
    %cst_66 = arith.constant dense<0.000000e+00> : vector<16xf32>
    %216 = vector.multi_reduction <add>, %213, %cst_66 [1] : vector<16x32xf32> to vector<16xf32>
    %217 = vector.shape_cast %216 : vector<16xf32> to vector<16x1xf32>
    %cst_67 = arith.constant 3.200000e+01 : f32
    %218 = vector.broadcast %cst_67 : f32 to vector<16x1xf32>
    %219 = arith.divf %217, %218 : vector<16x1xf32>
    %220 = vector.broadcast %219 : vector<16x1xf32> to vector<16x32xf32>
    %221 = arith.subf %213, %220 : vector<16x32xf32>
    %222 = arith.mulf %221, %221 : vector<16x32xf32>
    %cst_68 = arith.constant dense<0.000000e+00> : vector<16xf32>
    %223 = vector.multi_reduction <add>, %222, %cst_68 [1] : vector<16x32xf32> to vector<16xf32>
    %224 = vector.shape_cast %223 : vector<16xf32> to vector<16x1xf32>
    %cst_69 = arith.constant 3.200000e+01 : f32
    %225 = vector.broadcast %cst_69 : f32 to vector<16x1xf32>
    %226 = arith.divf %224, %225 : vector<16x1xf32>
    %cst_70 = arith.constant 9.99999974E-6 : f32
    %227 = vector.broadcast %cst_70 : f32 to vector<16x1xf32>
    %228 = arith.addf %226, %227 : vector<16x1xf32>
    %229 = math.rsqrt %228 : vector<16x1xf32>
    %230 = vector.broadcast %229 : vector<16x1xf32> to vector<16x32xf32>
    %231 = arith.mulf %221, %230 : vector<16x32xf32>
    %232 = vector.broadcast %214 : vector<1x32xf32> to vector<16x32xf32>
    %233 = arith.mulf %231, %232 : vector<16x32xf32>
    %234 = vector.broadcast %215 : vector<1x32xf32> to vector<16x32xf32>
    %235 = arith.addf %233, %234 : vector<16x32xf32>
    %c0_71 = arith.constant 0 : index
    %c0_72 = arith.constant 0 : index
    %c0_73 = arith.constant 0 : index
    %236 = vector.load %arg2[%c0_71, %c0_72, %c0_73] : memref<1x16x32xf32, #tpu.memory_space<vmem>>, vector<1x16x32xf32>
    %237 = vector.shape_cast %236 : vector<1x16x32xf32> to vector<16x32xf32>
    %238 = arith.addf %235, %237 : vector<16x32xf32>
    %c0_74 = arith.constant 0 : index
    %c0_75 = arith.constant 0 : index
    %239 = vector.load %arg3[%c0_74, %c0_75] : memref<8x32xf32, #tpu.memory_space<vmem>>, vector<8x32xf32>
    %cst_76 = arith.constant 0.000000e+00 : f32
    %240 = vector.broadcast %cst_76 : f32 to vector<8x32xf32>
    %c0_77 = arith.constant 0 : index
    %c512 = arith.constant 512 : index
    %241 = vector.load %arg4[%c0_77, %c512] : memref<32x1024xf32, #tpu.memory_space<vmem>>, vector<32x192xf32>
    %c0_78 = arith.constant 0 : index
    %c704 = arith.constant 704 : index
    %242 = vector.load %arg4[%c0_78, %c704] : memref<32x1024xf32, #tpu.memory_space<vmem>>, vector<32x64xf32>
    %c0_79 = arith.constant 0 : index
    %c128 = arith.constant 128 : index
    %243 = vector.load %arg5[%c0_79, %c128] : memref<64x256xf32, #tpu.memory_space<vmem>>, vector<64x32xf32>
    %c0_80 = arith.constant 0 : index
    %c160 = arith.constant 160 : index
    %244 = vector.load %arg5[%c0_80, %c160] : memref<64x256xf32, #tpu.memory_space<vmem>>, vector<64x32xf32>
    %245 = vector.extract_strided_slice %241 {offsets = [0, 0], sizes = [32, 64], strides = [1, 1]} : vector<32x192xf32> to vector<32x64xf32>
    %246 = vector.extract_strided_slice %241 {offsets = [0, 64], sizes = [32, 64], strides = [1, 1]} : vector<32x192xf32> to vector<32x64xf32>
    %247 = vector.extract_strided_slice %241 {offsets = [0, 128], sizes = [32, 64], strides = [1, 1]} : vector<32x192xf32> to vector<32x64xf32>
    %248 = arith.addf %240, %239 : vector<8x32xf32>
    %cst_81 = arith.constant dense<0.000000e+00> : vector<8x64xf32>
    %249 = tpu.matmul %248, %245, %cst_81 {dimension_numbers = #tpu.dot_dimension_numbers<[1], [0], [0], [1], [0, 0, 1, 1], [], []>} : vector<8x32xf32>, vector<32x64xf32>, vector<8x64xf32> -> vector<8x64xf32>
    %250 = vector.extract_strided_slice %249 {offsets = [0, 0], sizes = [8, 16], strides = [1, 1]} : vector<8x64xf32> to vector<8x16xf32>
    %251 = vector.extract_strided_slice %249 {offsets = [0, 16], sizes = [8, 16], strides = [1, 1]} : vector<8x64xf32> to vector<8x16xf32>
    %252 = vector.extract_strided_slice %249 {offsets = [0, 32], sizes = [8, 16], strides = [1, 1]} : vector<8x64xf32> to vector<8x16xf32>
    %253 = vector.extract_strided_slice %249 {offsets = [0, 48], sizes = [8, 16], strides = [1, 1]} : vector<8x64xf32> to vector<8x16xf32>
    %254 = vector.shape_cast %250 : vector<8x16xf32> to vector<1x8x16xf32>
    %255 = vector.shape_cast %251 : vector<8x16xf32> to vector<1x8x16xf32>
    %256 = vector.shape_cast %252 : vector<8x16xf32> to vector<1x8x16xf32>
    %257 = vector.shape_cast %253 : vector<8x16xf32> to vector<1x8x16xf32>
    %258 = tpu.concatenate %254, %255, %256, %257 in 0 : vector<1x8x16xf32>, vector<1x8x16xf32>, vector<1x8x16xf32>, vector<1x8x16xf32> -> vector<4x8x16xf32>
    %cst_82 = arith.constant dense<0.000000e+00> : vector<8x64xf32>
    %259 = tpu.matmul %248, %246, %cst_82 {dimension_numbers = #tpu.dot_dimension_numbers<[1], [0], [0], [1], [0, 0, 1, 1], [], []>} : vector<8x32xf32>, vector<32x64xf32>, vector<8x64xf32> -> vector<8x64xf32>
    %260 = vector.extract_strided_slice %259 {offsets = [0, 0], sizes = [8, 16], strides = [1, 1]} : vector<8x64xf32> to vector<8x16xf32>
    %261 = vector.extract_strided_slice %259 {offsets = [0, 16], sizes = [8, 16], strides = [1, 1]} : vector<8x64xf32> to vector<8x16xf32>
    %262 = vector.extract_strided_slice %259 {offsets = [0, 32], sizes = [8, 16], strides = [1, 1]} : vector<8x64xf32> to vector<8x16xf32>
    %263 = vector.extract_strided_slice %259 {offsets = [0, 48], sizes = [8, 16], strides = [1, 1]} : vector<8x64xf32> to vector<8x16xf32>
    %264 = vector.shape_cast %260 : vector<8x16xf32> to vector<1x8x16xf32>
    %265 = vector.shape_cast %261 : vector<8x16xf32> to vector<1x8x16xf32>
    %266 = vector.shape_cast %262 : vector<8x16xf32> to vector<1x8x16xf32>
    %267 = vector.shape_cast %263 : vector<8x16xf32> to vector<1x8x16xf32>
    %268 = tpu.concatenate %264, %265, %266, %267 in 0 : vector<1x8x16xf32>, vector<1x8x16xf32>, vector<1x8x16xf32>, vector<1x8x16xf32> -> vector<4x8x16xf32>
    %cst_83 = arith.constant dense<0.000000e+00> : vector<8x64xf32>
    %269 = tpu.matmul %240, %247, %cst_83 {dimension_numbers = #tpu.dot_dimension_numbers<[1], [0], [0], [1], [0, 0, 1, 1], [], []>} : vector<8x32xf32>, vector<32x64xf32>, vector<8x64xf32> -> vector<8x64xf32>
    %270 = vector.extract_strided_slice %269 {offsets = [0, 0], sizes = [8, 16], strides = [1, 1]} : vector<8x64xf32> to vector<8x16xf32>
    %271 = vector.extract_strided_slice %269 {offsets = [0, 16], sizes = [8, 16], strides = [1, 1]} : vector<8x64xf32> to vector<8x16xf32>
    %272 = vector.extract_strided_slice %269 {offsets = [0, 32], sizes = [8, 16], strides = [1, 1]} : vector<8x64xf32> to vector<8x16xf32>
    %273 = vector.extract_strided_slice %269 {offsets = [0, 48], sizes = [8, 16], strides = [1, 1]} : vector<8x64xf32> to vector<8x16xf32>
    %274 = vector.shape_cast %270 : vector<8x16xf32> to vector<1x8x16xf32>
    %275 = vector.shape_cast %271 : vector<8x16xf32> to vector<1x8x16xf32>
    %276 = vector.shape_cast %272 : vector<8x16xf32> to vector<1x8x16xf32>
    %277 = vector.shape_cast %273 : vector<8x16xf32> to vector<1x8x16xf32>
    %278 = tpu.concatenate %274, %275, %276, %277 in 0 : vector<1x8x16xf32>, vector<1x8x16xf32>, vector<1x8x16xf32>, vector<1x8x16xf32> -> vector<4x8x16xf32>
    "tpu.trace_start"() <{level = 10 : i32, message = "hqc,hkc->hqk"}> : () -> ()
    %cst_84 = arith.constant dense<0.000000e+00> : vector<4x8x8xf32>
    %279 = tpu.matmul %258, %268, %cst_84 {dimension_numbers = #tpu.dot_dimension_numbers<[2], [2], [1], [1], [0, 0, 0, 1, 1, 1], [0], [0]>} : vector<4x8x16xf32>, vector<4x8x16xf32>, vector<4x8x8xf32> -> vector<4x8x8xf32>
    "tpu.trace_stop"() : () -> ()
    %cst_85 = arith.constant dense<0xFF800000> : vector<4x8xf32>
    %280 = vector.multi_reduction <maximumf>, %279, %cst_85 [2] : vector<4x8x8xf32> to vector<4x8xf32>
    %281 = vector.shape_cast %280 : vector<4x8xf32> to vector<4x8x1xf32>
    %282 = vector.broadcast %281 : vector<4x8x1xf32> to vector<4x8x8xf32>
    %283 = arith.subf %279, %282 : vector<4x8x8xf32>
    %284 = math.exp %283 : vector<4x8x8xf32>
    %cst_86 = arith.constant dense<0.000000e+00> : vector<4x8xf32>
    %285 = vector.multi_reduction <add>, %284, %cst_86 [2] : vector<4x8x8xf32> to vector<4x8xf32>
    %286 = vector.shape_cast %285 : vector<4x8xf32> to vector<4x8x1xf32>
    %287 = tpu.reciprocal %286 {approx = true} : vector<4x8x1xf32> -> vector<4x8x1xf32>
    %288 = vector.broadcast %287 : vector<4x8x1xf32> to vector<4x8x8xf32>
    %289 = arith.mulf %284, %288 : vector<4x8x8xf32>
    "tpu.trace_start"() <{level = 10 : i32, message = "hqk,hkc->hqc"}> : () -> ()
    %cst_87 = arith.constant dense<0.000000e+00> : vector<4x8x16xf32>
    %290 = tpu.matmul %289, %278, %cst_87 {dimension_numbers = #tpu.dot_dimension_numbers<[2], [1], [1], [2], [0, 0, 0, 1, 1, 2], [0], [0]>} : vector<4x8x8xf32>, vector<4x8x16xf32>, vector<4x8x16xf32> -> vector<4x8x16xf32>
    "tpu.trace_stop"() : () -> ()
    %291 = vector.shape_cast %243 : vector<64x32xf32> to vector<4x16x32xf32>
    "tpu.trace_start"() <{level = 10 : i32, message = "hqc,hcd->hqd"}> : () -> ()
    %cst_88 = arith.constant dense<0.000000e+00> : vector<4x8x32xf32>
    %292 = tpu.matmul %290, %291, %cst_88 {dimension_numbers = #tpu.dot_dimension_numbers<[2], [1], [1], [2], [0, 0, 0, 1, 1, 2], [0], [0]>} : vector<4x8x16xf32>, vector<4x16x32xf32>, vector<4x8x32xf32> -> vector<4x8x32xf32>
    "tpu.trace_stop"() : () -> ()
    %cst_89 = arith.constant dense<0.000000e+00> : vector<8x32xf32>
    %293 = vector.multi_reduction <add>, %292, %cst_89 [0] : vector<4x8x32xf32> to vector<8x32xf32>
    %294 = arith.addf %240, %293 : vector<8x32xf32>
    %c12 = arith.constant 12 : index
    %c0_90 = arith.constant 0 : index
    %295 = vector.load %arg6[%c12, %c0_90] : memref<32x64xf32, #tpu.memory_space<vmem>>, vector<1x32xf32>
    %c13 = arith.constant 13 : index
    %c0_91 = arith.constant 0 : index
    %296 = vector.load %arg6[%c13, %c0_91] : memref<32x64xf32, #tpu.memory_space<vmem>>, vector<1x32xf32>
    %cst_92 = arith.constant dense<0.000000e+00> : vector<8xf32>
    %297 = vector.multi_reduction <add>, %294, %cst_92 [1] : vector<8x32xf32> to vector<8xf32>
    %298 = vector.shape_cast %297 : vector<8xf32> to vector<8x1xf32>
    %cst_93 = arith.constant 3.200000e+01 : f32
    %299 = vector.broadcast %cst_93 : f32 to vector<8x1xf32>
    %300 = arith.divf %298, %299 : vector<8x1xf32>
    %301 = vector.broadcast %300 : vector<8x1xf32> to vector<8x32xf32>
    %302 = arith.subf %294, %301 : vector<8x32xf32>
    %303 = arith.mulf %302, %302 : vector<8x32xf32>
    %cst_94 = arith.constant dense<0.000000e+00> : vector<8xf32>
    %304 = vector.multi_reduction <add>, %303, %cst_94 [1] : vector<8x32xf32> to vector<8xf32>
    %305 = vector.shape_cast %304 : vector<8xf32> to vector<8x1xf32>
    %cst_95 = arith.constant 3.200000e+01 : f32
    %306 = vector.broadcast %cst_95 : f32 to vector<8x1xf32>
    %307 = arith.divf %305, %306 : vector<8x1xf32>
    %cst_96 = arith.constant 9.99999974E-6 : f32
    %308 = vector.broadcast %cst_96 : f32 to vector<8x1xf32>
    %309 = arith.addf %307, %308 : vector<8x1xf32>
    %310 = math.rsqrt %309 : vector<8x1xf32>
    %311 = vector.broadcast %310 : vector<8x1xf32> to vector<8x32xf32>
    %312 = arith.mulf %302, %311 : vector<8x32xf32>
    %313 = vector.broadcast %295 : vector<1x32xf32> to vector<8x32xf32>
    %314 = arith.mulf %312, %313 : vector<8x32xf32>
    %315 = vector.broadcast %296 : vector<1x32xf32> to vector<8x32xf32>
    %316 = arith.addf %314, %315 : vector<8x32xf32>
    %cst_97 = arith.constant dense<0.000000e+00> : vector<16x64xf32>
    %317 = tpu.matmul %238, %246, %cst_97 {dimension_numbers = #tpu.dot_dimension_numbers<[1], [0], [0], [1], [0, 0, 1, 1], [], []>} : vector<16x32xf32>, vector<32x64xf32>, vector<16x64xf32> -> vector<16x64xf32>
    %318 = vector.extract_strided_slice %317 {offsets = [0, 0], sizes = [16, 16], strides = [1, 1]} : vector<16x64xf32> to vector<16x16xf32>
    %319 = vector.extract_strided_slice %317 {offsets = [0, 16], sizes = [16, 16], strides = [1, 1]} : vector<16x64xf32> to vector<16x16xf32>
    %320 = vector.extract_strided_slice %317 {offsets = [0, 32], sizes = [16, 16], strides = [1, 1]} : vector<16x64xf32> to vector<16x16xf32>
    %321 = vector.extract_strided_slice %317 {offsets = [0, 48], sizes = [16, 16], strides = [1, 1]} : vector<16x64xf32> to vector<16x16xf32>
    %322 = vector.shape_cast %318 : vector<16x16xf32> to vector<1x16x16xf32>
    %323 = vector.shape_cast %319 : vector<16x16xf32> to vector<1x16x16xf32>
    %324 = vector.shape_cast %320 : vector<16x16xf32> to vector<1x16x16xf32>
    %325 = vector.shape_cast %321 : vector<16x16xf32> to vector<1x16x16xf32>
    %326 = tpu.concatenate %322, %323, %324, %325 in 0 : vector<1x16x16xf32>, vector<1x16x16xf32>, vector<1x16x16xf32>, vector<1x16x16xf32> -> vector<4x16x16xf32>
    %cst_98 = arith.constant dense<0.000000e+00> : vector<16x64xf32>
    %327 = tpu.matmul %235, %247, %cst_98 {dimension_numbers = #tpu.dot_dimension_numbers<[1], [0], [0], [1], [0, 0, 1, 1], [], []>} : vector<16x32xf32>, vector<32x64xf32>, vector<16x64xf32> -> vector<16x64xf32>
    %328 = vector.extract_strided_slice %327 {offsets = [0, 0], sizes = [16, 16], strides = [1, 1]} : vector<16x64xf32> to vector<16x16xf32>
    %329 = vector.extract_strided_slice %327 {offsets = [0, 16], sizes = [16, 16], strides = [1, 1]} : vector<16x64xf32> to vector<16x16xf32>
    %330 = vector.extract_strided_slice %327 {offsets = [0, 32], sizes = [16, 16], strides = [1, 1]} : vector<16x64xf32> to vector<16x16xf32>
    %331 = vector.extract_strided_slice %327 {offsets = [0, 48], sizes = [16, 16], strides = [1, 1]} : vector<16x64xf32> to vector<16x16xf32>
    %332 = vector.shape_cast %328 : vector<16x16xf32> to vector<1x16x16xf32>
    %333 = vector.shape_cast %329 : vector<16x16xf32> to vector<1x16x16xf32>
    %334 = vector.shape_cast %330 : vector<16x16xf32> to vector<1x16x16xf32>
    %335 = vector.shape_cast %331 : vector<16x16xf32> to vector<1x16x16xf32>
    %336 = tpu.concatenate %332, %333, %334, %335 in 0 : vector<1x16x16xf32>, vector<1x16x16xf32>, vector<1x16x16xf32>, vector<1x16x16xf32> -> vector<4x16x16xf32>
    "tpu.trace_start"() <{level = 10 : i32, message = "hqc,hkc->hqk"}> : () -> ()
    %cst_99 = arith.constant dense<0.000000e+00> : vector<4x8x16xf32>
    %337 = tpu.matmul %258, %326, %cst_99 {dimension_numbers = #tpu.dot_dimension_numbers<[2], [2], [1], [1], [0, 0, 0, 1, 1, 1], [0], [0]>} : vector<4x8x16xf32>, vector<4x16x16xf32>, vector<4x8x16xf32> -> vector<4x8x16xf32>
    "tpu.trace_stop"() : () -> ()
    %cst_100 = arith.constant dense<0xFF800000> : vector<4x8xf32>
    %338 = vector.multi_reduction <maximumf>, %337, %cst_100 [2] : vector<4x8x16xf32> to vector<4x8xf32>
    %339 = vector.shape_cast %338 : vector<4x8xf32> to vector<4x8x1xf32>
    %340 = vector.broadcast %339 : vector<4x8x1xf32> to vector<4x8x16xf32>
    %341 = arith.subf %337, %340 : vector<4x8x16xf32>
    %342 = math.exp %341 : vector<4x8x16xf32>
    %cst_101 = arith.constant dense<0.000000e+00> : vector<4x8xf32>
    %343 = vector.multi_reduction <add>, %342, %cst_101 [2] : vector<4x8x16xf32> to vector<4x8xf32>
    %344 = vector.shape_cast %343 : vector<4x8xf32> to vector<4x8x1xf32>
    %345 = tpu.reciprocal %344 {approx = true} : vector<4x8x1xf32> -> vector<4x8x1xf32>
    %346 = vector.broadcast %345 : vector<4x8x1xf32> to vector<4x8x16xf32>
    %347 = arith.mulf %342, %346 : vector<4x8x16xf32>
    "tpu.trace_start"() <{level = 10 : i32, message = "hqk,hkc->hqc"}> : () -> ()
    %cst_102 = arith.constant dense<0.000000e+00> : vector<4x8x16xf32>
    %348 = tpu.matmul %347, %336, %cst_102 {dimension_numbers = #tpu.dot_dimension_numbers<[2], [1], [1], [2], [0, 0, 0, 1, 1, 2], [0], [0]>} : vector<4x8x16xf32>, vector<4x16x16xf32>, vector<4x8x16xf32> -> vector<4x8x16xf32>
    "tpu.trace_stop"() : () -> ()
    %349 = vector.shape_cast %243 : vector<64x32xf32> to vector<4x16x32xf32>
    "tpu.trace_start"() <{level = 10 : i32, message = "hqc,hcd->hqd"}> : () -> ()
    %cst_103 = arith.constant dense<0.000000e+00> : vector<4x8x32xf32>
    %350 = tpu.matmul %348, %349, %cst_103 {dimension_numbers = #tpu.dot_dimension_numbers<[2], [1], [1], [2], [0, 0, 0, 1, 1, 2], [0], [0]>} : vector<4x8x16xf32>, vector<4x16x32xf32>, vector<4x8x32xf32> -> vector<4x8x32xf32>
    "tpu.trace_stop"() : () -> ()
    %cst_104 = arith.constant dense<0.000000e+00> : vector<8x32xf32>
    %351 = vector.multi_reduction <add>, %350, %cst_104 [0] : vector<4x8x32xf32> to vector<8x32xf32>
    %352 = arith.addf %316, %351 : vector<8x32xf32>
    %c14 = arith.constant 14 : index
    %c0_105 = arith.constant 0 : index
    %353 = vector.load %arg6[%c14, %c0_105] : memref<32x64xf32, #tpu.memory_space<vmem>>, vector<1x32xf32>
    %c15 = arith.constant 15 : index
    %c0_106 = arith.constant 0 : index
    %354 = vector.load %arg6[%c15, %c0_106] : memref<32x64xf32, #tpu.memory_space<vmem>>, vector<1x32xf32>
    %cst_107 = arith.constant dense<0.000000e+00> : vector<8xf32>
    %355 = vector.multi_reduction <add>, %352, %cst_107 [1] : vector<8x32xf32> to vector<8xf32>
    %356 = vector.shape_cast %355 : vector<8xf32> to vector<8x1xf32>
    %cst_108 = arith.constant 3.200000e+01 : f32
    %357 = vector.broadcast %cst_108 : f32 to vector<8x1xf32>
    %358 = arith.divf %356, %357 : vector<8x1xf32>
    %359 = vector.broadcast %358 : vector<8x1xf32> to vector<8x32xf32>
    %360 = arith.subf %352, %359 : vector<8x32xf32>
    %361 = arith.mulf %360, %360 : vector<8x32xf32>
    %cst_109 = arith.constant dense<0.000000e+00> : vector<8xf32>
    %362 = vector.multi_reduction <add>, %361, %cst_109 [1] : vector<8x32xf32> to vector<8xf32>
    %363 = vector.shape_cast %362 : vector<8xf32> to vector<8x1xf32>
    %cst_110 = arith.constant 3.200000e+01 : f32
    %364 = vector.broadcast %cst_110 : f32 to vector<8x1xf32>
    %365 = arith.divf %363, %364 : vector<8x1xf32>
    %cst_111 = arith.constant 9.99999974E-6 : f32
    %366 = vector.broadcast %cst_111 : f32 to vector<8x1xf32>
    %367 = arith.addf %365, %366 : vector<8x1xf32>
    %368 = math.rsqrt %367 : vector<8x1xf32>
    %369 = vector.broadcast %368 : vector<8x1xf32> to vector<8x32xf32>
    %370 = arith.mulf %360, %369 : vector<8x32xf32>
    %371 = vector.broadcast %353 : vector<1x32xf32> to vector<8x32xf32>
    %372 = arith.mulf %370, %371 : vector<8x32xf32>
    %373 = vector.broadcast %354 : vector<1x32xf32> to vector<8x32xf32>
    %374 = arith.addf %372, %373 : vector<8x32xf32>
    %cst_112 = arith.constant dense<0.000000e+00> : vector<8x64xf32>
    %375 = tpu.matmul %374, %242, %cst_112 {dimension_numbers = #tpu.dot_dimension_numbers<[1], [0], [0], [1], [0, 0, 1, 1], [], []>} : vector<8x32xf32>, vector<32x64xf32>, vector<8x64xf32> -> vector<8x64xf32>
    %c19 = arith.constant 19 : index
    %c0_113 = arith.constant 0 : index
    %376 = vector.load %arg6[%c19, %c0_113] : memref<32x64xf32, #tpu.memory_space<vmem>>, vector<1x64xf32>
    %377 = vector.broadcast %376 : vector<1x64xf32> to vector<8x64xf32>
    %378 = arith.addf %375, %377 : vector<8x64xf32>
    %cst_114 = arith.constant 0.000000e+00 : f32
    %379 = vector.broadcast %cst_114 : f32 to vector<8x64xf32>
    %380 = arith.maximumf %378, %379 : vector<8x64xf32>
    %cst_115 = arith.constant dense<0.000000e+00> : vector<8x32xf32>
    %381 = tpu.matmul %380, %244, %cst_115 {dimension_numbers = #tpu.dot_dimension_numbers<[1], [0], [0], [1], [0, 0, 1, 1], [], []>} : vector<8x64xf32>, vector<64x32xf32>, vector<8x32xf32> -> vector<8x32xf32>
    %382 = arith.addf %374, %381 : vector<8x32xf32>
    %c18 = arith.constant 18 : index
    %c0_116 = arith.constant 0 : index
    %383 = vector.load %arg6[%c18, %c0_116] : memref<32x64xf32, #tpu.memory_space<vmem>>, vector<1x32xf32>
    %384 = vector.broadcast %383 : vector<1x32xf32> to vector<8x32xf32>
    %385 = arith.addf %382, %384 : vector<8x32xf32>
    %c16 = arith.constant 16 : index
    %c0_117 = arith.constant 0 : index
    %386 = vector.load %arg6[%c16, %c0_117] : memref<32x64xf32, #tpu.memory_space<vmem>>, vector<1x32xf32>
    %c17 = arith.constant 17 : index
    %c0_118 = arith.constant 0 : index
    %387 = vector.load %arg6[%c17, %c0_118] : memref<32x64xf32, #tpu.memory_space<vmem>>, vector<1x32xf32>
    %cst_119 = arith.constant dense<0.000000e+00> : vector<8xf32>
    %388 = vector.multi_reduction <add>, %385, %cst_119 [1] : vector<8x32xf32> to vector<8xf32>
    %389 = vector.shape_cast %388 : vector<8xf32> to vector<8x1xf32>
    %cst_120 = arith.constant 3.200000e+01 : f32
    %390 = vector.broadcast %cst_120 : f32 to vector<8x1xf32>
    %391 = arith.divf %389, %390 : vector<8x1xf32>
    %392 = vector.broadcast %391 : vector<8x1xf32> to vector<8x32xf32>
    %393 = arith.subf %385, %392 : vector<8x32xf32>
    %394 = arith.mulf %393, %393 : vector<8x32xf32>
    %cst_121 = arith.constant dense<0.000000e+00> : vector<8xf32>
    %395 = vector.multi_reduction <add>, %394, %cst_121 [1] : vector<8x32xf32> to vector<8xf32>
    %396 = vector.shape_cast %395 : vector<8xf32> to vector<8x1xf32>
    %cst_122 = arith.constant 3.200000e+01 : f32
    %397 = vector.broadcast %cst_122 : f32 to vector<8x1xf32>
    %398 = arith.divf %396, %397 : vector<8x1xf32>
    %cst_123 = arith.constant 9.99999974E-6 : f32
    %399 = vector.broadcast %cst_123 : f32 to vector<8x1xf32>
    %400 = arith.addf %398, %399 : vector<8x1xf32>
    %401 = math.rsqrt %400 : vector<8x1xf32>
    %402 = vector.broadcast %401 : vector<8x1xf32> to vector<8x32xf32>
    %403 = arith.mulf %393, %402 : vector<8x32xf32>
    %404 = vector.broadcast %386 : vector<1x32xf32> to vector<8x32xf32>
    %405 = arith.mulf %403, %404 : vector<8x32xf32>
    %406 = vector.broadcast %387 : vector<1x32xf32> to vector<8x32xf32>
    %407 = arith.addf %405, %406 : vector<8x32xf32>
    %c30 = arith.constant 30 : index
    %c0_124 = arith.constant 0 : index
    %408 = vector.load %arg6[%c30, %c0_124] : memref<32x64xf32, #tpu.memory_space<vmem>>, vector<1x32xf32>
    %c31 = arith.constant 31 : index
    %c0_125 = arith.constant 0 : index
    %409 = vector.load %arg6[%c31, %c0_125] : memref<32x64xf32, #tpu.memory_space<vmem>>, vector<1x32xf32>
    %cst_126 = arith.constant dense<0.000000e+00> : vector<8xf32>
    %410 = vector.multi_reduction <add>, %407, %cst_126 [1] : vector<8x32xf32> to vector<8xf32>
    %411 = vector.shape_cast %410 : vector<8xf32> to vector<8x1xf32>
    %cst_127 = arith.constant 3.200000e+01 : f32
    %412 = vector.broadcast %cst_127 : f32 to vector<8x1xf32>
    %413 = arith.divf %411, %412 : vector<8x1xf32>
    %414 = vector.broadcast %413 : vector<8x1xf32> to vector<8x32xf32>
    %415 = arith.subf %407, %414 : vector<8x32xf32>
    %416 = arith.mulf %415, %415 : vector<8x32xf32>
    %cst_128 = arith.constant dense<0.000000e+00> : vector<8xf32>
    %417 = vector.multi_reduction <add>, %416, %cst_128 [1] : vector<8x32xf32> to vector<8xf32>
    %418 = vector.shape_cast %417 : vector<8xf32> to vector<8x1xf32>
    %cst_129 = arith.constant 3.200000e+01 : f32
    %419 = vector.broadcast %cst_129 : f32 to vector<8x1xf32>
    %420 = arith.divf %418, %419 : vector<8x1xf32>
    %cst_130 = arith.constant 9.99999974E-6 : f32
    %421 = vector.broadcast %cst_130 : f32 to vector<8x1xf32>
    %422 = arith.addf %420, %421 : vector<8x1xf32>
    %423 = math.rsqrt %422 : vector<8x1xf32>
    %424 = vector.broadcast %423 : vector<8x1xf32> to vector<8x32xf32>
    %425 = arith.mulf %415, %424 : vector<8x32xf32>
    %426 = vector.broadcast %408 : vector<1x32xf32> to vector<8x32xf32>
    %427 = arith.mulf %425, %426 : vector<8x32xf32>
    %428 = vector.broadcast %409 : vector<1x32xf32> to vector<8x32xf32>
    %429 = arith.addf %427, %428 : vector<8x32xf32>
    %430 = vector.extract_strided_slice %429 {offsets = [0, 0], sizes = [1, 32], strides = [1, 1]} : vector<8x32xf32> to vector<1x32xf32>
    %431 = vector.extract_strided_slice %429 {offsets = [1, 0], sizes = [1, 32], strides = [1, 1]} : vector<8x32xf32> to vector<1x32xf32>
    %432 = vector.extract_strided_slice %429 {offsets = [2, 0], sizes = [1, 32], strides = [1, 1]} : vector<8x32xf32> to vector<1x32xf32>
    %433 = vector.extract_strided_slice %429 {offsets = [3, 0], sizes = [1, 32], strides = [1, 1]} : vector<8x32xf32> to vector<1x32xf32>
    %434 = vector.extract_strided_slice %429 {offsets = [4, 0], sizes = [1, 32], strides = [1, 1]} : vector<8x32xf32> to vector<1x32xf32>
    %435 = vector.extract_strided_slice %429 {offsets = [5, 0], sizes = [1, 32], strides = [1, 1]} : vector<8x32xf32> to vector<1x32xf32>
    %436 = vector.extract_strided_slice %429 {offsets = [6, 0], sizes = [1, 32], strides = [1, 1]} : vector<8x32xf32> to vector<1x32xf32>
    %437 = vector.extract_strided_slice %429 {offsets = [7, 0], sizes = [1, 32], strides = [1, 1]} : vector<8x32xf32> to vector<1x32xf32>
    %438 = tpu.concatenate %430, %431, %432, %433, %434, %435, %436, %437 in 1 : vector<1x32xf32>, vector<1x32xf32>, vector<1x32xf32>, vector<1x32xf32>, vector<1x32xf32>, vector<1x32xf32>, vector<1x32xf32>, vector<1x32xf32> -> vector<1x256xf32>
    %c0_131 = arith.constant 0 : index
    %c0_132 = arith.constant 0 : index
    %c0_133 = arith.constant 0 : index
    %439 = vector.load %arg7[%c0_131, %c0_132, %c0_133] : memref<1x2x256xf32, #tpu.memory_space<vmem>>, vector<1x1x256xf32>
    %440 = vector.shape_cast %439 : vector<1x1x256xf32> to vector<1x256xf32>
    %441 = vector.shape_cast %438 : vector<1x256xf32> to vector<1x1x256xf32>
    tpu.vector_store %arg7[%c0_131, %c0_132, %c0_133], %441 {strides = array<i32>} : memref<1x2x256xf32, #tpu.memory_space<vmem>>, vector<1x1x256xf32>,
    %c0_134 = arith.constant 0 : index
    %c768 = arith.constant 768 : index
    %442 = vector.load %arg4[%c0_134, %c768] : memref<32x1024xf32, #tpu.memory_space<vmem>>, vector<32x192xf32>
    %c0_135 = arith.constant 0 : index
    %c960 = arith.constant 960 : index
    %443 = vector.load %arg4[%c0_135, %c960] : memref<32x1024xf32, #tpu.memory_space<vmem>>, vector<32x64xf32>
    %c0_136 = arith.constant 0 : index
    %c192_137 = arith.constant 192 : index
    %444 = vector.load %arg5[%c0_136, %c192_137] : memref<64x256xf32, #tpu.memory_space<vmem>>, vector<64x32xf32>
    %c0_138 = arith.constant 0 : index
    %c224 = arith.constant 224 : index
    %445 = vector.load %arg5[%c0_138, %c224] : memref<64x256xf32, #tpu.memory_space<vmem>>, vector<64x32xf32>
    %446 = vector.extract_strided_slice %442 {offsets = [0, 0], sizes = [32, 64], strides = [1, 1]} : vector<32x192xf32> to vector<32x64xf32>
    %447 = vector.extract_strided_slice %442 {offsets = [0, 64], sizes = [32, 64], strides = [1, 1]} : vector<32x192xf32> to vector<32x64xf32>
    %448 = vector.extract_strided_slice %442 {offsets = [0, 128], sizes = [32, 64], strides = [1, 1]} : vector<32x192xf32> to vector<32x64xf32>
    %449 = arith.addf %407, %239 : vector<8x32xf32>
    %cst_139 = arith.constant dense<0.000000e+00> : vector<8x64xf32>
    %450 = tpu.matmul %449, %446, %cst_139 {dimension_numbers = #tpu.dot_dimension_numbers<[1], [0], [0], [1], [0, 0, 1, 1], [], []>} : vector<8x32xf32>, vector<32x64xf32>, vector<8x64xf32> -> vector<8x64xf32>
    %451 = vector.extract_strided_slice %450 {offsets = [0, 0], sizes = [8, 16], strides = [1, 1]} : vector<8x64xf32> to vector<8x16xf32>
    %452 = vector.extract_strided_slice %450 {offsets = [0, 16], sizes = [8, 16], strides = [1, 1]} : vector<8x64xf32> to vector<8x16xf32>
    %453 = vector.extract_strided_slice %450 {offsets = [0, 32], sizes = [8, 16], strides = [1, 1]} : vector<8x64xf32> to vector<8x16xf32>
    %454 = vector.extract_strided_slice %450 {offsets = [0, 48], sizes = [8, 16], strides = [1, 1]} : vector<8x64xf32> to vector<8x16xf32>
    %455 = vector.shape_cast %451 : vector<8x16xf32> to vector<1x8x16xf32>
    %456 = vector.shape_cast %452 : vector<8x16xf32> to vector<1x8x16xf32>
    %457 = vector.shape_cast %453 : vector<8x16xf32> to vector<1x8x16xf32>
    %458 = vector.shape_cast %454 : vector<8x16xf32> to vector<1x8x16xf32>
    %459 = tpu.concatenate %455, %456, %457, %458 in 0 : vector<1x8x16xf32>, vector<1x8x16xf32>, vector<1x8x16xf32>, vector<1x8x16xf32> -> vector<4x8x16xf32>
    %cst_140 = arith.constant dense<0.000000e+00> : vector<8x64xf32>
    %460 = tpu.matmul %449, %447, %cst_140 {dimension_numbers = #tpu.dot_dimension_numbers<[1], [0], [0], [1], [0, 0, 1, 1], [], []>} : vector<8x32xf32>, vector<32x64xf32>, vector<8x64xf32> -> vector<8x64xf32>
    %461 = vector.extract_strided_slice %460 {offsets = [0, 0], sizes = [8, 16], strides = [1, 1]} : vector<8x64xf32> to vector<8x16xf32>
    %462 = vector.extract_strided_slice %460 {offsets = [0, 16], sizes = [8, 16], strides = [1, 1]} : vector<8x64xf32> to vector<8x16xf32>
    %463 = vector.extract_strided_slice %460 {offsets = [0, 32], sizes = [8, 16], strides = [1, 1]} : vector<8x64xf32> to vector<8x16xf32>
    %464 = vector.extract_strided_slice %460 {offsets = [0, 48], sizes = [8, 16], strides = [1, 1]} : vector<8x64xf32> to vector<8x16xf32>
    %465 = vector.shape_cast %461 : vector<8x16xf32> to vector<1x8x16xf32>
    %466 = vector.shape_cast %462 : vector<8x16xf32> to vector<1x8x16xf32>
    %467 = vector.shape_cast %463 : vector<8x16xf32> to vector<1x8x16xf32>
    %468 = vector.shape_cast %464 : vector<8x16xf32> to vector<1x8x16xf32>
    %469 = tpu.concatenate %465, %466, %467, %468 in 0 : vector<1x8x16xf32>, vector<1x8x16xf32>, vector<1x8x16xf32>, vector<1x8x16xf32> -> vector<4x8x16xf32>
    %cst_141 = arith.constant dense<0.000000e+00> : vector<8x64xf32>
    %470 = tpu.matmul %407, %448, %cst_141 {dimension_numbers = #tpu.dot_dimension_numbers<[1], [0], [0], [1], [0, 0, 1, 1], [], []>} : vector<8x32xf32>, vector<32x64xf32>, vector<8x64xf32> -> vector<8x64xf32>
    %471 = vector.extract_strided_slice %470 {offsets = [0, 0], sizes = [8, 16], strides = [1, 1]} : vector<8x64xf32> to vector<8x16xf32>
    %472 = vector.extract_strided_slice %470 {offsets = [0, 16], sizes = [8, 16], strides = [1, 1]} : vector<8x64xf32> to vector<8x16xf32>
    %473 = vector.extract_strided_slice %470 {offsets = [0, 32], sizes = [8, 16], strides = [1, 1]} : vector<8x64xf32> to vector<8x16xf32>
    %474 = vector.extract_strided_slice %470 {offsets = [0, 48], sizes = [8, 16], strides = [1, 1]} : vector<8x64xf32> to vector<8x16xf32>
    %475 = vector.shape_cast %471 : vector<8x16xf32> to vector<1x8x16xf32>
    %476 = vector.shape_cast %472 : vector<8x16xf32> to vector<1x8x16xf32>
    %477 = vector.shape_cast %473 : vector<8x16xf32> to vector<1x8x16xf32>
    %478 = vector.shape_cast %474 : vector<8x16xf32> to vector<1x8x16xf32>
    %479 = tpu.concatenate %475, %476, %477, %478 in 0 : vector<1x8x16xf32>, vector<1x8x16xf32>, vector<1x8x16xf32>, vector<1x8x16xf32> -> vector<4x8x16xf32>
    "tpu.trace_start"() <{level = 10 : i32, message = "hqc,hkc->hqk"}> : () -> ()
    %cst_142 = arith.constant dense<0.000000e+00> : vector<4x8x8xf32>
    %480 = tpu.matmul %459, %469, %cst_142 {dimension_numbers = #tpu.dot_dimension_numbers<[2], [2], [1], [1], [0, 0, 0, 1, 1, 1], [0], [0]>} : vector<4x8x16xf32>, vector<4x8x16xf32>, vector<4x8x8xf32> -> vector<4x8x8xf32>
    "tpu.trace_stop"() : () -> ()
    %cst_143 = arith.constant dense<0xFF800000> : vector<4x8xf32>
    %481 = vector.multi_reduction <maximumf>, %480, %cst_143 [2] : vector<4x8x8xf32> to vector<4x8xf32>
    %482 = vector.shape_cast %481 : vector<4x8xf32> to vector<4x8x1xf32>
    %483 = vector.broadcast %482 : vector<4x8x1xf32> to vector<4x8x8xf32>
    %484 = arith.subf %480, %483 : vector<4x8x8xf32>
    %485 = math.exp %484 : vector<4x8x8xf32>
    %cst_144 = arith.constant dense<0.000000e+00> : vector<4x8xf32>
    %486 = vector.multi_reduction <add>, %485, %cst_144 [2] : vector<4x8x8xf32> to vector<4x8xf32>
    %487 = vector.shape_cast %486 : vector<4x8xf32> to vector<4x8x1xf32>
    %488 = tpu.reciprocal %487 {approx = true} : vector<4x8x1xf32> -> vector<4x8x1xf32>
    %489 = vector.broadcast %488 : vector<4x8x1xf32> to vector<4x8x8xf32>
    %490 = arith.mulf %485, %489 : vector<4x8x8xf32>
    "tpu.trace_start"() <{level = 10 : i32, message = "hqk,hkc->hqc"}> : () -> ()
    %cst_145 = arith.constant dense<0.000000e+00> : vector<4x8x16xf32>
    %491 = tpu.matmul %490, %479, %cst_145 {dimension_numbers = #tpu.dot_dimension_numbers<[2], [1], [1], [2], [0, 0, 0, 1, 1, 2], [0], [0]>} : vector<4x8x8xf32>, vector<4x8x16xf32>, vector<4x8x16xf32> -> vector<4x8x16xf32>
    "tpu.trace_stop"() : () -> ()
    %492 = vector.shape_cast %444 : vector<64x32xf32> to vector<4x16x32xf32>
    "tpu.trace_start"() <{level = 10 : i32, message = "hqc,hcd->hqd"}> : () -> ()
    %cst_146 = arith.constant dense<0.000000e+00> : vector<4x8x32xf32>
    %493 = tpu.matmul %491, %492, %cst_146 {dimension_numbers = #tpu.dot_dimension_numbers<[2], [1], [1], [2], [0, 0, 0, 1, 1, 2], [0], [0]>} : vector<4x8x16xf32>, vector<4x16x32xf32>, vector<4x8x32xf32> -> vector<4x8x32xf32>
    "tpu.trace_stop"() : () -> ()
    %cst_147 = arith.constant dense<0.000000e+00> : vector<8x32xf32>
    %494 = vector.multi_reduction <add>, %493, %cst_147 [0] : vector<4x8x32xf32> to vector<8x32xf32>
    %495 = arith.addf %407, %494 : vector<8x32xf32>
    %c20 = arith.constant 20 : index
    %c0_148 = arith.constant 0 : index
    %496 = vector.load %arg6[%c20, %c0_148] : memref<32x64xf32, #tpu.memory_space<vmem>>, vector<1x32xf32>
    %c21 = arith.constant 21 : index
    %c0_149 = arith.constant 0 : index
    %497 = vector.load %arg6[%c21, %c0_149] : memref<32x64xf32, #tpu.memory_space<vmem>>, vector<1x32xf32>
    %cst_150 = arith.constant dense<0.000000e+00> : vector<8xf32>
    %498 = vector.multi_reduction <add>, %495, %cst_150 [1] : vector<8x32xf32> to vector<8xf32>
    %499 = vector.shape_cast %498 : vector<8xf32> to vector<8x1xf32>
    %cst_151 = arith.constant 3.200000e+01 : f32
    %500 = vector.broadcast %cst_151 : f32 to vector<8x1xf32>
    %501 = arith.divf %499, %500 : vector<8x1xf32>
    %502 = vector.broadcast %501 : vector<8x1xf32> to vector<8x32xf32>
    %503 = arith.subf %495, %502 : vector<8x32xf32>
    %504 = arith.mulf %503, %503 : vector<8x32xf32>
    %cst_152 = arith.constant dense<0.000000e+00> : vector<8xf32>
    %505 = vector.multi_reduction <add>, %504, %cst_152 [1] : vector<8x32xf32> to vector<8xf32>
    %506 = vector.shape_cast %505 : vector<8xf32> to vector<8x1xf32>
    %cst_153 = arith.constant 3.200000e+01 : f32
    %507 = vector.broadcast %cst_153 : f32 to vector<8x1xf32>
    %508 = arith.divf %506, %507 : vector<8x1xf32>
    %cst_154 = arith.constant 9.99999974E-6 : f32
    %509 = vector.broadcast %cst_154 : f32 to vector<8x1xf32>
    %510 = arith.addf %508, %509 : vector<8x1xf32>
    %511 = math.rsqrt %510 : vector<8x1xf32>
    %512 = vector.broadcast %511 : vector<8x1xf32> to vector<8x32xf32>
    %513 = arith.mulf %503, %512 : vector<8x32xf32>
    %514 = vector.broadcast %496 : vector<1x32xf32> to vector<8x32xf32>
    %515 = arith.mulf %513, %514 : vector<8x32xf32>
    %516 = vector.broadcast %497 : vector<1x32xf32> to vector<8x32xf32>
    %517 = arith.addf %515, %516 : vector<8x32xf32>
    %cst_155 = arith.constant dense<0.000000e+00> : vector<16x64xf32>
    %518 = tpu.matmul %238, %447, %cst_155 {dimension_numbers = #tpu.dot_dimension_numbers<[1], [0], [0], [1], [0, 0, 1, 1], [], []>} : vector<16x32xf32>, vector<32x64xf32>, vector<16x64xf32> -> vector<16x64xf32>
    %519 = vector.extract_strided_slice %518 {offsets = [0, 0], sizes = [16, 16], strides = [1, 1]} : vector<16x64xf32> to vector<16x16xf32>
    %520 = vector.extract_strided_slice %518 {offsets = [0, 16], sizes = [16, 16], strides = [1, 1]} : vector<16x64xf32> to vector<16x16xf32>
    %521 = vector.extract_strided_slice %518 {offsets = [0, 32], sizes = [16, 16], strides = [1, 1]} : vector<16x64xf32> to vector<16x16xf32>
    %522 = vector.extract_strided_slice %518 {offsets = [0, 48], sizes = [16, 16], strides = [1, 1]} : vector<16x64xf32> to vector<16x16xf32>
    %523 = vector.shape_cast %519 : vector<16x16xf32> to vector<1x16x16xf32>
    %524 = vector.shape_cast %520 : vector<16x16xf32> to vector<1x16x16xf32>
    %525 = vector.shape_cast %521 : vector<16x16xf32> to vector<1x16x16xf32>
    %526 = vector.shape_cast %522 : vector<16x16xf32> to vector<1x16x16xf32>
    %527 = tpu.concatenate %523, %524, %525, %526 in 0 : vector<1x16x16xf32>, vector<1x16x16xf32>, vector<1x16x16xf32>, vector<1x16x16xf32> -> vector<4x16x16xf32>
    %cst_156 = arith.constant dense<0.000000e+00> : vector<16x64xf32>
    %528 = tpu.matmul %235, %448, %cst_156 {dimension_numbers = #tpu.dot_dimension_numbers<[1], [0], [0], [1], [0, 0, 1, 1], [], []>} : vector<16x32xf32>, vector<32x64xf32>, vector<16x64xf32> -> vector<16x64xf32>
    %529 = vector.extract_strided_slice %528 {offsets = [0, 0], sizes = [16, 16], strides = [1, 1]} : vector<16x64xf32> to vector<16x16xf32>
    %530 = vector.extract_strided_slice %528 {offsets = [0, 16], sizes = [16, 16], strides = [1, 1]} : vector<16x64xf32> to vector<16x16xf32>
    %531 = vector.extract_strided_slice %528 {offsets = [0, 32], sizes = [16, 16], strides = [1, 1]} : vector<16x64xf32> to vector<16x16xf32>
    %532 = vector.extract_strided_slice %528 {offsets = [0, 48], sizes = [16, 16], strides = [1, 1]} : vector<16x64xf32> to vector<16x16xf32>
    %533 = vector.shape_cast %529 : vector<16x16xf32> to vector<1x16x16xf32>
    %534 = vector.shape_cast %530 : vector<16x16xf32> to vector<1x16x16xf32>
    %535 = vector.shape_cast %531 : vector<16x16xf32> to vector<1x16x16xf32>
    %536 = vector.shape_cast %532 : vector<16x16xf32> to vector<1x16x16xf32>
    %537 = tpu.concatenate %533, %534, %535, %536 in 0 : vector<1x16x16xf32>, vector<1x16x16xf32>, vector<1x16x16xf32>, vector<1x16x16xf32> -> vector<4x16x16xf32>
    "tpu.trace_start"() <{level = 10 : i32, message = "hqc,hkc->hqk"}> : () -> ()
    %cst_157 = arith.constant dense<0.000000e+00> : vector<4x8x16xf32>
    %538 = tpu.matmul %459, %527, %cst_157 {dimension_numbers = #tpu.dot_dimension_numbers<[2], [2], [1], [1], [0, 0, 0, 1, 1, 1], [0], [0]>} : vector<4x8x16xf32>, vector<4x16x16xf32>, vector<4x8x16xf32> -> vector<4x8x16xf32>
    "tpu.trace_stop"() : () -> ()
    %cst_158 = arith.constant dense<0xFF800000> : vector<4x8xf32>
    %539 = vector.multi_reduction <maximumf>, %538, %cst_158 [2] : vector<4x8x16xf32> to vector<4x8xf32>
    %540 = vector.shape_cast %539 : vector<4x8xf32> to vector<4x8x1xf32>
    %541 = vector.broadcast %540 : vector<4x8x1xf32> to vector<4x8x16xf32>
    %542 = arith.subf %538, %541 : vector<4x8x16xf32>
    %543 = math.exp %542 : vector<4x8x16xf32>
    %cst_159 = arith.constant dense<0.000000e+00> : vector<4x8xf32>
    %544 = vector.multi_reduction <add>, %543, %cst_159 [2] : vector<4x8x16xf32> to vector<4x8xf32>
    %545 = vector.shape_cast %544 : vector<4x8xf32> to vector<4x8x1xf32>
    %546 = tpu.reciprocal %545 {approx = true} : vector<4x8x1xf32> -> vector<4x8x1xf32>
    %547 = vector.broadcast %546 : vector<4x8x1xf32> to vector<4x8x16xf32>
    %548 = arith.mulf %543, %547 : vector<4x8x16xf32>
    "tpu.trace_start"() <{level = 10 : i32, message = "hqk,hkc->hqc"}> : () -> ()
    %cst_160 = arith.constant dense<0.000000e+00> : vector<4x8x16xf32>
    %549 = tpu.matmul %548, %537, %cst_160 {dimension_numbers = #tpu.dot_dimension_numbers<[2], [1], [1], [2], [0, 0, 0, 1, 1, 2], [0], [0]>} : vector<4x8x16xf32>, vector<4x16x16xf32>, vector<4x8x16xf32> -> vector<4x8x16xf32>
    "tpu.trace_stop"() : () -> ()
    %550 = vector.shape_cast %444 : vector<64x32xf32> to vector<4x16x32xf32>
    "tpu.trace_start"() <{level = 10 : i32, message = "hqc,hcd->hqd"}> : () -> ()
    %cst_161 = arith.constant dense<0.000000e+00> : vector<4x8x32xf32>
    %551 = tpu.matmul %549, %550, %cst_161 {dimension_numbers = #tpu.dot_dimension_numbers<[2], [1], [1], [2], [0, 0, 0, 1, 1, 2], [0], [0]>} : vector<4x8x16xf32>, vector<4x16x32xf32>, vector<4x8x32xf32> -> vector<4x8x32xf32>
    "tpu.trace_stop"() : () -> ()
    %cst_162 = arith.constant dense<0.000000e+00> : vector<8x32xf32>
    %552 = vector.multi_reduction <add>, %551, %cst_162 [0] : vector<4x8x32xf32> to vector<8x32xf32>
    %553 = arith.addf %517, %552 : vector<8x32xf32>
    %c22 = arith.constant 22 : index
    %c0_163 = arith.constant 0 : index
    %554 = vector.load %arg6[%c22, %c0_163] : memref<32x64xf32, #tpu.memory_space<vmem>>, vector<1x32xf32>
    %c23 = arith.constant 23 : index
    %c0_164 = arith.constant 0 : index
    %555 = vector.load %arg6[%c23, %c0_164] : memref<32x64xf32, #tpu.memory_space<vmem>>, vector<1x32xf32>
    %cst_165 = arith.constant dense<0.000000e+00> : vector<8xf32>
    %556 = vector.multi_reduction <add>, %553, %cst_165 [1] : vector<8x32xf32> to vector<8xf32>
    %557 = vector.shape_cast %556 : vector<8xf32> to vector<8x1xf32>
    %cst_166 = arith.constant 3.200000e+01 : f32
    %558 = vector.broadcast %cst_166 : f32 to vector<8x1xf32>
    %559 = arith.divf %557, %558 : vector<8x1xf32>
    %560 = vector.broadcast %559 : vector<8x1xf32> to vector<8x32xf32>
    %561 = arith.subf %553, %560 : vector<8x32xf32>
    %562 = arith.mulf %561, %561 : vector<8x32xf32>
    %cst_167 = arith.constant dense<0.000000e+00> : vector<8xf32>
    %563 = vector.multi_reduction <add>, %562, %cst_167 [1] : vector<8x32xf32> to vector<8xf32>
    %564 = vector.shape_cast %563 : vector<8xf32> to vector<8x1xf32>
    %cst_168 = arith.constant 3.200000e+01 : f32
    %565 = vector.broadcast %cst_168 : f32 to vector<8x1xf32>
    %566 = arith.divf %564, %565 : vector<8x1xf32>
    %cst_169 = arith.constant 9.99999974E-6 : f32
    %567 = vector.broadcast %cst_169 : f32 to vector<8x1xf32>
    %568 = arith.addf %566, %567 : vector<8x1xf32>
    %569 = math.rsqrt %568 : vector<8x1xf32>
    %570 = vector.broadcast %569 : vector<8x1xf32> to vector<8x32xf32>
    %571 = arith.mulf %561, %570 : vector<8x32xf32>
    %572 = vector.broadcast %554 : vector<1x32xf32> to vector<8x32xf32>
    %573 = arith.mulf %571, %572 : vector<8x32xf32>
    %574 = vector.broadcast %555 : vector<1x32xf32> to vector<8x32xf32>
    %575 = arith.addf %573, %574 : vector<8x32xf32>
    %cst_170 = arith.constant dense<0.000000e+00> : vector<8x64xf32>
    %576 = tpu.matmul %575, %443, %cst_170 {dimension_numbers = #tpu.dot_dimension_numbers<[1], [0], [0], [1], [0, 0, 1, 1], [], []>} : vector<8x32xf32>, vector<32x64xf32>, vector<8x64xf32> -> vector<8x64xf32>
    %c27 = arith.constant 27 : index
    %c0_171 = arith.constant 0 : index
    %577 = vector.load %arg6[%c27, %c0_171] : memref<32x64xf32, #tpu.memory_space<vmem>>, vector<1x64xf32>
    %578 = vector.broadcast %577 : vector<1x64xf32> to vector<8x64xf32>
    %579 = arith.addf %576, %578 : vector<8x64xf32>
    %cst_172 = arith.constant 0.000000e+00 : f32
    %580 = vector.broadcast %cst_172 : f32 to vector<8x64xf32>
    %581 = arith.maximumf %579, %580 : vector<8x64xf32>
    %cst_173 = arith.constant dense<0.000000e+00> : vector<8x32xf32>
    %582 = tpu.matmul %581, %445, %cst_173 {dimension_numbers = #tpu.dot_dimension_numbers<[1], [0], [0], [1], [0, 0, 1, 1], [], []>} : vector<8x64xf32>, vector<64x32xf32>, vector<8x32xf32> -> vector<8x32xf32>
    %583 = arith.addf %575, %582 : vector<8x32xf32>
    %c26 = arith.constant 26 : index
    %c0_174 = arith.constant 0 : index
    %584 = vector.load %arg6[%c26, %c0_174] : memref<32x64xf32, #tpu.memory_space<vmem>>, vector<1x32xf32>
    %585 = vector.broadcast %584 : vector<1x32xf32> to vector<8x32xf32>
    %586 = arith.addf %583, %585 : vector<8x32xf32>
    %c24 = arith.constant 24 : index
    %c0_175 = arith.constant 0 : index
    %587 = vector.load %arg6[%c24, %c0_175] : memref<32x64xf32, #tpu.memory_space<vmem>>, vector<1x32xf32>
    %c25 = arith.constant 25 : index
    %c0_176 = arith.constant 0 : index
    %588 = vector.load %arg6[%c25, %c0_176] : memref<32x64xf32, #tpu.memory_space<vmem>>, vector<1x32xf32>
    %cst_177 = arith.constant dense<0.000000e+00> : vector<8xf32>
    %589 = vector.multi_reduction <add>, %586, %cst_177 [1] : vector<8x32xf32> to vector<8xf32>
    %590 = vector.shape_cast %589 : vector<8xf32> to vector<8x1xf32>
    %cst_178 = arith.constant 3.200000e+01 : f32
    %591 = vector.broadcast %cst_178 : f32 to vector<8x1xf32>
    %592 = arith.divf %590, %591 : vector<8x1xf32>
    %593 = vector.broadcast %592 : vector<8x1xf32> to vector<8x32xf32>
    %594 = arith.subf %586, %593 : vector<8x32xf32>
    %595 = arith.mulf %594, %594 : vector<8x32xf32>
    %cst_179 = arith.constant dense<0.000000e+00> : vector<8xf32>
    %596 = vector.multi_reduction <add>, %595, %cst_179 [1] : vector<8x32xf32> to vector<8xf32>
    %597 = vector.shape_cast %596 : vector<8xf32> to vector<8x1xf32>
    %cst_180 = arith.constant 3.200000e+01 : f32
    %598 = vector.broadcast %cst_180 : f32 to vector<8x1xf32>
    %599 = arith.divf %597, %598 : vector<8x1xf32>
    %cst_181 = arith.constant 9.99999974E-6 : f32
    %600 = vector.broadcast %cst_181 : f32 to vector<8x1xf32>
    %601 = arith.addf %599, %600 : vector<8x1xf32>
    %602 = math.rsqrt %601 : vector<8x1xf32>
    %603 = vector.broadcast %602 : vector<8x1xf32> to vector<8x32xf32>
    %604 = arith.mulf %594, %603 : vector<8x32xf32>
    %605 = vector.broadcast %587 : vector<1x32xf32> to vector<8x32xf32>
    %606 = arith.mulf %604, %605 : vector<8x32xf32>
    %607 = vector.broadcast %588 : vector<1x32xf32> to vector<8x32xf32>
    %608 = arith.addf %606, %607 : vector<8x32xf32>
    %c30_182 = arith.constant 30 : index
    %c0_183 = arith.constant 0 : index
    %609 = vector.load %arg6[%c30_182, %c0_183] : memref<32x64xf32, #tpu.memory_space<vmem>>, vector<1x32xf32>
    %c31_184 = arith.constant 31 : index
    %c0_185 = arith.constant 0 : index
    %610 = vector.load %arg6[%c31_184, %c0_185] : memref<32x64xf32, #tpu.memory_space<vmem>>, vector<1x32xf32>
    %cst_186 = arith.constant dense<0.000000e+00> : vector<8xf32>
    %611 = vector.multi_reduction <add>, %608, %cst_186 [1] : vector<8x32xf32> to vector<8xf32>
    %612 = vector.shape_cast %611 : vector<8xf32> to vector<8x1xf32>
    %cst_187 = arith.constant 3.200000e+01 : f32
    %613 = vector.broadcast %cst_187 : f32 to vector<8x1xf32>
    %614 = arith.divf %612, %613 : vector<8x1xf32>
    %615 = vector.broadcast %614 : vector<8x1xf32> to vector<8x32xf32>
    %616 = arith.subf %608, %615 : vector<8x32xf32>
    %617 = arith.mulf %616, %616 : vector<8x32xf32>
    %cst_188 = arith.constant dense<0.000000e+00> : vector<8xf32>
    %618 = vector.multi_reduction <add>, %617, %cst_188 [1] : vector<8x32xf32> to vector<8xf32>
    %619 = vector.shape_cast %618 : vector<8xf32> to vector<8x1xf32>
    %cst_189 = arith.constant 3.200000e+01 : f32
    %620 = vector.broadcast %cst_189 : f32 to vector<8x1xf32>
    %621 = arith.divf %619, %620 : vector<8x1xf32>
    %cst_190 = arith.constant 9.99999974E-6 : f32
    %622 = vector.broadcast %cst_190 : f32 to vector<8x1xf32>
    %623 = arith.addf %621, %622 : vector<8x1xf32>
    %624 = math.rsqrt %623 : vector<8x1xf32>
    %625 = vector.broadcast %624 : vector<8x1xf32> to vector<8x32xf32>
    %626 = arith.mulf %616, %625 : vector<8x32xf32>
    %627 = vector.broadcast %609 : vector<1x32xf32> to vector<8x32xf32>
    %628 = arith.mulf %626, %627 : vector<8x32xf32>
    %629 = vector.broadcast %610 : vector<1x32xf32> to vector<8x32xf32>
    %630 = arith.addf %628, %629 : vector<8x32xf32>
    %631 = vector.extract_strided_slice %630 {offsets = [0, 0], sizes = [1, 32], strides = [1, 1]} : vector<8x32xf32> to vector<1x32xf32>
    %632 = vector.extract_strided_slice %630 {offsets = [1, 0], sizes = [1, 32], strides = [1, 1]} : vector<8x32xf32> to vector<1x32xf32>
    %633 = vector.extract_strided_slice %630 {offsets = [2, 0], sizes = [1, 32], strides = [1, 1]} : vector<8x32xf32> to vector<1x32xf32>
    %634 = vector.extract_strided_slice %630 {offsets = [3, 0], sizes = [1, 32], strides = [1, 1]} : vector<8x32xf32> to vector<1x32xf32>
    %635 = vector.extract_strided_slice %630 {offsets = [4, 0], sizes = [1, 32], strides = [1, 1]} : vector<8x32xf32> to vector<1x32xf32>
    %636 = vector.extract_strided_slice %630 {offsets = [5, 0], sizes = [1, 32], strides = [1, 1]} : vector<8x32xf32> to vector<1x32xf32>
    %637 = vector.extract_strided_slice %630 {offsets = [6, 0], sizes = [1, 32], strides = [1, 1]} : vector<8x32xf32> to vector<1x32xf32>
    %638 = vector.extract_strided_slice %630 {offsets = [7, 0], sizes = [1, 32], strides = [1, 1]} : vector<8x32xf32> to vector<1x32xf32>
    %639 = tpu.concatenate %631, %632, %633, %634, %635, %636, %637, %638 in 1 : vector<1x32xf32>, vector<1x32xf32>, vector<1x32xf32>, vector<1x32xf32>, vector<1x32xf32>, vector<1x32xf32>, vector<1x32xf32>, vector<1x32xf32> -> vector<1x256xf32>
    %c0_191 = arith.constant 0 : index
    %c1_192 = arith.constant 1 : index
    %c0_193 = arith.constant 0 : index
    %640 = vector.load %arg7[%c0_191, %c1_192, %c0_193] : memref<1x2x256xf32, #tpu.memory_space<vmem>>, vector<1x1x256xf32>
    %641 = vector.shape_cast %640 : vector<1x1x256xf32> to vector<1x256xf32>
    %642 = vector.shape_cast %639 : vector<1x256xf32> to vector<1x1x256xf32>
    tpu.vector_store %arg7[%c0_191, %c1_192, %c0_193], %642 {strides = array<i32>} : memref<1x2x256xf32, #tpu.memory_space<vmem>>, vector<1x1x256xf32>,
    return
  }
  func.func @transform_0(%arg0: i32) -> (i32, i32, i32) {
    %c0_i32 = arith.constant 0 : i32
    %c0_i32_0 = arith.constant 0 : i32
    %c0_i32_1 = arith.constant 0 : i32
    return %arg0, %c0_i32, %c0_i32_0 : i32, i32, i32
  }
  func.func @transform_1(%arg0: i32) -> (i32, i32, i32) {
    %c0_i32 = arith.constant 0 : i32
    %c0_i32_0 = arith.constant 0 : i32
    %c0_i32_1 = arith.constant 0 : i32
    return %arg0, %c0_i32, %c0_i32_0 : i32, i32, i32
  }
  func.func @transform_2(%arg0: i32) -> (i32, i32) {
    %c0_i32 = arith.constant 0 : i32
    %c0_i32_0 = arith.constant 0 : i32
    %c0_i32_1 = arith.constant 0 : i32
    return %c0_i32, %c0_i32_0 : i32, i32
  }
  func.func @transform_3(%arg0: i32) -> (i32, i32) {
    %c0_i32 = arith.constant 0 : i32
    %c0_i32_0 = arith.constant 0 : i32
    %c0_i32_1 = arith.constant 0 : i32
    return %c0_i32, %c0_i32_0 : i32, i32
  }
  func.func @transform_4(%arg0: i32) -> (i32, i32) {
    %c0_i32 = arith.constant 0 : i32
    %c0_i32_0 = arith.constant 0 : i32
    %c0_i32_1 = arith.constant 0 : i32
    return %c0_i32, %c0_i32_0 : i32, i32
  }
  func.func @transform_5(%arg0: i32) -> (i32, i32) {
    %c0_i32 = arith.constant 0 : i32
    %c0_i32_0 = arith.constant 0 : i32
    %c0_i32_1 = arith.constant 0 : i32
    return %c0_i32, %c0_i32_0 : i32, i32
  }
  func.func @transform_6(%arg0: i32) -> (i32, i32, i32) {
    %c0_i32 = arith.constant 0 : i32
    %c0_i32_0 = arith.constant 0 : i32
    %c0_i32_1 = arith.constant 0 : i32
    return %arg0, %c0_i32, %c0_i32_0 : i32, i32, i32
  }
}

</mosaic_0001>

<llo_original>
// kernel: transformer_forward.1
$region0: #{transformer_forward.1}
  #allocation0 [shape = 'u32[]', space=smem, size = 0x4, offset = 0x4, fixed_abs, tag = 'smem constant byte address 0x4 - core index']
  #allocation1 [shape = 'u32[144,128]{1,0:T(1,128)}', space=vmem, size = 0x12000, scoped, tag = 'internal scratch']
  %s0 = inlined_call_operand.vmem [shape: f32[2,16,32], index: 0, kind: input, shape index: {}]
  %s1 = inlined_call_operand.vmem [shape: f32[2,16,32], index: 1, kind: input, shape index: {}]
  %s2 = inlined_call_operand.vmem [shape: f32[8,32], index: 2, kind: input, shape index: {}]
  %s3 = inlined_call_operand.hbm [shape: f32[32,1024], index: 3, kind: input, shape index: {}]
  %s4 = inlined_call_operand.hbm [shape: f32[64,256], index: 4, kind: input, shape index: {}]
  %s5 = inlined_call_operand.vmem [shape: f32[32,64], index: 5, kind: input, shape index: {}]
  %s6 = inlined_call_operand.vmem [shape: f32[2,2,256], index: 6, kind: output, shape index: {}]
  %s7 = sld [smem:[#allocation0]]
  $region65: #{transformer_forward.1} parent=0
    _
  %s9 = ssub.s32 1, %s7
  %s10 = scalar_select 0, %s9, %s7
  $region1: #{transformer_forward.1} parent=0
    #allocation2 [shape = 'u8[131072]{0}', space=vmem, size = 0x20000, scoped, tag = 'input window, operand 3, single buffered']
    #allocation3 [shape = 's32[2]{0}', space=sflag, size = 0x8, scoped, tag = 'scoped memory for transformer_forward.1']
    #allocation4 [shape = 'u8[65536]{0}', space=vmem, size = 0x10000, scoped, tag = 'input window, operand 4, single buffered']
    #allocation5 [shape = 's32[1]{0}', space=sflag, size = 0x4, scoped, tag = 'scoped memory for transformer_forward.1']
    %11 = vsyncpa [#allocation3], 0
    %12 = vsyncpa [#allocation5], 0
    loop: start=0, step=1, limit=4
    $region2: #{transformer_forward.1} parent=1 // loop_pre_header
      _
    $region3: #{transformer_forward.1} parent=1 // loop_header
      %s14 = sphi 0, %s18
      %p15 = scmp.ge.s32.totalorder %s14, 4
      %s24 = sphi 0, %s26
      %s27 = sphi 0, %s24
      %s28 = sphi 0, %s27
      %s44 = sphi 0, %s28
      %s50 = sphi 0, %s52
      %s53 = sphi 0, %s50
      %s54 = sphi 0, %s53
      %s70 = sphi 0, %s54
      %s74 = sphi 0, %s74
      %s76 = sphi 0, %s74
      %s77 = sphi 0, %s76
      %s91 = sphi 0, %s77
      %s95 = sphi 0, %s95
      %s97 = sphi 0, %s95
      %s98 = sphi 0, %s97
      %s112 = sphi 0, %s98
      %s116 = sphi 0, %s116
      %s118 = sphi 0, %s116
      %s119 = sphi 0, %s118
      %s133 = sphi 0, %s119
      %s137 = sphi 0, %s137
      %s139 = sphi 0, %s137
      %s140 = sphi 0, %s139
      %s154 = sphi 0, %s140
      %s160 = sphi 0, %s162
      %s163 = sphi 0, %s160
      %s164 = sphi 0, %s163
      %s180 = sphi 0, %s164
    $region4: #{transformer_forward.1} parent=1 // loop_header_branch
      %17 = sbr.rel (%p15) target = $region8
    $region5: #{transformer_forward.1} parent=1 // loop_body
      %s19 = ssub.s32 %s14, 1
      %s20 = ssub.s32 %s14, 2
      %s21 = sadd.s32 %s14, 1
      %s22 = ssub.s32 %s14, %s21
      %p23 = scmp.eq.s32.totalorder %s22, 0
      %s25 = sadd.s32 %s24, 1
      %s26 = scalar_select %p23, %s24, %s25
      %p29 = pneg %p23
      %p30 = scmp.eq.s32.totalorder %s14, 1
      %p31 = por %p29, %p30
      %p32 = scmp.ne.s32.totalorder %s24, %s27
      %p33 = scmp.eq.s32.totalorder %s14, 0
      %p34 = por %p32, %p33
      %p35 = scmp.ne.s32.totalorder %s24, %s27
      %p36 = scmp.eq.s32.totalorder %s19, 1
      %p37 = por %p35, %p36
      %p38 = scmp.ne.s32.totalorder %s27, %s28
      %p39 = scmp.eq.s32.totalorder %s19, 0
      %p40 = por %p38, %p39
      %p41 = scmp.ne.s32.totalorder %s27, %s28
      %p42 = scmp.eq.s32.totalorder %s20, 1
      %p43 = por %p41, %p42
      %p45 = scmp.ne.s32.totalorder %s28, %s44
      %p46 = scmp.eq.s32.totalorder %s20, 0
      %p47 = por %p45, %p46
      %s48 = ssub.s32 %s14, %s21
      %p49 = scmp.eq.s32.totalorder %s48, 0
      %s51 = sadd.s32 %s50, 1
      %s52 = scalar_select %p49, %s50, %s51
      %p55 = pneg %p49
      %p56 = scmp.eq.s32.totalorder %s14, 1
      %p57 = por %p55, %p56
      %p58 = scmp.ne.s32.totalorder %s50, %s53
      %p59 = scmp.eq.s32.totalorder %s14, 0
      %p60 = por %p58, %p59
      %p61 = scmp.ne.s32.totalorder %s50, %s53
      %p62 = scmp.eq.s32.totalorder %s19, 1
      %p63 = por %p61, %p62
      %p64 = scmp.ne.s32.totalorder %s53, %s54
      %p65 = scmp.eq.s32.totalorder %s19, 0
      %p66 = por %p64, %p65
      %p67 = scmp.ne.s32.totalorder %s53, %s54
      %p68 = scmp.eq.s32.totalorder %s20, 1
      %p69 = por %p67, %p68
      %p71 = scmp.ne.s32.totalorder %s54, %s70
      %p72 = scmp.eq.s32.totalorder %s20, 0
      %p73 = por %p71, %p72
      %s75 = sadd.s32 %s74, 1
      %p78 = scmp.eq.s32.totalorder %s14, 1
      %p79 = scmp.ne.s32.totalorder %s74, %s76
      %p80 = scmp.eq.s32.totalorder %s14, 0
      %p81 = por %p79, %p80
      %p82 = scmp.ne.s32.totalorder %s74, %s76
      %p83 = scmp.eq.s32.totalorder %s19, 1
      %p84 = por %p82, %p83
      %p85 = scmp.ne.s32.totalorder %s76, %s77
      %p86 = scmp.eq.s32.totalorder %s19, 0
      %p87 = por %p85, %p86
      %p88 = scmp.ne.s32.totalorder %s76, %s77
      %p89 = scmp.eq.s32.totalorder %s20, 1
      %p90 = por %p88, %p89
      %p92 = scmp.ne.s32.totalorder %s77, %s91
      %p93 = scmp.eq.s32.totalorder %s20, 0
      %p94 = por %p92, %p93
      %s96 = sadd.s32 %s95, 1
      %p99 = scmp.eq.s32.totalorder %s14, 1
      %p100 = scmp.ne.s32.totalorder %s95, %s97
      %p101 = scmp.eq.s32.totalorder %s14, 0
      %p102 = por %p100, %p101
      %p103 = scmp.ne.s32.totalorder %s95, %s97
      %p104 = scmp.eq.s32.totalorder %s19, 1
      %p105 = por %p103, %p104
      %p106 = scmp.ne.s32.totalorder %s97, %s98
      %p107 = scmp.eq.s32.totalorder %s19, 0
      %p108 = por %p106, %p107
      %p109 = scmp.ne.s32.totalorder %s97, %s98
      %p110 = scmp.eq.s32.totalorder %s20, 1
      %p111 = por %p109, %p110
      %p113 = scmp.ne.s32.totalorder %s98, %s112
      %p114 = scmp.eq.s32.totalorder %s20, 0
      %p115 = por %p113, %p114
      %s117 = sadd.s32 %s116, 1
      %p120 = scmp.eq.s32.totalorder %s14, 1
      %p121 = scmp.ne.s32.totalorder %s116, %s118
      %p122 = scmp.eq.s32.totalorder %s14, 0
      %p123 = por %p121, %p122
      %p124 = scmp.ne.s32.totalorder %s116, %s118
      %p125 = scmp.eq.s32.totalorder %s19, 1
      %p126 = por %p124, %p125
      %p127 = scmp.ne.s32.totalorder %s118, %s119
      %p128 = scmp.eq.s32.totalorder %s19, 0
      %p129 = por %p127, %p128
      %p130 = scmp.ne.s32.totalorder %s118, %s119
      %p131 = scmp.eq.s32.totalorder %s20, 1
      %p132 = por %p130, %p131
      %p134 = scmp.ne.s32.totalorder %s119, %s133
      %p135 = scmp.eq.s32.totalorder %s20, 0
      %p136 = por %p134, %p135
      %s138 = sadd.s32 %s137, 1
      %p141 = scmp.eq.s32.totalorder %s14, 1
      %p142 = scmp.ne.s32.totalorder %s137, %s139
      %p143 = scmp.eq.s32.totalorder %s14, 0
      %p144 = por %p142, %p143
      %p145 = scmp.ne.s32.totalorder %s137, %s139
      %p146 = scmp.eq.s32.totalorder %s19, 1
      %p147 = por %p145, %p146
      %p148 = scmp.ne.s32.totalorder %s139, %s140
      %p149 = scmp.eq.s32.totalorder %s19, 0
      %p150 = por %p148, %p149
      %p151 = scmp.ne.s32.totalorder %s139, %s140
      %p152 = scmp.eq.s32.totalorder %s20, 1
      %p153 = por %p151, %p152
      %p155 = scmp.ne.s32.totalorder %s140, %s154
      %p156 = scmp.eq.s32.totalorder %s20, 0
      %p157 = por %p155, %p156
      %s158 = ssub.s32 %s14, %s21
      %p159 = scmp.eq.s32.totalorder %s158, 0
      %s161 = sadd.s32 %s160, 1
      %s162 = scalar_select %p159, %s160, %s161
      %p165 = pneg %p159
      %p166 = scmp.eq.s32.totalorder %s14, 1
      %p167 = por %p165, %p166
      %p168 = scmp.ne.s32.totalorder %s160, %s163
      %p169 = scmp.eq.s32.totalorder %s14, 0
      %p170 = por %p168, %p169
      %p171 = scmp.ne.s32.totalorder %s160, %s163
      %p172 = scmp.eq.s32.totalorder %s19, 1
      %p173 = por %p171, %p172
      %p174 = scmp.ne.s32.totalorder %s163, %s164
      %p175 = scmp.eq.s32.totalorder %s19, 0
      %p176 = por %p174, %p175
      %p177 = scmp.ne.s32.totalorder %s163, %s164
      %p178 = scmp.eq.s32.totalorder %s20, 1
      %p179 = por %p177, %p178
      %p181 = scmp.ne.s32.totalorder %s164, %s180
      %p182 = scmp.eq.s32.totalorder %s20, 0
      %p183 = por %p181, %p182
      %p184 = scmp.le.s32.totalorder 1, %s14
      %p185 = scmp.lt.s32.totalorder %s14, 3
      %p186 = pnand %p184, %p185
      %p187 = pneg %p186
      // Predicated region
      $region9: #{transformer_forward.1} parent=5 // pred_check
        _
      $region10: #{transformer_forward.1} parent=5 // pred_check_branch
        %189 = sbr.rel (%p186) target = $region12
      $region11: #{transformer_forward.1} parent=5 // pred_region
        %s190 = ssub.s32 %s14, 1
        // Predicated region
        $region13: #{transformer_forward.1} parent=11 // pred_check
          %p191 = pneg %p87
        $region14: #{transformer_forward.1} parent=11 // pred_check_branch
          %193 = sbr.rel (%p191) target = $region16
        $region15: #{transformer_forward.1} parent=11 // pred_region
          _
        $region16: #{transformer_forward.1} parent=11 // pred_fallthru
          _
        // Predicated region
        $region17: #{transformer_forward.1} parent=11 // pred_check
          %p194 = pneg %p108
        $region18: #{transformer_forward.1} parent=11 // pred_check_branch
          %196 = sbr.rel (%p194) target = $region20
        $region19: #{transformer_forward.1} parent=11 // pred_region
          %s198 = ssub.s32 4096, 4096
          %199 = vsyncadd [#allocation3], %s198
          %s200 = sshll.u32 [#allocation2], 4
          %s201 = int_to_ptr.vmem [resolvable:$true] %s200
          %206 = dma.hbm_to_vmem [thread:$0]  %s3, 4096, %s201, [#allocation3], 1024, 1024, 64
        $region20: #{transformer_forward.1} parent=11 // pred_fallthru
          _
        // Predicated region
        $region21: #{transformer_forward.1} parent=11 // pred_check
          %p207 = pneg %p129
        $region22: #{transformer_forward.1} parent=11 // pred_check_branch
          %209 = sbr.rel (%p207) target = $region24
        $region23: #{transformer_forward.1} parent=11 // pred_region
          %s211 = ssub.s32 2048, 2048
          %212 = vsyncadd [#allocation5], %s211
          %s213 = sshll.u32 [#allocation4], 4
          %s214 = int_to_ptr.vmem [resolvable:$true] %s213
          %219 = dma.hbm_to_vmem [thread:$0]  %s4, 2048, %s214, [#allocation5], 256, 256, 16
        $region24: #{transformer_forward.1} parent=11 // pred_fallthru
          _
        // Predicated region
        $region25: #{transformer_forward.1} parent=11 // pred_check
          %p220 = pneg %p150
        $region26: #{transformer_forward.1} parent=11 // pred_check_branch
          %222 = sbr.rel (%p220) target = $region28
        $region27: #{transformer_forward.1} parent=11 // pred_region
          _
        $region28: #{transformer_forward.1} parent=11 // pred_fallthru
          _
      $region12: #{transformer_forward.1} parent=5 // pred_fallthru
        _
      %p223 = scmp.lt.s32.totalorder %s14, 2
      // Predicated region
      $region29: #{transformer_forward.1} parent=5 // pred_check
        %p224 = pneg %p223
      $region30: #{transformer_forward.1} parent=5 // pred_check_branch
        %226 = sbr.rel (%p224) target = $region32
      $region31: #{transformer_forward.1} parent=5 // pred_region
        // Predicated region
        $region33: #{transformer_forward.1} parent=31 // pred_check
          %p227 = pneg %p34
        $region34: #{transformer_forward.1} parent=31 // pred_check_branch
          %229 = sbr.rel (%p227) target = $region36
        $region35: #{transformer_forward.1} parent=31 // pred_region
          %p230 = scmp.lt.s32.totalorder %s14, 1
          %s231 = scalar_select %p230, %s14, 1
          %s232 = smul.addr %s231, 2
          %s233 = smul.addr %s232, 8
          %s234 = scalar_lea.vmem %s0, %s233
        $region36: #{transformer_forward.1} parent=31 // pred_fallthru
          _
        // Predicated region
        $region37: #{transformer_forward.1} parent=31 // pred_check
          %p235 = pneg %p60
        $region38: #{transformer_forward.1} parent=31 // pred_check_branch
          %237 = sbr.rel (%p235) target = $region40
        $region39: #{transformer_forward.1} parent=31 // pred_region
          %p238 = scmp.lt.s32.totalorder %s14, 1
          %s239 = scalar_select %p238, %s14, 1
          %s240 = smul.addr %s239, 2
          %s241 = smul.addr %s240, 8
          %s242 = scalar_lea.vmem %s1, %s241
        $region40: #{transformer_forward.1} parent=31 // pred_fallthru
          _
      $region32: #{transformer_forward.1} parent=5 // pred_fallthru
        _
      %p243 = scmp.le.s32.totalorder 1, %s14
      %p244 = scmp.lt.s32.totalorder %s14, 3
      %p245 = pnand %p243, %p244
      %p246 = pneg %p245
      // Predicated region
      $region41: #{transformer_forward.1} parent=5 // pred_check
        _
      $region42: #{transformer_forward.1} parent=5 // pred_check_branch
        %248 = sbr.rel (%p245) target = $region44
      $region43: #{transformer_forward.1} parent=5 // pred_region
        %s249 = ssub.s32 %s14, 1
        // Predicated region
        $region45: #{transformer_forward.1} parent=43 // pred_check
          %p250 = pneg %p108
        $region46: #{transformer_forward.1} parent=43 // pred_check_branch
          %252 = sbr.rel (%p250) target = $region48
        $region47: #{transformer_forward.1} parent=43 // pred_region
          %253 = dma.done [#allocation3], 4096
        $region48: #{transformer_forward.1} parent=43 // pred_fallthru
          _
        // Predicated region
        $region49: #{transformer_forward.1} parent=43 // pred_check
          %p254 = pneg %p129
        $region50: #{transformer_forward.1} parent=43 // pred_check_branch
          %256 = sbr.rel (%p254) target = $region52
        $region51: #{transformer_forward.1} parent=43 // pred_region
          %257 = dma.done [#allocation5], 2048
        $region52: #{transformer_forward.1} parent=43 // pred_fallthru
          _
        %p258 = scmp.lt.s32.totalorder %s19, 1
        %s259 = scalar_select %p258, %s19, 1
        %s260 = smul.addr %s259, 2
        %s261 = smul.addr %s260, 8
        %s262 = scalar_lea.vmem %s0, %s261
        %p263 = pneg %p40
        %p264 = pneg %p37
        %p265 = scmp.lt.s32.totalorder %s19, 1
        %s266 = scalar_select %p265, %s19, 1
        %s267 = smul.addr %s266, 2
        %s268 = smul.addr %s267, 8
        %s269 = scalar_lea.vmem %s1, %s268
        %p270 = pneg %p66
        %p271 = pneg %p63
        %p272 = pneg %p87
        %p273 = pneg %p84
        %p274 = pneg %p108
        %p275 = pneg %p105
        %p276 = pneg %p129
        %p277 = pneg %p126
        %p278 = pneg %p150
        %p279 = pneg %p147
        %p280 = pneg %p176
        %p281 = pneg %p173
        %p282 = scmp.lt.s32.totalorder %s19, 1
        %s283 = scalar_select %p282, %s19, 1
        %s284 = smul.addr %s283, 2
        %s285 = smul.addr %s284, 2
        %s286 = scalar_lea.vmem %s6, %s285
        %p287 = scmp.lt.s32.totalorder %s19, 1
        %s288 = scalar_select %p287, %s19, 1
        %s289 = smul.addr %s288, 2
        %s290 = smul.addr %s289, 8
        %s291 = scalar_lea.vmem %s0, %s290
        %p292 = scmp.lt.s32.totalorder %s19, 1
        %s293 = scalar_select %p292, %s19, 1
        %s294 = smul.addr %s293, 2
        %s295 = smul.addr %s294, 8
        %s296 = scalar_lea.vmem %s1, %s295
        %p297 = scmp.lt.s32.totalorder %s19, 1
        %s298 = scalar_select %p297, %s19, 1
        %s299 = smul.addr %s298, 2
        %s300 = smul.addr %s299, 2
        %s301 = scalar_lea.vmem %s6, %s300
        %v302 = vld [vmem:[%s291] sm:$0xff]
        %v303 = vld [vmem:[%s291 + $0x8] sm:$0xff]
        %v304 = vld [vmem:[#allocation2] sm:$0xff]
        %v305 = vld [vmem:[#allocation2 + $0x8] sm:$0xff]
        %v306 = vld [vmem:[#allocation2 + $0x40] sm:$0xff]
        %v307 = vld [vmem:[#allocation2 + $0x48] sm:$0xff]
        %v308 = vld [vmem:[#allocation2 + $0x80] sm:$0xff]
        %v309 = vld [vmem:[#allocation2 + $0x88] sm:$0xff]
        %v310 = vld [vmem:[#allocation2 + $0xc0] sm:$0xff]
        %v311 = vld [vmem:[#allocation2 + $0xc8] sm:$0xff]
        %v312 = vld [vmem:[#allocation4] sm:$0xff]
        %v313 = vld [vmem:[#allocation4 + $0x10] sm:$0xff]
        %v314 = vld [vmem:[#allocation4 + $0x20] sm:$0xff]
        %v315 = vld [vmem:[#allocation4 + $0x30] sm:$0xff]
        %v316 = vld [vmem:[#allocation4 + $0x40] sm:$0xff]
        %v317 = vld [vmem:[#allocation4 + $0x50] sm:$0xff]
        %v318 = vld [vmem:[#allocation4 + $0x60] sm:$0xff]
        %v319 = vld [vmem:[#allocation4 + $0x70] sm:$0xff]
        %v320 = vld [vmem:[%s5] sm:$0x1]
        %v321 = vld [vmem:[%s5 + $0x1] sm:$0x1]
        %vm322 = vcmask 261120
        %v323 = vsel %vm322, %v302, 0.0
        %324 = vadd.xlane.f32.xlu0 %v323
        %v325 = vpop.xlane.xlu0 %324
        %v326 = vsel %vm322, %v303, 0.0
        %327 = vadd.xlane.f32.xlu0 %v326
        %v328 = vpop.xlane.xlu0 %327
        %v329 = vrcp.pop 32.0
        %v330 = vmul.f32 %v325, %v329
        %v331 = vmul.f32 %v328, %v329
        %v332 = vsub.f32 %v302, %v330
        %v333 = vsub.f32 %v303, %v331
        %v334 = vmul.f32 %v332, %v332
        %v335 = vmul.f32 %v333, %v333
        %v336 = vsel %vm322, %v334, 0.0
        %337 = vadd.xlane.f32.xlu0 %v336
        %v338 = vpop.xlane.xlu0 %337
        %v339 = vsel %vm322, %v335, 0.0
        %340 = vadd.xlane.f32.xlu0 %v339
        %v341 = vpop.xlane.xlu0 %340
        %v342 = vmul.f32 %v338, %v329
        %v343 = vmul.f32 %v341, %v329
        %v344 = vadd.f32 %v342, 1e-05
        %v345 = vadd.f32 %v343, 1e-05
        %v346 = vrsqrt.pop %v344
        %v347 = vrsqrt.pop %v345
        %v348 = vmul.f32 %v332, %v346
        %v349 = vmul.f32 %v333, %v347
        %v350 = vlaneseq
        %v351 = vshrl.u32 %v350, 7
        %v352 = vsub.s32 0, %v351
        %v353 = vrot.slane %v320, %v352
        %v354 = vmul.f32 %v348, %v353
        %v355 = vmul.f32 %v349, %v353
        %v356 = vlaneseq
        %v357 = vshrl.u32 %v356, 7
        %v358 = vsub.s32 0, %v357
        %v359 = vrot.slane %v321, %v358
        %v360 = vadd.f32 %v354, %v359
        %v361 = vadd.f32 %v355, %v359
        %v363 = vsel %vm322, %v360, 0
        %v366 = vsel %vm322, %v361, 0
        %368 = vmatprep.subr.mxu0 0.0
        %369 = vmatpush1.msra.mxu0 0.0
        %370 = vmatprep.subr.mxu0 0.0
        %371 = vmatpush1.msra.mxu0 0.0
        %372 = vmatprep.subr.mxu0 0.0
        %373 = vmatpush1.msra.mxu0 0.0
        %374 = vmatprep.subr.mxu0 0.0
        %375 = vmatpush1.msra.mxu0 0.0
        %376 = vmatprep.subr.mxu0 0.0
        %377 = vmatpush1.msra.mxu0 0.0
        %378 = vmatprep.subr.mxu0 0.0
        %379 = vmatpush1.msra.mxu0 0.0
        %380 = vmatprep.subr.mxu0 0.0
        %381 = vmatpush1.msra.mxu0 0.0
        %382 = vmatprep.subr.mxu0 0.0
        %383 = vmatpush1.msra.mxu0 0.0
        %384 = vmatprep.subr.mxu0 0.0
        %385 = vmatpush1.msra.mxu0 0.0
        %386 = vmatprep.subr.mxu0 0.0
        %387 = vmatpush1.msra.mxu0 0.0
        %388 = vmatprep.subr.mxu0 0.0
        %389 = vmatpush1.msra.mxu0 0.0
        %390 = vmatprep.subr.mxu0 0.0
        %391 = vmatpush1.msra.mxu0 0.0
        %392 = vmatprep.subr.mxu0 %v311
        %393 = vmatpush1.msra.mxu0 %v310
        %394 = vmatprep.subr.mxu0 %v309
        %395 = vmatpush1.msra.mxu0 %v308
        %396 = vmatprep.subr.mxu0 %v307
        %397 = vmatpush1.msra.mxu0 %v306
        %398 = vmatprep.subr.mxu0 %v305
        %399 = vmatpush1.msra.mxu0 %v304
        %400 = vmatprep.subr.mxu0 0.0
        %401 = vmatpush2.msra.mxu0 0.0
        %402 = vmatprep.subr.mxu0 0.0
        %403 = vmatpush2.msra.mxu0 0.0
        %404 = vmatprep.subr.mxu0 0.0
        %405 = vmatpush2.msra.mxu0 0.0
        %406 = vmatprep.subr.mxu0 0.0
        %407 = vmatpush2.msra.mxu0 0.0
        %408 = vmatprep.subr.mxu0 0.0
        %409 = vmatpush2.msra.mxu0 0.0
        %410 = vmatprep.subr.mxu0 0.0
        %411 = vmatpush2.msra.mxu0 0.0
        %412 = vmatprep.subr.mxu0 0.0
        %413 = vmatpush2.msra.mxu0 0.0
        %414 = vmatprep.subr.mxu0 0.0
        %415 = vmatpush2.msra.mxu0 0.0
        %416 = vmatprep.subr.mxu0 0.0
        %417 = vmatpush2.msra.mxu0 0.0
        %418 = vmatprep.subr.mxu0 0.0
        %419 = vmatpush2.msra.mxu0 0.0
        %420 = vmatprep.subr.mxu0 0.0
        %421 = vmatpush2.msra.mxu0 0.0
        %422 = vmatprep.subr.mxu0 0.0
        %423 = vmatpush2.msra.mxu0 0.0
        %424 = vmatprep.subr.mxu0 0.0
        %425 = vmatpush2.msra.mxu0 0.0
        %426 = vmatprep.subr.mxu0 0.0
        %427 = vmatpush2.msra.mxu0 0.0
        %428 = vmatprep.subr.mxu0 0.0
        %429 = vmatpush2.msra.mxu0 0.0
        %430 = vmatprep.subr.mxu0 0.0
        %431 = vmatpush2.msra.mxu0 0.0
        %432 = vmatprep.mubr.f32.mxu0 0.0
        %433 = vmatmul.mubr.f32.gmra.mxu0 %v363
        %v434 = vpop.f32.mrf.mxu0
        %v435 = vadd.f32 0.0, %v434
        %v436 = vpop.f32.mrf.mxu0
        %v437 = vadd.f32 0.0, %v436
        %438 = vmatprep.mubr.f32.mxu0 0.0
        %439 = vmatmul.mubr.f32.gmra.mxu0 %v366
        %v440 = vpop.f32.mrf.mxu0
        %v441 = vadd.f32 0.0, %v440
        %v442 = vpop.f32.mrf.mxu0
        %v443 = vadd.f32 0.0, %v442
        %444 = vdwg.mxu0
        %447 = vrot.lane.b32.xlu0 %v435, 112
        %v448 = vpop.permute.xlu0 %447
        %449 = vrot.lane.b32.xlu0 %v441, 112
        %v450 = vpop.permute.xlu0 %449
        %451 = vrot.lane.b32.xlu0 %v435, 96
        %v452 = vpop.permute.xlu0 %451
        %453 = vrot.lane.b32.xlu0 %v441, 96
        %v454 = vpop.permute.xlu0 %453
        %455 = vrot.lane.b32.xlu0 %v435, 80
        %v456 = vpop.permute.xlu0 %455
        %457 = vrot.lane.b32.xlu0 %v441, 80
        %v458 = vpop.permute.xlu0 %457
        %461 = vrot.lane.b32.xlu0 %v437, 112
        %v462 = vpop.permute.xlu0 %461
        %463 = vrot.lane.b32.xlu0 %v443, 112
        %v464 = vpop.permute.xlu0 %463
        %467 = vrot.lane.b32.xlu0 %v437, 96
        %v468 = vpop.permute.xlu0 %467
        %469 = vrot.lane.b32.xlu0 %v443, 96
        %v470 = vpop.permute.xlu0 %469
        %473 = vrot.lane.b32.xlu0 %v437, 80
        %v474 = vpop.permute.xlu0 %473
        %475 = vrot.lane.b32.xlu0 %v443, 80
        %v476 = vpop.permute.xlu0 %475
        %479 = vrot.lane.b32.xlu0 %v435, 64
        %v480 = vpop.permute.xlu0 %479
        %481 = vrot.lane.b32.xlu0 %v441, 64
        %v482 = vpop.permute.xlu0 %481
        %vm483 = vcmask 130048
        %v484 = vsel %vm483, %v435, 0
        %v486 = vsel %vm483, %v441, 0
        %v488 = vsel %vm483, %v480, 0
        %v490 = vsel %vm483, %v482, 0
        %492 = vmatprep.subr.mxu0 0.0
        %493 = vmatpush1.xpose.msra.mxu0 0.0
        %494 = vmatprep.subr.mxu0 0.0
        %495 = vmatpush1.xpose.msra.mxu0 0.0
        %496 = vmatprep.subr.mxu0 0.0
        %497 = vmatpush1.xpose.msra.mxu0 0.0
        %498 = vmatprep.subr.mxu0 0.0
        %499 = vmatpush1.xpose.msra.mxu0 0.0
        %500 = vmatprep.subr.mxu0 0.0
        %501 = vmatpush1.xpose.msra.mxu0 0.0
        %502 = vmatprep.subr.mxu0 0.0
        %503 = vmatpush1.xpose.msra.mxu0 0.0
        %504 = vmatprep.subr.mxu0 0.0
        %505 = vmatpush1.xpose.msra.mxu0 0.0
        %506 = vmatprep.subr.mxu0 0.0
        %507 = vmatpush1.xpose.msra.mxu0 0.0
        %508 = vmatprep.subr.mxu0 0.0
        %509 = vmatpush1.xpose.msra.mxu0 0.0
        %510 = vmatprep.subr.mxu0 0.0
        %511 = vmatpush1.xpose.msra.mxu0 0.0
        %512 = vmatprep.subr.mxu0 0.0
        %513 = vmatpush1.xpose.msra.mxu0 0.0
        %514 = vmatprep.subr.mxu0 0.0
        %515 = vmatpush1.xpose.msra.mxu0 0.0
        %516 = vmatprep.subr.mxu0 0.0
        %517 = vmatpush1.xpose.msra.mxu0 0.0
        %518 = vmatprep.subr.mxu0 0.0
        %519 = vmatpush1.xpose.msra.mxu0 0.0
        %520 = vmatprep.subr.mxu0 0.0
        %521 = vmatpush1.xpose.msra.mxu0 %v490
        %522 = vmatprep.subr.mxu0 0.0
        %523 = vmatpush1.xpose.msra.mxu0 %v488
        %524 = vmatprep.subr.mxu0 0.0
        %525 = vmatpush2.xpose.msra.mxu0 0.0
        %526 = vmatprep.subr.mxu0 0.0
        %527 = vmatpush2.xpose.msra.mxu0 0.0
        %528 = vmatprep.subr.mxu0 0.0
        %529 = vmatpush2.xpose.msra.mxu0 0.0
        %530 = vmatprep.subr.mxu0 0.0
        %531 = vmatpush2.xpose.msra.mxu0 0.0
        %532 = vmatprep.subr.mxu0 0.0
        %533 = vmatpush2.xpose.msra.mxu0 0.0
        %534 = vmatprep.subr.mxu0 0.0
        %535 = vmatpush2.xpose.msra.mxu0 0.0
        %536 = vmatprep.subr.mxu0 0.0
        %537 = vmatpush2.xpose.msra.mxu0 0.0
        %538 = vmatprep.subr.mxu0 0.0
        %539 = vmatpush2.xpose.msra.mxu0 0.0
        %540 = vmatprep.subr.mxu0 0.0
        %541 = vmatpush2.xpose.msra.mxu0 0.0
        %542 = vmatprep.subr.mxu0 0.0
        %543 = vmatpush2.xpose.msra.mxu0 0.0
        %544 = vmatprep.subr.mxu0 0.0
        %545 = vmatpush2.xpose.msra.mxu0 0.0
        %546 = vmatprep.subr.mxu0 0.0
        %547 = vmatpush2.xpose.msra.mxu0 0.0
        %548 = vmatprep.subr.mxu0 0.0
        %549 = vmatpush2.xpose.msra.mxu0 0.0
        %550 = vmatprep.subr.mxu0 0.0
        %551 = vmatpush2.xpose.msra.mxu0 0.0
        %552 = vmatprep.subr.mxu0 0.0
        %553 = vmatpush2.xpose.msra.mxu0 0.0
        %554 = vmatprep.subr.mxu0 0.0
        %555 = vmatpush2.xpose.msra.mxu0 0.0
        %556 = vmatprep.mubr.f32.mxu0 0.0
        %557 = vmatmul.mubr.f32.gmra.mxu0 %v484
        %v558 = vpop.f32.mrf.mxu0
        %v559 = vadd.f32 0.0, %v558
        %v560 = vpop.f32.mrf.mxu0
        %561 = vmatprep.mubr.f32.mxu0 0.0
        %562 = vmatmul.mubr.f32.gmra.mxu0 %v486
        %v563 = vpop.f32.mrf.mxu0
        %v564 = vadd.f32 0.0, %v563
        %v565 = vpop.f32.mrf.mxu0
        %566 = vdwg.mxu0
        %567 = vrot.lane.b32.xlu0 %v448, 64
        %v568 = vpop.permute.xlu0 %567
        %569 = vrot.lane.b32.xlu0 %v450, 64
        %v570 = vpop.permute.xlu0 %569
        %v571 = vsel %vm483, %v448, 0
        %v573 = vsel %vm483, %v450, 0
        %v575 = vsel %vm483, %v568, 0
        %v577 = vsel %vm483, %v570, 0
        %579 = vmatprep.subr.mxu0 0.0
        %580 = vmatpush1.xpose.msra.mxu0 0.0
        %581 = vmatprep.subr.mxu0 0.0
        %582 = vmatpush1.xpose.msra.mxu0 0.0
        %583 = vmatprep.subr.mxu0 0.0
        %584 = vmatpush1.xpose.msra.mxu0 0.0
        %585 = vmatprep.subr.mxu0 0.0
        %586 = vmatpush1.xpose.msra.mxu0 0.0
        %587 = vmatprep.subr.mxu0 0.0
        %588 = vmatpush1.xpose.msra.mxu0 0.0
        %589 = vmatprep.subr.mxu0 0.0
        %590 = vmatpush1.xpose.msra.mxu0 0.0
        %591 = vmatprep.subr.mxu0 0.0
        %592 = vmatpush1.xpose.msra.mxu0 0.0
        %593 = vmatprep.subr.mxu0 0.0
        %594 = vmatpush1.xpose.msra.mxu0 0.0
        %595 = vmatprep.subr.mxu0 0.0
        %596 = vmatpush1.xpose.msra.mxu0 0.0
        %597 = vmatprep.subr.mxu0 0.0
        %598 = vmatpush1.xpose.msra.mxu0 0.0
        %599 = vmatprep.subr.mxu0 0.0
        %600 = vmatpush1.xpose.msra.mxu0 0.0
        %601 = vmatprep.subr.mxu0 0.0
        %602 = vmatpush1.xpose.msra.mxu0 0.0
        %603 = vmatprep.subr.mxu0 0.0
        %604 = vmatpush1.xpose.msra.mxu0 0.0
        %605 = vmatprep.subr.mxu0 0.0
        %606 = vmatpush1.xpose.msra.mxu0 0.0
        %607 = vmatprep.subr.mxu0 0.0
        %608 = vmatpush1.xpose.msra.mxu0 %v577
        %609 = vmatprep.subr.mxu0 0.0
        %610 = vmatpush1.xpose.msra.mxu0 %v575
        %611 = vmatprep.subr.mxu0 0.0
        %612 = vmatpush2.xpose.msra.mxu0 0.0
        %613 = vmatprep.subr.mxu0 0.0
        %614 = vmatpush2.xpose.msra.mxu0 0.0
        %615 = vmatprep.subr.mxu0 0.0
        %616 = vmatpush2.xpose.msra.mxu0 0.0
        %617 = vmatprep.subr.mxu0 0.0
        %618 = vmatpush2.xpose.msra.mxu0 0.0
        %619 = vmatprep.subr.mxu0 0.0
        %620 = vmatpush2.xpose.msra.mxu0 0.0
        %621 = vmatprep.subr.mxu0 0.0
        %622 = vmatpush2.xpose.msra.mxu0 0.0
        %623 = vmatprep.subr.mxu0 0.0
        %624 = vmatpush2.xpose.msra.mxu0 0.0
        %625 = vmatprep.subr.mxu0 0.0
        %626 = vmatpush2.xpose.msra.mxu0 0.0
        %627 = vmatprep.subr.mxu0 0.0
        %628 = vmatpush2.xpose.msra.mxu0 0.0
        %629 = vmatprep.subr.mxu0 0.0
        %630 = vmatpush2.xpose.msra.mxu0 0.0
        %631 = vmatprep.subr.mxu0 0.0
        %632 = vmatpush2.xpose.msra.mxu0 0.0
        %633 = vmatprep.subr.mxu0 0.0
        %634 = vmatpush2.xpose.msra.mxu0 0.0
        %635 = vmatprep.subr.mxu0 0.0
        %636 = vmatpush2.xpose.msra.mxu0 0.0
        %637 = vmatprep.subr.mxu0 0.0
        %638 = vmatpush2.xpose.msra.mxu0 0.0
        %639 = vmatprep.subr.mxu0 0.0
        %640 = vmatpush2.xpose.msra.mxu0 0.0
        %641 = vmatprep.subr.mxu0 0.0
        %642 = vmatpush2.xpose.msra.mxu0 0.0
        %643 = vmatprep.mubr.f32.mxu0 0.0
        %644 = vmatmul.mubr.f32.gmra.mxu0 %v571
        %v645 = vpop.f32.mrf.mxu0
        %v646 = vadd.f32 0.0, %v645
        %v647 = vpop.f32.mrf.mxu0
        %648 = vmatprep.mubr.f32.mxu0 0.0
        %649 = vmatmul.mubr.f32.gmra.mxu0 %v573
        %v650 = vpop.f32.mrf.mxu0
        %v651 = vadd.f32 0.0, %v650
        %v652 = vpop.f32.mrf.mxu0
        %653 = vdwg.mxu0
        %654 = vrot.lane.b32.xlu0 %v452, 64
        %v655 = vpop.permute.xlu0 %654
        %656 = vrot.lane.b32.xlu0 %v454, 64
        %v657 = vpop.permute.xlu0 %656
        %v658 = vsel %vm483, %v452, 0
        %v660 = vsel %vm483, %v454, 0
        %v662 = vsel %vm483, %v655, 0
        %v664 = vsel %vm483, %v657, 0
        %666 = vmatprep.subr.mxu0 0.0
        %667 = vmatpush1.xpose.msra.mxu0 0.0
        %668 = vmatprep.subr.mxu0 0.0
        %669 = vmatpush1.xpose.msra.mxu0 0.0
        %670 = vmatprep.subr.mxu0 0.0
        %671 = vmatpush1.xpose.msra.mxu0 0.0
        %672 = vmatprep.subr.mxu0 0.0
        %673 = vmatpush1.xpose.msra.mxu0 0.0
        %674 = vmatprep.subr.mxu0 0.0
        %675 = vmatpush1.xpose.msra.mxu0 0.0
        %676 = vmatprep.subr.mxu0 0.0
        %677 = vmatpush1.xpose.msra.mxu0 0.0
        %678 = vmatprep.subr.mxu0 0.0
        %679 = vmatpush1.xpose.msra.mxu0 0.0
        %680 = vmatprep.subr.mxu0 0.0
        %681 = vmatpush1.xpose.msra.mxu0 0.0
        %682 = vmatprep.subr.mxu0 0.0
        %683 = vmatpush1.xpose.msra.mxu0 0.0
        %684 = vmatprep.subr.mxu0 0.0
        %685 = vmatpush1.xpose.msra.mxu0 0.0
        %686 = vmatprep.subr.mxu0 0.0
        %687 = vmatpush1.xpose.msra.mxu0 0.0
        %688 = vmatprep.subr.mxu0 0.0
        %689 = vmatpush1.xpose.msra.mxu0 0.0
        %690 = vmatprep.subr.mxu0 0.0
        %691 = vmatpush1.xpose.msra.mxu0 0.0
        %692 = vmatprep.subr.mxu0 0.0
        %693 = vmatpush1.xpose.msra.mxu0 0.0
        %694 = vmatprep.subr.mxu0 0.0
        %695 = vmatpush1.xpose.msra.mxu0 %v664
        %696 = vmatprep.subr.mxu0 0.0
        %697 = vmatpush1.xpose.msra.mxu0 %v662
        %698 = vmatprep.subr.mxu0 0.0
        %699 = vmatpush2.xpose.msra.mxu0 0.0
        %700 = vmatprep.subr.mxu0 0.0
        %701 = vmatpush2.xpose.msra.mxu0 0.0
        %702 = vmatprep.subr.mxu0 0.0
        %703 = vmatpush2.xpose.msra.mxu0 0.0
        %704 = vmatprep.subr.mxu0 0.0
        %705 = vmatpush2.xpose.msra.mxu0 0.0
        %706 = vmatprep.subr.mxu0 0.0
        %707 = vmatpush2.xpose.msra.mxu0 0.0
        %708 = vmatprep.subr.mxu0 0.0
        %709 = vmatpush2.xpose.msra.mxu0 0.0
        %710 = vmatprep.subr.mxu0 0.0
        %711 = vmatpush2.xpose.msra.mxu0 0.0
        %712 = vmatprep.subr.mxu0 0.0
        %713 = vmatpush2.xpose.msra.mxu0 0.0
        %714 = vmatprep.subr.mxu0 0.0
        %715 = vmatpush2.xpose.msra.mxu0 0.0
        %716 = vmatprep.subr.mxu0 0.0
        %717 = vmatpush2.xpose.msra.mxu0 0.0
        %718 = vmatprep.subr.mxu0 0.0
        %719 = vmatpush2.xpose.msra.mxu0 0.0
        %720 = vmatprep.subr.mxu0 0.0
        %721 = vmatpush2.xpose.msra.mxu0 0.0
        %722 = vmatprep.subr.mxu0 0.0
        %723 = vmatpush2.xpose.msra.mxu0 0.0
        %724 = vmatprep.subr.mxu0 0.0
        %725 = vmatpush2.xpose.msra.mxu0 0.0
        %726 = vmatprep.subr.mxu0 0.0
        %727 = vmatpush2.xpose.msra.mxu0 0.0
        %728 = vmatprep.subr.mxu0 0.0
        %729 = vmatpush2.xpose.msra.mxu0 0.0
        %730 = vmatprep.mubr.f32.mxu0 0.0
        %731 = vmatmul.mubr.f32.gmra.mxu0 %v658
        %v732 = vpop.f32.mrf.mxu0
        %v733 = vadd.f32 0.0, %v732
        %v734 = vpop.f32.mrf.mxu0
        %735 = vmatprep.mubr.f32.mxu0 0.0
        %736 = vmatmul.mubr.f32.gmra.mxu0 %v660
        %v737 = vpop.f32.mrf.mxu0
        %v738 = vadd.f32 0.0, %v737
        %v739 = vpop.f32.mrf.mxu0
        %740 = vdwg.mxu0
        %741 = vrot.lane.b32.xlu0 %v456, 64
        %v742 = vpop.permute.xlu0 %741
        %743 = vrot.lane.b32.xlu0 %v458, 64
        %v744 = vpop.permute.xlu0 %743
        %v745 = vsel %vm483, %v456, 0
        %v747 = vsel %vm483, %v458, 0
        %v749 = vsel %vm483, %v742, 0
        %v751 = vsel %vm483, %v744, 0
        %753 = vmatprep.subr.mxu0 0.0
        %754 = vmatpush1.xpose.msra.mxu0 0.0
        %755 = vmatprep.subr.mxu0 0.0
        %756 = vmatpush1.xpose.msra.mxu0 0.0
        %757 = vmatprep.subr.mxu0 0.0
        %758 = vmatpush1.xpose.msra.mxu0 0.0
        %759 = vmatprep.subr.mxu0 0.0
        %760 = vmatpush1.xpose.msra.mxu0 0.0
        %761 = vmatprep.subr.mxu0 0.0
        %762 = vmatpush1.xpose.msra.mxu0 0.0
        %763 = vmatprep.subr.mxu0 0.0
        %764 = vmatpush1.xpose.msra.mxu0 0.0
        %765 = vmatprep.subr.mxu0 0.0
        %766 = vmatpush1.xpose.msra.mxu0 0.0
        %767 = vmatprep.subr.mxu0 0.0
        %768 = vmatpush1.xpose.msra.mxu0 0.0
        %769 = vmatprep.subr.mxu0 0.0
        %770 = vmatpush1.xpose.msra.mxu0 0.0
        %771 = vmatprep.subr.mxu0 0.0
        %772 = vmatpush1.xpose.msra.mxu0 0.0
        %773 = vmatprep.subr.mxu0 0.0
        %774 = vmatpush1.xpose.msra.mxu0 0.0
        %775 = vmatprep.subr.mxu0 0.0
        %776 = vmatpush1.xpose.msra.mxu0 0.0
        %777 = vmatprep.subr.mxu0 0.0
        %778 = vmatpush1.xpose.msra.mxu0 0.0
        %779 = vmatprep.subr.mxu0 0.0
        %780 = vmatpush1.xpose.msra.mxu0 0.0
        %781 = vmatprep.subr.mxu0 0.0
        %782 = vmatpush1.xpose.msra.mxu0 %v751
        %783 = vmatprep.subr.mxu0 0.0
        %784 = vmatpush1.xpose.msra.mxu0 %v749
        %785 = vmatprep.subr.mxu0 0.0
        %786 = vmatpush2.xpose.msra.mxu0 0.0
        %787 = vmatprep.subr.mxu0 0.0
        %788 = vmatpush2.xpose.msra.mxu0 0.0
        %789 = vmatprep.subr.mxu0 0.0
        %790 = vmatpush2.xpose.msra.mxu0 0.0
        %791 = vmatprep.subr.mxu0 0.0
        %792 = vmatpush2.xpose.msra.mxu0 0.0
        %793 = vmatprep.subr.mxu0 0.0
        %794 = vmatpush2.xpose.msra.mxu0 0.0
        %795 = vmatprep.subr.mxu0 0.0
        %796 = vmatpush2.xpose.msra.mxu0 0.0
        %797 = vmatprep.subr.mxu0 0.0
        %798 = vmatpush2.xpose.msra.mxu0 0.0
        %799 = vmatprep.subr.mxu0 0.0
        %800 = vmatpush2.xpose.msra.mxu0 0.0
        %801 = vmatprep.subr.mxu0 0.0
        %802 = vmatpush2.xpose.msra.mxu0 0.0
        %803 = vmatprep.subr.mxu0 0.0
        %804 = vmatpush2.xpose.msra.mxu0 0.0
        %805 = vmatprep.subr.mxu0 0.0
        %806 = vmatpush2.xpose.msra.mxu0 0.0
        %807 = vmatprep.subr.mxu0 0.0
        %808 = vmatpush2.xpose.msra.mxu0 0.0
        %809 = vmatprep.subr.mxu0 0.0
        %810 = vmatpush2.xpose.msra.mxu0 0.0
        %811 = vmatprep.subr.mxu0 0.0
        %812 = vmatpush2.xpose.msra.mxu0 0.0
        %813 = vmatprep.subr.mxu0 0.0
        %814 = vmatpush2.xpose.msra.mxu0 0.0
        %815 = vmatprep.subr.mxu0 0.0
        %816 = vmatpush2.xpose.msra.mxu0 0.0
        %817 = vmatprep.mubr.f32.mxu0 0.0
        %818 = vmatmul.mubr.f32.gmra.mxu0 %v745
        %v819 = vpop.f32.mrf.mxu0
        %v820 = vadd.f32 0.0, %v819
        %v821 = vpop.f32.mrf.mxu0
        %822 = vmatprep.mubr.f32.mxu0 0.0
        %823 = vmatmul.mubr.f32.gmra.mxu0 %v747
        %v824 = vpop.f32.mrf.mxu0
        %v825 = vadd.f32 0.0, %v824
        %v826 = vpop.f32.mrf.mxu0
        %827 = vdwg.mxu0
        %v828 = vsel %vm483, %v559, -inf
        %829 = vmax.xlane.f32.xlu0 %v828
        %v830 = vpop.xlane.xlu0 %829
        %v831 = vsel %vm483, %v564, -inf
        %832 = vmax.xlane.f32.xlu0 %v831
        %v833 = vpop.xlane.xlu0 %832
        %v834 = vsel %vm483, %v646, -inf
        %835 = vmax.xlane.f32.xlu0 %v834
        %v836 = vpop.xlane.xlu0 %835
        %v837 = vsel %vm483, %v651, -inf
        %838 = vmax.xlane.f32.xlu0 %v837
        %v839 = vpop.xlane.xlu0 %838
        %v840 = vsel %vm483, %v733, -inf
        %841 = vmax.xlane.f32.xlu0 %v840
        %v842 = vpop.xlane.xlu0 %841
        %v843 = vsel %vm483, %v738, -inf
        %844 = vmax.xlane.f32.xlu0 %v843
        %v845 = vpop.xlane.xlu0 %844
        %v846 = vsel %vm483, %v820, -inf
        %847 = vmax.xlane.f32.xlu0 %v846
        %v848 = vpop.xlane.xlu0 %847
        %v849 = vsel %vm483, %v825, -inf
        %850 = vmax.xlane.f32.xlu0 %v849
        %v851 = vpop.xlane.xlu0 %850
        %v852 = vsub.f32 %v559, %v830
        %v853 = vsub.f32 %v564, %v833
        %v854 = vsub.f32 %v646, %v836
        %v855 = vsub.f32 %v651, %v839
        %v856 = vsub.f32 %v733, %v842
        %v857 = vsub.f32 %v738, %v845
        %v858 = vsub.f32 %v820, %v848
        %v859 = vsub.f32 %v825, %v851
        %v860 = vmul.f32 %v852, 1.442695
        %v861 = vpow.pop %v860
        %v862 = vmul.f32 %v853, 1.442695
        %v863 = vpow.pop %v862
        %v864 = vmul.f32 %v854, 1.442695
        %v865 = vpow.pop %v864
        %v866 = vmul.f32 %v855, 1.442695
        %v867 = vpow.pop %v866
        %v868 = vmul.f32 %v856, 1.442695
        %v869 = vpow.pop %v868
        %v870 = vmul.f32 %v857, 1.442695
        %v871 = vpow.pop %v870
        %v872 = vmul.f32 %v858, 1.442695
        %v873 = vpow.pop %v872
        %v874 = vmul.f32 %v859, 1.442695
        %v875 = vpow.pop %v874
        %v876 = vsel %vm483, %v861, 0.0
        %877 = vadd.xlane.f32.xlu0 %v876
        %v878 = vpop.xlane.xlu0 %877
        %v879 = vsel %vm483, %v863, 0.0
        %880 = vadd.xlane.f32.xlu0 %v879
        %v881 = vpop.xlane.xlu0 %880
        %v882 = vsel %vm483, %v865, 0.0
        %883 = vadd.xlane.f32.xlu0 %v882
        %v884 = vpop.xlane.xlu0 %883
        %v885 = vsel %vm483, %v867, 0.0
        %886 = vadd.xlane.f32.xlu0 %v885
        %v887 = vpop.xlane.xlu0 %886
        %v888 = vsel %vm483, %v869, 0.0
        %889 = vadd.xlane.f32.xlu0 %v888
        %v890 = vpop.xlane.xlu0 %889
        %v891 = vsel %vm483, %v871, 0.0
        %892 = vadd.xlane.f32.xlu0 %v891
        %v893 = vpop.xlane.xlu0 %892
        %v894 = vsel %vm483, %v873, 0.0
        %895 = vadd.xlane.f32.xlu0 %v894
        %v896 = vpop.xlane.xlu0 %895
        %v897 = vsel %vm483, %v875, 0.0
        %898 = vadd.xlane.f32.xlu0 %v897
        %v899 = vpop.xlane.xlu0 %898
        %v900 = vrcp.pop %v878
        %v901 = vrcp.pop %v881
        %v902 = vrcp.pop %v884
        %v903 = vrcp.pop %v887
        %v904 = vrcp.pop %v890
        %v905 = vrcp.pop %v893
        %v906 = vrcp.pop %v896
        %v907 = vrcp.pop %v899
        %v908 = vmul.f32 %v861, %v900
        %v909 = vmul.f32 %v863, %v901
        %v910 = vmul.f32 %v865, %v902
        %v911 = vmul.f32 %v867, %v903
        %v912 = vmul.f32 %v869, %v904
        %v913 = vmul.f32 %v871, %v905
        %v914 = vmul.f32 %v873, %v906
        %v915 = vmul.f32 %v875, %v907
        %v917 = vsel %vm483, %v908, 0
        %v920 = vsel %vm483, %v909, 0
        %922 = vmatprep.subr.mxu0 0.0
        %923 = vmatpush1.msra.mxu0 0.0
        %924 = vmatprep.subr.mxu0 0.0
        %925 = vmatpush1.msra.mxu0 0.0
        %926 = vmatprep.subr.mxu0 0.0
        %927 = vmatpush1.msra.mxu0 0.0
        %928 = vmatprep.subr.mxu0 0.0
        %929 = vmatpush1.msra.mxu0 0.0
        %930 = vmatprep.subr.mxu0 0.0
        %931 = vmatpush1.msra.mxu0 0.0
        %932 = vmatprep.subr.mxu0 0.0
        %933 = vmatpush1.msra.mxu0 0.0
        %934 = vmatprep.subr.mxu0 0.0
        %935 = vmatpush1.msra.mxu0 0.0
        %936 = vmatprep.subr.mxu0 0.0
        %937 = vmatpush1.msra.mxu0 0.0
        %938 = vmatprep.subr.mxu0 0.0
        %939 = vmatpush1.msra.mxu0 0.0
        %940 = vmatprep.subr.mxu0 0.0
        %941 = vmatpush1.msra.mxu0 0.0
        %942 = vmatprep.subr.mxu0 0.0
        %943 = vmatpush1.msra.mxu0 0.0
        %944 = vmatprep.subr.mxu0 0.0
        %945 = vmatpush1.msra.mxu0 0.0
        %946 = vmatprep.subr.mxu0 0.0
        %947 = vmatpush1.msra.mxu0 0.0
        %948 = vmatprep.subr.mxu0 0.0
        %949 = vmatpush1.msra.mxu0 0.0
        %950 = vmatprep.subr.mxu0 0.0
        %951 = vmatpush1.msra.mxu0 %v443
        %952 = vmatprep.subr.mxu0 0.0
        %953 = vmatpush1.msra.mxu0 %v437
        %954 = vmatprep.subr.mxu0 0.0
        %955 = vmatpush2.msra.mxu0 0.0
        %956 = vmatprep.subr.mxu0 0.0
        %957 = vmatpush2.msra.mxu0 0.0
        %958 = vmatprep.subr.mxu0 0.0
        %959 = vmatpush2.msra.mxu0 0.0
        %960 = vmatprep.subr.mxu0 0.0
        %961 = vmatpush2.msra.mxu0 0.0
        %962 = vmatprep.subr.mxu0 0.0
        %963 = vmatpush2.msra.mxu0 0.0
        %964 = vmatprep.subr.mxu0 0.0
        %965 = vmatpush2.msra.mxu0 0.0
        %966 = vmatprep.subr.mxu0 0.0
        %967 = vmatpush2.msra.mxu0 0.0
        %968 = vmatprep.subr.mxu0 0.0
        %969 = vmatpush2.msra.mxu0 0.0
        %970 = vmatprep.subr.mxu0 0.0
        %971 = vmatpush2.msra.mxu0 0.0
        %972 = vmatprep.subr.mxu0 0.0
        %973 = vmatpush2.msra.mxu0 0.0
        %974 = vmatprep.subr.mxu0 0.0
        %975 = vmatpush2.msra.mxu0 0.0
        %976 = vmatprep.subr.mxu0 0.0
        %977 = vmatpush2.msra.mxu0 0.0
        %978 = vmatprep.subr.mxu0 0.0
        %979 = vmatpush2.msra.mxu0 0.0
        %980 = vmatprep.subr.mxu0 0.0
        %981 = vmatpush2.msra.mxu0 0.0
        %982 = vmatprep.subr.mxu0 0.0
        %983 = vmatpush2.msra.mxu0 0.0
        %984 = vmatprep.subr.mxu0 0.0
        %985 = vmatpush2.msra.mxu0 0.0
        %986 = vmatprep.mubr.f32.mxu0 0.0
        %987 = vmatmul.mubr.f32.gmra.mxu0 %v917
        %v988 = vpop.f32.mrf.mxu0
        %v989 = vadd.f32 0.0, %v988
        %v990 = vpop.f32.mrf.mxu0
        %991 = vmatprep.mubr.f32.mxu0 0.0
        %992 = vmatmul.mubr.f32.gmra.mxu0 %v920
        %v993 = vpop.f32.mrf.mxu0
        %v994 = vadd.f32 0.0, %v993
        %v995 = vpop.f32.mrf.mxu0
        %996 = vdwg.mxu0
        %v998 = vsel %vm483, %v910, 0
        %v1001 = vsel %vm483, %v911, 0
        %1003 = vmatprep.subr.mxu0 0.0
        %1004 = vmatpush1.msra.mxu0 0.0
        %1005 = vmatprep.subr.mxu0 0.0
        %1006 = vmatpush1.msra.mxu0 0.0
        %1007 = vmatprep.subr.mxu0 0.0
        %1008 = vmatpush1.msra.mxu0 0.0
        %1009 = vmatprep.subr.mxu0 0.0
        %1010 = vmatpush1.msra.mxu0 0.0
        %1011 = vmatprep.subr.mxu0 0.0
        %1012 = vmatpush1.msra.mxu0 0.0
        %1013 = vmatprep.subr.mxu0 0.0
        %1014 = vmatpush1.msra.mxu0 0.0
        %1015 = vmatprep.subr.mxu0 0.0
        %1016 = vmatpush1.msra.mxu0 0.0
        %1017 = vmatprep.subr.mxu0 0.0
        %1018 = vmatpush1.msra.mxu0 0.0
        %1019 = vmatprep.subr.mxu0 0.0
        %1020 = vmatpush1.msra.mxu0 0.0
        %1021 = vmatprep.subr.mxu0 0.0
        %1022 = vmatpush1.msra.mxu0 0.0
        %1023 = vmatprep.subr.mxu0 0.0
        %1024 = vmatpush1.msra.mxu0 0.0
        %1025 = vmatprep.subr.mxu0 0.0
        %1026 = vmatpush1.msra.mxu0 0.0
        %1027 = vmatprep.subr.mxu0 0.0
        %1028 = vmatpush1.msra.mxu0 0.0
        %1029 = vmatprep.subr.mxu0 0.0
        %1030 = vmatpush1.msra.mxu0 0.0
        %1031 = vmatprep.subr.mxu0 0.0
        %1032 = vmatpush1.msra.mxu0 %v464
        %1033 = vmatprep.subr.mxu0 0.0
        %1034 = vmatpush1.msra.mxu0 %v462
        %1035 = vmatprep.subr.mxu0 0.0
        %1036 = vmatpush2.msra.mxu0 0.0
        %1037 = vmatprep.subr.mxu0 0.0
        %1038 = vmatpush2.msra.mxu0 0.0
        %1039 = vmatprep.subr.mxu0 0.0
        %1040 = vmatpush2.msra.mxu0 0.0
        %1041 = vmatprep.subr.mxu0 0.0
        %1042 = vmatpush2.msra.mxu0 0.0
        %1043 = vmatprep.subr.mxu0 0.0
        %1044 = vmatpush2.msra.mxu0 0.0
        %1045 = vmatprep.subr.mxu0 0.0
        %1046 = vmatpush2.msra.mxu0 0.0
        %1047 = vmatprep.subr.mxu0 0.0
        %1048 = vmatpush2.msra.mxu0 0.0
        %1049 = vmatprep.subr.mxu0 0.0
        %1050 = vmatpush2.msra.mxu0 0.0
        %1051 = vmatprep.subr.mxu0 0.0
        %1052 = vmatpush2.msra.mxu0 0.0
        %1053 = vmatprep.subr.mxu0 0.0
        %1054 = vmatpush2.msra.mxu0 0.0
        %1055 = vmatprep.subr.mxu0 0.0
        %1056 = vmatpush2.msra.mxu0 0.0
        %1057 = vmatprep.subr.mxu0 0.0
        %1058 = vmatpush2.msra.mxu0 0.0
        %1059 = vmatprep.subr.mxu0 0.0
        %1060 = vmatpush2.msra.mxu0 0.0
        %1061 = vmatprep.subr.mxu0 0.0
        %1062 = vmatpush2.msra.mxu0 0.0
        %1063 = vmatprep.subr.mxu0 0.0
        %1064 = vmatpush2.msra.mxu0 0.0
        %1065 = vmatprep.subr.mxu0 0.0
        %1066 = vmatpush2.msra.mxu0 0.0
        %1067 = vmatprep.mubr.f32.mxu0 0.0
        %1068 = vmatmul.mubr.f32.gmra.mxu0 %v998
        %v1069 = vpop.f32.mrf.mxu0
        %v1070 = vadd.f32 0.0, %v1069
        %v1071 = vpop.f32.mrf.mxu0
        %1072 = vmatprep.mubr.f32.mxu0 0.0
        %1073 = vmatmul.mubr.f32.gmra.mxu0 %v1001
        %v1074 = vpop.f32.mrf.mxu0
        %v1075 = vadd.f32 0.0, %v1074
        %v1076 = vpop.f32.mrf.mxu0
        %1077 = vdwg.mxu0
        %v1079 = vsel %vm483, %v912, 0
        %v1082 = vsel %vm483, %v913, 0
        %1084 = vmatprep.subr.mxu0 0.0
        %1085 = vmatpush1.msra.mxu0 0.0
        %1086 = vmatprep.subr.mxu0 0.0
        %1087 = vmatpush1.msra.mxu0 0.0
        %1088 = vmatprep.subr.mxu0 0.0
        %1089 = vmatpush1.msra.mxu0 0.0
        %1090 = vmatprep.subr.mxu0 0.0
        %1091 = vmatpush1.msra.mxu0 0.0
        %1092 = vmatprep.subr.mxu0 0.0
        %1093 = vmatpush1.msra.mxu0 0.0
        %1094 = vmatprep.subr.mxu0 0.0
        %1095 = vmatpush1.msra.mxu0 0.0
        %1096 = vmatprep.subr.mxu0 0.0
        %1097 = vmatpush1.msra.mxu0 0.0
        %1098 = vmatprep.subr.mxu0 0.0
        %1099 = vmatpush1.msra.mxu0 0.0
        %1100 = vmatprep.subr.mxu0 0.0
        %1101 = vmatpush1.msra.mxu0 0.0
        %1102 = vmatprep.subr.mxu0 0.0
        %1103 = vmatpush1.msra.mxu0 0.0
        %1104 = vmatprep.subr.mxu0 0.0
        %1105 = vmatpush1.msra.mxu0 0.0
        %1106 = vmatprep.subr.mxu0 0.0
        %1107 = vmatpush1.msra.mxu0 0.0
        %1108 = vmatprep.subr.mxu0 0.0
        %1109 = vmatpush1.msra.mxu0 0.0
        %1110 = vmatprep.subr.mxu0 0.0
        %1111 = vmatpush1.msra.mxu0 0.0
        %1112 = vmatprep.subr.mxu0 0.0
        %1113 = vmatpush1.msra.mxu0 %v470
        %1114 = vmatprep.subr.mxu0 0.0
        %1115 = vmatpush1.msra.mxu0 %v468
        %1116 = vmatprep.subr.mxu0 0.0
        %1117 = vmatpush2.msra.mxu0 0.0
        %1118 = vmatprep.subr.mxu0 0.0
        %1119 = vmatpush2.msra.mxu0 0.0
        %1120 = vmatprep.subr.mxu0 0.0
        %1121 = vmatpush2.msra.mxu0 0.0
        %1122 = vmatprep.subr.mxu0 0.0
        %1123 = vmatpush2.msra.mxu0 0.0
        %1124 = vmatprep.subr.mxu0 0.0
        %1125 = vmatpush2.msra.mxu0 0.0
        %1126 = vmatprep.subr.mxu0 0.0
        %1127 = vmatpush2.msra.mxu0 0.0
        %1128 = vmatprep.subr.mxu0 0.0
        %1129 = vmatpush2.msra.mxu0 0.0
        %1130 = vmatprep.subr.mxu0 0.0
        %1131 = vmatpush2.msra.mxu0 0.0
        %1132 = vmatprep.subr.mxu0 0.0
        %1133 = vmatpush2.msra.mxu0 0.0
        %1134 = vmatprep.subr.mxu0 0.0
        %1135 = vmatpush2.msra.mxu0 0.0
        %1136 = vmatprep.subr.mxu0 0.0
        %1137 = vmatpush2.msra.mxu0 0.0
        %1138 = vmatprep.subr.mxu0 0.0
        %1139 = vmatpush2.msra.mxu0 0.0
        %1140 = vmatprep.subr.mxu0 0.0
        %1141 = vmatpush2.msra.mxu0 0.0
        %1142 = vmatprep.subr.mxu0 0.0
        %1143 = vmatpush2.msra.mxu0 0.0
        %1144 = vmatprep.subr.mxu0 0.0
        %1145 = vmatpush2.msra.mxu0 0.0
        %1146 = vmatprep.subr.mxu0 0.0
        %1147 = vmatpush2.msra.mxu0 0.0
        %1148 = vmatprep.mubr.f32.mxu0 0.0
        %1149 = vmatmul.mubr.f32.gmra.mxu0 %v1079
        %v1150 = vpop.f32.mrf.mxu0
        %v1151 = vadd.f32 0.0, %v1150
        %v1152 = vpop.f32.mrf.mxu0
        %1153 = vmatprep.mubr.f32.mxu0 0.0
        %1154 = vmatmul.mubr.f32.gmra.mxu0 %v1082
        %v1155 = vpop.f32.mrf.mxu0
        %v1156 = vadd.f32 0.0, %v1155
        %v1157 = vpop.f32.mrf.mxu0
        %1158 = vdwg.mxu0
        %v1160 = vsel %vm483, %v914, 0
        %v1163 = vsel %vm483, %v915, 0
        %1165 = vmatprep.subr.mxu0 0.0
        %1166 = vmatpush1.msra.mxu0 0.0
        %1167 = vmatprep.subr.mxu0 0.0
        %1168 = vmatpush1.msra.mxu0 0.0
        %1169 = vmatprep.subr.mxu0 0.0
        %1170 = vmatpush1.msra.mxu0 0.0
        %1171 = vmatprep.subr.mxu0 0.0
        %1172 = vmatpush1.msra.mxu0 0.0
        %1173 = vmatprep.subr.mxu0 0.0
        %1174 = vmatpush1.msra.mxu0 0.0
        %1175 = vmatprep.subr.mxu0 0.0
        %1176 = vmatpush1.msra.mxu0 0.0
        %1177 = vmatprep.subr.mxu0 0.0
        %1178 = vmatpush1.msra.mxu0 0.0
        %1179 = vmatprep.subr.mxu0 0.0
        %1180 = vmatpush1.msra.mxu0 0.0
        %1181 = vmatprep.subr.mxu0 0.0
        %1182 = vmatpush1.msra.mxu0 0.0
        %1183 = vmatprep.subr.mxu0 0.0
        %1184 = vmatpush1.msra.mxu0 0.0
        %1185 = vmatprep.subr.mxu0 0.0
        %1186 = vmatpush1.msra.mxu0 0.0
        %1187 = vmatprep.subr.mxu0 0.0
        %1188 = vmatpush1.msra.mxu0 0.0
        %1189 = vmatprep.subr.mxu0 0.0
        %1190 = vmatpush1.msra.mxu0 0.0
        %1191 = vmatprep.subr.mxu0 0.0
        %1192 = vmatpush1.msra.mxu0 0.0
        %1193 = vmatprep.subr.mxu0 0.0
        %1194 = vmatpush1.msra.mxu0 %v476
        %1195 = vmatprep.subr.mxu0 0.0
        %1196 = vmatpush1.msra.mxu0 %v474
        %1197 = vmatprep.subr.mxu0 0.0
        %1198 = vmatpush2.msra.mxu0 0.0
        %1199 = vmatprep.subr.mxu0 0.0
        %1200 = vmatpush2.msra.mxu0 0.0
        %1201 = vmatprep.subr.mxu0 0.0
        %1202 = vmatpush2.msra.mxu0 0.0
        %1203 = vmatprep.subr.mxu0 0.0
        %1204 = vmatpush2.msra.mxu0 0.0
        %1205 = vmatprep.subr.mxu0 0.0
        %1206 = vmatpush2.msra.mxu0 0.0
        %1207 = vmatprep.subr.mxu0 0.0
        %1208 = vmatpush2.msra.mxu0 0.0
        %1209 = vmatprep.subr.mxu0 0.0
        %1210 = vmatpush2.msra.mxu0 0.0
        %1211 = vmatprep.subr.mxu0 0.0
        %1212 = vmatpush2.msra.mxu0 0.0
        %1213 = vmatprep.subr.mxu0 0.0
        %1214 = vmatpush2.msra.mxu0 0.0
        %1215 = vmatprep.subr.mxu0 0.0
        %1216 = vmatpush2.msra.mxu0 0.0
        %1217 = vmatprep.subr.mxu0 0.0
        %1218 = vmatpush2.msra.mxu0 0.0
        %1219 = vmatprep.subr.mxu0 0.0
        %1220 = vmatpush2.msra.mxu0 0.0
        %1221 = vmatprep.subr.mxu0 0.0
        %1222 = vmatpush2.msra.mxu0 0.0
        %1223 = vmatprep.subr.mxu0 0.0
        %1224 = vmatpush2.msra.mxu0 0.0
        %1225 = vmatprep.subr.mxu0 0.0
        %1226 = vmatpush2.msra.mxu0 0.0
        %1227 = vmatprep.subr.mxu0 0.0
        %1228 = vmatpush2.msra.mxu0 0.0
        %1229 = vmatprep.mubr.f32.mxu0 0.0
        %1230 = vmatmul.mubr.f32.gmra.mxu0 %v1160
        %v1231 = vpop.f32.mrf.mxu0
        %v1232 = vadd.f32 0.0, %v1231
        %v1233 = vpop.f32.mrf.mxu0
        %1234 = vmatprep.mubr.f32.mxu0 0.0
        %1235 = vmatmul.mubr.f32.gmra.mxu0 %v1163
        %v1236 = vpop.f32.mrf.mxu0
        %v1237 = vadd.f32 0.0, %v1236
        %v1238 = vpop.f32.mrf.mxu0
        %1239 = vdwg.mxu0
        %v1241 = vsel %vm483, %v989, 0
        %v1244 = vsel %vm483, %v994, 0
        %1246 = vmatprep.subr.mxu0 0.0
        %1247 = vmatpush1.msra.mxu0 0.0
        %1248 = vmatprep.subr.mxu0 0.0
        %1249 = vmatpush1.msra.mxu0 0.0
        %1250 = vmatprep.subr.mxu0 0.0
        %1251 = vmatpush1.msra.mxu0 0.0
        %1252 = vmatprep.subr.mxu0 0.0
        %1253 = vmatpush1.msra.mxu0 0.0
        %1254 = vmatprep.subr.mxu0 0.0
        %1255 = vmatpush1.msra.mxu0 0.0
        %1256 = vmatprep.subr.mxu0 0.0
        %1257 = vmatpush1.msra.mxu0 0.0
        %1258 = vmatprep.subr.mxu0 0.0
        %1259 = vmatpush1.msra.mxu0 0.0
        %1260 = vmatprep.subr.mxu0 0.0
        %1261 = vmatpush1.msra.mxu0 0.0
        %1262 = vmatprep.subr.mxu0 0.0
        %1263 = vmatpush1.msra.mxu0 0.0
        %1264 = vmatprep.subr.mxu0 0.0
        %1265 = vmatpush1.msra.mxu0 0.0
        %1266 = vmatprep.subr.mxu0 0.0
        %1267 = vmatpush1.msra.mxu0 0.0
        %1268 = vmatprep.subr.mxu0 0.0
        %1269 = vmatpush1.msra.mxu0 0.0
        %1270 = vmatprep.subr.mxu0 0.0
        %1271 = vmatpush1.msra.mxu0 0.0
        %1272 = vmatprep.subr.mxu0 0.0
        %1273 = vmatpush1.msra.mxu0 0.0
        %1274 = vmatprep.subr.mxu0 0.0
        %1275 = vmatpush1.msra.mxu0 %v313
        %1276 = vmatprep.subr.mxu0 0.0
        %1277 = vmatpush1.msra.mxu0 %v312
        %1278 = vmatprep.subr.mxu0 0.0
        %1279 = vmatpush2.msra.mxu0 0.0
        %1280 = vmatprep.subr.mxu0 0.0
        %1281 = vmatpush2.msra.mxu0 0.0
        %1282 = vmatprep.subr.mxu0 0.0
        %1283 = vmatpush2.msra.mxu0 0.0
        %1284 = vmatprep.subr.mxu0 0.0
        %1285 = vmatpush2.msra.mxu0 0.0
        %1286 = vmatprep.subr.mxu0 0.0
        %1287 = vmatpush2.msra.mxu0 0.0
        %1288 = vmatprep.subr.mxu0 0.0
        %1289 = vmatpush2.msra.mxu0 0.0
        %1290 = vmatprep.subr.mxu0 0.0
        %1291 = vmatpush2.msra.mxu0 0.0
        %1292 = vmatprep.subr.mxu0 0.0
        %1293 = vmatpush2.msra.mxu0 0.0
        %1294 = vmatprep.subr.mxu0 0.0
        %1295 = vmatpush2.msra.mxu0 0.0
        %1296 = vmatprep.subr.mxu0 0.0
        %1297 = vmatpush2.msra.mxu0 0.0
        %1298 = vmatprep.subr.mxu0 0.0
        %1299 = vmatpush2.msra.mxu0 0.0
        %1300 = vmatprep.subr.mxu0 0.0
        %1301 = vmatpush2.msra.mxu0 0.0
        %1302 = vmatprep.subr.mxu0 0.0
        %1303 = vmatpush2.msra.mxu0 0.0
        %1304 = vmatprep.subr.mxu0 0.0
        %1305 = vmatpush2.msra.mxu0 0.0
        %1306 = vmatprep.subr.mxu0 0.0
        %1307 = vmatpush2.msra.mxu0 0.0
        %1308 = vmatprep.subr.mxu0 0.0
        %1309 = vmatpush2.msra.mxu0 0.0
        %1310 = vmatprep.mubr.f32.mxu0 0.0
        %1311 = vmatmul.mubr.f32.gmra.mxu0 %v1241
        %v1312 = vpop.f32.mrf.mxu0
        %v1313 = vadd.f32 0.0, %v1312
        %v1314 = vpop.f32.mrf.mxu0
        %1315 = vmatprep.mubr.f32.mxu0 0.0
        %1316 = vmatmul.mubr.f32.gmra.mxu0 %v1244
        %v1317 = vpop.f32.mrf.mxu0
        %v1318 = vadd.f32 0.0, %v1317
        %v1319 = vpop.f32.mrf.mxu0
        %1320 = vdwg.mxu0
        %v1322 = vsel %vm483, %v1070, 0
        %v1325 = vsel %vm483, %v1075, 0
        %1327 = vmatprep.subr.mxu0 0.0
        %1328 = vmatpush1.msra.mxu0 0.0
        %1329 = vmatprep.subr.mxu0 0.0
        %1330 = vmatpush1.msra.mxu0 0.0
        %1331 = vmatprep.subr.mxu0 0.0
        %1332 = vmatpush1.msra.mxu0 0.0
        %1333 = vmatprep.subr.mxu0 0.0
        %1334 = vmatpush1.msra.mxu0 0.0
        %1335 = vmatprep.subr.mxu0 0.0
        %1336 = vmatpush1.msra.mxu0 0.0
        %1337 = vmatprep.subr.mxu0 0.0
        %1338 = vmatpush1.msra.mxu0 0.0
        %1339 = vmatprep.subr.mxu0 0.0
        %1340 = vmatpush1.msra.mxu0 0.0
        %1341 = vmatprep.subr.mxu0 0.0
        %1342 = vmatpush1.msra.mxu0 0.0
        %1343 = vmatprep.subr.mxu0 0.0
        %1344 = vmatpush1.msra.mxu0 0.0
        %1345 = vmatprep.subr.mxu0 0.0
        %1346 = vmatpush1.msra.mxu0 0.0
        %1347 = vmatprep.subr.mxu0 0.0
        %1348 = vmatpush1.msra.mxu0 0.0
        %1349 = vmatprep.subr.mxu0 0.0
        %1350 = vmatpush1.msra.mxu0 0.0
        %1351 = vmatprep.subr.mxu0 0.0
        %1352 = vmatpush1.msra.mxu0 0.0
        %1353 = vmatprep.subr.mxu0 0.0
        %1354 = vmatpush1.msra.mxu0 0.0
        %1355 = vmatprep.subr.mxu0 0.0
        %1356 = vmatpush1.msra.mxu0 %v315
        %1357 = vmatprep.subr.mxu0 0.0
        %1358 = vmatpush1.msra.mxu0 %v314
        %1359 = vmatprep.subr.mxu0 0.0
        %1360 = vmatpush2.msra.mxu0 0.0
        %1361 = vmatprep.subr.mxu0 0.0
        %1362 = vmatpush2.msra.mxu0 0.0
        %1363 = vmatprep.subr.mxu0 0.0
        %1364 = vmatpush2.msra.mxu0 0.0
        %1365 = vmatprep.subr.mxu0 0.0
        %1366 = vmatpush2.msra.mxu0 0.0
        %1367 = vmatprep.subr.mxu0 0.0
        %1368 = vmatpush2.msra.mxu0 0.0
        %1369 = vmatprep.subr.mxu0 0.0
        %1370 = vmatpush2.msra.mxu0 0.0
        %1371 = vmatprep.subr.mxu0 0.0
        %1372 = vmatpush2.msra.mxu0 0.0
        %1373 = vmatprep.subr.mxu0 0.0
        %1374 = vmatpush2.msra.mxu0 0.0
        %1375 = vmatprep.subr.mxu0 0.0
        %1376 = vmatpush2.msra.mxu0 0.0
        %1377 = vmatprep.subr.mxu0 0.0
        %1378 = vmatpush2.msra.mxu0 0.0
        %1379 = vmatprep.subr.mxu0 0.0
        %1380 = vmatpush2.msra.mxu0 0.0
        %1381 = vmatprep.subr.mxu0 0.0
        %1382 = vmatpush2.msra.mxu0 0.0
        %1383 = vmatprep.subr.mxu0 0.0
        %1384 = vmatpush2.msra.mxu0 0.0
        %1385 = vmatprep.subr.mxu0 0.0
        %1386 = vmatpush2.msra.mxu0 0.0
        %1387 = vmatprep.subr.mxu0 0.0
        %1388 = vmatpush2.msra.mxu0 0.0
        %1389 = vmatprep.subr.mxu0 0.0
        %1390 = vmatpush2.msra.mxu0 0.0
        %1391 = vmatprep.mubr.f32.mxu0 0.0
        %1392 = vmatmul.mubr.f32.gmra.mxu0 %v1322
        %v1393 = vpop.f32.mrf.mxu0
        %v1394 = vadd.f32 0.0, %v1393
        %v1395 = vpop.f32.mrf.mxu0
        %1396 = vmatprep.mubr.f32.mxu0 0.0
        %1397 = vmatmul.mubr.f32.gmra.mxu0 %v1325
        %v1398 = vpop.f32.mrf.mxu0
        %v1399 = vadd.f32 0.0, %v1398
        %v1400 = vpop.f32.mrf.mxu0
        %1401 = vdwg.mxu0
        %v1403 = vsel %vm483, %v1151, 0
        %v1406 = vsel %vm483, %v1156, 0
        %1408 = vmatprep.subr.mxu0 0.0
        %1409 = vmatpush1.msra.mxu0 0.0
        %1410 = vmatprep.subr.mxu0 0.0
        %1411 = vmatpush1.msra.mxu0 0.0
        %1412 = vmatprep.subr.mxu0 0.0
        %1413 = vmatpush1.msra.mxu0 0.0
        %1414 = vmatprep.subr.mxu0 0.0
        %1415 = vmatpush1.msra.mxu0 0.0
        %1416 = vmatprep.subr.mxu0 0.0
        %1417 = vmatpush1.msra.mxu0 0.0
        %1418 = vmatprep.subr.mxu0 0.0
        %1419 = vmatpush1.msra.mxu0 0.0
        %1420 = vmatprep.subr.mxu0 0.0
        %1421 = vmatpush1.msra.mxu0 0.0
        %1422 = vmatprep.subr.mxu0 0.0
        %1423 = vmatpush1.msra.mxu0 0.0
        %1424 = vmatprep.subr.mxu0 0.0
        %1425 = vmatpush1.msra.mxu0 0.0
        %1426 = vmatprep.subr.mxu0 0.0
        %1427 = vmatpush1.msra.mxu0 0.0
        %1428 = vmatprep.subr.mxu0 0.0
        %1429 = vmatpush1.msra.mxu0 0.0
        %1430 = vmatprep.subr.mxu0 0.0
        %1431 = vmatpush1.msra.mxu0 0.0
        %1432 = vmatprep.subr.mxu0 0.0
        %1433 = vmatpush1.msra.mxu0 0.0
        %1434 = vmatprep.subr.mxu0 0.0
        %1435 = vmatpush1.msra.mxu0 0.0
        %1436 = vmatprep.subr.mxu0 0.0
        %1437 = vmatpush1.msra.mxu0 %v317
        %1438 = vmatprep.subr.mxu0 0.0
        %1439 = vmatpush1.msra.mxu0 %v316
        %1440 = vmatprep.subr.mxu0 0.0
        %1441 = vmatpush2.msra.mxu0 0.0
        %1442 = vmatprep.subr.mxu0 0.0
        %1443 = vmatpush2.msra.mxu0 0.0
        %1444 = vmatprep.subr.mxu0 0.0
        %1445 = vmatpush2.msra.mxu0 0.0
        %1446 = vmatprep.subr.mxu0 0.0
        %1447 = vmatpush2.msra.mxu0 0.0
        %1448 = vmatprep.subr.mxu0 0.0
        %1449 = vmatpush2.msra.mxu0 0.0
        %1450 = vmatprep.subr.mxu0 0.0
        %1451 = vmatpush2.msra.mxu0 0.0
        %1452 = vmatprep.subr.mxu0 0.0
        %1453 = vmatpush2.msra.mxu0 0.0
        %1454 = vmatprep.subr.mxu0 0.0
        %1455 = vmatpush2.msra.mxu0 0.0
        %1456 = vmatprep.subr.mxu0 0.0
        %1457 = vmatpush2.msra.mxu0 0.0
        %1458 = vmatprep.subr.mxu0 0.0
        %1459 = vmatpush2.msra.mxu0 0.0
        %1460 = vmatprep.subr.mxu0 0.0
        %1461 = vmatpush2.msra.mxu0 0.0
        %1462 = vmatprep.subr.mxu0 0.0
        %1463 = vmatpush2.msra.mxu0 0.0
        %1464 = vmatprep.subr.mxu0 0.0
        %1465 = vmatpush2.msra.mxu0 0.0
        %1466 = vmatprep.subr.mxu0 0.0
        %1467 = vmatpush2.msra.mxu0 0.0
        %1468 = vmatprep.subr.mxu0 0.0
        %1469 = vmatpush2.msra.mxu0 0.0
        %1470 = vmatprep.subr.mxu0 0.0
        %1471 = vmatpush2.msra.mxu0 0.0
        %1472 = vmatprep.mubr.f32.mxu0 0.0
        %1473 = vmatmul.mubr.f32.gmra.mxu0 %v1403
        %v1474 = vpop.f32.mrf.mxu0
        %v1475 = vadd.f32 0.0, %v1474
        %v1476 = vpop.f32.mrf.mxu0
        %1477 = vmatprep.mubr.f32.mxu0 0.0
        %1478 = vmatmul.mubr.f32.gmra.mxu0 %v1406
        %v1479 = vpop.f32.mrf.mxu0
        %v1480 = vadd.f32 0.0, %v1479
        %v1481 = vpop.f32.mrf.mxu0
        %1482 = vdwg.mxu0
        %v1484 = vsel %vm483, %v1232, 0
        %v1487 = vsel %vm483, %v1237, 0
        %1489 = vmatprep.subr.mxu0 0.0
        %1490 = vmatpush1.msra.mxu0 0.0
        %1491 = vmatprep.subr.mxu0 0.0
        %1492 = vmatpush1.msra.mxu0 0.0
        %1493 = vmatprep.subr.mxu0 0.0
        %1494 = vmatpush1.msra.mxu0 0.0
        %1495 = vmatprep.subr.mxu0 0.0
        %1496 = vmatpush1.msra.mxu0 0.0
        %1497 = vmatprep.subr.mxu0 0.0
        %1498 = vmatpush1.msra.mxu0 0.0
        %1499 = vmatprep.subr.mxu0 0.0
        %1500 = vmatpush1.msra.mxu0 0.0
        %1501 = vmatprep.subr.mxu0 0.0
        %1502 = vmatpush1.msra.mxu0 0.0
        %1503 = vmatprep.subr.mxu0 0.0
        %1504 = vmatpush1.msra.mxu0 0.0
        %1505 = vmatprep.subr.mxu0 0.0
        %1506 = vmatpush1.msra.mxu0 0.0
        %1507 = vmatprep.subr.mxu0 0.0
        %1508 = vmatpush1.msra.mxu0 0.0
        %1509 = vmatprep.subr.mxu0 0.0
        %1510 = vmatpush1.msra.mxu0 0.0
        %1511 = vmatprep.subr.mxu0 0.0
        %1512 = vmatpush1.msra.mxu0 0.0
        %1513 = vmatprep.subr.mxu0 0.0
        %1514 = vmatpush1.msra.mxu0 0.0
        %1515 = vmatprep.subr.mxu0 0.0
        %1516 = vmatpush1.msra.mxu0 0.0
        %1517 = vmatprep.subr.mxu0 0.0
        %1518 = vmatpush1.msra.mxu0 %v319
        %1519 = vmatprep.subr.mxu0 0.0
        %1520 = vmatpush1.msra.mxu0 %v318
        %1521 = vmatprep.subr.mxu0 0.0
        %1522 = vmatpush2.msra.mxu0 0.0
        %1523 = vmatprep.subr.mxu0 0.0
        %1524 = vmatpush2.msra.mxu0 0.0
        %1525 = vmatprep.subr.mxu0 0.0
        %1526 = vmatpush2.msra.mxu0 0.0
        %1527 = vmatprep.subr.mxu0 0.0
        %1528 = vmatpush2.msra.mxu0 0.0
        %1529 = vmatprep.subr.mxu0 0.0
        %1530 = vmatpush2.msra.mxu0 0.0
        %1531 = vmatprep.subr.mxu0 0.0
        %1532 = vmatpush2.msra.mxu0 0.0
        %1533 = vmatprep.subr.mxu0 0.0
        %1534 = vmatpush2.msra.mxu0 0.0
        %1535 = vmatprep.subr.mxu0 0.0
        %1536 = vmatpush2.msra.mxu0 0.0
        %1537 = vmatprep.subr.mxu0 0.0
        %1538 = vmatpush2.msra.mxu0 0.0
        %1539 = vmatprep.subr.mxu0 0.0
        %1540 = vmatpush2.msra.mxu0 0.0
        %1541 = vmatprep.subr.mxu0 0.0
        %1542 = vmatpush2.msra.mxu0 0.0
        %1543 = vmatprep.subr.mxu0 0.0
        %1544 = vmatpush2.msra.mxu0 0.0
        %1545 = vmatprep.subr.mxu0 0.0
        %1546 = vmatpush2.msra.mxu0 0.0
        %1547 = vmatprep.subr.mxu0 0.0
        %1548 = vmatpush2.msra.mxu0 0.0
        %1549 = vmatprep.subr.mxu0 0.0
        %1550 = vmatpush2.msra.mxu0 0.0
        %1551 = vmatprep.subr.mxu0 0.0
        %1552 = vmatpush2.msra.mxu0 0.0
        %1553 = vmatprep.mubr.f32.mxu0 0.0
        %1554 = vmatmul.mubr.f32.gmra.mxu0 %v1484
        %v1555 = vpop.f32.mrf.mxu0
        %v1556 = vadd.f32 0.0, %v1555
        %v1557 = vpop.f32.mrf.mxu0
        %1558 = vmatprep.mubr.f32.mxu0 0.0
        %1559 = vmatmul.mubr.f32.gmra.mxu0 %v1487
        %v1560 = vpop.f32.mrf.mxu0
        %v1561 = vadd.f32 0.0, %v1560
        %v1562 = vpop.f32.mrf.mxu0
        %1563 = vdwg.mxu0
        %v1564 = vsel %vm322, %v1313, 0.0
        %v1565 = vsel %vm322, %v1394, 0.0
        %v1566 = vadd.f32 %v1564, %v1565
        %v1567 = vsel %vm322, %v1475, 0.0
        %v1568 = vadd.f32 %v1566, %v1567
        %v1569 = vsel %vm322, %v1556, 0.0
        %v1570 = vadd.f32 %v1568, %v1569
        %v1571 = vsel %vm322, %v1318, 0.0
        %v1572 = vsel %vm322, %v1399, 0.0
        %v1573 = vadd.f32 %v1571, %v1572
        %v1574 = vsel %vm322, %v1480, 0.0
        %v1575 = vadd.f32 %v1573, %v1574
        %v1576 = vsel %vm322, %v1561, 0.0
        %v1577 = vadd.f32 %v1575, %v1576
        %v1578 = vadd.f32 %v302, %v1570
        %v1579 = vadd.f32 %v303, %v1577
        %v1580 = vld [vmem:[%s5 + $0x2] sm:$0x1]
        %v1581 = vld [vmem:[%s5 + $0x3] sm:$0x1]
        %v1582 = vsel %vm322, %v1578, 0.0
        %1583 = vadd.xlane.f32.xlu0 %v1582
        %v1584 = vpop.xlane.xlu0 %1583
        %v1585 = vsel %vm322, %v1579, 0.0
        %1586 = vadd.xlane.f32.xlu0 %v1585
        %v1587 = vpop.xlane.xlu0 %1586
        %v1588 = vmul.f32 %v1584, %v329
        %v1589 = vmul.f32 %v1587, %v329
        %v1590 = vsub.f32 %v1578, %v1588
        %v1591 = vsub.f32 %v1579, %v1589
        %v1592 = vmul.f32 %v1590, %v1590
        %v1593 = vmul.f32 %v1591, %v1591
        %v1594 = vsel %vm322, %v1592, 0.0
        %1595 = vadd.xlane.f32.xlu0 %v1594
        %v1596 = vpop.xlane.xlu0 %1595
        %v1597 = vsel %vm322, %v1593, 0.0
        %1598 = vadd.xlane.f32.xlu0 %v1597
        %v1599 = vpop.xlane.xlu0 %1598
        %v1600 = vmul.f32 %v1596, %v329
        %v1601 = vmul.f32 %v1599, %v329
        %v1602 = vadd.f32 %v1600, 1e-05
        %v1603 = vadd.f32 %v1601, 1e-05
        %v1604 = vrsqrt.pop %v1602
        %v1605 = vrsqrt.pop %v1603
        %v1606 = vmul.f32 %v1590, %v1604
        %v1607 = vmul.f32 %v1591, %v1605
        %v1608 = vlaneseq
        %v1609 = vshrl.u32 %v1608, 7
        %v1610 = vsub.s32 0, %v1609
        %v1611 = vrot.slane %v1580, %v1610
        %v1612 = vmul.f32 %v1606, %v1611
        %v1613 = vmul.f32 %v1607, %v1611
        %v1614 = vlaneseq
        %v1615 = vshrl.u32 %v1614, 7
        %v1616 = vsub.s32 0, %v1615
        %v1617 = vrot.slane %v1581, %v1616
        %v1618 = vadd.f32 %v1612, %v1617
        %v1619 = vadd.f32 %v1613, %v1617
        %v1620 = vld [vmem:[%s5 + $0x5] sm:$0x1]
        %v1621 = vlaneseq
        %v1622 = vshrl.u32 %v1621, 7
        %v1623 = vsub.s32 0, %v1622
        %v1624 = vrot.slane %v1620, %v1623
        %1629 = vrot.lane.b32.xlu0 %v305, 64
        %v1630 = vpop.permute.xlu0 %1629
        %1631 = vrot.lane.b32.xlu0 %v307, 64
        %v1632 = vpop.permute.xlu0 %1631
        %1633 = vrot.lane.b32.xlu0 %v309, 64
        %v1634 = vpop.permute.xlu0 %1633
        %1635 = vrot.lane.b32.xlu0 %v311, 64
        %v1636 = vpop.permute.xlu0 %1635
        %v1642 = vsel %vm322, %v1618, 0
        %v1645 = vsel %vm322, %v1619, 0
        %1647 = vmatprep.subr.mxu0 0.0
        %1648 = vmatpush1.msra.mxu0 0.0
        %1649 = vmatprep.subr.mxu0 0.0
        %1650 = vmatpush1.msra.mxu0 0.0
        %1651 = vmatprep.subr.mxu0 0.0
        %1652 = vmatpush1.msra.mxu0 0.0
        %1653 = vmatprep.subr.mxu0 0.0
        %1654 = vmatpush1.msra.mxu0 0.0
        %1655 = vmatprep.subr.mxu0 0.0
        %1656 = vmatpush1.msra.mxu0 0.0
        %1657 = vmatprep.subr.mxu0 0.0
        %1658 = vmatpush1.msra.mxu0 0.0
        %1659 = vmatprep.subr.mxu0 0.0
        %1660 = vmatpush1.msra.mxu0 0.0
        %1661 = vmatprep.subr.mxu0 0.0
        %1662 = vmatpush1.msra.mxu0 0.0
        %1663 = vmatprep.subr.mxu0 0.0
        %1664 = vmatpush1.msra.mxu0 0.0
        %1665 = vmatprep.subr.mxu0 0.0
        %1666 = vmatpush1.msra.mxu0 0.0
        %1667 = vmatprep.subr.mxu0 0.0
        %1668 = vmatpush1.msra.mxu0 0.0
        %1669 = vmatprep.subr.mxu0 0.0
        %1670 = vmatpush1.msra.mxu0 0.0
        %1671 = vmatprep.subr.mxu0 0.0
        %1672 = vmatpush1.msra.mxu0 %v1636
        %1673 = vmatprep.subr.mxu0 0.0
        %1674 = vmatpush1.msra.mxu0 %v1634
        %1675 = vmatprep.subr.mxu0 0.0
        %1676 = vmatpush1.msra.mxu0 %v1632
        %1677 = vmatprep.subr.mxu0 0.0
        %1678 = vmatpush1.msra.mxu0 %v1630
        %1679 = vmatprep.subr.mxu0 0.0
        %1680 = vmatpush2.msra.mxu0 0.0
        %1681 = vmatprep.subr.mxu0 0.0
        %1682 = vmatpush2.msra.mxu0 0.0
        %1683 = vmatprep.subr.mxu0 0.0
        %1684 = vmatpush2.msra.mxu0 0.0
        %1685 = vmatprep.subr.mxu0 0.0
        %1686 = vmatpush2.msra.mxu0 0.0
        %1687 = vmatprep.subr.mxu0 0.0
        %1688 = vmatpush2.msra.mxu0 0.0
        %1689 = vmatprep.subr.mxu0 0.0
        %1690 = vmatpush2.msra.mxu0 0.0
        %1691 = vmatprep.subr.mxu0 0.0
        %1692 = vmatpush2.msra.mxu0 0.0
        %1693 = vmatprep.subr.mxu0 0.0
        %1694 = vmatpush2.msra.mxu0 0.0
        %1695 = vmatprep.subr.mxu0 0.0
        %1696 = vmatpush2.msra.mxu0 0.0
        %1697 = vmatprep.subr.mxu0 0.0
        %1698 = vmatpush2.msra.mxu0 0.0
        %1699 = vmatprep.subr.mxu0 0.0
        %1700 = vmatpush2.msra.mxu0 0.0
        %1701 = vmatprep.subr.mxu0 0.0
        %1702 = vmatpush2.msra.mxu0 0.0
        %1703 = vmatprep.subr.mxu0 0.0
        %1704 = vmatpush2.msra.mxu0 0.0
        %1705 = vmatprep.subr.mxu0 0.0
        %1706 = vmatpush2.msra.mxu0 0.0
        %1707 = vmatprep.subr.mxu0 0.0
        %1708 = vmatpush2.msra.mxu0 0.0
        %1709 = vmatprep.subr.mxu0 0.0
        %1710 = vmatpush2.msra.mxu0 0.0
        %1711 = vmatprep.mubr.f32.mxu0 0.0
        %1712 = vmatmul.mubr.f32.gmra.mxu0 %v1642
        %v1713 = vpop.f32.mrf.mxu0
        %v1714 = vadd.f32 %v1624, %v1713
        %v1715 = vpop.f32.mrf.mxu0
        %1716 = vmatprep.mubr.f32.mxu0 0.0
        %1717 = vmatmul.mubr.f32.gmra.mxu0 %v1645
        %v1718 = vpop.f32.mrf.mxu0
        %v1719 = vadd.f32 %v1624, %v1718
        %v1720 = vpop.f32.mrf.mxu0
        %1721 = vdwg.mxu0
        %v1722 = vmax.f32 %v1714, 0.0
        %v1723 = vmax.f32 %v1719, 0.0
        %1732 = vrot.lane.b32.xlu0 %v312, 96
        %v1733 = vpop.permute.xlu0 %1732
        %1734 = vrot.lane.b32.xlu0 %v313, 96
        %v1735 = vpop.permute.xlu0 %1734
        %1736 = vrot.lane.b32.xlu0 %v314, 96
        %v1737 = vpop.permute.xlu0 %1736
        %1738 = vrot.lane.b32.xlu0 %v315, 96
        %v1739 = vpop.permute.xlu0 %1738
        %1740 = vrot.lane.b32.xlu0 %v316, 96
        %v1741 = vpop.permute.xlu0 %1740
        %1742 = vrot.lane.b32.xlu0 %v317, 96
        %v1743 = vpop.permute.xlu0 %1742
        %1744 = vrot.lane.b32.xlu0 %v318, 96
        %v1745 = vpop.permute.xlu0 %1744
        %1746 = vrot.lane.b32.xlu0 %v319, 96
        %v1747 = vpop.permute.xlu0 %1746
        %vm1756 = vcmask 523264
        %v1758 = vsel %vm1756, %v1722, 0
        %v1761 = vsel %vm1756, %v1723, 0
        %1763 = vmatprep.subr.mxu0 0.0
        %1764 = vmatpush1.msra.mxu0 0.0
        %1765 = vmatprep.subr.mxu0 0.0
        %1766 = vmatpush1.msra.mxu0 0.0
        %1767 = vmatprep.subr.mxu0 0.0
        %1768 = vmatpush1.msra.mxu0 0.0
        %1769 = vmatprep.subr.mxu0 0.0
        %1770 = vmatpush1.msra.mxu0 0.0
        %1771 = vmatprep.subr.mxu0 0.0
        %1772 = vmatpush1.msra.mxu0 0.0
        %1773 = vmatprep.subr.mxu0 0.0
        %1774 = vmatpush1.msra.mxu0 0.0
        %1775 = vmatprep.subr.mxu0 0.0
        %1776 = vmatpush1.msra.mxu0 0.0
        %1777 = vmatprep.subr.mxu0 0.0
        %1778 = vmatpush1.msra.mxu0 0.0
        %1779 = vmatprep.subr.mxu0 0.0
        %1780 = vmatpush1.msra.mxu0 %v1747
        %1781 = vmatprep.subr.mxu0 0.0
        %1782 = vmatpush1.msra.mxu0 %v1745
        %1783 = vmatprep.subr.mxu0 0.0
        %1784 = vmatpush1.msra.mxu0 %v1743
        %1785 = vmatprep.subr.mxu0 0.0
        %1786 = vmatpush1.msra.mxu0 %v1741
        %1787 = vmatprep.subr.mxu0 0.0
        %1788 = vmatpush1.msra.mxu0 %v1739
        %1789 = vmatprep.subr.mxu0 0.0
        %1790 = vmatpush1.msra.mxu0 %v1737
        %1791 = vmatprep.subr.mxu0 0.0
        %1792 = vmatpush1.msra.mxu0 %v1735
        %1793 = vmatprep.subr.mxu0 0.0
        %1794 = vmatpush1.msra.mxu0 %v1733
        %1795 = vmatprep.subr.mxu0 0.0
        %1796 = vmatpush2.msra.mxu0 0.0
        %1797 = vmatprep.subr.mxu0 0.0
        %1798 = vmatpush2.msra.mxu0 0.0
        %1799 = vmatprep.subr.mxu0 0.0
        %1800 = vmatpush2.msra.mxu0 0.0
        %1801 = vmatprep.subr.mxu0 0.0
        %1802 = vmatpush2.msra.mxu0 0.0
        %1803 = vmatprep.subr.mxu0 0.0
        %1804 = vmatpush2.msra.mxu0 0.0
        %1805 = vmatprep.subr.mxu0 0.0
        %1806 = vmatpush2.msra.mxu0 0.0
        %1807 = vmatprep.subr.mxu0 0.0
        %1808 = vmatpush2.msra.mxu0 0.0
        %1809 = vmatprep.subr.mxu0 0.0
        %1810 = vmatpush2.msra.mxu0 0.0
        %1811 = vmatprep.subr.mxu0 0.0
        %1812 = vmatpush2.msra.mxu0 0.0
        %1813 = vmatprep.subr.mxu0 0.0
        %1814 = vmatpush2.msra.mxu0 0.0
        %1815 = vmatprep.subr.mxu0 0.0
        %1816 = vmatpush2.msra.mxu0 0.0
        %1817 = vmatprep.subr.mxu0 0.0
        %1818 = vmatpush2.msra.mxu0 0.0
        %1819 = vmatprep.subr.mxu0 0.0
        %1820 = vmatpush2.msra.mxu0 0.0
        %1821 = vmatprep.subr.mxu0 0.0
        %1822 = vmatpush2.msra.mxu0 0.0
        %1823 = vmatprep.subr.mxu0 0.0
        %1824 = vmatpush2.msra.mxu0 0.0
        %1825 = vmatprep.subr.mxu0 0.0
        %1826 = vmatpush2.msra.mxu0 0.0
        %1827 = vmatprep.mubr.f32.mxu0 0.0
        %1828 = vmatmul.mubr.f32.gmra.mxu0 %v1758
        %v1829 = vpop.f32.mrf.mxu0
        %v1830 = vadd.f32 0.0, %v1829
        %v1831 = vpop.f32.mrf.mxu0
        %1832 = vmatprep.mubr.f32.mxu0 0.0
        %1833 = vmatmul.mubr.f32.gmra.mxu0 %v1761
        %v1834 = vpop.f32.mrf.mxu0
        %v1835 = vadd.f32 0.0, %v1834
        %v1836 = vpop.f32.mrf.mxu0
        %1837 = vdwg.mxu0
        %v1838 = vadd.f32 %v1578, %v1830
        %v1839 = vadd.f32 %v1579, %v1835
        %v1840 = vld [vmem:[%s5 + $0x4] sm:$0x1]
        %v1841 = vlaneseq
        %v1842 = vshrl.u32 %v1841, 7
        %v1843 = vsub.s32 0, %v1842
        %v1844 = vrot.slane %v1840, %v1843
        %v1845 = vadd.f32 %v1838, %v1844
        %v1846 = vadd.f32 %v1839, %v1844
        %v1847 = vld [vmem:[#allocation2 + $0x10] sm:$0xff]
        %v1848 = vld [vmem:[#allocation2 + $0x18] sm:$0xff]
        %v1849 = vld [vmem:[#allocation2 + $0x50] sm:$0xff]
        %v1850 = vld [vmem:[#allocation2 + $0x58] sm:$0xff]
        %v1851 = vld [vmem:[#allocation2 + $0x90] sm:$0xff]
        %v1852 = vld [vmem:[#allocation2 + $0x98] sm:$0xff]
        %v1853 = vld [vmem:[#allocation2 + $0xd0] sm:$0xff]
        %v1854 = vld [vmem:[#allocation2 + $0xd8] sm:$0xff]
        %v1855 = vld [vmem:[#allocation4] sm:$0xff]
        %v1856 = vld [vmem:[#allocation4 + $0x10] sm:$0xff]
        %v1857 = vld [vmem:[#allocation4 + $0x20] sm:$0xff]
        %v1858 = vld [vmem:[#allocation4 + $0x30] sm:$0xff]
        %v1859 = vld [vmem:[#allocation4 + $0x40] sm:$0xff]
        %v1860 = vld [vmem:[#allocation4 + $0x50] sm:$0xff]
        %v1861 = vld [vmem:[#allocation4 + $0x60] sm:$0xff]
        %v1862 = vld [vmem:[#allocation4 + $0x70] sm:$0xff]
        %v1863 = vld [vmem:[%s5 + $0x6] sm:$0x1]
        %v1864 = vld [vmem:[%s5 + $0x7] sm:$0x1]
        %v1865 = vsel %vm322, %v1845, 0.0
        %1866 = vadd.xlane.f32.xlu0 %v1865
        %v1867 = vpop.xlane.xlu0 %1866
        %v1868 = vsel %vm322, %v1846, 0.0
        %1869 = vadd.xlane.f32.xlu0 %v1868
        %v1870 = vpop.xlane.xlu0 %1869
        %v1871 = vmul.f32 %v1867, %v329
        %v1872 = vmul.f32 %v1870, %v329
        %v1873 = vsub.f32 %v1845, %v1871
        %v1874 = vsub.f32 %v1846, %v1872
        %v1875 = vmul.f32 %v1873, %v1873
        %v1876 = vmul.f32 %v1874, %v1874
        %v1877 = vsel %vm322, %v1875, 0.0
        %1878 = vadd.xlane.f32.xlu0 %v1877
        %v1879 = vpop.xlane.xlu0 %1878
        %v1880 = vsel %vm322, %v1876, 0.0
        %1881 = vadd.xlane.f32.xlu0 %v1880
        %v1882 = vpop.xlane.xlu0 %1881
        %v1883 = vmul.f32 %v1879, %v329
        %v1884 = vmul.f32 %v1882, %v329
        %v1885 = vadd.f32 %v1883, 1e-05
        %v1886 = vadd.f32 %v1884, 1e-05
        %v1887 = vrsqrt.pop %v1885
        %v1888 = vrsqrt.pop %v1886
        %v1889 = vmul.f32 %v1873, %v1887
        %v1890 = vmul.f32 %v1874, %v1888
        %v1891 = vlaneseq
        %v1892 = vshrl.u32 %v1891, 7
        %v1893 = vsub.s32 0, %v1892
        %v1894 = vrot.slane %v1863, %v1893
        %v1895 = vmul.f32 %v1889, %v1894
        %v1896 = vmul.f32 %v1890, %v1894
        %v1897 = vlaneseq
        %v1898 = vshrl.u32 %v1897, 7
        %v1899 = vsub.s32 0, %v1898
        %v1900 = vrot.slane %v1864, %v1899
        %v1901 = vadd.f32 %v1895, %v1900
        %v1902 = vadd.f32 %v1896, %v1900
        %v1904 = vsel %vm322, %v1901, 0
        %v1907 = vsel %vm322, %v1902, 0
        %1909 = vmatprep.subr.mxu0 0.0
        %1910 = vmatpush1.msra.mxu0 0.0
        %1911 = vmatprep.subr.mxu0 0.0
        %1912 = vmatpush1.msra.mxu0 0.0
        %1913 = vmatprep.subr.mxu0 0.0
        %1914 = vmatpush1.msra.mxu0 0.0
        %1915 = vmatprep.subr.mxu0 0.0
        %1916 = vmatpush1.msra.mxu0 0.0
        %1917 = vmatprep.subr.mxu0 0.0
        %1918 = vmatpush1.msra.mxu0 0.0
        %1919 = vmatprep.subr.mxu0 0.0
        %1920 = vmatpush1.msra.mxu0 0.0
        %1921 = vmatprep.subr.mxu0 0.0
        %1922 = vmatpush1.msra.mxu0 0.0
        %1923 = vmatprep.subr.mxu0 0.0
        %1924 = vmatpush1.msra.mxu0 0.0
        %1925 = vmatprep.subr.mxu0 0.0
        %1926 = vmatpush1.msra.mxu0 0.0
        %1927 = vmatprep.subr.mxu0 0.0
        %1928 = vmatpush1.msra.mxu0 0.0
        %1929 = vmatprep.subr.mxu0 0.0
        %1930 = vmatpush1.msra.mxu0 0.0
        %1931 = vmatprep.subr.mxu0 0.0
        %1932 = vmatpush1.msra.mxu0 0.0
        %1933 = vmatprep.subr.mxu0 %v1854
        %1934 = vmatpush1.msra.mxu0 %v1853
        %1935 = vmatprep.subr.mxu0 %v1852
        %1936 = vmatpush1.msra.mxu0 %v1851
        %1937 = vmatprep.subr.mxu0 %v1850
        %1938 = vmatpush1.msra.mxu0 %v1849
        %1939 = vmatprep.subr.mxu0 %v1848
        %1940 = vmatpush1.msra.mxu0 %v1847
        %1941 = vmatprep.subr.mxu0 0.0
        %1942 = vmatpush2.msra.mxu0 0.0
        %1943 = vmatprep.subr.mxu0 0.0
        %1944 = vmatpush2.msra.mxu0 0.0
        %1945 = vmatprep.subr.mxu0 0.0
        %1946 = vmatpush2.msra.mxu0 0.0
        %1947 = vmatprep.subr.mxu0 0.0
        %1948 = vmatpush2.msra.mxu0 0.0
        %1949 = vmatprep.subr.mxu0 0.0
        %1950 = vmatpush2.msra.mxu0 0.0
        %1951 = vmatprep.subr.mxu0 0.0
        %1952 = vmatpush2.msra.mxu0 0.0
        %1953 = vmatprep.subr.mxu0 0.0
        %1954 = vmatpush2.msra.mxu0 0.0
        %1955 = vmatprep.subr.mxu0 0.0
        %1956 = vmatpush2.msra.mxu0 0.0
        %1957 = vmatprep.subr.mxu0 0.0
        %1958 = vmatpush2.msra.mxu0 0.0
        %1959 = vmatprep.subr.mxu0 0.0
        %1960 = vmatpush2.msra.mxu0 0.0
        %1961 = vmatprep.subr.mxu0 0.0
        %1962 = vmatpush2.msra.mxu0 0.0
        %1963 = vmatprep.subr.mxu0 0.0
        %1964 = vmatpush2.msra.mxu0 0.0
        %1965 = vmatprep.subr.mxu0 0.0
        %1966 = vmatpush2.msra.mxu0 0.0
        %1967 = vmatprep.subr.mxu0 0.0
        %1968 = vmatpush2.msra.mxu0 0.0
        %1969 = vmatprep.subr.mxu0 0.0
        %1970 = vmatpush2.msra.mxu0 0.0
        %1971 = vmatprep.subr.mxu0 0.0
        %1972 = vmatpush2.msra.mxu0 0.0
        %1973 = vmatprep.mubr.f32.mxu0 0.0
        %1974 = vmatmul.mubr.f32.gmra.mxu0 %v1904
        %v1975 = vpop.f32.mrf.mxu0
        %v1976 = vadd.f32 0.0, %v1975
        %v1977 = vpop.f32.mrf.mxu0
        %v1978 = vadd.f32 0.0, %v1977
        %1979 = vmatprep.mubr.f32.mxu0 0.0
        %1980 = vmatmul.mubr.f32.gmra.mxu0 %v1907
        %v1981 = vpop.f32.mrf.mxu0
        %v1982 = vadd.f32 0.0, %v1981
        %v1983 = vpop.f32.mrf.mxu0
        %v1984 = vadd.f32 0.0, %v1983
        %1985 = vdwg.mxu0
        %1988 = vrot.lane.b32.xlu0 %v1976, 112
        %v1989 = vpop.permute.xlu0 %1988
        %1990 = vrot.lane.b32.xlu0 %v1982, 112
        %v1991 = vpop.permute.xlu0 %1990
        %1992 = vrot.lane.b32.xlu0 %v1976, 96
        %v1993 = vpop.permute.xlu0 %1992
        %1994 = vrot.lane.b32.xlu0 %v1982, 96
        %v1995 = vpop.permute.xlu0 %1994
        %1996 = vrot.lane.b32.xlu0 %v1976, 80
        %v1997 = vpop.permute.xlu0 %1996
        %1998 = vrot.lane.b32.xlu0 %v1982, 80
        %v1999 = vpop.permute.xlu0 %1998
        %2002 = vrot.lane.b32.xlu0 %v1978, 112
        %v2003 = vpop.permute.xlu0 %2002
        %2004 = vrot.lane.b32.xlu0 %v1984, 112
        %v2005 = vpop.permute.xlu0 %2004
        %2008 = vrot.lane.b32.xlu0 %v1978, 96
        %v2009 = vpop.permute.xlu0 %2008
        %2010 = vrot.lane.b32.xlu0 %v1984, 96
        %v2011 = vpop.permute.xlu0 %2010
        %2014 = vrot.lane.b32.xlu0 %v1978, 80
        %v2015 = vpop.permute.xlu0 %2014
        %2016 = vrot.lane.b32.xlu0 %v1984, 80
        %v2017 = vpop.permute.xlu0 %2016
        %2020 = vrot.lane.b32.xlu0 %v1976, 64
        %v2021 = vpop.permute.xlu0 %2020
        %2022 = vrot.lane.b32.xlu0 %v1982, 64
        %v2023 = vpop.permute.xlu0 %2022
        %v2024 = vsel %vm483, %v1976, 0
        %v2026 = vsel %vm483, %v1982, 0
        %v2028 = vsel %vm483, %v2021, 0
        %v2030 = vsel %vm483, %v2023, 0
        %2032 = vmatprep.subr.mxu0 0.0
        %2033 = vmatpush1.xpose.msra.mxu0 0.0
        %2034 = vmatprep.subr.mxu0 0.0
        %2035 = vmatpush1.xpose.msra.mxu0 0.0
        %2036 = vmatprep.subr.mxu0 0.0
        %2037 = vmatpush1.xpose.msra.mxu0 0.0
        %2038 = vmatprep.subr.mxu0 0.0
        %2039 = vmatpush1.xpose.msra.mxu0 0.0
        %2040 = vmatprep.subr.mxu0 0.0
        %2041 = vmatpush1.xpose.msra.mxu0 0.0
        %2042 = vmatprep.subr.mxu0 0.0
        %2043 = vmatpush1.xpose.msra.mxu0 0.0
        %2044 = vmatprep.subr.mxu0 0.0
        %2045 = vmatpush1.xpose.msra.mxu0 0.0
        %2046 = vmatprep.subr.mxu0 0.0
        %2047 = vmatpush1.xpose.msra.mxu0 0.0
        %2048 = vmatprep.subr.mxu0 0.0
        %2049 = vmatpush1.xpose.msra.mxu0 0.0
        %2050 = vmatprep.subr.mxu0 0.0
        %2051 = vmatpush1.xpose.msra.mxu0 0.0
        %2052 = vmatprep.subr.mxu0 0.0
        %2053 = vmatpush1.xpose.msra.mxu0 0.0
        %2054 = vmatprep.subr.mxu0 0.0
        %2055 = vmatpush1.xpose.msra.mxu0 0.0
        %2056 = vmatprep.subr.mxu0 0.0
        %2057 = vmatpush1.xpose.msra.mxu0 0.0
        %2058 = vmatprep.subr.mxu0 0.0
        %2059 = vmatpush1.xpose.msra.mxu0 0.0
        %2060 = vmatprep.subr.mxu0 0.0
        %2061 = vmatpush1.xpose.msra.mxu0 %v2030
        %2062 = vmatprep.subr.mxu0 0.0
        %2063 = vmatpush1.xpose.msra.mxu0 %v2028
        %2064 = vmatprep.subr.mxu0 0.0
        %2065 = vmatpush2.xpose.msra.mxu0 0.0
        %2066 = vmatprep.subr.mxu0 0.0
        %2067 = vmatpush2.xpose.msra.mxu0 0.0
        %2068 = vmatprep.subr.mxu0 0.0
        %2069 = vmatpush2.xpose.msra.mxu0 0.0
        %2070 = vmatprep.subr.mxu0 0.0
        %2071 = vmatpush2.xpose.msra.mxu0 0.0
        %2072 = vmatprep.subr.mxu0 0.0
        %2073 = vmatpush2.xpose.msra.mxu0 0.0
        %2074 = vmatprep.subr.mxu0 0.0
        %2075 = vmatpush2.xpose.msra.mxu0 0.0
        %2076 = vmatprep.subr.mxu0 0.0
        %2077 = vmatpush2.xpose.msra.mxu0 0.0
        %2078 = vmatprep.subr.mxu0 0.0
        %2079 = vmatpush2.xpose.msra.mxu0 0.0
        %2080 = vmatprep.subr.mxu0 0.0
        %2081 = vmatpush2.xpose.msra.mxu0 0.0
        %2082 = vmatprep.subr.mxu0 0.0
        %2083 = vmatpush2.xpose.msra.mxu0 0.0
        %2084 = vmatprep.subr.mxu0 0.0
        %2085 = vmatpush2.xpose.msra.mxu0 0.0
        %2086 = vmatprep.subr.mxu0 0.0
        %2087 = vmatpush2.xpose.msra.mxu0 0.0
        %2088 = vmatprep.subr.mxu0 0.0
        %2089 = vmatpush2.xpose.msra.mxu0 0.0
        %2090 = vmatprep.subr.mxu0 0.0
        %2091 = vmatpush2.xpose.msra.mxu0 0.0
        %2092 = vmatprep.subr.mxu0 0.0
        %2093 = vmatpush2.xpose.msra.mxu0 0.0
        %2094 = vmatprep.subr.mxu0 0.0
        %2095 = vmatpush2.xpose.msra.mxu0 0.0
        %2096 = vmatprep.mubr.f32.mxu0 0.0
        %2097 = vmatmul.mubr.f32.gmra.mxu0 %v2024
        %v2098 = vpop.f32.mrf.mxu0
        %v2099 = vadd.f32 0.0, %v2098
        %v2100 = vpop.f32.mrf.mxu0
        %2101 = vmatprep.mubr.f32.mxu0 0.0
        %2102 = vmatmul.mubr.f32.gmra.mxu0 %v2026
        %v2103 = vpop.f32.mrf.mxu0
        %v2104 = vadd.f32 0.0, %v2103
        %v2105 = vpop.f32.mrf.mxu0
        %2106 = vdwg.mxu0
        %2107 = vrot.lane.b32.xlu0 %v1989, 64
        %v2108 = vpop.permute.xlu0 %2107
        %2109 = vrot.lane.b32.xlu0 %v1991, 64
        %v2110 = vpop.permute.xlu0 %2109
        %v2111 = vsel %vm483, %v1989, 0
        %v2113 = vsel %vm483, %v1991, 0
        %v2115 = vsel %vm483, %v2108, 0
        %v2117 = vsel %vm483, %v2110, 0
        %2119 = vmatprep.subr.mxu0 0.0
        %2120 = vmatpush1.xpose.msra.mxu0 0.0
        %2121 = vmatprep.subr.mxu0 0.0
        %2122 = vmatpush1.xpose.msra.mxu0 0.0
        %2123 = vmatprep.subr.mxu0 0.0
        %2124 = vmatpush1.xpose.msra.mxu0 0.0
        %2125 = vmatprep.subr.mxu0 0.0
        %2126 = vmatpush1.xpose.msra.mxu0 0.0
        %2127 = vmatprep.subr.mxu0 0.0
        %2128 = vmatpush1.xpose.msra.mxu0 0.0
        %2129 = vmatprep.subr.mxu0 0.0
        %2130 = vmatpush1.xpose.msra.mxu0 0.0
        %2131 = vmatprep.subr.mxu0 0.0
        %2132 = vmatpush1.xpose.msra.mxu0 0.0
        %2133 = vmatprep.subr.mxu0 0.0
        %2134 = vmatpush1.xpose.msra.mxu0 0.0
        %2135 = vmatprep.subr.mxu0 0.0
        %2136 = vmatpush1.xpose.msra.mxu0 0.0
        %2137 = vmatprep.subr.mxu0 0.0
        %2138 = vmatpush1.xpose.msra.mxu0 0.0
        %2139 = vmatprep.subr.mxu0 0.0
        %2140 = vmatpush1.xpose.msra.mxu0 0.0
        %2141 = vmatprep.subr.mxu0 0.0
        %2142 = vmatpush1.xpose.msra.mxu0 0.0
        %2143 = vmatprep.subr.mxu0 0.0
        %2144 = vmatpush1.xpose.msra.mxu0 0.0
        %2145 = vmatprep.subr.mxu0 0.0
        %2146 = vmatpush1.xpose.msra.mxu0 0.0
        %2147 = vmatprep.subr.mxu0 0.0
        %2148 = vmatpush1.xpose.msra.mxu0 %v2117
        %2149 = vmatprep.subr.mxu0 0.0
        %2150 = vmatpush1.xpose.msra.mxu0 %v2115
        %2151 = vmatprep.subr.mxu0 0.0
        %2152 = vmatpush2.xpose.msra.mxu0 0.0
        %2153 = vmatprep.subr.mxu0 0.0
        %2154 = vmatpush2.xpose.msra.mxu0 0.0
        %2155 = vmatprep.subr.mxu0 0.0
        %2156 = vmatpush2.xpose.msra.mxu0 0.0
        %2157 = vmatprep.subr.mxu0 0.0
        %2158 = vmatpush2.xpose.msra.mxu0 0.0
        %2159 = vmatprep.subr.mxu0 0.0
        %2160 = vmatpush2.xpose.msra.mxu0 0.0
        %2161 = vmatprep.subr.mxu0 0.0
        %2162 = vmatpush2.xpose.msra.mxu0 0.0
        %2163 = vmatprep.subr.mxu0 0.0
        %2164 = vmatpush2.xpose.msra.mxu0 0.0
        %2165 = vmatprep.subr.mxu0 0.0
        %2166 = vmatpush2.xpose.msra.mxu0 0.0
        %2167 = vmatprep.subr.mxu0 0.0
        %2168 = vmatpush2.xpose.msra.mxu0 0.0
        %2169 = vmatprep.subr.mxu0 0.0
        %2170 = vmatpush2.xpose.msra.mxu0 0.0
        %2171 = vmatprep.subr.mxu0 0.0
        %2172 = vmatpush2.xpose.msra.mxu0 0.0
        %2173 = vmatprep.subr.mxu0 0.0
        %2174 = vmatpush2.xpose.msra.mxu0 0.0
        %2175 = vmatprep.subr.mxu0 0.0
        %2176 = vmatpush2.xpose.msra.mxu0 0.0
        %2177 = vmatprep.subr.mxu0 0.0
        %2178 = vmatpush2.xpose.msra.mxu0 0.0
        %2179 = vmatprep.subr.mxu0 0.0
        %2180 = vmatpush2.xpose.msra.mxu0 0.0
        %2181 = vmatprep.subr.mxu0 0.0
        %2182 = vmatpush2.xpose.msra.mxu0 0.0
        %2183 = vmatprep.mubr.f32.mxu0 0.0
        %2184 = vmatmul.mubr.f32.gmra.mxu0 %v2111
        %v2185 = vpop.f32.mrf.mxu0
        %v2186 = vadd.f32 0.0, %v2185
        %v2187 = vpop.f32.mrf.mxu0
        %2188 = vmatprep.mubr.f32.mxu0 0.0
        %2189 = vmatmul.mubr.f32.gmra.mxu0 %v2113
        %v2190 = vpop.f32.mrf.mxu0
        %v2191 = vadd.f32 0.0, %v2190
        %v2192 = vpop.f32.mrf.mxu0
        %2193 = vdwg.mxu0
        %2194 = vrot.lane.b32.xlu0 %v1993, 64
        %v2195 = vpop.permute.xlu0 %2194
        %2196 = vrot.lane.b32.xlu0 %v1995, 64
        %v2197 = vpop.permute.xlu0 %2196
        %v2198 = vsel %vm483, %v1993, 0
        %v2200 = vsel %vm483, %v1995, 0
        %v2202 = vsel %vm483, %v2195, 0
        %v2204 = vsel %vm483, %v2197, 0
        %2206 = vmatprep.subr.mxu0 0.0
        %2207 = vmatpush1.xpose.msra.mxu0 0.0
        %2208 = vmatprep.subr.mxu0 0.0
        %2209 = vmatpush1.xpose.msra.mxu0 0.0
        %2210 = vmatprep.subr.mxu0 0.0
        %2211 = vmatpush1.xpose.msra.mxu0 0.0
        %2212 = vmatprep.subr.mxu0 0.0
        %2213 = vmatpush1.xpose.msra.mxu0 0.0
        %2214 = vmatprep.subr.mxu0 0.0
        %2215 = vmatpush1.xpose.msra.mxu0 0.0
        %2216 = vmatprep.subr.mxu0 0.0
        %2217 = vmatpush1.xpose.msra.mxu0 0.0
        %2218 = vmatprep.subr.mxu0 0.0
        %2219 = vmatpush1.xpose.msra.mxu0 0.0
        %2220 = vmatprep.subr.mxu0 0.0
        %2221 = vmatpush1.xpose.msra.mxu0 0.0
        %2222 = vmatprep.subr.mxu0 0.0
        %2223 = vmatpush1.xpose.msra.mxu0 0.0
        %2224 = vmatprep.subr.mxu0 0.0
        %2225 = vmatpush1.xpose.msra.mxu0 0.0
        %2226 = vmatprep.subr.mxu0 0.0
        %2227 = vmatpush1.xpose.msra.mxu0 0.0
        %2228 = vmatprep.subr.mxu0 0.0
        %2229 = vmatpush1.xpose.msra.mxu0 0.0
        %2230 = vmatprep.subr.mxu0 0.0
        %2231 = vmatpush1.xpose.msra.mxu0 0.0
        %2232 = vmatprep.subr.mxu0 0.0
        %2233 = vmatpush1.xpose.msra.mxu0 0.0
        %2234 = vmatprep.subr.mxu0 0.0
        %2235 = vmatpush1.xpose.msra.mxu0 %v2204
        %2236 = vmatprep.subr.mxu0 0.0
        %2237 = vmatpush1.xpose.msra.mxu0 %v2202
        %2238 = vmatprep.subr.mxu0 0.0
        %2239 = vmatpush2.xpose.msra.mxu0 0.0
        %2240 = vmatprep.subr.mxu0 0.0
        %2241 = vmatpush2.xpose.msra.mxu0 0.0
        %2242 = vmatprep.subr.mxu0 0.0
        %2243 = vmatpush2.xpose.msra.mxu0 0.0
        %2244 = vmatprep.subr.mxu0 0.0
        %2245 = vmatpush2.xpose.msra.mxu0 0.0
        %2246 = vmatprep.subr.mxu0 0.0
        %2247 = vmatpush2.xpose.msra.mxu0 0.0
        %2248 = vmatprep.subr.mxu0 0.0
        %2249 = vmatpush2.xpose.msra.mxu0 0.0
        %2250 = vmatprep.subr.mxu0 0.0
        %2251 = vmatpush2.xpose.msra.mxu0 0.0
        %2252 = vmatprep.subr.mxu0 0.0
        %2253 = vmatpush2.xpose.msra.mxu0 0.0
        %2254 = vmatprep.subr.mxu0 0.0
        %2255 = vmatpush2.xpose.msra.mxu0 0.0
        %2256 = vmatprep.subr.mxu0 0.0
        %2257 = vmatpush2.xpose.msra.mxu0 0.0
        %2258 = vmatprep.subr.mxu0 0.0
        %2259 = vmatpush2.xpose.msra.mxu0 0.0
        %2260 = vmatprep.subr.mxu0 0.0
        %2261 = vmatpush2.xpose.msra.mxu0 0.0
        %2262 = vmatprep.subr.mxu0 0.0
        %2263 = vmatpush2.xpose.msra.mxu0 0.0
        %2264 = vmatprep.subr.mxu0 0.0
        %2265 = vmatpush2.xpose.msra.mxu0 0.0
        %2266 = vmatprep.subr.mxu0 0.0
        %2267 = vmatpush2.xpose.msra.mxu0 0.0
        %2268 = vmatprep.subr.mxu0 0.0
        %2269 = vmatpush2.xpose.msra.mxu0 0.0
        %2270 = vmatprep.mubr.f32.mxu0 0.0
        %2271 = vmatmul.mubr.f32.gmra.mxu0 %v2198
        %v2272 = vpop.f32.mrf.mxu0
        %v2273 = vadd.f32 0.0, %v2272
        %v2274 = vpop.f32.mrf.mxu0
        %2275 = vmatprep.mubr.f32.mxu0 0.0
        %2276 = vmatmul.mubr.f32.gmra.mxu0 %v2200
        %v2277 = vpop.f32.mrf.mxu0
        %v2278 = vadd.f32 0.0, %v2277
        %v2279 = vpop.f32.mrf.mxu0
        %2280 = vdwg.mxu0
        %2281 = vrot.lane.b32.xlu0 %v1997, 64
        %v2282 = vpop.permute.xlu0 %2281
        %2283 = vrot.lane.b32.xlu0 %v1999, 64
        %v2284 = vpop.permute.xlu0 %2283
        %v2285 = vsel %vm483, %v1997, 0
        %v2287 = vsel %vm483, %v1999, 0
        %v2289 = vsel %vm483, %v2282, 0
        %v2291 = vsel %vm483, %v2284, 0
        %2293 = vmatprep.subr.mxu0 0.0
        %2294 = vmatpush1.xpose.msra.mxu0 0.0
        %2295 = vmatprep.subr.mxu0 0.0
        %2296 = vmatpush1.xpose.msra.mxu0 0.0
        %2297 = vmatprep.subr.mxu0 0.0
        %2298 = vmatpush1.xpose.msra.mxu0 0.0
        %2299 = vmatprep.subr.mxu0 0.0
        %2300 = vmatpush1.xpose.msra.mxu0 0.0
        %2301 = vmatprep.subr.mxu0 0.0
        %2302 = vmatpush1.xpose.msra.mxu0 0.0
        %2303 = vmatprep.subr.mxu0 0.0
        %2304 = vmatpush1.xpose.msra.mxu0 0.0
        %2305 = vmatprep.subr.mxu0 0.0
        %2306 = vmatpush1.xpose.msra.mxu0 0.0
        %2307 = vmatprep.subr.mxu0 0.0
        %2308 = vmatpush1.xpose.msra.mxu0 0.0
        %2309 = vmatprep.subr.mxu0 0.0
        %2310 = vmatpush1.xpose.msra.mxu0 0.0
        %2311 = vmatprep.subr.mxu0 0.0
        %2312 = vmatpush1.xpose.msra.mxu0 0.0
        %2313 = vmatprep.subr.mxu0 0.0
        %2314 = vmatpush1.xpose.msra.mxu0 0.0
        %2315 = vmatprep.subr.mxu0 0.0
        %2316 = vmatpush1.xpose.msra.mxu0 0.0
        %2317 = vmatprep.subr.mxu0 0.0
        %2318 = vmatpush1.xpose.msra.mxu0 0.0
        %2319 = vmatprep.subr.mxu0 0.0
        %2320 = vmatpush1.xpose.msra.mxu0 0.0
        %2321 = vmatprep.subr.mxu0 0.0
        %2322 = vmatpush1.xpose.msra.mxu0 %v2291
        %2323 = vmatprep.subr.mxu0 0.0
        %2324 = vmatpush1.xpose.msra.mxu0 %v2289
        %2325 = vmatprep.subr.mxu0 0.0
        %2326 = vmatpush2.xpose.msra.mxu0 0.0
        %2327 = vmatprep.subr.mxu0 0.0
        %2328 = vmatpush2.xpose.msra.mxu0 0.0
        %2329 = vmatprep.subr.mxu0 0.0
        %2330 = vmatpush2.xpose.msra.mxu0 0.0
        %2331 = vmatprep.subr.mxu0 0.0
        %2332 = vmatpush2.xpose.msra.mxu0 0.0
        %2333 = vmatprep.subr.mxu0 0.0
        %2334 = vmatpush2.xpose.msra.mxu0 0.0
        %2335 = vmatprep.subr.mxu0 0.0
        %2336 = vmatpush2.xpose.msra.mxu0 0.0
        %2337 = vmatprep.subr.mxu0 0.0
        %2338 = vmatpush2.xpose.msra.mxu0 0.0
        %2339 = vmatprep.subr.mxu0 0.0
        %2340 = vmatpush2.xpose.msra.mxu0 0.0
        %2341 = vmatprep.subr.mxu0 0.0
        %2342 = vmatpush2.xpose.msra.mxu0 0.0
        %2343 = vmatprep.subr.mxu0 0.0
        %2344 = vmatpush2.xpose.msra.mxu0 0.0
        %2345 = vmatprep.subr.mxu0 0.0
        %2346 = vmatpush2.xpose.msra.mxu0 0.0
        %2347 = vmatprep.subr.mxu0 0.0
        %2348 = vmatpush2.xpose.msra.mxu0 0.0
        %2349 = vmatprep.subr.mxu0 0.0
        %2350 = vmatpush2.xpose.msra.mxu0 0.0
        %2351 = vmatprep.subr.mxu0 0.0
        %2352 = vmatpush2.xpose.msra.mxu0 0.0
        %2353 = vmatprep.subr.mxu0 0.0
        %2354 = vmatpush2.xpose.msra.mxu0 0.0
        %2355 = vmatprep.subr.mxu0 0.0
        %2356 = vmatpush2.xpose.msra.mxu0 0.0
        %2357 = vmatprep.mubr.f32.mxu0 0.0
        %2358 = vmatmul.mubr.f32.gmra.mxu0 %v2285
        %v2359 = vpop.f32.mrf.mxu0
        %v2360 = vadd.f32 0.0, %v2359
        %v2361 = vpop.f32.mrf.mxu0
        %2362 = vmatprep.mubr.f32.mxu0 0.0
        %2363 = vmatmul.mubr.f32.gmra.mxu0 %v2287
        %v2364 = vpop.f32.mrf.mxu0
        %v2365 = vadd.f32 0.0, %v2364
        %v2366 = vpop.f32.mrf.mxu0
        %2367 = vdwg.mxu0
        %v2368 = vsel %vm483, %v2099, -inf
        %2369 = vmax.xlane.f32.xlu0 %v2368
        %v2370 = vpop.xlane.xlu0 %2369
        %v2371 = vsel %vm483, %v2104, -inf
        %2372 = vmax.xlane.f32.xlu0 %v2371
        %v2373 = vpop.xlane.xlu0 %2372
        %v2374 = vsel %vm483, %v2186, -inf
        %2375 = vmax.xlane.f32.xlu0 %v2374
        %v2376 = vpop.xlane.xlu0 %2375
        %v2377 = vsel %vm483, %v2191, -inf
        %2378 = vmax.xlane.f32.xlu0 %v2377
        %v2379 = vpop.xlane.xlu0 %2378
        %v2380 = vsel %vm483, %v2273, -inf
        %2381 = vmax.xlane.f32.xlu0 %v2380
        %v2382 = vpop.xlane.xlu0 %2381
        %v2383 = vsel %vm483, %v2278, -inf
        %2384 = vmax.xlane.f32.xlu0 %v2383
        %v2385 = vpop.xlane.xlu0 %2384
        %v2386 = vsel %vm483, %v2360, -inf
        %2387 = vmax.xlane.f32.xlu0 %v2386
        %v2388 = vpop.xlane.xlu0 %2387
        %v2389 = vsel %vm483, %v2365, -inf
        %2390 = vmax.xlane.f32.xlu0 %v2389
        %v2391 = vpop.xlane.xlu0 %2390
        %v2392 = vsub.f32 %v2099, %v2370
        %v2393 = vsub.f32 %v2104, %v2373
        %v2394 = vsub.f32 %v2186, %v2376
        %v2395 = vsub.f32 %v2191, %v2379
        %v2396 = vsub.f32 %v2273, %v2382
        %v2397 = vsub.f32 %v2278, %v2385
        %v2398 = vsub.f32 %v2360, %v2388
        %v2399 = vsub.f32 %v2365, %v2391
        %v2400 = vmul.f32 %v2392, 1.442695
        %v2401 = vpow.pop %v2400
        %v2402 = vmul.f32 %v2393, 1.442695
        %v2403 = vpow.pop %v2402
        %v2404 = vmul.f32 %v2394, 1.442695
        %v2405 = vpow.pop %v2404
        %v2406 = vmul.f32 %v2395, 1.442695
        %v2407 = vpow.pop %v2406
        %v2408 = vmul.f32 %v2396, 1.442695
        %v2409 = vpow.pop %v2408
        %v2410 = vmul.f32 %v2397, 1.442695
        %v2411 = vpow.pop %v2410
        %v2412 = vmul.f32 %v2398, 1.442695
        %v2413 = vpow.pop %v2412
        %v2414 = vmul.f32 %v2399, 1.442695
        %v2415 = vpow.pop %v2414
        %v2416 = vsel %vm483, %v2401, 0.0
        %2417 = vadd.xlane.f32.xlu0 %v2416
        %v2418 = vpop.xlane.xlu0 %2417
        %v2419 = vsel %vm483, %v2403, 0.0
        %2420 = vadd.xlane.f32.xlu0 %v2419
        %v2421 = vpop.xlane.xlu0 %2420
        %v2422 = vsel %vm483, %v2405, 0.0
        %2423 = vadd.xlane.f32.xlu0 %v2422
        %v2424 = vpop.xlane.xlu0 %2423
        %v2425 = vsel %vm483, %v2407, 0.0
        %2426 = vadd.xlane.f32.xlu0 %v2425
        %v2427 = vpop.xlane.xlu0 %2426
        %v2428 = vsel %vm483, %v2409, 0.0
        %2429 = vadd.xlane.f32.xlu0 %v2428
        %v2430 = vpop.xlane.xlu0 %2429
        %v2431 = vsel %vm483, %v2411, 0.0
        %2432 = vadd.xlane.f32.xlu0 %v2431
        %v2433 = vpop.xlane.xlu0 %2432
        %v2434 = vsel %vm483, %v2413, 0.0
        %2435 = vadd.xlane.f32.xlu0 %v2434
        %v2436 = vpop.xlane.xlu0 %2435
        %v2437 = vsel %vm483, %v2415, 0.0
        %2438 = vadd.xlane.f32.xlu0 %v2437
        %v2439 = vpop.xlane.xlu0 %2438
        %v2440 = vrcp.pop %v2418
        %v2441 = vrcp.pop %v2421
        %v2442 = vrcp.pop %v2424
        %v2443 = vrcp.pop %v2427
        %v2444 = vrcp.pop %v2430
        %v2445 = vrcp.pop %v2433
        %v2446 = vrcp.pop %v2436
        %v2447 = vrcp.pop %v2439
        %v2448 = vmul.f32 %v2401, %v2440
        %v2449 = vmul.f32 %v2403, %v2441
        %v2450 = vmul.f32 %v2405, %v2442
        %v2451 = vmul.f32 %v2407, %v2443
        %v2452 = vmul.f32 %v2409, %v2444
        %v2453 = vmul.f32 %v2411, %v2445
        %v2454 = vmul.f32 %v2413, %v2446
        %v2455 = vmul.f32 %v2415, %v2447
        %v2457 = vsel %vm483, %v2448, 0
        %v2460 = vsel %vm483, %v2449, 0
        %2462 = vmatprep.subr.mxu0 0.0
        %2463 = vmatpush1.msra.mxu0 0.0
        %2464 = vmatprep.subr.mxu0 0.0
        %2465 = vmatpush1.msra.mxu0 0.0
        %2466 = vmatprep.subr.mxu0 0.0
        %2467 = vmatpush1.msra.mxu0 0.0
        %2468 = vmatprep.subr.mxu0 0.0
        %2469 = vmatpush1.msra.mxu0 0.0
        %2470 = vmatprep.subr.mxu0 0.0
        %2471 = vmatpush1.msra.mxu0 0.0
        %2472 = vmatprep.subr.mxu0 0.0
        %2473 = vmatpush1.msra.mxu0 0.0
        %2474 = vmatprep.subr.mxu0 0.0
        %2475 = vmatpush1.msra.mxu0 0.0
        %2476 = vmatprep.subr.mxu0 0.0
        %2477 = vmatpush1.msra.mxu0 0.0
        %2478 = vmatprep.subr.mxu0 0.0
        %2479 = vmatpush1.msra.mxu0 0.0
        %2480 = vmatprep.subr.mxu0 0.0
        %2481 = vmatpush1.msra.mxu0 0.0
        %2482 = vmatprep.subr.mxu0 0.0
        %2483 = vmatpush1.msra.mxu0 0.0
        %2484 = vmatprep.subr.mxu0 0.0
        %2485 = vmatpush1.msra.mxu0 0.0
        %2486 = vmatprep.subr.mxu0 0.0
        %2487 = vmatpush1.msra.mxu0 0.0
        %2488 = vmatprep.subr.mxu0 0.0
        %2489 = vmatpush1.msra.mxu0 0.0
        %2490 = vmatprep.subr.mxu0 0.0
        %2491 = vmatpush1.msra.mxu0 %v1984
        %2492 = vmatprep.subr.mxu0 0.0
        %2493 = vmatpush1.msra.mxu0 %v1978
        %2494 = vmatprep.subr.mxu0 0.0
        %2495 = vmatpush2.msra.mxu0 0.0
        %2496 = vmatprep.subr.mxu0 0.0
        %2497 = vmatpush2.msra.mxu0 0.0
        %2498 = vmatprep.subr.mxu0 0.0
        %2499 = vmatpush2.msra.mxu0 0.0
        %2500 = vmatprep.subr.mxu0 0.0
        %2501 = vmatpush2.msra.mxu0 0.0
        %2502 = vmatprep.subr.mxu0 0.0
        %2503 = vmatpush2.msra.mxu0 0.0
        %2504 = vmatprep.subr.mxu0 0.0
        %2505 = vmatpush2.msra.mxu0 0.0
        %2506 = vmatprep.subr.mxu0 0.0
        %2507 = vmatpush2.msra.mxu0 0.0
        %2508 = vmatprep.subr.mxu0 0.0
        %2509 = vmatpush2.msra.mxu0 0.0
        %2510 = vmatprep.subr.mxu0 0.0
        %2511 = vmatpush2.msra.mxu0 0.0
        %2512 = vmatprep.subr.mxu0 0.0
        %2513 = vmatpush2.msra.mxu0 0.0
        %2514 = vmatprep.subr.mxu0 0.0
        %2515 = vmatpush2.msra.mxu0 0.0
        %2516 = vmatprep.subr.mxu0 0.0
        %2517 = vmatpush2.msra.mxu0 0.0
        %2518 = vmatprep.subr.mxu0 0.0
        %2519 = vmatpush2.msra.mxu0 0.0
        %2520 = vmatprep.subr.mxu0 0.0
        %2521 = vmatpush2.msra.mxu0 0.0
        %2522 = vmatprep.subr.mxu0 0.0
        %2523 = vmatpush2.msra.mxu0 0.0
        %2524 = vmatprep.subr.mxu0 0.0
        %2525 = vmatpush2.msra.mxu0 0.0
        %2526 = vmatprep.mubr.f32.mxu0 0.0
        %2527 = vmatmul.mubr.f32.gmra.mxu0 %v2457
        %v2528 = vpop.f32.mrf.mxu0
        %v2529 = vadd.f32 0.0, %v2528
        %v2530 = vpop.f32.mrf.mxu0
        %2531 = vmatprep.mubr.f32.mxu0 0.0
        %2532 = vmatmul.mubr.f32.gmra.mxu0 %v2460
        %v2533 = vpop.f32.mrf.mxu0
        %v2534 = vadd.f32 0.0, %v2533
        %v2535 = vpop.f32.mrf.mxu0
        %2536 = vdwg.mxu0
        %v2538 = vsel %vm483, %v2450, 0
        %v2541 = vsel %vm483, %v2451, 0
        %2543 = vmatprep.subr.mxu0 0.0
        %2544 = vmatpush1.msra.mxu0 0.0
        %2545 = vmatprep.subr.mxu0 0.0
        %2546 = vmatpush1.msra.mxu0 0.0
        %2547 = vmatprep.subr.mxu0 0.0
        %2548 = vmatpush1.msra.mxu0 0.0
        %2549 = vmatprep.subr.mxu0 0.0
        %2550 = vmatpush1.msra.mxu0 0.0
        %2551 = vmatprep.subr.mxu0 0.0
        %2552 = vmatpush1.msra.mxu0 0.0
        %2553 = vmatprep.subr.mxu0 0.0
        %2554 = vmatpush1.msra.mxu0 0.0
        %2555 = vmatprep.subr.mxu0 0.0
        %2556 = vmatpush1.msra.mxu0 0.0
        %2557 = vmatprep.subr.mxu0 0.0
        %2558 = vmatpush1.msra.mxu0 0.0
        %2559 = vmatprep.subr.mxu0 0.0
        %2560 = vmatpush1.msra.mxu0 0.0
        %2561 = vmatprep.subr.mxu0 0.0
        %2562 = vmatpush1.msra.mxu0 0.0
        %2563 = vmatprep.subr.mxu0 0.0
        %2564 = vmatpush1.msra.mxu0 0.0
        %2565 = vmatprep.subr.mxu0 0.0
        %2566 = vmatpush1.msra.mxu0 0.0
        %2567 = vmatprep.subr.mxu0 0.0
        %2568 = vmatpush1.msra.mxu0 0.0
        %2569 = vmatprep.subr.mxu0 0.0
        %2570 = vmatpush1.msra.mxu0 0.0
        %2571 = vmatprep.subr.mxu0 0.0
        %2572 = vmatpush1.msra.mxu0 %v2005
        %2573 = vmatprep.subr.mxu0 0.0
        %2574 = vmatpush1.msra.mxu0 %v2003
        %2575 = vmatprep.subr.mxu0 0.0
        %2576 = vmatpush2.msra.mxu0 0.0
        %2577 = vmatprep.subr.mxu0 0.0
        %2578 = vmatpush2.msra.mxu0 0.0
        %2579 = vmatprep.subr.mxu0 0.0
        %2580 = vmatpush2.msra.mxu0 0.0
        %2581 = vmatprep.subr.mxu0 0.0
        %2582 = vmatpush2.msra.mxu0 0.0
        %2583 = vmatprep.subr.mxu0 0.0
        %2584 = vmatpush2.msra.mxu0 0.0
        %2585 = vmatprep.subr.mxu0 0.0
        %2586 = vmatpush2.msra.mxu0 0.0
        %2587 = vmatprep.subr.mxu0 0.0
        %2588 = vmatpush2.msra.mxu0 0.0
        %2589 = vmatprep.subr.mxu0 0.0
        %2590 = vmatpush2.msra.mxu0 0.0
        %2591 = vmatprep.subr.mxu0 0.0
        %2592 = vmatpush2.msra.mxu0 0.0
        %2593 = vmatprep.subr.mxu0 0.0
        %2594 = vmatpush2.msra.mxu0 0.0
        %2595 = vmatprep.subr.mxu0 0.0
        %2596 = vmatpush2.msra.mxu0 0.0
        %2597 = vmatprep.subr.mxu0 0.0
        %2598 = vmatpush2.msra.mxu0 0.0
        %2599 = vmatprep.subr.mxu0 0.0
        %2600 = vmatpush2.msra.mxu0 0.0
        %2601 = vmatprep.subr.mxu0 0.0
        %2602 = vmatpush2.msra.mxu0 0.0
        %2603 = vmatprep.subr.mxu0 0.0
        %2604 = vmatpush2.msra.mxu0 0.0
        %2605 = vmatprep.subr.mxu0 0.0
        %2606 = vmatpush2.msra.mxu0 0.0
        %2607 = vmatprep.mubr.f32.mxu0 0.0
        %2608 = vmatmul.mubr.f32.gmra.mxu0 %v2538
        %v2609 = vpop.f32.mrf.mxu0
        %v2610 = vadd.f32 0.0, %v2609
        %v2611 = vpop.f32.mrf.mxu0
        %2612 = vmatprep.mubr.f32.mxu0 0.0
        %2613 = vmatmul.mubr.f32.gmra.mxu0 %v2541
        %v2614 = vpop.f32.mrf.mxu0
        %v2615 = vadd.f32 0.0, %v2614
        %v2616 = vpop.f32.mrf.mxu0
        %2617 = vdwg.mxu0
        %v2619 = vsel %vm483, %v2452, 0
        %v2622 = vsel %vm483, %v2453, 0
        %2624 = vmatprep.subr.mxu0 0.0
        %2625 = vmatpush1.msra.mxu0 0.0
        %2626 = vmatprep.subr.mxu0 0.0
        %2627 = vmatpush1.msra.mxu0 0.0
        %2628 = vmatprep.subr.mxu0 0.0
        %2629 = vmatpush1.msra.mxu0 0.0
        %2630 = vmatprep.subr.mxu0 0.0
        %2631 = vmatpush1.msra.mxu0 0.0
        %2632 = vmatprep.subr.mxu0 0.0
        %2633 = vmatpush1.msra.mxu0 0.0
        %2634 = vmatprep.subr.mxu0 0.0
        %2635 = vmatpush1.msra.mxu0 0.0
        %2636 = vmatprep.subr.mxu0 0.0
        %2637 = vmatpush1.msra.mxu0 0.0
        %2638 = vmatprep.subr.mxu0 0.0
        %2639 = vmatpush1.msra.mxu0 0.0
        %2640 = vmatprep.subr.mxu0 0.0
        %2641 = vmatpush1.msra.mxu0 0.0
        %2642 = vmatprep.subr.mxu0 0.0
        %2643 = vmatpush1.msra.mxu0 0.0
        %2644 = vmatprep.subr.mxu0 0.0
        %2645 = vmatpush1.msra.mxu0 0.0
        %2646 = vmatprep.subr.mxu0 0.0
        %2647 = vmatpush1.msra.mxu0 0.0
        %2648 = vmatprep.subr.mxu0 0.0
        %2649 = vmatpush1.msra.mxu0 0.0
        %2650 = vmatprep.subr.mxu0 0.0
        %2651 = vmatpush1.msra.mxu0 0.0
        %2652 = vmatprep.subr.mxu0 0.0
        %2653 = vmatpush1.msra.mxu0 %v2011
        %2654 = vmatprep.subr.mxu0 0.0
        %2655 = vmatpush1.msra.mxu0 %v2009
        %2656 = vmatprep.subr.mxu0 0.0
        %2657 = vmatpush2.msra.mxu0 0.0
        %2658 = vmatprep.subr.mxu0 0.0
        %2659 = vmatpush2.msra.mxu0 0.0
        %2660 = vmatprep.subr.mxu0 0.0
        %2661 = vmatpush2.msra.mxu0 0.0
        %2662 = vmatprep.subr.mxu0 0.0
        %2663 = vmatpush2.msra.mxu0 0.0
        %2664 = vmatprep.subr.mxu0 0.0
        %2665 = vmatpush2.msra.mxu0 0.0
        %2666 = vmatprep.subr.mxu0 0.0
        %2667 = vmatpush2.msra.mxu0 0.0
        %2668 = vmatprep.subr.mxu0 0.0
        %2669 = vmatpush2.msra.mxu0 0.0
        %2670 = vmatprep.subr.mxu0 0.0
        %2671 = vmatpush2.msra.mxu0 0.0
        %2672 = vmatprep.subr.mxu0 0.0
        %2673 = vmatpush2.msra.mxu0 0.0
        %2674 = vmatprep.subr.mxu0 0.0
        %2675 = vmatpush2.msra.mxu0 0.0
        %2676 = vmatprep.subr.mxu0 0.0
        %2677 = vmatpush2.msra.mxu0 0.0
        %2678 = vmatprep.subr.mxu0 0.0
        %2679 = vmatpush2.msra.mxu0 0.0
        %2680 = vmatprep.subr.mxu0 0.0
        %2681 = vmatpush2.msra.mxu0 0.0
        %2682 = vmatprep.subr.mxu0 0.0
        %2683 = vmatpush2.msra.mxu0 0.0
        %2684 = vmatprep.subr.mxu0 0.0
        %2685 = vmatpush2.msra.mxu0 0.0
        %2686 = vmatprep.subr.mxu0 0.0
        %2687 = vmatpush2.msra.mxu0 0.0
        %2688 = vmatprep.mubr.f32.mxu0 0.0
        %2689 = vmatmul.mubr.f32.gmra.mxu0 %v2619
        %v2690 = vpop.f32.mrf.mxu0
        %v2691 = vadd.f32 0.0, %v2690
        %v2692 = vpop.f32.mrf.mxu0
        %2693 = vmatprep.mubr.f32.mxu0 0.0
        %2694 = vmatmul.mubr.f32.gmra.mxu0 %v2622
        %v2695 = vpop.f32.mrf.mxu0
        %v2696 = vadd.f32 0.0, %v2695
        %v2697 = vpop.f32.mrf.mxu0
        %2698 = vdwg.mxu0
        %v2700 = vsel %vm483, %v2454, 0
        %v2703 = vsel %vm483, %v2455, 0
        %2705 = vmatprep.subr.mxu0 0.0
        %2706 = vmatpush1.msra.mxu0 0.0
        %2707 = vmatprep.subr.mxu0 0.0
        %2708 = vmatpush1.msra.mxu0 0.0
        %2709 = vmatprep.subr.mxu0 0.0
        %2710 = vmatpush1.msra.mxu0 0.0
        %2711 = vmatprep.subr.mxu0 0.0
        %2712 = vmatpush1.msra.mxu0 0.0
        %2713 = vmatprep.subr.mxu0 0.0
        %2714 = vmatpush1.msra.mxu0 0.0
        %2715 = vmatprep.subr.mxu0 0.0
        %2716 = vmatpush1.msra.mxu0 0.0
        %2717 = vmatprep.subr.mxu0 0.0
        %2718 = vmatpush1.msra.mxu0 0.0
        %2719 = vmatprep.subr.mxu0 0.0
        %2720 = vmatpush1.msra.mxu0 0.0
        %2721 = vmatprep.subr.mxu0 0.0
        %2722 = vmatpush1.msra.mxu0 0.0
        %2723 = vmatprep.subr.mxu0 0.0
        %2724 = vmatpush1.msra.mxu0 0.0
        %2725 = vmatprep.subr.mxu0 0.0
        %2726 = vmatpush1.msra.mxu0 0.0
        %2727 = vmatprep.subr.mxu0 0.0
        %2728 = vmatpush1.msra.mxu0 0.0
        %2729 = vmatprep.subr.mxu0 0.0
        %2730 = vmatpush1.msra.mxu0 0.0
        %2731 = vmatprep.subr.mxu0 0.0
        %2732 = vmatpush1.msra.mxu0 0.0
        %2733 = vmatprep.subr.mxu0 0.0
        %2734 = vmatpush1.msra.mxu0 %v2017
        %2735 = vmatprep.subr.mxu0 0.0
        %2736 = vmatpush1.msra.mxu0 %v2015
        %2737 = vmatprep.subr.mxu0 0.0
        %2738 = vmatpush2.msra.mxu0 0.0
        %2739 = vmatprep.subr.mxu0 0.0
        %2740 = vmatpush2.msra.mxu0 0.0
        %2741 = vmatprep.subr.mxu0 0.0
        %2742 = vmatpush2.msra.mxu0 0.0
        %2743 = vmatprep.subr.mxu0 0.0
        %2744 = vmatpush2.msra.mxu0 0.0
        %2745 = vmatprep.subr.mxu0 0.0
        %2746 = vmatpush2.msra.mxu0 0.0
        %2747 = vmatprep.subr.mxu0 0.0
        %2748 = vmatpush2.msra.mxu0 0.0
        %2749 = vmatprep.subr.mxu0 0.0
        %2750 = vmatpush2.msra.mxu0 0.0
        %2751 = vmatprep.subr.mxu0 0.0
        %2752 = vmatpush2.msra.mxu0 0.0
        %2753 = vmatprep.subr.mxu0 0.0
        %2754 = vmatpush2.msra.mxu0 0.0
        %2755 = vmatprep.subr.mxu0 0.0
        %2756 = vmatpush2.msra.mxu0 0.0
        %2757 = vmatprep.subr.mxu0 0.0
        %2758 = vmatpush2.msra.mxu0 0.0
        %2759 = vmatprep.subr.mxu0 0.0
        %2760 = vmatpush2.msra.mxu0 0.0
        %2761 = vmatprep.subr.mxu0 0.0
        %2762 = vmatpush2.msra.mxu0 0.0
        %2763 = vmatprep.subr.mxu0 0.0
        %2764 = vmatpush2.msra.mxu0 0.0
        %2765 = vmatprep.subr.mxu0 0.0
        %2766 = vmatpush2.msra.mxu0 0.0
        %2767 = vmatprep.subr.mxu0 0.0
        %2768 = vmatpush2.msra.mxu0 0.0
        %2769 = vmatprep.mubr.f32.mxu0 0.0
        %2770 = vmatmul.mubr.f32.gmra.mxu0 %v2700
        %v2771 = vpop.f32.mrf.mxu0
        %v2772 = vadd.f32 0.0, %v2771
        %v2773 = vpop.f32.mrf.mxu0
        %2774 = vmatprep.mubr.f32.mxu0 0.0
        %2775 = vmatmul.mubr.f32.gmra.mxu0 %v2703
        %v2776 = vpop.f32.mrf.mxu0
        %v2777 = vadd.f32 0.0, %v2776
        %v2778 = vpop.f32.mrf.mxu0
        %2779 = vdwg.mxu0
        %2782 = vrot.lane.b32.xlu0 %v1855, 64
        %v2783 = vpop.permute.xlu0 %2782
        %2784 = vrot.lane.b32.xlu0 %v1856, 64
        %v2785 = vpop.permute.xlu0 %2784
        %v2789 = vsel %vm483, %v2529, 0
        %v2792 = vsel %vm483, %v2534, 0
        %2794 = vmatprep.subr.mxu0 0.0
        %2795 = vmatpush1.msra.mxu0 0.0
        %2796 = vmatprep.subr.mxu0 0.0
        %2797 = vmatpush1.msra.mxu0 0.0
        %2798 = vmatprep.subr.mxu0 0.0
        %2799 = vmatpush1.msra.mxu0 0.0
        %2800 = vmatprep.subr.mxu0 0.0
        %2801 = vmatpush1.msra.mxu0 0.0
        %2802 = vmatprep.subr.mxu0 0.0
        %2803 = vmatpush1.msra.mxu0 0.0
        %2804 = vmatprep.subr.mxu0 0.0
        %2805 = vmatpush1.msra.mxu0 0.0
        %2806 = vmatprep.subr.mxu0 0.0
        %2807 = vmatpush1.msra.mxu0 0.0
        %2808 = vmatprep.subr.mxu0 0.0
        %2809 = vmatpush1.msra.mxu0 0.0
        %2810 = vmatprep.subr.mxu0 0.0
        %2811 = vmatpush1.msra.mxu0 0.0
        %2812 = vmatprep.subr.mxu0 0.0
        %2813 = vmatpush1.msra.mxu0 0.0
        %2814 = vmatprep.subr.mxu0 0.0
        %2815 = vmatpush1.msra.mxu0 0.0
        %2816 = vmatprep.subr.mxu0 0.0
        %2817 = vmatpush1.msra.mxu0 0.0
        %2818 = vmatprep.subr.mxu0 0.0
        %2819 = vmatpush1.msra.mxu0 0.0
        %2820 = vmatprep.subr.mxu0 0.0
        %2821 = vmatpush1.msra.mxu0 0.0
        %2822 = vmatprep.subr.mxu0 0.0
        %2823 = vmatpush1.msra.mxu0 %v2785
        %2824 = vmatprep.subr.mxu0 0.0
        %2825 = vmatpush1.msra.mxu0 %v2783
        %2826 = vmatprep.subr.mxu0 0.0
        %2827 = vmatpush2.msra.mxu0 0.0
        %2828 = vmatprep.subr.mxu0 0.0
        %2829 = vmatpush2.msra.mxu0 0.0
        %2830 = vmatprep.subr.mxu0 0.0
        %2831 = vmatpush2.msra.mxu0 0.0
        %2832 = vmatprep.subr.mxu0 0.0
        %2833 = vmatpush2.msra.mxu0 0.0
        %2834 = vmatprep.subr.mxu0 0.0
        %2835 = vmatpush2.msra.mxu0 0.0
        %2836 = vmatprep.subr.mxu0 0.0
        %2837 = vmatpush2.msra.mxu0 0.0
        %2838 = vmatprep.subr.mxu0 0.0
        %2839 = vmatpush2.msra.mxu0 0.0
        %2840 = vmatprep.subr.mxu0 0.0
        %2841 = vmatpush2.msra.mxu0 0.0
        %2842 = vmatprep.subr.mxu0 0.0
        %2843 = vmatpush2.msra.mxu0 0.0
        %2844 = vmatprep.subr.mxu0 0.0
        %2845 = vmatpush2.msra.mxu0 0.0
        %2846 = vmatprep.subr.mxu0 0.0
        %2847 = vmatpush2.msra.mxu0 0.0
        %2848 = vmatprep.subr.mxu0 0.0
        %2849 = vmatpush2.msra.mxu0 0.0
        %2850 = vmatprep.subr.mxu0 0.0
        %2851 = vmatpush2.msra.mxu0 0.0
        %2852 = vmatprep.subr.mxu0 0.0
        %2853 = vmatpush2.msra.mxu0 0.0
        %2854 = vmatprep.subr.mxu0 0.0
        %2855 = vmatpush2.msra.mxu0 0.0
        %2856 = vmatprep.subr.mxu0 0.0
        %2857 = vmatpush2.msra.mxu0 0.0
        %2858 = vmatprep.mubr.f32.mxu0 0.0
        %2859 = vmatmul.mubr.f32.gmra.mxu0 %v2789
        %v2860 = vpop.f32.mrf.mxu0
        %v2861 = vadd.f32 0.0, %v2860
        %v2862 = vpop.f32.mrf.mxu0
        %2863 = vmatprep.mubr.f32.mxu0 0.0
        %2864 = vmatmul.mubr.f32.gmra.mxu0 %v2792
        %v2865 = vpop.f32.mrf.mxu0
        %v2866 = vadd.f32 0.0, %v2865
        %v2867 = vpop.f32.mrf.mxu0
        %2868 = vdwg.mxu0
        %2871 = vrot.lane.b32.xlu0 %v1857, 64
        %v2872 = vpop.permute.xlu0 %2871
        %2873 = vrot.lane.b32.xlu0 %v1858, 64
        %v2874 = vpop.permute.xlu0 %2873
        %v2878 = vsel %vm483, %v2610, 0
        %v2881 = vsel %vm483, %v2615, 0
        %2883 = vmatprep.subr.mxu0 0.0
        %2884 = vmatpush1.msra.mxu0 0.0
        %2885 = vmatprep.subr.mxu0 0.0
        %2886 = vmatpush1.msra.mxu0 0.0
        %2887 = vmatprep.subr.mxu0 0.0
        %2888 = vmatpush1.msra.mxu0 0.0
        %2889 = vmatprep.subr.mxu0 0.0
        %2890 = vmatpush1.msra.mxu0 0.0
        %2891 = vmatprep.subr.mxu0 0.0
        %2892 = vmatpush1.msra.mxu0 0.0
        %2893 = vmatprep.subr.mxu0 0.0
        %2894 = vmatpush1.msra.mxu0 0.0
        %2895 = vmatprep.subr.mxu0 0.0
        %2896 = vmatpush1.msra.mxu0 0.0
        %2897 = vmatprep.subr.mxu0 0.0
        %2898 = vmatpush1.msra.mxu0 0.0
        %2899 = vmatprep.subr.mxu0 0.0
        %2900 = vmatpush1.msra.mxu0 0.0
        %2901 = vmatprep.subr.mxu0 0.0
        %2902 = vmatpush1.msra.mxu0 0.0
        %2903 = vmatprep.subr.mxu0 0.0
        %2904 = vmatpush1.msra.mxu0 0.0
        %2905 = vmatprep.subr.mxu0 0.0
        %2906 = vmatpush1.msra.mxu0 0.0
        %2907 = vmatprep.subr.mxu0 0.0
        %2908 = vmatpush1.msra.mxu0 0.0
        %2909 = vmatprep.subr.mxu0 0.0
        %2910 = vmatpush1.msra.mxu0 0.0
        %2911 = vmatprep.subr.mxu0 0.0
        %2912 = vmatpush1.msra.mxu0 %v2874
        %2913 = vmatprep.subr.mxu0 0.0
        %2914 = vmatpush1.msra.mxu0 %v2872
        %2915 = vmatprep.subr.mxu0 0.0
        %2916 = vmatpush2.msra.mxu0 0.0
        %2917 = vmatprep.subr.mxu0 0.0
        %2918 = vmatpush2.msra.mxu0 0.0
        %2919 = vmatprep.subr.mxu0 0.0
        %2920 = vmatpush2.msra.mxu0 0.0
        %2921 = vmatprep.subr.mxu0 0.0
        %2922 = vmatpush2.msra.mxu0 0.0
        %2923 = vmatprep.subr.mxu0 0.0
        %2924 = vmatpush2.msra.mxu0 0.0
        %2925 = vmatprep.subr.mxu0 0.0
        %2926 = vmatpush2.msra.mxu0 0.0
        %2927 = vmatprep.subr.mxu0 0.0
        %2928 = vmatpush2.msra.mxu0 0.0
        %2929 = vmatprep.subr.mxu0 0.0
        %2930 = vmatpush2.msra.mxu0 0.0
        %2931 = vmatprep.subr.mxu0 0.0
        %2932 = vmatpush2.msra.mxu0 0.0
        %2933 = vmatprep.subr.mxu0 0.0
        %2934 = vmatpush2.msra.mxu0 0.0
        %2935 = vmatprep.subr.mxu0 0.0
        %2936 = vmatpush2.msra.mxu0 0.0
        %2937 = vmatprep.subr.mxu0 0.0
        %2938 = vmatpush2.msra.mxu0 0.0
        %2939 = vmatprep.subr.mxu0 0.0
        %2940 = vmatpush2.msra.mxu0 0.0
        %2941 = vmatprep.subr.mxu0 0.0
        %2942 = vmatpush2.msra.mxu0 0.0
        %2943 = vmatprep.subr.mxu0 0.0
        %2944 = vmatpush2.msra.mxu0 0.0
        %2945 = vmatprep.subr.mxu0 0.0
        %2946 = vmatpush2.msra.mxu0 0.0
        %2947 = vmatprep.mubr.f32.mxu0 0.0
        %2948 = vmatmul.mubr.f32.gmra.mxu0 %v2878
        %v2949 = vpop.f32.mrf.mxu0
        %v2950 = vadd.f32 0.0, %v2949
        %v2951 = vpop.f32.mrf.mxu0
        %2952 = vmatprep.mubr.f32.mxu0 0.0
        %2953 = vmatmul.mubr.f32.gmra.mxu0 %v2881
        %v2954 = vpop.f32.mrf.mxu0
        %v2955 = vadd.f32 0.0, %v2954
        %v2956 = vpop.f32.mrf.mxu0
        %2957 = vdwg.mxu0
        %2960 = vrot.lane.b32.xlu0 %v1859, 64
        %v2961 = vpop.permute.xlu0 %2960
        %2962 = vrot.lane.b32.xlu0 %v1860, 64
        %v2963 = vpop.permute.xlu0 %2962
        %v2967 = vsel %vm483, %v2691, 0
        %v2970 = vsel %vm483, %v2696, 0
        %2972 = vmatprep.subr.mxu0 0.0
        %2973 = vmatpush1.msra.mxu0 0.0
        %2974 = vmatprep.subr.mxu0 0.0
        %2975 = vmatpush1.msra.mxu0 0.0
        %2976 = vmatprep.subr.mxu0 0.0
        %2977 = vmatpush1.msra.mxu0 0.0
        %2978 = vmatprep.subr.mxu0 0.0
        %2979 = vmatpush1.msra.mxu0 0.0
        %2980 = vmatprep.subr.mxu0 0.0
        %2981 = vmatpush1.msra.mxu0 0.0
        %2982 = vmatprep.subr.mxu0 0.0
        %2983 = vmatpush1.msra.mxu0 0.0
        %2984 = vmatprep.subr.mxu0 0.0
        %2985 = vmatpush1.msra.mxu0 0.0
        %2986 = vmatprep.subr.mxu0 0.0
        %2987 = vmatpush1.msra.mxu0 0.0
        %2988 = vmatprep.subr.mxu0 0.0
        %2989 = vmatpush1.msra.mxu0 0.0
        %2990 = vmatprep.subr.mxu0 0.0
        %2991 = vmatpush1.msra.mxu0 0.0
        %2992 = vmatprep.subr.mxu0 0.0
        %2993 = vmatpush1.msra.mxu0 0.0
        %2994 = vmatprep.subr.mxu0 0.0
        %2995 = vmatpush1.msra.mxu0 0.0
        %2996 = vmatprep.subr.mxu0 0.0
        %2997 = vmatpush1.msra.mxu0 0.0
        %2998 = vmatprep.subr.mxu0 0.0
        %2999 = vmatpush1.msra.mxu0 0.0
        %3000 = vmatprep.subr.mxu0 0.0
        %3001 = vmatpush1.msra.mxu0 %v2963
        %3002 = vmatprep.subr.mxu0 0.0
        %3003 = vmatpush1.msra.mxu0 %v2961
        %3004 = vmatprep.subr.mxu0 0.0
        %3005 = vmatpush2.msra.mxu0 0.0
        %3006 = vmatprep.subr.mxu0 0.0
        %3007 = vmatpush2.msra.mxu0 0.0
        %3008 = vmatprep.subr.mxu0 0.0
        %3009 = vmatpush2.msra.mxu0 0.0
        %3010 = vmatprep.subr.mxu0 0.0
        %3011 = vmatpush2.msra.mxu0 0.0
        %3012 = vmatprep.subr.mxu0 0.0
        %3013 = vmatpush2.msra.mxu0 0.0
        %3014 = vmatprep.subr.mxu0 0.0
        %3015 = vmatpush2.msra.mxu0 0.0
        %3016 = vmatprep.subr.mxu0 0.0
        %3017 = vmatpush2.msra.mxu0 0.0
        %3018 = vmatprep.subr.mxu0 0.0
        %3019 = vmatpush2.msra.mxu0 0.0
        %3020 = vmatprep.subr.mxu0 0.0
        %3021 = vmatpush2.msra.mxu0 0.0
        %3022 = vmatprep.subr.mxu0 0.0
        %3023 = vmatpush2.msra.mxu0 0.0
        %3024 = vmatprep.subr.mxu0 0.0
        %3025 = vmatpush2.msra.mxu0 0.0
        %3026 = vmatprep.subr.mxu0 0.0
        %3027 = vmatpush2.msra.mxu0 0.0
        %3028 = vmatprep.subr.mxu0 0.0
        %3029 = vmatpush2.msra.mxu0 0.0
        %3030 = vmatprep.subr.mxu0 0.0
        %3031 = vmatpush2.msra.mxu0 0.0
        %3032 = vmatprep.subr.mxu0 0.0
        %3033 = vmatpush2.msra.mxu0 0.0
        %3034 = vmatprep.subr.mxu0 0.0
        %3035 = vmatpush2.msra.mxu0 0.0
        %3036 = vmatprep.mubr.f32.mxu0 0.0
        %3037 = vmatmul.mubr.f32.gmra.mxu0 %v2967
        %v3038 = vpop.f32.mrf.mxu0
        %v3039 = vadd.f32 0.0, %v3038
        %v3040 = vpop.f32.mrf.mxu0
        %3041 = vmatprep.mubr.f32.mxu0 0.0
        %3042 = vmatmul.mubr.f32.gmra.mxu0 %v2970
        %v3043 = vpop.f32.mrf.mxu0
        %v3044 = vadd.f32 0.0, %v3043
        %v3045 = vpop.f32.mrf.mxu0
        %3046 = vdwg.mxu0
        %3049 = vrot.lane.b32.xlu0 %v1861, 64
        %v3050 = vpop.permute.xlu0 %3049
        %3051 = vrot.lane.b32.xlu0 %v1862, 64
        %v3052 = vpop.permute.xlu0 %3051
        %v3056 = vsel %vm483, %v2772, 0
        %v3059 = vsel %vm483, %v2777, 0
        %3061 = vmatprep.subr.mxu0 0.0
        %3062 = vmatpush1.msra.mxu0 0.0
        %3063 = vmatprep.subr.mxu0 0.0
        %3064 = vmatpush1.msra.mxu0 0.0
        %3065 = vmatprep.subr.mxu0 0.0
        %3066 = vmatpush1.msra.mxu0 0.0
        %3067 = vmatprep.subr.mxu0 0.0
        %3068 = vmatpush1.msra.mxu0 0.0
        %3069 = vmatprep.subr.mxu0 0.0
        %3070 = vmatpush1.msra.mxu0 0.0
        %3071 = vmatprep.subr.mxu0 0.0
        %3072 = vmatpush1.msra.mxu0 0.0
        %3073 = vmatprep.subr.mxu0 0.0
        %3074 = vmatpush1.msra.mxu0 0.0
        %3075 = vmatprep.subr.mxu0 0.0
        %3076 = vmatpush1.msra.mxu0 0.0
        %3077 = vmatprep.subr.mxu0 0.0
        %3078 = vmatpush1.msra.mxu0 0.0
        %3079 = vmatprep.subr.mxu0 0.0
        %3080 = vmatpush1.msra.mxu0 0.0
        %3081 = vmatprep.subr.mxu0 0.0
        %3082 = vmatpush1.msra.mxu0 0.0
        %3083 = vmatprep.subr.mxu0 0.0
        %3084 = vmatpush1.msra.mxu0 0.0
        %3085 = vmatprep.subr.mxu0 0.0
        %3086 = vmatpush1.msra.mxu0 0.0
        %3087 = vmatprep.subr.mxu0 0.0
        %3088 = vmatpush1.msra.mxu0 0.0
        %3089 = vmatprep.subr.mxu0 0.0
        %3090 = vmatpush1.msra.mxu0 %v3052
        %3091 = vmatprep.subr.mxu0 0.0
        %3092 = vmatpush1.msra.mxu0 %v3050
        %3093 = vmatprep.subr.mxu0 0.0
        %3094 = vmatpush2.msra.mxu0 0.0
        %3095 = vmatprep.subr.mxu0 0.0
        %3096 = vmatpush2.msra.mxu0 0.0
        %3097 = vmatprep.subr.mxu0 0.0
        %3098 = vmatpush2.msra.mxu0 0.0
        %3099 = vmatprep.subr.mxu0 0.0
        %3100 = vmatpush2.msra.mxu0 0.0
        %3101 = vmatprep.subr.mxu0 0.0
        %3102 = vmatpush2.msra.mxu0 0.0
        %3103 = vmatprep.subr.mxu0 0.0
        %3104 = vmatpush2.msra.mxu0 0.0
        %3105 = vmatprep.subr.mxu0 0.0
        %3106 = vmatpush2.msra.mxu0 0.0
        %3107 = vmatprep.subr.mxu0 0.0
        %3108 = vmatpush2.msra.mxu0 0.0
        %3109 = vmatprep.subr.mxu0 0.0
        %3110 = vmatpush2.msra.mxu0 0.0
        %3111 = vmatprep.subr.mxu0 0.0
        %3112 = vmatpush2.msra.mxu0 0.0
        %3113 = vmatprep.subr.mxu0 0.0
        %3114 = vmatpush2.msra.mxu0 0.0
        %3115 = vmatprep.subr.mxu0 0.0
        %3116 = vmatpush2.msra.mxu0 0.0
        %3117 = vmatprep.subr.mxu0 0.0
        %3118 = vmatpush2.msra.mxu0 0.0
        %3119 = vmatprep.subr.mxu0 0.0
        %3120 = vmatpush2.msra.mxu0 0.0
        %3121 = vmatprep.subr.mxu0 0.0
        %3122 = vmatpush2.msra.mxu0 0.0
        %3123 = vmatprep.subr.mxu0 0.0
        %3124 = vmatpush2.msra.mxu0 0.0
        %3125 = vmatprep.mubr.f32.mxu0 0.0
        %3126 = vmatmul.mubr.f32.gmra.mxu0 %v3056
        %v3127 = vpop.f32.mrf.mxu0
        %v3128 = vadd.f32 0.0, %v3127
        %v3129 = vpop.f32.mrf.mxu0
        %3130 = vmatprep.mubr.f32.mxu0 0.0
        %3131 = vmatmul.mubr.f32.gmra.mxu0 %v3059
        %v3132 = vpop.f32.mrf.mxu0
        %v3133 = vadd.f32 0.0, %v3132
        %v3134 = vpop.f32.mrf.mxu0
        %3135 = vdwg.mxu0
        %v3136 = vsel %vm322, %v2861, 0.0
        %v3137 = vsel %vm322, %v2950, 0.0
        %v3138 = vadd.f32 %v3136, %v3137
        %v3139 = vsel %vm322, %v3039, 0.0
        %v3140 = vadd.f32 %v3138, %v3139
        %v3141 = vsel %vm322, %v3128, 0.0
        %v3142 = vadd.f32 %v3140, %v3141
        %v3143 = vsel %vm322, %v2866, 0.0
        %v3144 = vsel %vm322, %v2955, 0.0
        %v3145 = vadd.f32 %v3143, %v3144
        %v3146 = vsel %vm322, %v3044, 0.0
        %v3147 = vadd.f32 %v3145, %v3146
        %v3148 = vsel %vm322, %v3133, 0.0
        %v3149 = vadd.f32 %v3147, %v3148
        %v3150 = vadd.f32 %v1845, %v3142
        %v3151 = vadd.f32 %v1846, %v3149
        %v3152 = vld [vmem:[%s5 + $0x8] sm:$0x1]
        %v3153 = vld [vmem:[%s5 + $0x9] sm:$0x1]
        %v3154 = vsel %vm322, %v3150, 0.0
        %3155 = vadd.xlane.f32.xlu0 %v3154
        %v3156 = vpop.xlane.xlu0 %3155
        %v3157 = vsel %vm322, %v3151, 0.0
        %3158 = vadd.xlane.f32.xlu0 %v3157
        %v3159 = vpop.xlane.xlu0 %3158
        %v3160 = vmul.f32 %v3156, %v329
        %v3161 = vmul.f32 %v3159, %v329
        %v3162 = vsub.f32 %v3150, %v3160
        %v3163 = vsub.f32 %v3151, %v3161
        %v3164 = vmul.f32 %v3162, %v3162
        %v3165 = vmul.f32 %v3163, %v3163
        %v3166 = vsel %vm322, %v3164, 0.0
        %3167 = vadd.xlane.f32.xlu0 %v3166
        %v3168 = vpop.xlane.xlu0 %3167
        %v3169 = vsel %vm322, %v3165, 0.0
        %3170 = vadd.xlane.f32.xlu0 %v3169
        %v3171 = vpop.xlane.xlu0 %3170
        %v3172 = vmul.f32 %v3168, %v329
        %v3173 = vmul.f32 %v3171, %v329
        %v3174 = vadd.f32 %v3172, 1e-05
        %v3175 = vadd.f32 %v3173, 1e-05
        %v3176 = vrsqrt.pop %v3174
        %v3177 = vrsqrt.pop %v3175
        %v3178 = vmul.f32 %v3162, %v3176
        %v3179 = vmul.f32 %v3163, %v3177
        %v3180 = vlaneseq
        %v3181 = vshrl.u32 %v3180, 7
        %v3182 = vsub.s32 0, %v3181
        %v3183 = vrot.slane %v3152, %v3182
        %v3184 = vmul.f32 %v3178, %v3183
        %v3185 = vmul.f32 %v3179, %v3183
        %v3186 = vlaneseq
        %v3187 = vshrl.u32 %v3186, 7
        %v3188 = vsub.s32 0, %v3187
        %v3189 = vrot.slane %v3153, %v3188
        %v3190 = vadd.f32 %v3184, %v3189
        %v3191 = vadd.f32 %v3185, %v3189
        %v3192 = vld [vmem:[%s5 + $0xb] sm:$0x1]
        %v3193 = vlaneseq
        %v3194 = vshrl.u32 %v3193, 7
        %v3195 = vsub.s32 0, %v3194
        %v3196 = vrot.slane %v3192, %v3195
        %3201 = vrot.lane.b32.xlu0 %v1848, 64
        %v3202 = vpop.permute.xlu0 %3201
        %3203 = vrot.lane.b32.xlu0 %v1850, 64
        %v3204 = vpop.permute.xlu0 %3203
        %3205 = vrot.lane.b32.xlu0 %v1852, 64
        %v3206 = vpop.permute.xlu0 %3205
        %3207 = vrot.lane.b32.xlu0 %v1854, 64
        %v3208 = vpop.permute.xlu0 %3207
        %v3214 = vsel %vm322, %v3190, 0
        %v3217 = vsel %vm322, %v3191, 0
        %3219 = vmatprep.subr.mxu0 0.0
        %3220 = vmatpush1.msra.mxu0 0.0
        %3221 = vmatprep.subr.mxu0 0.0
        %3222 = vmatpush1.msra.mxu0 0.0
        %3223 = vmatprep.subr.mxu0 0.0
        %3224 = vmatpush1.msra.mxu0 0.0
        %3225 = vmatprep.subr.mxu0 0.0
        %3226 = vmatpush1.msra.mxu0 0.0
        %3227 = vmatprep.subr.mxu0 0.0
        %3228 = vmatpush1.msra.mxu0 0.0
        %3229 = vmatprep.subr.mxu0 0.0
        %3230 = vmatpush1.msra.mxu0 0.0
        %3231 = vmatprep.subr.mxu0 0.0
        %3232 = vmatpush1.msra.mxu0 0.0
        %3233 = vmatprep.subr.mxu0 0.0
        %3234 = vmatpush1.msra.mxu0 0.0
        %3235 = vmatprep.subr.mxu0 0.0
        %3236 = vmatpush1.msra.mxu0 0.0
        %3237 = vmatprep.subr.mxu0 0.0
        %3238 = vmatpush1.msra.mxu0 0.0
        %3239 = vmatprep.subr.mxu0 0.0
        %3240 = vmatpush1.msra.mxu0 0.0
        %3241 = vmatprep.subr.mxu0 0.0
        %3242 = vmatpush1.msra.mxu0 0.0
        %3243 = vmatprep.subr.mxu0 0.0
        %3244 = vmatpush1.msra.mxu0 %v3208
        %3245 = vmatprep.subr.mxu0 0.0
        %3246 = vmatpush1.msra.mxu0 %v3206
        %3247 = vmatprep.subr.mxu0 0.0
        %3248 = vmatpush1.msra.mxu0 %v3204
        %3249 = vmatprep.subr.mxu0 0.0
        %3250 = vmatpush1.msra.mxu0 %v3202
        %3251 = vmatprep.subr.mxu0 0.0
        %3252 = vmatpush2.msra.mxu0 0.0
        %3253 = vmatprep.subr.mxu0 0.0
        %3254 = vmatpush2.msra.mxu0 0.0
        %3255 = vmatprep.subr.mxu0 0.0
        %3256 = vmatpush2.msra.mxu0 0.0
        %3257 = vmatprep.subr.mxu0 0.0
        %3258 = vmatpush2.msra.mxu0 0.0
        %3259 = vmatprep.subr.mxu0 0.0
        %3260 = vmatpush2.msra.mxu0 0.0
        %3261 = vmatprep.subr.mxu0 0.0
        %3262 = vmatpush2.msra.mxu0 0.0
        %3263 = vmatprep.subr.mxu0 0.0
        %3264 = vmatpush2.msra.mxu0 0.0
        %3265 = vmatprep.subr.mxu0 0.0
        %3266 = vmatpush2.msra.mxu0 0.0
        %3267 = vmatprep.subr.mxu0 0.0
        %3268 = vmatpush2.msra.mxu0 0.0
        %3269 = vmatprep.subr.mxu0 0.0
        %3270 = vmatpush2.msra.mxu0 0.0
        %3271 = vmatprep.subr.mxu0 0.0
        %3272 = vmatpush2.msra.mxu0 0.0
        %3273 = vmatprep.subr.mxu0 0.0
        %3274 = vmatpush2.msra.mxu0 0.0
        %3275 = vmatprep.subr.mxu0 0.0
        %3276 = vmatpush2.msra.mxu0 0.0
        %3277 = vmatprep.subr.mxu0 0.0
        %3278 = vmatpush2.msra.mxu0 0.0
        %3279 = vmatprep.subr.mxu0 0.0
        %3280 = vmatpush2.msra.mxu0 0.0
        %3281 = vmatprep.subr.mxu0 0.0
        %3282 = vmatpush2.msra.mxu0 0.0
        %3283 = vmatprep.mubr.f32.mxu0 0.0
        %3284 = vmatmul.mubr.f32.gmra.mxu0 %v3214
        %v3285 = vpop.f32.mrf.mxu0
        %v3286 = vadd.f32 %v3196, %v3285
        %v3287 = vpop.f32.mrf.mxu0
        %3288 = vmatprep.mubr.f32.mxu0 0.0
        %3289 = vmatmul.mubr.f32.gmra.mxu0 %v3217
        %v3290 = vpop.f32.mrf.mxu0
        %v3291 = vadd.f32 %v3196, %v3290
        %v3292 = vpop.f32.mrf.mxu0
        %3293 = vdwg.mxu0
        %v3294 = vmax.f32 %v3286, 0.0
        %v3295 = vmax.f32 %v3291, 0.0
        %3296 = vrot.lane.b32.xlu0 %v1855, 32
        %v3297 = vpop.permute.xlu0 %3296
        %3298 = vrot.lane.b32.xlu0 %v1856, 32
        %v3299 = vpop.permute.xlu0 %3298
        %3300 = vrot.lane.b32.xlu0 %v1857, 32
        %v3301 = vpop.permute.xlu0 %3300
        %3302 = vrot.lane.b32.xlu0 %v1858, 32
        %v3303 = vpop.permute.xlu0 %3302
        %3304 = vrot.lane.b32.xlu0 %v1859, 32
        %v3305 = vpop.permute.xlu0 %3304
        %3306 = vrot.lane.b32.xlu0 %v1860, 32
        %v3307 = vpop.permute.xlu0 %3306
        %3308 = vrot.lane.b32.xlu0 %v1861, 32
        %v3309 = vpop.permute.xlu0 %3308
        %3310 = vrot.lane.b32.xlu0 %v1862, 32
        %v3311 = vpop.permute.xlu0 %3310
        %v3321 = vsel %vm1756, %v3294, 0
        %v3324 = vsel %vm1756, %v3295, 0
        %3326 = vmatprep.subr.mxu0 0.0
        %3327 = vmatpush1.msra.mxu0 0.0
        %3328 = vmatprep.subr.mxu0 0.0
        %3329 = vmatpush1.msra.mxu0 0.0
        %3330 = vmatprep.subr.mxu0 0.0
        %3331 = vmatpush1.msra.mxu0 0.0
        %3332 = vmatprep.subr.mxu0 0.0
        %3333 = vmatpush1.msra.mxu0 0.0
        %3334 = vmatprep.subr.mxu0 0.0
        %3335 = vmatpush1.msra.mxu0 0.0
        %3336 = vmatprep.subr.mxu0 0.0
        %3337 = vmatpush1.msra.mxu0 0.0
        %3338 = vmatprep.subr.mxu0 0.0
        %3339 = vmatpush1.msra.mxu0 0.0
        %3340 = vmatprep.subr.mxu0 0.0
        %3341 = vmatpush1.msra.mxu0 0.0
        %3342 = vmatprep.subr.mxu0 0.0
        %3343 = vmatpush1.msra.mxu0 %v3311
        %3344 = vmatprep.subr.mxu0 0.0
        %3345 = vmatpush1.msra.mxu0 %v3309
        %3346 = vmatprep.subr.mxu0 0.0
        %3347 = vmatpush1.msra.mxu0 %v3307
        %3348 = vmatprep.subr.mxu0 0.0
        %3349 = vmatpush1.msra.mxu0 %v3305
        %3350 = vmatprep.subr.mxu0 0.0
        %3351 = vmatpush1.msra.mxu0 %v3303
        %3352 = vmatprep.subr.mxu0 0.0
        %3353 = vmatpush1.msra.mxu0 %v3301
        %3354 = vmatprep.subr.mxu0 0.0
        %3355 = vmatpush1.msra.mxu0 %v3299
        %3356 = vmatprep.subr.mxu0 0.0
        %3357 = vmatpush1.msra.mxu0 %v3297
        %3358 = vmatprep.subr.mxu0 0.0
        %3359 = vmatpush2.msra.mxu0 0.0
        %3360 = vmatprep.subr.mxu0 0.0
        %3361 = vmatpush2.msra.mxu0 0.0
        %3362 = vmatprep.subr.mxu0 0.0
        %3363 = vmatpush2.msra.mxu0 0.0
        %3364 = vmatprep.subr.mxu0 0.0
        %3365 = vmatpush2.msra.mxu0 0.0
        %3366 = vmatprep.subr.mxu0 0.0
        %3367 = vmatpush2.msra.mxu0 0.0
        %3368 = vmatprep.subr.mxu0 0.0
        %3369 = vmatpush2.msra.mxu0 0.0
        %3370 = vmatprep.subr.mxu0 0.0
        %3371 = vmatpush2.msra.mxu0 0.0
        %3372 = vmatprep.subr.mxu0 0.0
        %3373 = vmatpush2.msra.mxu0 0.0
        %3374 = vmatprep.subr.mxu0 0.0
        %3375 = vmatpush2.msra.mxu0 0.0
        %3376 = vmatprep.subr.mxu0 0.0
        %3377 = vmatpush2.msra.mxu0 0.0
        %3378 = vmatprep.subr.mxu0 0.0
        %3379 = vmatpush2.msra.mxu0 0.0
        %3380 = vmatprep.subr.mxu0 0.0
        %3381 = vmatpush2.msra.mxu0 0.0
        %3382 = vmatprep.subr.mxu0 0.0
        %3383 = vmatpush2.msra.mxu0 0.0
        %3384 = vmatprep.subr.mxu0 0.0
        %3385 = vmatpush2.msra.mxu0 0.0
        %3386 = vmatprep.subr.mxu0 0.0
        %3387 = vmatpush2.msra.mxu0 0.0
        %3388 = vmatprep.subr.mxu0 0.0
        %3389 = vmatpush2.msra.mxu0 0.0
        %3390 = vmatprep.mubr.f32.mxu0 0.0
        %3391 = vmatmul.mubr.f32.gmra.mxu0 %v3321
        %v3392 = vpop.f32.mrf.mxu0
        %v3393 = vadd.f32 0.0, %v3392
        %v3394 = vpop.f32.mrf.mxu0
        %3395 = vmatprep.mubr.f32.mxu0 0.0
        %3396 = vmatmul.mubr.f32.gmra.mxu0 %v3324
        %v3397 = vpop.f32.mrf.mxu0
        %v3398 = vadd.f32 0.0, %v3397
        %v3399 = vpop.f32.mrf.mxu0
        %3400 = vdwg.mxu0
        %v3401 = vadd.f32 %v3150, %v3393
        %v3402 = vadd.f32 %v3151, %v3398
        %v3403 = vld [vmem:[%s5 + $0xa] sm:$0x1]
        %v3404 = vlaneseq
        %v3405 = vshrl.u32 %v3404, 7
        %v3406 = vsub.s32 0, %v3405
        %v3407 = vrot.slane %v3403, %v3406
        %v3408 = vadd.f32 %v3401, %v3407
        %v3409 = vadd.f32 %v3402, %v3407
        %v3410 = vld [vmem:[%s5 + $0x1c] sm:$0x1]
        %v3411 = vld [vmem:[%s5 + $0x1d] sm:$0x1]
        %v3412 = vsel %vm322, %v3408, 0.0
        %3413 = vadd.xlane.f32.xlu0 %v3412
        %v3414 = vpop.xlane.xlu0 %3413
        %v3415 = vsel %vm322, %v3409, 0.0
        %3416 = vadd.xlane.f32.xlu0 %v3415
        %v3417 = vpop.xlane.xlu0 %3416
        %v3418 = vmul.f32 %v3414, %v329
        %v3419 = vmul.f32 %v3417, %v329
        %v3420 = vsub.f32 %v3408, %v3418
        %v3421 = vsub.f32 %v3409, %v3419
        %v3422 = vmul.f32 %v3420, %v3420
        %v3423 = vmul.f32 %v3421, %v3421
        %v3424 = vsel %vm322, %v3422, 0.0
        %3425 = vadd.xlane.f32.xlu0 %v3424
        %v3426 = vpop.xlane.xlu0 %3425
        %v3427 = vsel %vm322, %v3423, 0.0
        %3428 = vadd.xlane.f32.xlu0 %v3427
        %v3429 = vpop.xlane.xlu0 %3428
        %v3430 = vmul.f32 %v3426, %v329
        %v3431 = vmul.f32 %v3429, %v329
        %v3432 = vadd.f32 %v3430, 1e-05
        %v3433 = vadd.f32 %v3431, 1e-05
        %v3434 = vrsqrt.pop %v3432
        %v3435 = vrsqrt.pop %v3433
        %v3436 = vmul.f32 %v3420, %v3434
        %v3437 = vmul.f32 %v3421, %v3435
        %v3438 = vlaneseq
        %v3439 = vshrl.u32 %v3438, 7
        %v3440 = vsub.s32 0, %v3439
        %v3441 = vrot.slane %v3410, %v3440
        %v3442 = vmul.f32 %v3436, %v3441
        %v3443 = vmul.f32 %v3437, %v3441
        %v3444 = vlaneseq
        %v3445 = vshrl.u32 %v3444, 7
        %v3446 = vsub.s32 0, %v3445
        %v3447 = vrot.slane %v3411, %v3446
        %v3448 = vadd.f32 %v3442, %v3447
        %v3449 = vadd.f32 %v3443, %v3447
        %v3450 = vld [vmem:[%s296] sm:$0xff]
        %v3451 = vld [vmem:[%s296 + $0x8] sm:$0xff]
        %v3452 = vadd.f32 %v3448, %v3450
        %v3453 = vadd.f32 %v3449, %v3451
        %v3454 = vld [vmem:[%s2] sm:$0xff]
        %v3455 = vld [vmem:[#allocation2 + $0x20] sm:$0xff]
        %v3456 = vld [vmem:[#allocation2 + $0x28] sm:$0xff]
        %v3457 = vld [vmem:[#allocation2 + $0x60] sm:$0xff]
        %v3458 = vld [vmem:[#allocation2 + $0x68] sm:$0xff]
        %v3459 = vld [vmem:[#allocation2 + $0xa0] sm:$0xff]
        %v3460 = vld [vmem:[#allocation2 + $0xa8] sm:$0xff]
        %v3461 = vld [vmem:[#allocation2 + $0xe0] sm:$0xff]
        %v3462 = vld [vmem:[#allocation2 + $0xe8] sm:$0xff]
        %v3463 = vld [vmem:[#allocation4 + $0x8] sm:$0xff]
        %v3464 = vld [vmem:[#allocation4 + $0x18] sm:$0xff]
        %v3465 = vld [vmem:[#allocation4 + $0x28] sm:$0xff]
        %v3466 = vld [vmem:[#allocation4 + $0x38] sm:$0xff]
        %v3467 = vld [vmem:[#allocation4 + $0x48] sm:$0xff]
        %v3468 = vld [vmem:[#allocation4 + $0x58] sm:$0xff]
        %v3469 = vld [vmem:[#allocation4 + $0x68] sm:$0xff]
        %v3470 = vld [vmem:[#allocation4 + $0x78] sm:$0xff]
        %v3471 = vadd.f32 %v3454, 0.0
        %v3473 = vsel %vm322, %v3471, 0
        %3475 = vmatprep.subr.mxu0 0.0
        %3476 = vmatpush1.msra.mxu0 0.0
        %3477 = vmatprep.subr.mxu0 0.0
        %3478 = vmatpush1.msra.mxu0 0.0
        %3479 = vmatprep.subr.mxu0 0.0
        %3480 = vmatpush1.msra.mxu0 0.0
        %3481 = vmatprep.subr.mxu0 0.0
        %3482 = vmatpush1.msra.mxu0 0.0
        %3483 = vmatprep.subr.mxu0 0.0
        %3484 = vmatpush1.msra.mxu0 0.0
        %3485 = vmatprep.subr.mxu0 0.0
        %3486 = vmatpush1.msra.mxu0 0.0
        %3487 = vmatprep.subr.mxu0 0.0
        %3488 = vmatpush1.msra.mxu0 0.0
        %3489 = vmatprep.subr.mxu0 0.0
        %3490 = vmatpush1.msra.mxu0 0.0
        %3491 = vmatprep.subr.mxu0 0.0
        %3492 = vmatpush1.msra.mxu0 0.0
        %3493 = vmatprep.subr.mxu0 0.0
        %3494 = vmatpush1.msra.mxu0 0.0
        %3495 = vmatprep.subr.mxu0 0.0
        %3496 = vmatpush1.msra.mxu0 0.0
        %3497 = vmatprep.subr.mxu0 0.0
        %3498 = vmatpush1.msra.mxu0 0.0
        %3499 = vmatprep.subr.mxu0 0.0
        %3500 = vmatpush1.msra.mxu0 %v3461
        %3501 = vmatprep.subr.mxu0 0.0
        %3502 = vmatpush1.msra.mxu0 %v3459
        %3503 = vmatprep.subr.mxu0 0.0
        %3504 = vmatpush1.msra.mxu0 %v3457
        %3505 = vmatprep.subr.mxu0 0.0
        %3506 = vmatpush1.msra.mxu0 %v3455
        %3507 = vmatprep.subr.mxu0 0.0
        %3508 = vmatpush2.msra.mxu0 0.0
        %3509 = vmatprep.subr.mxu0 0.0
        %3510 = vmatpush2.msra.mxu0 0.0
        %3511 = vmatprep.subr.mxu0 0.0
        %3512 = vmatpush2.msra.mxu0 0.0
        %3513 = vmatprep.subr.mxu0 0.0
        %3514 = vmatpush2.msra.mxu0 0.0
        %3515 = vmatprep.subr.mxu0 0.0
        %3516 = vmatpush2.msra.mxu0 0.0
        %3517 = vmatprep.subr.mxu0 0.0
        %3518 = vmatpush2.msra.mxu0 0.0
        %3519 = vmatprep.subr.mxu0 0.0
        %3520 = vmatpush2.msra.mxu0 0.0
        %3521 = vmatprep.subr.mxu0 0.0
        %3522 = vmatpush2.msra.mxu0 0.0
        %3523 = vmatprep.subr.mxu0 0.0
        %3524 = vmatpush2.msra.mxu0 0.0
        %3525 = vmatprep.subr.mxu0 0.0
        %3526 = vmatpush2.msra.mxu0 0.0
        %3527 = vmatprep.subr.mxu0 0.0
        %3528 = vmatpush2.msra.mxu0 0.0
        %3529 = vmatprep.subr.mxu0 0.0
        %3530 = vmatpush2.msra.mxu0 0.0
        %3531 = vmatprep.subr.mxu0 0.0
        %3532 = vmatpush2.msra.mxu0 0.0
        %3533 = vmatprep.subr.mxu0 0.0
        %3534 = vmatpush2.msra.mxu0 0.0
        %3535 = vmatprep.subr.mxu0 0.0
        %3536 = vmatpush2.msra.mxu0 0.0
        %3537 = vmatprep.subr.mxu0 0.0
        %3538 = vmatpush2.msra.mxu0 0.0
        %3539 = vmatprep.mubr.f32.mxu0 0.0
        %3540 = vmatmul.mubr.f32.gmra.mxu0 %v3473
        %v3541 = vpop.f32.mrf.mxu0
        %v3542 = vadd.f32 0.0, %v3541
        %v3543 = vpop.f32.mrf.mxu0
        %3544 = vdwg.mxu0
        %3546 = vrot.lane.b32.xlu0 %v3542, 112
        %v3547 = vpop.permute.xlu0 %3546
        %3548 = vrot.lane.b32.xlu0 %v3542, 96
        %v3549 = vpop.permute.xlu0 %3548
        %3550 = vrot.lane.b32.xlu0 %v3542, 80
        %v3551 = vpop.permute.xlu0 %3550
        %3556 = vrot.lane.b32.xlu0 %v3455, 64
        %v3557 = vpop.permute.xlu0 %3556
        %3558 = vrot.lane.b32.xlu0 %v3457, 64
        %v3559 = vpop.permute.xlu0 %3558
        %3560 = vrot.lane.b32.xlu0 %v3459, 64
        %v3561 = vpop.permute.xlu0 %3560
        %3562 = vrot.lane.b32.xlu0 %v3461, 64
        %v3563 = vpop.permute.xlu0 %3562
        %3568 = vmatprep.subr.mxu0 0.0
        %3569 = vmatpush1.msra.mxu0 0.0
        %3570 = vmatprep.subr.mxu0 0.0
        %3571 = vmatpush1.msra.mxu0 0.0
        %3572 = vmatprep.subr.mxu0 0.0
        %3573 = vmatpush1.msra.mxu0 0.0
        %3574 = vmatprep.subr.mxu0 0.0
        %3575 = vmatpush1.msra.mxu0 0.0
        %3576 = vmatprep.subr.mxu0 0.0
        %3577 = vmatpush1.msra.mxu0 0.0
        %3578 = vmatprep.subr.mxu0 0.0
        %3579 = vmatpush1.msra.mxu0 0.0
        %3580 = vmatprep.subr.mxu0 0.0
        %3581 = vmatpush1.msra.mxu0 0.0
        %3582 = vmatprep.subr.mxu0 0.0
        %3583 = vmatpush1.msra.mxu0 0.0
        %3584 = vmatprep.subr.mxu0 0.0
        %3585 = vmatpush1.msra.mxu0 0.0
        %3586 = vmatprep.subr.mxu0 0.0
        %3587 = vmatpush1.msra.mxu0 0.0
        %3588 = vmatprep.subr.mxu0 0.0
        %3589 = vmatpush1.msra.mxu0 0.0
        %3590 = vmatprep.subr.mxu0 0.0
        %3591 = vmatpush1.msra.mxu0 0.0
        %3592 = vmatprep.subr.mxu0 0.0
        %3593 = vmatpush1.msra.mxu0 %v3563
        %3594 = vmatprep.subr.mxu0 0.0
        %3595 = vmatpush1.msra.mxu0 %v3561
        %3596 = vmatprep.subr.mxu0 0.0
        %3597 = vmatpush1.msra.mxu0 %v3559
        %3598 = vmatprep.subr.mxu0 0.0
        %3599 = vmatpush1.msra.mxu0 %v3557
        %3600 = vmatprep.subr.mxu0 0.0
        %3601 = vmatpush2.msra.mxu0 0.0
        %3602 = vmatprep.subr.mxu0 0.0
        %3603 = vmatpush2.msra.mxu0 0.0
        %3604 = vmatprep.subr.mxu0 0.0
        %3605 = vmatpush2.msra.mxu0 0.0
        %3606 = vmatprep.subr.mxu0 0.0
        %3607 = vmatpush2.msra.mxu0 0.0
        %3608 = vmatprep.subr.mxu0 0.0
        %3609 = vmatpush2.msra.mxu0 0.0
        %3610 = vmatprep.subr.mxu0 0.0
        %3611 = vmatpush2.msra.mxu0 0.0
        %3612 = vmatprep.subr.mxu0 0.0
        %3613 = vmatpush2.msra.mxu0 0.0
        %3614 = vmatprep.subr.mxu0 0.0
        %3615 = vmatpush2.msra.mxu0 0.0
        %3616 = vmatprep.subr.mxu0 0.0
        %3617 = vmatpush2.msra.mxu0 0.0
        %3618 = vmatprep.subr.mxu0 0.0
        %3619 = vmatpush2.msra.mxu0 0.0
        %3620 = vmatprep.subr.mxu0 0.0
        %3621 = vmatpush2.msra.mxu0 0.0
        %3622 = vmatprep.subr.mxu0 0.0
        %3623 = vmatpush2.msra.mxu0 0.0
        %3624 = vmatprep.subr.mxu0 0.0
        %3625 = vmatpush2.msra.mxu0 0.0
        %3626 = vmatprep.subr.mxu0 0.0
        %3627 = vmatpush2.msra.mxu0 0.0
        %3628 = vmatprep.subr.mxu0 0.0
        %3629 = vmatpush2.msra.mxu0 0.0
        %3630 = vmatprep.subr.mxu0 0.0
        %3631 = vmatpush2.msra.mxu0 0.0
        %3632 = vmatprep.mubr.f32.mxu0 0.0
        %3633 = vmatmul.mubr.f32.gmra.mxu0 %v3473
        %v3634 = vpop.f32.mrf.mxu0
        %v3635 = vadd.f32 0.0, %v3634
        %v3636 = vpop.f32.mrf.mxu0
        %3637 = vdwg.mxu0
        %3639 = vrot.lane.b32.xlu0 %v3635, 112
        %v3640 = vpop.permute.xlu0 %3639
        %3641 = vrot.lane.b32.xlu0 %v3635, 96
        %v3642 = vpop.permute.xlu0 %3641
        %3643 = vrot.lane.b32.xlu0 %v3635, 80
        %v3644 = vpop.permute.xlu0 %3643
        %v3646 = vsel %vm322, 0.0, 0
        %3648 = vmatprep.subr.mxu0 0.0
        %3649 = vmatpush1.msra.mxu0 0.0
        %3650 = vmatprep.subr.mxu0 0.0
        %3651 = vmatpush1.msra.mxu0 0.0
        %3652 = vmatprep.subr.mxu0 0.0
        %3653 = vmatpush1.msra.mxu0 0.0
        %3654 = vmatprep.subr.mxu0 0.0
        %3655 = vmatpush1.msra.mxu0 0.0
        %3656 = vmatprep.subr.mxu0 0.0
        %3657 = vmatpush1.msra.mxu0 0.0
        %3658 = vmatprep.subr.mxu0 0.0
        %3659 = vmatpush1.msra.mxu0 0.0
        %3660 = vmatprep.subr.mxu0 0.0
        %3661 = vmatpush1.msra.mxu0 0.0
        %3662 = vmatprep.subr.mxu0 0.0
        %3663 = vmatpush1.msra.mxu0 0.0
        %3664 = vmatprep.subr.mxu0 0.0
        %3665 = vmatpush1.msra.mxu0 0.0
        %3666 = vmatprep.subr.mxu0 0.0
        %3667 = vmatpush1.msra.mxu0 0.0
        %3668 = vmatprep.subr.mxu0 0.0
        %3669 = vmatpush1.msra.mxu0 0.0
        %3670 = vmatprep.subr.mxu0 0.0
        %3671 = vmatpush1.msra.mxu0 0.0
        %3672 = vmatprep.subr.mxu0 0.0
        %3673 = vmatpush1.msra.mxu0 %v3462
        %3674 = vmatprep.subr.mxu0 0.0
        %3675 = vmatpush1.msra.mxu0 %v3460
        %3676 = vmatprep.subr.mxu0 0.0
        %3677 = vmatpush1.msra.mxu0 %v3458
        %3678 = vmatprep.subr.mxu0 0.0
        %3679 = vmatpush1.msra.mxu0 %v3456
        %3680 = vmatprep.subr.mxu0 0.0
        %3681 = vmatpush2.msra.mxu0 0.0
        %3682 = vmatprep.subr.mxu0 0.0
        %3683 = vmatpush2.msra.mxu0 0.0
        %3684 = vmatprep.subr.mxu0 0.0
        %3685 = vmatpush2.msra.mxu0 0.0
        %3686 = vmatprep.subr.mxu0 0.0
        %3687 = vmatpush2.msra.mxu0 0.0
        %3688 = vmatprep.subr.mxu0 0.0
        %3689 = vmatpush2.msra.mxu0 0.0
        %3690 = vmatprep.subr.mxu0 0.0
        %3691 = vmatpush2.msra.mxu0 0.0
        %3692 = vmatprep.subr.mxu0 0.0
        %3693 = vmatpush2.msra.mxu0 0.0
        %3694 = vmatprep.subr.mxu0 0.0
        %3695 = vmatpush2.msra.mxu0 0.0
        %3696 = vmatprep.subr.mxu0 0.0
        %3697 = vmatpush2.msra.mxu0 0.0
        %3698 = vmatprep.subr.mxu0 0.0
        %3699 = vmatpush2.msra.mxu0 0.0
        %3700 = vmatprep.subr.mxu0 0.0
        %3701 = vmatpush2.msra.mxu0 0.0
        %3702 = vmatprep.subr.mxu0 0.0
        %3703 = vmatpush2.msra.mxu0 0.0
        %3704 = vmatprep.subr.mxu0 0.0
        %3705 = vmatpush2.msra.mxu0 0.0
        %3706 = vmatprep.subr.mxu0 0.0
        %3707 = vmatpush2.msra.mxu0 0.0
        %3708 = vmatprep.subr.mxu0 0.0
        %3709 = vmatpush2.msra.mxu0 0.0
        %3710 = vmatprep.subr.mxu0 0.0
        %3711 = vmatpush2.msra.mxu0 0.0
        %3712 = vmatprep.mubr.f32.mxu0 0.0
        %3713 = vmatmul.mubr.f32.gmra.mxu0 %v3646
        %v3714 = vpop.f32.mrf.mxu0
        %v3715 = vadd.f32 0.0, %v3714
        %v3716 = vpop.f32.mrf.mxu0
        %3717 = vdwg.mxu0
        %3719 = vrot.lane.b32.xlu0 %v3715, 112
        %v3720 = vpop.permute.xlu0 %3719
        %3722 = vrot.lane.b32.xlu0 %v3715, 96
        %v3723 = vpop.permute.xlu0 %3722
        %3725 = vrot.lane.b32.xlu0 %v3715, 80
        %v3726 = vpop.permute.xlu0 %3725
        %v3728 = vsel %vm483, %v3542, 0
        %v3730 = vsel %vm483, %v3635, 0
        %3732 = vmatprep.subr.mxu0 0.0
        %3733 = vmatpush1.xpose.msra.mxu0 0.0
        %3734 = vmatprep.subr.mxu0 0.0
        %3735 = vmatpush1.xpose.msra.mxu0 0.0
        %3736 = vmatprep.subr.mxu0 0.0
        %3737 = vmatpush1.xpose.msra.mxu0 0.0
        %3738 = vmatprep.subr.mxu0 0.0
        %3739 = vmatpush1.xpose.msra.mxu0 0.0
        %3740 = vmatprep.subr.mxu0 0.0
        %3741 = vmatpush1.xpose.msra.mxu0 0.0
        %3742 = vmatprep.subr.mxu0 0.0
        %3743 = vmatpush1.xpose.msra.mxu0 0.0
        %3744 = vmatprep.subr.mxu0 0.0
        %3745 = vmatpush1.xpose.msra.mxu0 0.0
        %3746 = vmatprep.subr.mxu0 0.0
        %3747 = vmatpush1.xpose.msra.mxu0 0.0
        %3748 = vmatprep.subr.mxu0 0.0
        %3749 = vmatpush1.xpose.msra.mxu0 0.0
        %3750 = vmatprep.subr.mxu0 0.0
        %3751 = vmatpush1.xpose.msra.mxu0 0.0
        %3752 = vmatprep.subr.mxu0 0.0
        %3753 = vmatpush1.xpose.msra.mxu0 0.0
        %3754 = vmatprep.subr.mxu0 0.0
        %3755 = vmatpush1.xpose.msra.mxu0 0.0
        %3756 = vmatprep.subr.mxu0 0.0
        %3757 = vmatpush1.xpose.msra.mxu0 0.0
        %3758 = vmatprep.subr.mxu0 0.0
        %3759 = vmatpush1.xpose.msra.mxu0 0.0
        %3760 = vmatprep.subr.mxu0 0.0
        %3761 = vmatpush1.xpose.msra.mxu0 0.0
        %3762 = vmatprep.subr.mxu0 0.0
        %3763 = vmatpush1.xpose.msra.mxu0 %v3730
        %3764 = vmatprep.subr.mxu0 0.0
        %3765 = vmatpush2.xpose.msra.mxu0 0.0
        %3766 = vmatprep.subr.mxu0 0.0
        %3767 = vmatpush2.xpose.msra.mxu0 0.0
        %3768 = vmatprep.subr.mxu0 0.0
        %3769 = vmatpush2.xpose.msra.mxu0 0.0
        %3770 = vmatprep.subr.mxu0 0.0
        %3771 = vmatpush2.xpose.msra.mxu0 0.0
        %3772 = vmatprep.subr.mxu0 0.0
        %3773 = vmatpush2.xpose.msra.mxu0 0.0
        %3774 = vmatprep.subr.mxu0 0.0
        %3775 = vmatpush2.xpose.msra.mxu0 0.0
        %3776 = vmatprep.subr.mxu0 0.0
        %3777 = vmatpush2.xpose.msra.mxu0 0.0
        %3778 = vmatprep.subr.mxu0 0.0
        %3779 = vmatpush2.xpose.msra.mxu0 0.0
        %3780 = vmatprep.subr.mxu0 0.0
        %3781 = vmatpush2.xpose.msra.mxu0 0.0
        %3782 = vmatprep.subr.mxu0 0.0
        %3783 = vmatpush2.xpose.msra.mxu0 0.0
        %3784 = vmatprep.subr.mxu0 0.0
        %3785 = vmatpush2.xpose.msra.mxu0 0.0
        %3786 = vmatprep.subr.mxu0 0.0
        %3787 = vmatpush2.xpose.msra.mxu0 0.0
        %3788 = vmatprep.subr.mxu0 0.0
        %3789 = vmatpush2.xpose.msra.mxu0 0.0
        %3790 = vmatprep.subr.mxu0 0.0
        %3791 = vmatpush2.xpose.msra.mxu0 0.0
        %3792 = vmatprep.subr.mxu0 0.0
        %3793 = vmatpush2.xpose.msra.mxu0 0.0
        %3794 = vmatprep.subr.mxu0 0.0
        %3795 = vmatpush2.xpose.msra.mxu0 0.0
        %3796 = vmatprep.mubr.f32.mxu0 0.0
        %3797 = vmatmul.mubr.f32.gmra.mxu0 %v3728
        %v3798 = vpop.f32.mrf.mxu0
        %v3799 = vadd.f32 0.0, %v3798
        %v3800 = vpop.f32.mrf.mxu0
        %3801 = vdwg.mxu0
        %v3802 = vsel %vm483, %v3547, 0
        %v3804 = vsel %vm483, %v3640, 0
        %3806 = vmatprep.subr.mxu0 0.0
        %3807 = vmatpush1.xpose.msra.mxu0 0.0
        %3808 = vmatprep.subr.mxu0 0.0
        %3809 = vmatpush1.xpose.msra.mxu0 0.0
        %3810 = vmatprep.subr.mxu0 0.0
        %3811 = vmatpush1.xpose.msra.mxu0 0.0
        %3812 = vmatprep.subr.mxu0 0.0
        %3813 = vmatpush1.xpose.msra.mxu0 0.0
        %3814 = vmatprep.subr.mxu0 0.0
        %3815 = vmatpush1.xpose.msra.mxu0 0.0
        %3816 = vmatprep.subr.mxu0 0.0
        %3817 = vmatpush1.xpose.msra.mxu0 0.0
        %3818 = vmatprep.subr.mxu0 0.0
        %3819 = vmatpush1.xpose.msra.mxu0 0.0
        %3820 = vmatprep.subr.mxu0 0.0
        %3821 = vmatpush1.xpose.msra.mxu0 0.0
        %3822 = vmatprep.subr.mxu0 0.0
        %3823 = vmatpush1.xpose.msra.mxu0 0.0
        %3824 = vmatprep.subr.mxu0 0.0
        %3825 = vmatpush1.xpose.msra.mxu0 0.0
        %3826 = vmatprep.subr.mxu0 0.0
        %3827 = vmatpush1.xpose.msra.mxu0 0.0
        %3828 = vmatprep.subr.mxu0 0.0
        %3829 = vmatpush1.xpose.msra.mxu0 0.0
        %3830 = vmatprep.subr.mxu0 0.0
        %3831 = vmatpush1.xpose.msra.mxu0 0.0
        %3832 = vmatprep.subr.mxu0 0.0
        %3833 = vmatpush1.xpose.msra.mxu0 0.0
        %3834 = vmatprep.subr.mxu0 0.0
        %3835 = vmatpush1.xpose.msra.mxu0 0.0
        %3836 = vmatprep.subr.mxu0 0.0
        %3837 = vmatpush1.xpose.msra.mxu0 %v3804
        %3838 = vmatprep.subr.mxu0 0.0
        %3839 = vmatpush2.xpose.msra.mxu0 0.0
        %3840 = vmatprep.subr.mxu0 0.0
        %3841 = vmatpush2.xpose.msra.mxu0 0.0
        %3842 = vmatprep.subr.mxu0 0.0
        %3843 = vmatpush2.xpose.msra.mxu0 0.0
        %3844 = vmatprep.subr.mxu0 0.0
        %3845 = vmatpush2.xpose.msra.mxu0 0.0
        %3846 = vmatprep.subr.mxu0 0.0
        %3847 = vmatpush2.xpose.msra.mxu0 0.0
        %3848 = vmatprep.subr.mxu0 0.0
        %3849 = vmatpush2.xpose.msra.mxu0 0.0
        %3850 = vmatprep.subr.mxu0 0.0
        %3851 = vmatpush2.xpose.msra.mxu0 0.0
        %3852 = vmatprep.subr.mxu0 0.0
        %3853 = vmatpush2.xpose.msra.mxu0 0.0
        %3854 = vmatprep.subr.mxu0 0.0
        %3855 = vmatpush2.xpose.msra.mxu0 0.0
        %3856 = vmatprep.subr.mxu0 0.0
        %3857 = vmatpush2.xpose.msra.mxu0 0.0
        %3858 = vmatprep.subr.mxu0 0.0
        %3859 = vmatpush2.xpose.msra.mxu0 0.0
        %3860 = vmatprep.subr.mxu0 0.0
        %3861 = vmatpush2.xpose.msra.mxu0 0.0
        %3862 = vmatprep.subr.mxu0 0.0
        %3863 = vmatpush2.xpose.msra.mxu0 0.0
        %3864 = vmatprep.subr.mxu0 0.0
        %3865 = vmatpush2.xpose.msra.mxu0 0.0
        %3866 = vmatprep.subr.mxu0 0.0
        %3867 = vmatpush2.xpose.msra.mxu0 0.0
        %3868 = vmatprep.subr.mxu0 0.0
        %3869 = vmatpush2.xpose.msra.mxu0 0.0
        %3870 = vmatprep.mubr.f32.mxu0 0.0
        %3871 = vmatmul.mubr.f32.gmra.mxu0 %v3802
        %v3872 = vpop.f32.mrf.mxu0
        %v3873 = vadd.f32 0.0, %v3872
        %v3874 = vpop.f32.mrf.mxu0
        %3875 = vdwg.mxu0
        %v3876 = vsel %vm483, %v3549, 0
        %v3878 = vsel %vm483, %v3642, 0
        %3880 = vmatprep.subr.mxu0 0.0
        %3881 = vmatpush1.xpose.msra.mxu0 0.0
        %3882 = vmatprep.subr.mxu0 0.0
        %3883 = vmatpush1.xpose.msra.mxu0 0.0
        %3884 = vmatprep.subr.mxu0 0.0
        %3885 = vmatpush1.xpose.msra.mxu0 0.0
        %3886 = vmatprep.subr.mxu0 0.0
        %3887 = vmatpush1.xpose.msra.mxu0 0.0
        %3888 = vmatprep.subr.mxu0 0.0
        %3889 = vmatpush1.xpose.msra.mxu0 0.0
        %3890 = vmatprep.subr.mxu0 0.0
        %3891 = vmatpush1.xpose.msra.mxu0 0.0
        %3892 = vmatprep.subr.mxu0 0.0
        %3893 = vmatpush1.xpose.msra.mxu0 0.0
        %3894 = vmatprep.subr.mxu0 0.0
        %3895 = vmatpush1.xpose.msra.mxu0 0.0
        %3896 = vmatprep.subr.mxu0 0.0
        %3897 = vmatpush1.xpose.msra.mxu0 0.0
        %3898 = vmatprep.subr.mxu0 0.0
        %3899 = vmatpush1.xpose.msra.mxu0 0.0
        %3900 = vmatprep.subr.mxu0 0.0
        %3901 = vmatpush1.xpose.msra.mxu0 0.0
        %3902 = vmatprep.subr.mxu0 0.0
        %3903 = vmatpush1.xpose.msra.mxu0 0.0
        %3904 = vmatprep.subr.mxu0 0.0
        %3905 = vmatpush1.xpose.msra.mxu0 0.0
        %3906 = vmatprep.subr.mxu0 0.0
        %3907 = vmatpush1.xpose.msra.mxu0 0.0
        %3908 = vmatprep.subr.mxu0 0.0
        %3909 = vmatpush1.xpose.msra.mxu0 0.0
        %3910 = vmatprep.subr.mxu0 0.0
        %3911 = vmatpush1.xpose.msra.mxu0 %v3878
        %3912 = vmatprep.subr.mxu0 0.0
        %3913 = vmatpush2.xpose.msra.mxu0 0.0
        %3914 = vmatprep.subr.mxu0 0.0
        %3915 = vmatpush2.xpose.msra.mxu0 0.0
        %3916 = vmatprep.subr.mxu0 0.0
        %3917 = vmatpush2.xpose.msra.mxu0 0.0
        %3918 = vmatprep.subr.mxu0 0.0
        %3919 = vmatpush2.xpose.msra.mxu0 0.0
        %3920 = vmatprep.subr.mxu0 0.0
        %3921 = vmatpush2.xpose.msra.mxu0 0.0
        %3922 = vmatprep.subr.mxu0 0.0
        %3923 = vmatpush2.xpose.msra.mxu0 0.0
        %3924 = vmatprep.subr.mxu0 0.0
        %3925 = vmatpush2.xpose.msra.mxu0 0.0
        %3926 = vmatprep.subr.mxu0 0.0
        %3927 = vmatpush2.xpose.msra.mxu0 0.0
        %3928 = vmatprep.subr.mxu0 0.0
        %3929 = vmatpush2.xpose.msra.mxu0 0.0
        %3930 = vmatprep.subr.mxu0 0.0
        %3931 = vmatpush2.xpose.msra.mxu0 0.0
        %3932 = vmatprep.subr.mxu0 0.0
        %3933 = vmatpush2.xpose.msra.mxu0 0.0
        %3934 = vmatprep.subr.mxu0 0.0
        %3935 = vmatpush2.xpose.msra.mxu0 0.0
        %3936 = vmatprep.subr.mxu0 0.0
        %3937 = vmatpush2.xpose.msra.mxu0 0.0
        %3938 = vmatprep.subr.mxu0 0.0
        %3939 = vmatpush2.xpose.msra.mxu0 0.0
        %3940 = vmatprep.subr.mxu0 0.0
        %3941 = vmatpush2.xpose.msra.mxu0 0.0
        %3942 = vmatprep.subr.mxu0 0.0
        %3943 = vmatpush2.xpose.msra.mxu0 0.0
        %3944 = vmatprep.mubr.f32.mxu0 0.0
        %3945 = vmatmul.mubr.f32.gmra.mxu0 %v3876
        %v3946 = vpop.f32.mrf.mxu0
        %v3947 = vadd.f32 0.0, %v3946
        %v3948 = vpop.f32.mrf.mxu0
        %3949 = vdwg.mxu0
        %v3950 = vsel %vm483, %v3551, 0
        %v3952 = vsel %vm483, %v3644, 0
        %3954 = vmatprep.subr.mxu0 0.0
        %3955 = vmatpush1.xpose.msra.mxu0 0.0
        %3956 = vmatprep.subr.mxu0 0.0
        %3957 = vmatpush1.xpose.msra.mxu0 0.0
        %3958 = vmatprep.subr.mxu0 0.0
        %3959 = vmatpush1.xpose.msra.mxu0 0.0
        %3960 = vmatprep.subr.mxu0 0.0
        %3961 = vmatpush1.xpose.msra.mxu0 0.0
        %3962 = vmatprep.subr.mxu0 0.0
        %3963 = vmatpush1.xpose.msra.mxu0 0.0
        %3964 = vmatprep.subr.mxu0 0.0
        %3965 = vmatpush1.xpose.msra.mxu0 0.0
        %3966 = vmatprep.subr.mxu0 0.0
        %3967 = vmatpush1.xpose.msra.mxu0 0.0
        %3968 = vmatprep.subr.mxu0 0.0
        %3969 = vmatpush1.xpose.msra.mxu0 0.0
        %3970 = vmatprep.subr.mxu0 0.0
        %3971 = vmatpush1.xpose.msra.mxu0 0.0
        %3972 = vmatprep.subr.mxu0 0.0
        %3973 = vmatpush1.xpose.msra.mxu0 0.0
        %3974 = vmatprep.subr.mxu0 0.0
        %3975 = vmatpush1.xpose.msra.mxu0 0.0
        %3976 = vmatprep.subr.mxu0 0.0
        %3977 = vmatpush1.xpose.msra.mxu0 0.0
        %3978 = vmatprep.subr.mxu0 0.0
        %3979 = vmatpush1.xpose.msra.mxu0 0.0
        %3980 = vmatprep.subr.mxu0 0.0
        %3981 = vmatpush1.xpose.msra.mxu0 0.0
        %3982 = vmatprep.subr.mxu0 0.0
        %3983 = vmatpush1.xpose.msra.mxu0 0.0
        %3984 = vmatprep.subr.mxu0 0.0
        %3985 = vmatpush1.xpose.msra.mxu0 %v3952
        %3986 = vmatprep.subr.mxu0 0.0
        %3987 = vmatpush2.xpose.msra.mxu0 0.0
        %3988 = vmatprep.subr.mxu0 0.0
        %3989 = vmatpush2.xpose.msra.mxu0 0.0
        %3990 = vmatprep.subr.mxu0 0.0
        %3991 = vmatpush2.xpose.msra.mxu0 0.0
        %3992 = vmatprep.subr.mxu0 0.0
        %3993 = vmatpush2.xpose.msra.mxu0 0.0
        %3994 = vmatprep.subr.mxu0 0.0
        %3995 = vmatpush2.xpose.msra.mxu0 0.0
        %3996 = vmatprep.subr.mxu0 0.0
        %3997 = vmatpush2.xpose.msra.mxu0 0.0
        %3998 = vmatprep.subr.mxu0 0.0
        %3999 = vmatpush2.xpose.msra.mxu0 0.0
        %4000 = vmatprep.subr.mxu0 0.0
        %4001 = vmatpush2.xpose.msra.mxu0 0.0
        %4002 = vmatprep.subr.mxu0 0.0
        %4003 = vmatpush2.xpose.msra.mxu0 0.0
        %4004 = vmatprep.subr.mxu0 0.0
        %4005 = vmatpush2.xpose.msra.mxu0 0.0
        %4006 = vmatprep.subr.mxu0 0.0
        %4007 = vmatpush2.xpose.msra.mxu0 0.0
        %4008 = vmatprep.subr.mxu0 0.0
        %4009 = vmatpush2.xpose.msra.mxu0 0.0
        %4010 = vmatprep.subr.mxu0 0.0
        %4011 = vmatpush2.xpose.msra.mxu0 0.0
        %4012 = vmatprep.subr.mxu0 0.0
        %4013 = vmatpush2.xpose.msra.mxu0 0.0
        %4014 = vmatprep.subr.mxu0 0.0
        %4015 = vmatpush2.xpose.msra.mxu0 0.0
        %4016 = vmatprep.subr.mxu0 0.0
        %4017 = vmatpush2.xpose.msra.mxu0 0.0
        %4018 = vmatprep.mubr.f32.mxu0 0.0
        %4019 = vmatmul.mubr.f32.gmra.mxu0 %v3950
        %v4020 = vpop.f32.mrf.mxu0
        %v4021 = vadd.f32 0.0, %v4020
        %v4022 = vpop.f32.mrf.mxu0
        %4023 = vdwg.mxu0
        %vm4024 = vcmask 64512
        %v4025 = vsel %vm4024, %v3799, -inf
        %4026 = vmax.xlane.f32.xlu0 %v4025
        %v4027 = vpop.xlane.xlu0 %4026
        %v4028 = vsel %vm4024, %v3873, -inf
        %4029 = vmax.xlane.f32.xlu0 %v4028
        %v4030 = vpop.xlane.xlu0 %4029
        %v4031 = vsel %vm4024, %v3947, -inf
        %4032 = vmax.xlane.f32.xlu0 %v4031
        %v4033 = vpop.xlane.xlu0 %4032
        %v4034 = vsel %vm4024, %v4021, -inf
        %4035 = vmax.xlane.f32.xlu0 %v4034
        %v4036 = vpop.xlane.xlu0 %4035
        %v4037 = vsub.f32 %v3799, %v4027
        %v4038 = vsub.f32 %v3873, %v4030
        %v4039 = vsub.f32 %v3947, %v4033
        %v4040 = vsub.f32 %v4021, %v4036
        %v4041 = vmul.f32 %v4037, 1.442695
        %v4042 = vpow.pop %v4041
        %v4043 = vmul.f32 %v4038, 1.442695
        %v4044 = vpow.pop %v4043
        %v4045 = vmul.f32 %v4039, 1.442695
        %v4046 = vpow.pop %v4045
        %v4047 = vmul.f32 %v4040, 1.442695
        %v4048 = vpow.pop %v4047
        %v4049 = vsel %vm4024, %v4042, 0.0
        %4050 = vadd.xlane.f32.xlu0 %v4049
        %v4051 = vpop.xlane.xlu0 %4050
        %v4052 = vsel %vm4024, %v4044, 0.0
        %4053 = vadd.xlane.f32.xlu0 %v4052
        %v4054 = vpop.xlane.xlu0 %4053
        %v4055 = vsel %vm4024, %v4046, 0.0
        %4056 = vadd.xlane.f32.xlu0 %v4055
        %v4057 = vpop.xlane.xlu0 %4056
        %v4058 = vsel %vm4024, %v4048, 0.0
        %4059 = vadd.xlane.f32.xlu0 %v4058
        %v4060 = vpop.xlane.xlu0 %4059
        %v4061 = vrcp.pop %v4051
        %v4062 = vrcp.pop %v4054
        %v4063 = vrcp.pop %v4057
        %v4064 = vrcp.pop %v4060
        %v4065 = vmul.f32 %v4042, %v4061
        %v4066 = vmul.f32 %v4044, %v4062
        %v4067 = vmul.f32 %v4046, %v4063
        %v4068 = vmul.f32 %v4048, %v4064
        %v4070 = vsel %vm4024, %v4065, 0
        %4072 = vmatprep.subr.mxu0 0.0
        %4073 = vmatpush1.msra.mxu0 0.0
        %4074 = vmatprep.subr.mxu0 0.0
        %4075 = vmatpush1.msra.mxu0 0.0
        %4076 = vmatprep.subr.mxu0 0.0
        %4077 = vmatpush1.msra.mxu0 0.0
        %4078 = vmatprep.subr.mxu0 0.0
        %4079 = vmatpush1.msra.mxu0 0.0
        %4080 = vmatprep.subr.mxu0 0.0
        %4081 = vmatpush1.msra.mxu0 0.0
        %4082 = vmatprep.subr.mxu0 0.0
        %4083 = vmatpush1.msra.mxu0 0.0
        %4084 = vmatprep.subr.mxu0 0.0
        %4085 = vmatpush1.msra.mxu0 0.0
        %4086 = vmatprep.subr.mxu0 0.0
        %4087 = vmatpush1.msra.mxu0 0.0
        %4088 = vmatprep.subr.mxu0 0.0
        %4089 = vmatpush1.msra.mxu0 0.0
        %4090 = vmatprep.subr.mxu0 0.0
        %4091 = vmatpush1.msra.mxu0 0.0
        %4092 = vmatprep.subr.mxu0 0.0
        %4093 = vmatpush1.msra.mxu0 0.0
        %4094 = vmatprep.subr.mxu0 0.0
        %4095 = vmatpush1.msra.mxu0 0.0
        %4096 = vmatprep.subr.mxu0 0.0
        %4097 = vmatpush1.msra.mxu0 0.0
        %4098 = vmatprep.subr.mxu0 0.0
        %4099 = vmatpush1.msra.mxu0 0.0
        %4100 = vmatprep.subr.mxu0 0.0
        %4101 = vmatpush1.msra.mxu0 0.0
        %4102 = vmatprep.subr.mxu0 0.0
        %4103 = vmatpush1.msra.mxu0 %v3715
        %4104 = vmatprep.subr.mxu0 0.0
        %4105 = vmatpush2.msra.mxu0 0.0
        %4106 = vmatprep.subr.mxu0 0.0
        %4107 = vmatpush2.msra.mxu0 0.0
        %4108 = vmatprep.subr.mxu0 0.0
        %4109 = vmatpush2.msra.mxu0 0.0
        %4110 = vmatprep.subr.mxu0 0.0
        %4111 = vmatpush2.msra.mxu0 0.0
        %4112 = vmatprep.subr.mxu0 0.0
        %4113 = vmatpush2.msra.mxu0 0.0
        %4114 = vmatprep.subr.mxu0 0.0
        %4115 = vmatpush2.msra.mxu0 0.0
        %4116 = vmatprep.subr.mxu0 0.0
        %4117 = vmatpush2.msra.mxu0 0.0
        %4118 = vmatprep.subr.mxu0 0.0
        %4119 = vmatpush2.msra.mxu0 0.0
        %4120 = vmatprep.subr.mxu0 0.0
        %4121 = vmatpush2.msra.mxu0 0.0
        %4122 = vmatprep.subr.mxu0 0.0
        %4123 = vmatpush2.msra.mxu0 0.0
        %4124 = vmatprep.subr.mxu0 0.0
        %4125 = vmatpush2.msra.mxu0 0.0
        %4126 = vmatprep.subr.mxu0 0.0
        %4127 = vmatpush2.msra.mxu0 0.0
        %4128 = vmatprep.subr.mxu0 0.0
        %4129 = vmatpush2.msra.mxu0 0.0
        %4130 = vmatprep.subr.mxu0 0.0
        %4131 = vmatpush2.msra.mxu0 0.0
        %4132 = vmatprep.subr.mxu0 0.0
        %4133 = vmatpush2.msra.mxu0 0.0
        %4134 = vmatprep.subr.mxu0 0.0
        %4135 = vmatpush2.msra.mxu0 0.0
        %4136 = vmatprep.mubr.f32.mxu0 0.0
        %4137 = vmatmul.mubr.f32.gmra.mxu0 %v4070
        %v4138 = vpop.f32.mrf.mxu0
        %v4139 = vadd.f32 0.0, %v4138
        %v4140 = vpop.f32.mrf.mxu0
        %4141 = vdwg.mxu0
        %v4143 = vsel %vm4024, %v4066, 0
        %4145 = vmatprep.subr.mxu0 0.0
        %4146 = vmatpush1.msra.mxu0 0.0
        %4147 = vmatprep.subr.mxu0 0.0
        %4148 = vmatpush1.msra.mxu0 0.0
        %4149 = vmatprep.subr.mxu0 0.0
        %4150 = vmatpush1.msra.mxu0 0.0
        %4151 = vmatprep.subr.mxu0 0.0
        %4152 = vmatpush1.msra.mxu0 0.0
        %4153 = vmatprep.subr.mxu0 0.0
        %4154 = vmatpush1.msra.mxu0 0.0
        %4155 = vmatprep.subr.mxu0 0.0
        %4156 = vmatpush1.msra.mxu0 0.0
        %4157 = vmatprep.subr.mxu0 0.0
        %4158 = vmatpush1.msra.mxu0 0.0
        %4159 = vmatprep.subr.mxu0 0.0
        %4160 = vmatpush1.msra.mxu0 0.0
        %4161 = vmatprep.subr.mxu0 0.0
        %4162 = vmatpush1.msra.mxu0 0.0
        %4163 = vmatprep.subr.mxu0 0.0
        %4164 = vmatpush1.msra.mxu0 0.0
        %4165 = vmatprep.subr.mxu0 0.0
        %4166 = vmatpush1.msra.mxu0 0.0
        %4167 = vmatprep.subr.mxu0 0.0
        %4168 = vmatpush1.msra.mxu0 0.0
        %4169 = vmatprep.subr.mxu0 0.0
        %4170 = vmatpush1.msra.mxu0 0.0
        %4171 = vmatprep.subr.mxu0 0.0
        %4172 = vmatpush1.msra.mxu0 0.0
        %4173 = vmatprep.subr.mxu0 0.0
        %4174 = vmatpush1.msra.mxu0 0.0
        %4175 = vmatprep.subr.mxu0 0.0
        %4176 = vmatpush1.msra.mxu0 %v3720
        %4177 = vmatprep.subr.mxu0 0.0
        %4178 = vmatpush2.msra.mxu0 0.0
        %4179 = vmatprep.subr.mxu0 0.0
        %4180 = vmatpush2.msra.mxu0 0.0
        %4181 = vmatprep.subr.mxu0 0.0
        %4182 = vmatpush2.msra.mxu0 0.0
        %4183 = vmatprep.subr.mxu0 0.0
        %4184 = vmatpush2.msra.mxu0 0.0
        %4185 = vmatprep.subr.mxu0 0.0
        %4186 = vmatpush2.msra.mxu0 0.0
        %4187 = vmatprep.subr.mxu0 0.0
        %4188 = vmatpush2.msra.mxu0 0.0
        %4189 = vmatprep.subr.mxu0 0.0
        %4190 = vmatpush2.msra.mxu0 0.0
        %4191 = vmatprep.subr.mxu0 0.0
        %4192 = vmatpush2.msra.mxu0 0.0
        %4193 = vmatprep.subr.mxu0 0.0
        %4194 = vmatpush2.msra.mxu0 0.0
        %4195 = vmatprep.subr.mxu0 0.0
        %4196 = vmatpush2.msra.mxu0 0.0
        %4197 = vmatprep.subr.mxu0 0.0
        %4198 = vmatpush2.msra.mxu0 0.0
        %4199 = vmatprep.subr.mxu0 0.0
        %4200 = vmatpush2.msra.mxu0 0.0
        %4201 = vmatprep.subr.mxu0 0.0
        %4202 = vmatpush2.msra.mxu0 0.0
        %4203 = vmatprep.subr.mxu0 0.0
        %4204 = vmatpush2.msra.mxu0 0.0
        %4205 = vmatprep.subr.mxu0 0.0
        %4206 = vmatpush2.msra.mxu0 0.0
        %4207 = vmatprep.subr.mxu0 0.0
        %4208 = vmatpush2.msra.mxu0 0.0
        %4209 = vmatprep.mubr.f32.mxu0 0.0
        %4210 = vmatmul.mubr.f32.gmra.mxu0 %v4143
        %v4211 = vpop.f32.mrf.mxu0
        %v4212 = vadd.f32 0.0, %v4211
        %v4213 = vpop.f32.mrf.mxu0
        %4214 = vdwg.mxu0
        %v4216 = vsel %vm4024, %v4067, 0
        %4218 = vmatprep.subr.mxu0 0.0
        %4219 = vmatpush1.msra.mxu0 0.0
        %4220 = vmatprep.subr.mxu0 0.0
        %4221 = vmatpush1.msra.mxu0 0.0
        %4222 = vmatprep.subr.mxu0 0.0
        %4223 = vmatpush1.msra.mxu0 0.0
        %4224 = vmatprep.subr.mxu0 0.0
        %4225 = vmatpush1.msra.mxu0 0.0
        %4226 = vmatprep.subr.mxu0 0.0
        %4227 = vmatpush1.msra.mxu0 0.0
        %4228 = vmatprep.subr.mxu0 0.0
        %4229 = vmatpush1.msra.mxu0 0.0
        %4230 = vmatprep.subr.mxu0 0.0
        %4231 = vmatpush1.msra.mxu0 0.0
        %4232 = vmatprep.subr.mxu0 0.0
        %4233 = vmatpush1.msra.mxu0 0.0
        %4234 = vmatprep.subr.mxu0 0.0
        %4235 = vmatpush1.msra.mxu0 0.0
        %4236 = vmatprep.subr.mxu0 0.0
        %4237 = vmatpush1.msra.mxu0 0.0
        %4238 = vmatprep.subr.mxu0 0.0
        %4239 = vmatpush1.msra.mxu0 0.0
        %4240 = vmatprep.subr.mxu0 0.0
        %4241 = vmatpush1.msra.mxu0 0.0
        %4242 = vmatprep.subr.mxu0 0.0
        %4243 = vmatpush1.msra.mxu0 0.0
        %4244 = vmatprep.subr.mxu0 0.0
        %4245 = vmatpush1.msra.mxu0 0.0
        %4246 = vmatprep.subr.mxu0 0.0
        %4247 = vmatpush1.msra.mxu0 0.0
        %4248 = vmatprep.subr.mxu0 0.0
        %4249 = vmatpush1.msra.mxu0 %v3723
        %4250 = vmatprep.subr.mxu0 0.0
        %4251 = vmatpush2.msra.mxu0 0.0
        %4252 = vmatprep.subr.mxu0 0.0
        %4253 = vmatpush2.msra.mxu0 0.0
        %4254 = vmatprep.subr.mxu0 0.0
        %4255 = vmatpush2.msra.mxu0 0.0
        %4256 = vmatprep.subr.mxu0 0.0
        %4257 = vmatpush2.msra.mxu0 0.0
        %4258 = vmatprep.subr.mxu0 0.0
        %4259 = vmatpush2.msra.mxu0 0.0
        %4260 = vmatprep.subr.mxu0 0.0
        %4261 = vmatpush2.msra.mxu0 0.0
        %4262 = vmatprep.subr.mxu0 0.0
        %4263 = vmatpush2.msra.mxu0 0.0
        %4264 = vmatprep.subr.mxu0 0.0
        %4265 = vmatpush2.msra.mxu0 0.0
        %4266 = vmatprep.subr.mxu0 0.0
        %4267 = vmatpush2.msra.mxu0 0.0
        %4268 = vmatprep.subr.mxu0 0.0
        %4269 = vmatpush2.msra.mxu0 0.0
        %4270 = vmatprep.subr.mxu0 0.0
        %4271 = vmatpush2.msra.mxu0 0.0
        %4272 = vmatprep.subr.mxu0 0.0
        %4273 = vmatpush2.msra.mxu0 0.0
        %4274 = vmatprep.subr.mxu0 0.0
        %4275 = vmatpush2.msra.mxu0 0.0
        %4276 = vmatprep.subr.mxu0 0.0
        %4277 = vmatpush2.msra.mxu0 0.0
        %4278 = vmatprep.subr.mxu0 0.0
        %4279 = vmatpush2.msra.mxu0 0.0
        %4280 = vmatprep.subr.mxu0 0.0
        %4281 = vmatpush2.msra.mxu0 0.0
        %4282 = vmatprep.mubr.f32.mxu0 0.0
        %4283 = vmatmul.mubr.f32.gmra.mxu0 %v4216
        %v4284 = vpop.f32.mrf.mxu0
        %v4285 = vadd.f32 0.0, %v4284
        %v4286 = vpop.f32.mrf.mxu0
        %4287 = vdwg.mxu0
        %v4289 = vsel %vm4024, %v4068, 0
        %4291 = vmatprep.subr.mxu0 0.0
        %4292 = vmatpush1.msra.mxu0 0.0
        %4293 = vmatprep.subr.mxu0 0.0
        %4294 = vmatpush1.msra.mxu0 0.0
        %4295 = vmatprep.subr.mxu0 0.0
        %4296 = vmatpush1.msra.mxu0 0.0
        %4297 = vmatprep.subr.mxu0 0.0
        %4298 = vmatpush1.msra.mxu0 0.0
        %4299 = vmatprep.subr.mxu0 0.0
        %4300 = vmatpush1.msra.mxu0 0.0
        %4301 = vmatprep.subr.mxu0 0.0
        %4302 = vmatpush1.msra.mxu0 0.0
        %4303 = vmatprep.subr.mxu0 0.0
        %4304 = vmatpush1.msra.mxu0 0.0
        %4305 = vmatprep.subr.mxu0 0.0
        %4306 = vmatpush1.msra.mxu0 0.0
        %4307 = vmatprep.subr.mxu0 0.0
        %4308 = vmatpush1.msra.mxu0 0.0
        %4309 = vmatprep.subr.mxu0 0.0
        %4310 = vmatpush1.msra.mxu0 0.0
        %4311 = vmatprep.subr.mxu0 0.0
        %4312 = vmatpush1.msra.mxu0 0.0
        %4313 = vmatprep.subr.mxu0 0.0
        %4314 = vmatpush1.msra.mxu0 0.0
        %4315 = vmatprep.subr.mxu0 0.0
        %4316 = vmatpush1.msra.mxu0 0.0
        %4317 = vmatprep.subr.mxu0 0.0
        %4318 = vmatpush1.msra.mxu0 0.0
        %4319 = vmatprep.subr.mxu0 0.0
        %4320 = vmatpush1.msra.mxu0 0.0
        %4321 = vmatprep.subr.mxu0 0.0
        %4322 = vmatpush1.msra.mxu0 %v3726
        %4323 = vmatprep.subr.mxu0 0.0
        %4324 = vmatpush2.msra.mxu0 0.0
        %4325 = vmatprep.subr.mxu0 0.0
        %4326 = vmatpush2.msra.mxu0 0.0
        %4327 = vmatprep.subr.mxu0 0.0
        %4328 = vmatpush2.msra.mxu0 0.0
        %4329 = vmatprep.subr.mxu0 0.0
        %4330 = vmatpush2.msra.mxu0 0.0
        %4331 = vmatprep.subr.mxu0 0.0
        %4332 = vmatpush2.msra.mxu0 0.0
        %4333 = vmatprep.subr.mxu0 0.0
        %4334 = vmatpush2.msra.mxu0 0.0
        %4335 = vmatprep.subr.mxu0 0.0
        %4336 = vmatpush2.msra.mxu0 0.0
        %4337 = vmatprep.subr.mxu0 0.0
        %4338 = vmatpush2.msra.mxu0 0.0
        %4339 = vmatprep.subr.mxu0 0.0
        %4340 = vmatpush2.msra.mxu0 0.0
        %4341 = vmatprep.subr.mxu0 0.0
        %4342 = vmatpush2.msra.mxu0 0.0
        %4343 = vmatprep.subr.mxu0 0.0
        %4344 = vmatpush2.msra.mxu0 0.0
        %4345 = vmatprep.subr.mxu0 0.0
        %4346 = vmatpush2.msra.mxu0 0.0
        %4347 = vmatprep.subr.mxu0 0.0
        %4348 = vmatpush2.msra.mxu0 0.0
        %4349 = vmatprep.subr.mxu0 0.0
        %4350 = vmatpush2.msra.mxu0 0.0
        %4351 = vmatprep.subr.mxu0 0.0
        %4352 = vmatpush2.msra.mxu0 0.0
        %4353 = vmatprep.subr.mxu0 0.0
        %4354 = vmatpush2.msra.mxu0 0.0
        %4355 = vmatprep.mubr.f32.mxu0 0.0
        %4356 = vmatmul.mubr.f32.gmra.mxu0 %v4289
        %v4357 = vpop.f32.mrf.mxu0
        %v4358 = vadd.f32 0.0, %v4357
        %v4359 = vpop.f32.mrf.mxu0
        %4360 = vdwg.mxu0
        %v4362 = vsel %vm483, %v4139, 0
        %4364 = vmatprep.subr.mxu0 0.0
        %4365 = vmatpush1.msra.mxu0 0.0
        %4366 = vmatprep.subr.mxu0 0.0
        %4367 = vmatpush1.msra.mxu0 0.0
        %4368 = vmatprep.subr.mxu0 0.0
        %4369 = vmatpush1.msra.mxu0 0.0
        %4370 = vmatprep.subr.mxu0 0.0
        %4371 = vmatpush1.msra.mxu0 0.0
        %4372 = vmatprep.subr.mxu0 0.0
        %4373 = vmatpush1.msra.mxu0 0.0
        %4374 = vmatprep.subr.mxu0 0.0
        %4375 = vmatpush1.msra.mxu0 0.0
        %4376 = vmatprep.subr.mxu0 0.0
        %4377 = vmatpush1.msra.mxu0 0.0
        %4378 = vmatprep.subr.mxu0 0.0
        %4379 = vmatpush1.msra.mxu0 0.0
        %4380 = vmatprep.subr.mxu0 0.0
        %4381 = vmatpush1.msra.mxu0 0.0
        %4382 = vmatprep.subr.mxu0 0.0
        %4383 = vmatpush1.msra.mxu0 0.0
        %4384 = vmatprep.subr.mxu0 0.0
        %4385 = vmatpush1.msra.mxu0 0.0
        %4386 = vmatprep.subr.mxu0 0.0
        %4387 = vmatpush1.msra.mxu0 0.0
        %4388 = vmatprep.subr.mxu0 0.0
        %4389 = vmatpush1.msra.mxu0 0.0
        %4390 = vmatprep.subr.mxu0 0.0
        %4391 = vmatpush1.msra.mxu0 0.0
        %4392 = vmatprep.subr.mxu0 0.0
        %4393 = vmatpush1.msra.mxu0 %v3464
        %4394 = vmatprep.subr.mxu0 0.0
        %4395 = vmatpush1.msra.mxu0 %v3463
        %4396 = vmatprep.subr.mxu0 0.0
        %4397 = vmatpush2.msra.mxu0 0.0
        %4398 = vmatprep.subr.mxu0 0.0
        %4399 = vmatpush2.msra.mxu0 0.0
        %4400 = vmatprep.subr.mxu0 0.0
        %4401 = vmatpush2.msra.mxu0 0.0
        %4402 = vmatprep.subr.mxu0 0.0
        %4403 = vmatpush2.msra.mxu0 0.0
        %4404 = vmatprep.subr.mxu0 0.0
        %4405 = vmatpush2.msra.mxu0 0.0
        %4406 = vmatprep.subr.mxu0 0.0
        %4407 = vmatpush2.msra.mxu0 0.0
        %4408 = vmatprep.subr.mxu0 0.0
        %4409 = vmatpush2.msra.mxu0 0.0
        %4410 = vmatprep.subr.mxu0 0.0
        %4411 = vmatpush2.msra.mxu0 0.0
        %4412 = vmatprep.subr.mxu0 0.0
        %4413 = vmatpush2.msra.mxu0 0.0
        %4414 = vmatprep.subr.mxu0 0.0
        %4415 = vmatpush2.msra.mxu0 0.0
        %4416 = vmatprep.subr.mxu0 0.0
        %4417 = vmatpush2.msra.mxu0 0.0
        %4418 = vmatprep.subr.mxu0 0.0
        %4419 = vmatpush2.msra.mxu0 0.0
        %4420 = vmatprep.subr.mxu0 0.0
        %4421 = vmatpush2.msra.mxu0 0.0
        %4422 = vmatprep.subr.mxu0 0.0
        %4423 = vmatpush2.msra.mxu0 0.0
        %4424 = vmatprep.subr.mxu0 0.0
        %4425 = vmatpush2.msra.mxu0 0.0
        %4426 = vmatprep.subr.mxu0 0.0
        %4427 = vmatpush2.msra.mxu0 0.0
        %4428 = vmatprep.mubr.f32.mxu0 0.0
        %4429 = vmatmul.mubr.f32.gmra.mxu0 %v4362
        %v4430 = vpop.f32.mrf.mxu0
        %v4431 = vadd.f32 0.0, %v4430
        %v4432 = vpop.f32.mrf.mxu0
        %4433 = vdwg.mxu0
        %v4435 = vsel %vm483, %v4212, 0
        %4437 = vmatprep.subr.mxu0 0.0
        %4438 = vmatpush1.msra.mxu0 0.0
        %4439 = vmatprep.subr.mxu0 0.0
        %4440 = vmatpush1.msra.mxu0 0.0
        %4441 = vmatprep.subr.mxu0 0.0
        %4442 = vmatpush1.msra.mxu0 0.0
        %4443 = vmatprep.subr.mxu0 0.0
        %4444 = vmatpush1.msra.mxu0 0.0
        %4445 = vmatprep.subr.mxu0 0.0
        %4446 = vmatpush1.msra.mxu0 0.0
        %4447 = vmatprep.subr.mxu0 0.0
        %4448 = vmatpush1.msra.mxu0 0.0
        %4449 = vmatprep.subr.mxu0 0.0
        %4450 = vmatpush1.msra.mxu0 0.0
        %4451 = vmatprep.subr.mxu0 0.0
        %4452 = vmatpush1.msra.mxu0 0.0
        %4453 = vmatprep.subr.mxu0 0.0
        %4454 = vmatpush1.msra.mxu0 0.0
        %4455 = vmatprep.subr.mxu0 0.0
        %4456 = vmatpush1.msra.mxu0 0.0
        %4457 = vmatprep.subr.mxu0 0.0
        %4458 = vmatpush1.msra.mxu0 0.0
        %4459 = vmatprep.subr.mxu0 0.0
        %4460 = vmatpush1.msra.mxu0 0.0
        %4461 = vmatprep.subr.mxu0 0.0
        %4462 = vmatpush1.msra.mxu0 0.0
        %4463 = vmatprep.subr.mxu0 0.0
        %4464 = vmatpush1.msra.mxu0 0.0
        %4465 = vmatprep.subr.mxu0 0.0
        %4466 = vmatpush1.msra.mxu0 %v3466
        %4467 = vmatprep.subr.mxu0 0.0
        %4468 = vmatpush1.msra.mxu0 %v3465
        %4469 = vmatprep.subr.mxu0 0.0
        %4470 = vmatpush2.msra.mxu0 0.0
        %4471 = vmatprep.subr.mxu0 0.0
        %4472 = vmatpush2.msra.mxu0 0.0
        %4473 = vmatprep.subr.mxu0 0.0
        %4474 = vmatpush2.msra.mxu0 0.0
        %4475 = vmatprep.subr.mxu0 0.0
        %4476 = vmatpush2.msra.mxu0 0.0
        %4477 = vmatprep.subr.mxu0 0.0
        %4478 = vmatpush2.msra.mxu0 0.0
        %4479 = vmatprep.subr.mxu0 0.0
        %4480 = vmatpush2.msra.mxu0 0.0
        %4481 = vmatprep.subr.mxu0 0.0
        %4482 = vmatpush2.msra.mxu0 0.0
        %4483 = vmatprep.subr.mxu0 0.0
        %4484 = vmatpush2.msra.mxu0 0.0
        %4485 = vmatprep.subr.mxu0 0.0
        %4486 = vmatpush2.msra.mxu0 0.0
        %4487 = vmatprep.subr.mxu0 0.0
        %4488 = vmatpush2.msra.mxu0 0.0
        %4489 = vmatprep.subr.mxu0 0.0
        %4490 = vmatpush2.msra.mxu0 0.0
        %4491 = vmatprep.subr.mxu0 0.0
        %4492 = vmatpush2.msra.mxu0 0.0
        %4493 = vmatprep.subr.mxu0 0.0
        %4494 = vmatpush2.msra.mxu0 0.0
        %4495 = vmatprep.subr.mxu0 0.0
        %4496 = vmatpush2.msra.mxu0 0.0
        %4497 = vmatprep.subr.mxu0 0.0
        %4498 = vmatpush2.msra.mxu0 0.0
        %4499 = vmatprep.subr.mxu0 0.0
        %4500 = vmatpush2.msra.mxu0 0.0
        %4501 = vmatprep.mubr.f32.mxu0 0.0
        %4502 = vmatmul.mubr.f32.gmra.mxu0 %v4435
        %v4503 = vpop.f32.mrf.mxu0
        %v4504 = vadd.f32 0.0, %v4503
        %v4505 = vpop.f32.mrf.mxu0
        %4506 = vdwg.mxu0
        %v4508 = vsel %vm483, %v4285, 0
        %4510 = vmatprep.subr.mxu0 0.0
        %4511 = vmatpush1.msra.mxu0 0.0
        %4512 = vmatprep.subr.mxu0 0.0
        %4513 = vmatpush1.msra.mxu0 0.0
        %4514 = vmatprep.subr.mxu0 0.0
        %4515 = vmatpush1.msra.mxu0 0.0
        %4516 = vmatprep.subr.mxu0 0.0
        %4517 = vmatpush1.msra.mxu0 0.0
        %4518 = vmatprep.subr.mxu0 0.0
        %4519 = vmatpush1.msra.mxu0 0.0
        %4520 = vmatprep.subr.mxu0 0.0
        %4521 = vmatpush1.msra.mxu0 0.0
        %4522 = vmatprep.subr.mxu0 0.0
        %4523 = vmatpush1.msra.mxu0 0.0
        %4524 = vmatprep.subr.mxu0 0.0
        %4525 = vmatpush1.msra.mxu0 0.0
        %4526 = vmatprep.subr.mxu0 0.0
        %4527 = vmatpush1.msra.mxu0 0.0
        %4528 = vmatprep.subr.mxu0 0.0
        %4529 = vmatpush1.msra.mxu0 0.0
        %4530 = vmatprep.subr.mxu0 0.0
        %4531 = vmatpush1.msra.mxu0 0.0
        %4532 = vmatprep.subr.mxu0 0.0
        %4533 = vmatpush1.msra.mxu0 0.0
        %4534 = vmatprep.subr.mxu0 0.0
        %4535 = vmatpush1.msra.mxu0 0.0
        %4536 = vmatprep.subr.mxu0 0.0
        %4537 = vmatpush1.msra.mxu0 0.0
        %4538 = vmatprep.subr.mxu0 0.0
        %4539 = vmatpush1.msra.mxu0 %v3468
        %4540 = vmatprep.subr.mxu0 0.0
        %4541 = vmatpush1.msra.mxu0 %v3467
        %4542 = vmatprep.subr.mxu0 0.0
        %4543 = vmatpush2.msra.mxu0 0.0
        %4544 = vmatprep.subr.mxu0 0.0
        %4545 = vmatpush2.msra.mxu0 0.0
        %4546 = vmatprep.subr.mxu0 0.0
        %4547 = vmatpush2.msra.mxu0 0.0
        %4548 = vmatprep.subr.mxu0 0.0
        %4549 = vmatpush2.msra.mxu0 0.0
        %4550 = vmatprep.subr.mxu0 0.0
        %4551 = vmatpush2.msra.mxu0 0.0
        %4552 = vmatprep.subr.mxu0 0.0
        %4553 = vmatpush2.msra.mxu0 0.0
        %4554 = vmatprep.subr.mxu0 0.0
        %4555 = vmatpush2.msra.mxu0 0.0
        %4556 = vmatprep.subr.mxu0 0.0
        %4557 = vmatpush2.msra.mxu0 0.0
        %4558 = vmatprep.subr.mxu0 0.0
        %4559 = vmatpush2.msra.mxu0 0.0
        %4560 = vmatprep.subr.mxu0 0.0
        %4561 = vmatpush2.msra.mxu0 0.0
        %4562 = vmatprep.subr.mxu0 0.0
        %4563 = vmatpush2.msra.mxu0 0.0
        %4564 = vmatprep.subr.mxu0 0.0
        %4565 = vmatpush2.msra.mxu0 0.0
        %4566 = vmatprep.subr.mxu0 0.0
        %4567 = vmatpush2.msra.mxu0 0.0
        %4568 = vmatprep.subr.mxu0 0.0
        %4569 = vmatpush2.msra.mxu0 0.0
        %4570 = vmatprep.subr.mxu0 0.0
        %4571 = vmatpush2.msra.mxu0 0.0
        %4572 = vmatprep.subr.mxu0 0.0
        %4573 = vmatpush2.msra.mxu0 0.0
        %4574 = vmatprep.mubr.f32.mxu0 0.0
        %4575 = vmatmul.mubr.f32.gmra.mxu0 %v4508
        %v4576 = vpop.f32.mrf.mxu0
        %v4577 = vadd.f32 0.0, %v4576
        %v4578 = vpop.f32.mrf.mxu0
        %4579 = vdwg.mxu0
        %v4581 = vsel %vm483, %v4358, 0
        %4583 = vmatprep.subr.mxu0 0.0
        %4584 = vmatpush1.msra.mxu0 0.0
        %4585 = vmatprep.subr.mxu0 0.0
        %4586 = vmatpush1.msra.mxu0 0.0
        %4587 = vmatprep.subr.mxu0 0.0
        %4588 = vmatpush1.msra.mxu0 0.0
        %4589 = vmatprep.subr.mxu0 0.0
        %4590 = vmatpush1.msra.mxu0 0.0
        %4591 = vmatprep.subr.mxu0 0.0
        %4592 = vmatpush1.msra.mxu0 0.0
        %4593 = vmatprep.subr.mxu0 0.0
        %4594 = vmatpush1.msra.mxu0 0.0
        %4595 = vmatprep.subr.mxu0 0.0
        %4596 = vmatpush1.msra.mxu0 0.0
        %4597 = vmatprep.subr.mxu0 0.0
        %4598 = vmatpush1.msra.mxu0 0.0
        %4599 = vmatprep.subr.mxu0 0.0
        %4600 = vmatpush1.msra.mxu0 0.0
        %4601 = vmatprep.subr.mxu0 0.0
        %4602 = vmatpush1.msra.mxu0 0.0
        %4603 = vmatprep.subr.mxu0 0.0
        %4604 = vmatpush1.msra.mxu0 0.0
        %4605 = vmatprep.subr.mxu0 0.0
        %4606 = vmatpush1.msra.mxu0 0.0
        %4607 = vmatprep.subr.mxu0 0.0
        %4608 = vmatpush1.msra.mxu0 0.0
        %4609 = vmatprep.subr.mxu0 0.0
        %4610 = vmatpush1.msra.mxu0 0.0
        %4611 = vmatprep.subr.mxu0 0.0
        %4612 = vmatpush1.msra.mxu0 %v3470
        %4613 = vmatprep.subr.mxu0 0.0
        %4614 = vmatpush1.msra.mxu0 %v3469
        %4615 = vmatprep.subr.mxu0 0.0
        %4616 = vmatpush2.msra.mxu0 0.0
        %4617 = vmatprep.subr.mxu0 0.0
        %4618 = vmatpush2.msra.mxu0 0.0
        %4619 = vmatprep.subr.mxu0 0.0
        %4620 = vmatpush2.msra.mxu0 0.0
        %4621 = vmatprep.subr.mxu0 0.0
        %4622 = vmatpush2.msra.mxu0 0.0
        %4623 = vmatprep.subr.mxu0 0.0
        %4624 = vmatpush2.msra.mxu0 0.0
        %4625 = vmatprep.subr.mxu0 0.0
        %4626 = vmatpush2.msra.mxu0 0.0
        %4627 = vmatprep.subr.mxu0 0.0
        %4628 = vmatpush2.msra.mxu0 0.0
        %4629 = vmatprep.subr.mxu0 0.0
        %4630 = vmatpush2.msra.mxu0 0.0
        %4631 = vmatprep.subr.mxu0 0.0
        %4632 = vmatpush2.msra.mxu0 0.0
        %4633 = vmatprep.subr.mxu0 0.0
        %4634 = vmatpush2.msra.mxu0 0.0
        %4635 = vmatprep.subr.mxu0 0.0
        %4636 = vmatpush2.msra.mxu0 0.0
        %4637 = vmatprep.subr.mxu0 0.0
        %4638 = vmatpush2.msra.mxu0 0.0
        %4639 = vmatprep.subr.mxu0 0.0
        %4640 = vmatpush2.msra.mxu0 0.0
        %4641 = vmatprep.subr.mxu0 0.0
        %4642 = vmatpush2.msra.mxu0 0.0
        %4643 = vmatprep.subr.mxu0 0.0
        %4644 = vmatpush2.msra.mxu0 0.0
        %4645 = vmatprep.subr.mxu0 0.0
        %4646 = vmatpush2.msra.mxu0 0.0
        %4647 = vmatprep.mubr.f32.mxu0 0.0
        %4648 = vmatmul.mubr.f32.gmra.mxu0 %v4581
        %v4649 = vpop.f32.mrf.mxu0
        %v4650 = vadd.f32 0.0, %v4649
        %v4651 = vpop.f32.mrf.mxu0
        %4652 = vdwg.mxu0
        %v4653 = vsel %vm322, %v4431, 0.0
        %v4654 = vsel %vm322, %v4504, 0.0
        %v4655 = vadd.f32 %v4653, %v4654
        %v4656 = vsel %vm322, %v4577, 0.0
        %v4657 = vadd.f32 %v4655, %v4656
        %v4658 = vsel %vm322, %v4650, 0.0
        %v4659 = vadd.f32 %v4657, %v4658
        %v4660 = vadd.f32 %v4659, 0.0
        %v4661 = vld [vmem:[%s5 + $0xc] sm:$0x1]
        %v4662 = vld [vmem:[%s5 + $0xd] sm:$0x1]
        %v4663 = vsel %vm322, %v4660, 0.0
        %4664 = vadd.xlane.f32.xlu0 %v4663
        %v4665 = vpop.xlane.xlu0 %4664
        %v4666 = vmul.f32 %v4665, %v329
        %v4667 = vsub.f32 %v4660, %v4666
        %v4668 = vmul.f32 %v4667, %v4667
        %v4669 = vsel %vm322, %v4668, 0.0
        %4670 = vadd.xlane.f32.xlu0 %v4669
        %v4671 = vpop.xlane.xlu0 %4670
        %v4672 = vmul.f32 %v4671, %v329
        %v4673 = vadd.f32 %v4672, 1e-05
        %v4674 = vrsqrt.pop %v4673
        %v4675 = vmul.f32 %v4667, %v4674
        %v4676 = vlaneseq
        %v4677 = vshrl.u32 %v4676, 7
        %v4678 = vsub.s32 0, %v4677
        %v4679 = vrot.slane %v4661, %v4678
        %v4680 = vmul.f32 %v4675, %v4679
        %v4681 = vlaneseq
        %v4682 = vshrl.u32 %v4681, 7
        %v4683 = vsub.s32 0, %v4682
        %v4684 = vrot.slane %v4662, %v4683
        %v4685 = vadd.f32 %v4680, %v4684
        %v4687 = vsel %vm322, %v3452, 0
        %v4690 = vsel %vm322, %v3453, 0
        %4692 = vmatprep.subr.mxu0 0.0
        %4693 = vmatpush1.msra.mxu0 0.0
        %4694 = vmatprep.subr.mxu0 0.0
        %4695 = vmatpush1.msra.mxu0 0.0
        %4696 = vmatprep.subr.mxu0 0.0
        %4697 = vmatpush1.msra.mxu0 0.0
        %4698 = vmatprep.subr.mxu0 0.0
        %4699 = vmatpush1.msra.mxu0 0.0
        %4700 = vmatprep.subr.mxu0 0.0
        %4701 = vmatpush1.msra.mxu0 0.0
        %4702 = vmatprep.subr.mxu0 0.0
        %4703 = vmatpush1.msra.mxu0 0.0
        %4704 = vmatprep.subr.mxu0 0.0
        %4705 = vmatpush1.msra.mxu0 0.0
        %4706 = vmatprep.subr.mxu0 0.0
        %4707 = vmatpush1.msra.mxu0 0.0
        %4708 = vmatprep.subr.mxu0 0.0
        %4709 = vmatpush1.msra.mxu0 0.0
        %4710 = vmatprep.subr.mxu0 0.0
        %4711 = vmatpush1.msra.mxu0 0.0
        %4712 = vmatprep.subr.mxu0 0.0
        %4713 = vmatpush1.msra.mxu0 0.0
        %4714 = vmatprep.subr.mxu0 0.0
        %4715 = vmatpush1.msra.mxu0 0.0
        %4716 = vmatprep.subr.mxu0 0.0
        %4717 = vmatpush1.msra.mxu0 %v3563
        %4718 = vmatprep.subr.mxu0 0.0
        %4719 = vmatpush1.msra.mxu0 %v3561
        %4720 = vmatprep.subr.mxu0 0.0
        %4721 = vmatpush1.msra.mxu0 %v3559
        %4722 = vmatprep.subr.mxu0 0.0
        %4723 = vmatpush1.msra.mxu0 %v3557
        %4724 = vmatprep.subr.mxu0 0.0
        %4725 = vmatpush2.msra.mxu0 0.0
        %4726 = vmatprep.subr.mxu0 0.0
        %4727 = vmatpush2.msra.mxu0 0.0
        %4728 = vmatprep.subr.mxu0 0.0
        %4729 = vmatpush2.msra.mxu0 0.0
        %4730 = vmatprep.subr.mxu0 0.0
        %4731 = vmatpush2.msra.mxu0 0.0
        %4732 = vmatprep.subr.mxu0 0.0
        %4733 = vmatpush2.msra.mxu0 0.0
        %4734 = vmatprep.subr.mxu0 0.0
        %4735 = vmatpush2.msra.mxu0 0.0
        %4736 = vmatprep.subr.mxu0 0.0
        %4737 = vmatpush2.msra.mxu0 0.0
        %4738 = vmatprep.subr.mxu0 0.0
        %4739 = vmatpush2.msra.mxu0 0.0
        %4740 = vmatprep.subr.mxu0 0.0
        %4741 = vmatpush2.msra.mxu0 0.0
        %4742 = vmatprep.subr.mxu0 0.0
        %4743 = vmatpush2.msra.mxu0 0.0
        %4744 = vmatprep.subr.mxu0 0.0
        %4745 = vmatpush2.msra.mxu0 0.0
        %4746 = vmatprep.subr.mxu0 0.0
        %4747 = vmatpush2.msra.mxu0 0.0
        %4748 = vmatprep.subr.mxu0 0.0
        %4749 = vmatpush2.msra.mxu0 0.0
        %4750 = vmatprep.subr.mxu0 0.0
        %4751 = vmatpush2.msra.mxu0 0.0
        %4752 = vmatprep.subr.mxu0 0.0
        %4753 = vmatpush2.msra.mxu0 0.0
        %4754 = vmatprep.subr.mxu0 0.0
        %4755 = vmatpush2.msra.mxu0 0.0
        %4756 = vmatprep.mubr.f32.mxu0 0.0
        %4757 = vmatmul.mubr.f32.gmra.mxu0 %v4687
        %v4758 = vpop.f32.mrf.mxu0
        %v4759 = vadd.f32 0.0, %v4758
        %v4760 = vpop.f32.mrf.mxu0
        %4761 = vmatprep.mubr.f32.mxu0 0.0
        %4762 = vmatmul.mubr.f32.gmra.mxu0 %v4690
        %v4763 = vpop.f32.mrf.mxu0
        %v4764 = vadd.f32 0.0, %v4763
        %v4765 = vpop.f32.mrf.mxu0
        %4766 = vdwg.mxu0
        %4769 = vrot.lane.b32.xlu0 %v4759, 112
        %v4770 = vpop.permute.xlu0 %4769
        %4771 = vrot.lane.b32.xlu0 %v4764, 112
        %v4772 = vpop.permute.xlu0 %4771
        %4773 = vrot.lane.b32.xlu0 %v4759, 96
        %v4774 = vpop.permute.xlu0 %4773
        %4775 = vrot.lane.b32.xlu0 %v4764, 96
        %v4776 = vpop.permute.xlu0 %4775
        %4777 = vrot.lane.b32.xlu0 %v4759, 80
        %v4778 = vpop.permute.xlu0 %4777
        %4779 = vrot.lane.b32.xlu0 %v4764, 80
        %v4780 = vpop.permute.xlu0 %4779
        %v4782 = vsel %vm322, %v3448, 0
        %v4785 = vsel %vm322, %v3449, 0
        %4787 = vmatprep.subr.mxu0 0.0
        %4788 = vmatpush1.msra.mxu0 0.0
        %4789 = vmatprep.subr.mxu0 0.0
        %4790 = vmatpush1.msra.mxu0 0.0
        %4791 = vmatprep.subr.mxu0 0.0
        %4792 = vmatpush1.msra.mxu0 0.0
        %4793 = vmatprep.subr.mxu0 0.0
        %4794 = vmatpush1.msra.mxu0 0.0
        %4795 = vmatprep.subr.mxu0 0.0
        %4796 = vmatpush1.msra.mxu0 0.0
        %4797 = vmatprep.subr.mxu0 0.0
        %4798 = vmatpush1.msra.mxu0 0.0
        %4799 = vmatprep.subr.mxu0 0.0
        %4800 = vmatpush1.msra.mxu0 0.0
        %4801 = vmatprep.subr.mxu0 0.0
        %4802 = vmatpush1.msra.mxu0 0.0
        %4803 = vmatprep.subr.mxu0 0.0
        %4804 = vmatpush1.msra.mxu0 0.0
        %4805 = vmatprep.subr.mxu0 0.0
        %4806 = vmatpush1.msra.mxu0 0.0
        %4807 = vmatprep.subr.mxu0 0.0
        %4808 = vmatpush1.msra.mxu0 0.0
        %4809 = vmatprep.subr.mxu0 0.0
        %4810 = vmatpush1.msra.mxu0 0.0
        %4811 = vmatprep.subr.mxu0 0.0
        %4812 = vmatpush1.msra.mxu0 %v3462
        %4813 = vmatprep.subr.mxu0 0.0
        %4814 = vmatpush1.msra.mxu0 %v3460
        %4815 = vmatprep.subr.mxu0 0.0
        %4816 = vmatpush1.msra.mxu0 %v3458
        %4817 = vmatprep.subr.mxu0 0.0
        %4818 = vmatpush1.msra.mxu0 %v3456
        %4819 = vmatprep.subr.mxu0 0.0
        %4820 = vmatpush2.msra.mxu0 0.0
        %4821 = vmatprep.subr.mxu0 0.0
        %4822 = vmatpush2.msra.mxu0 0.0
        %4823 = vmatprep.subr.mxu0 0.0
        %4824 = vmatpush2.msra.mxu0 0.0
        %4825 = vmatprep.subr.mxu0 0.0
        %4826 = vmatpush2.msra.mxu0 0.0
        %4827 = vmatprep.subr.mxu0 0.0
        %4828 = vmatpush2.msra.mxu0 0.0
        %4829 = vmatprep.subr.mxu0 0.0
        %4830 = vmatpush2.msra.mxu0 0.0
        %4831 = vmatprep.subr.mxu0 0.0
        %4832 = vmatpush2.msra.mxu0 0.0
        %4833 = vmatprep.subr.mxu0 0.0
        %4834 = vmatpush2.msra.mxu0 0.0
        %4835 = vmatprep.subr.mxu0 0.0
        %4836 = vmatpush2.msra.mxu0 0.0
        %4837 = vmatprep.subr.mxu0 0.0
        %4838 = vmatpush2.msra.mxu0 0.0
        %4839 = vmatprep.subr.mxu0 0.0
        %4840 = vmatpush2.msra.mxu0 0.0
        %4841 = vmatprep.subr.mxu0 0.0
        %4842 = vmatpush2.msra.mxu0 0.0
        %4843 = vmatprep.subr.mxu0 0.0
        %4844 = vmatpush2.msra.mxu0 0.0
        %4845 = vmatprep.subr.mxu0 0.0
        %4846 = vmatpush2.msra.mxu0 0.0
        %4847 = vmatprep.subr.mxu0 0.0
        %4848 = vmatpush2.msra.mxu0 0.0
        %4849 = vmatprep.subr.mxu0 0.0
        %4850 = vmatpush2.msra.mxu0 0.0
        %4851 = vmatprep.mubr.f32.mxu0 0.0
        %4852 = vmatmul.mubr.f32.gmra.mxu0 %v4782
        %v4853 = vpop.f32.mrf.mxu0
        %v4854 = vadd.f32 0.0, %v4853
        %v4855 = vpop.f32.mrf.mxu0
        %4856 = vmatprep.mubr.f32.mxu0 0.0
        %4857 = vmatmul.mubr.f32.gmra.mxu0 %v4785
        %v4858 = vpop.f32.mrf.mxu0
        %v4859 = vadd.f32 0.0, %v4858
        %v4860 = vpop.f32.mrf.mxu0
        %4861 = vdwg.mxu0
        %4864 = vrot.lane.b32.xlu0 %v4854, 112
        %v4865 = vpop.permute.xlu0 %4864
        %4866 = vrot.lane.b32.xlu0 %v4859, 112
        %v4867 = vpop.permute.xlu0 %4866
        %4870 = vrot.lane.b32.xlu0 %v4854, 96
        %v4871 = vpop.permute.xlu0 %4870
        %4872 = vrot.lane.b32.xlu0 %v4859, 96
        %v4873 = vpop.permute.xlu0 %4872
        %4876 = vrot.lane.b32.xlu0 %v4854, 80
        %v4877 = vpop.permute.xlu0 %4876
        %4878 = vrot.lane.b32.xlu0 %v4859, 80
        %v4879 = vpop.permute.xlu0 %4878
        %v4882 = vsel %vm483, %v4759, 0
        %v4884 = vsel %vm483, %v4764, 0
        %4886 = vmatprep.subr.mxu0 0.0
        %4887 = vmatpush1.xpose.msra.mxu0 0.0
        %4888 = vmatprep.subr.mxu0 0.0
        %4889 = vmatpush1.xpose.msra.mxu0 0.0
        %4890 = vmatprep.subr.mxu0 0.0
        %4891 = vmatpush1.xpose.msra.mxu0 0.0
        %4892 = vmatprep.subr.mxu0 0.0
        %4893 = vmatpush1.xpose.msra.mxu0 0.0
        %4894 = vmatprep.subr.mxu0 0.0
        %4895 = vmatpush1.xpose.msra.mxu0 0.0
        %4896 = vmatprep.subr.mxu0 0.0
        %4897 = vmatpush1.xpose.msra.mxu0 0.0
        %4898 = vmatprep.subr.mxu0 0.0
        %4899 = vmatpush1.xpose.msra.mxu0 0.0
        %4900 = vmatprep.subr.mxu0 0.0
        %4901 = vmatpush1.xpose.msra.mxu0 0.0
        %4902 = vmatprep.subr.mxu0 0.0
        %4903 = vmatpush1.xpose.msra.mxu0 0.0
        %4904 = vmatprep.subr.mxu0 0.0
        %4905 = vmatpush1.xpose.msra.mxu0 0.0
        %4906 = vmatprep.subr.mxu0 0.0
        %4907 = vmatpush1.xpose.msra.mxu0 0.0
        %4908 = vmatprep.subr.mxu0 0.0
        %4909 = vmatpush1.xpose.msra.mxu0 0.0
        %4910 = vmatprep.subr.mxu0 0.0
        %4911 = vmatpush1.xpose.msra.mxu0 0.0
        %4912 = vmatprep.subr.mxu0 0.0
        %4913 = vmatpush1.xpose.msra.mxu0 0.0
        %4914 = vmatprep.subr.mxu0 0.0
        %4915 = vmatpush1.xpose.msra.mxu0 %v4884
        %4916 = vmatprep.subr.mxu0 0.0
        %4917 = vmatpush1.xpose.msra.mxu0 %v4882
        %4918 = vmatprep.subr.mxu0 0.0
        %4919 = vmatpush2.xpose.msra.mxu0 0.0
        %4920 = vmatprep.subr.mxu0 0.0
        %4921 = vmatpush2.xpose.msra.mxu0 0.0
        %4922 = vmatprep.subr.mxu0 0.0
        %4923 = vmatpush2.xpose.msra.mxu0 0.0
        %4924 = vmatprep.subr.mxu0 0.0
        %4925 = vmatpush2.xpose.msra.mxu0 0.0
        %4926 = vmatprep.subr.mxu0 0.0
        %4927 = vmatpush2.xpose.msra.mxu0 0.0
        %4928 = vmatprep.subr.mxu0 0.0
        %4929 = vmatpush2.xpose.msra.mxu0 0.0
        %4930 = vmatprep.subr.mxu0 0.0
        %4931 = vmatpush2.xpose.msra.mxu0 0.0
        %4932 = vmatprep.subr.mxu0 0.0
        %4933 = vmatpush2.xpose.msra.mxu0 0.0
        %4934 = vmatprep.subr.mxu0 0.0
        %4935 = vmatpush2.xpose.msra.mxu0 0.0
        %4936 = vmatprep.subr.mxu0 0.0
        %4937 = vmatpush2.xpose.msra.mxu0 0.0
        %4938 = vmatprep.subr.mxu0 0.0
        %4939 = vmatpush2.xpose.msra.mxu0 0.0
        %4940 = vmatprep.subr.mxu0 0.0
        %4941 = vmatpush2.xpose.msra.mxu0 0.0
        %4942 = vmatprep.subr.mxu0 0.0
        %4943 = vmatpush2.xpose.msra.mxu0 0.0
        %4944 = vmatprep.subr.mxu0 0.0
        %4945 = vmatpush2.xpose.msra.mxu0 0.0
        %4946 = vmatprep.subr.mxu0 0.0
        %4947 = vmatpush2.xpose.msra.mxu0 0.0
        %4948 = vmatprep.subr.mxu0 0.0
        %4949 = vmatpush2.xpose.msra.mxu0 0.0
        %4950 = vmatprep.mubr.f32.mxu0 0.0
        %4951 = vmatmul.mubr.f32.gmra.mxu0 %v3728
        %v4952 = vpop.f32.mrf.mxu0
        %v4953 = vadd.f32 0.0, %v4952
        %v4954 = vpop.f32.mrf.mxu0
        %4955 = vdwg.mxu0
        %v4956 = vsel %vm483, %v4770, 0
        %v4958 = vsel %vm483, %v4772, 0
        %4960 = vmatprep.subr.mxu0 0.0
        %4961 = vmatpush1.xpose.msra.mxu0 0.0
        %4962 = vmatprep.subr.mxu0 0.0
        %4963 = vmatpush1.xpose.msra.mxu0 0.0
        %4964 = vmatprep.subr.mxu0 0.0
        %4965 = vmatpush1.xpose.msra.mxu0 0.0
        %4966 = vmatprep.subr.mxu0 0.0
        %4967 = vmatpush1.xpose.msra.mxu0 0.0
        %4968 = vmatprep.subr.mxu0 0.0
        %4969 = vmatpush1.xpose.msra.mxu0 0.0
        %4970 = vmatprep.subr.mxu0 0.0
        %4971 = vmatpush1.xpose.msra.mxu0 0.0
        %4972 = vmatprep.subr.mxu0 0.0
        %4973 = vmatpush1.xpose.msra.mxu0 0.0
        %4974 = vmatprep.subr.mxu0 0.0
        %4975 = vmatpush1.xpose.msra.mxu0 0.0
        %4976 = vmatprep.subr.mxu0 0.0
        %4977 = vmatpush1.xpose.msra.mxu0 0.0
        %4978 = vmatprep.subr.mxu0 0.0
        %4979 = vmatpush1.xpose.msra.mxu0 0.0
        %4980 = vmatprep.subr.mxu0 0.0
        %4981 = vmatpush1.xpose.msra.mxu0 0.0
        %4982 = vmatprep.subr.mxu0 0.0
        %4983 = vmatpush1.xpose.msra.mxu0 0.0
        %4984 = vmatprep.subr.mxu0 0.0
        %4985 = vmatpush1.xpose.msra.mxu0 0.0
        %4986 = vmatprep.subr.mxu0 0.0
        %4987 = vmatpush1.xpose.msra.mxu0 0.0
        %4988 = vmatprep.subr.mxu0 0.0
        %4989 = vmatpush1.xpose.msra.mxu0 %v4958
        %4990 = vmatprep.subr.mxu0 0.0
        %4991 = vmatpush1.xpose.msra.mxu0 %v4956
        %4992 = vmatprep.subr.mxu0 0.0
        %4993 = vmatpush2.xpose.msra.mxu0 0.0
        %4994 = vmatprep.subr.mxu0 0.0
        %4995 = vmatpush2.xpose.msra.mxu0 0.0
        %4996 = vmatprep.subr.mxu0 0.0
        %4997 = vmatpush2.xpose.msra.mxu0 0.0
        %4998 = vmatprep.subr.mxu0 0.0
        %4999 = vmatpush2.xpose.msra.mxu0 0.0
        %5000 = vmatprep.subr.mxu0 0.0
        %5001 = vmatpush2.xpose.msra.mxu0 0.0
        %5002 = vmatprep.subr.mxu0 0.0
        %5003 = vmatpush2.xpose.msra.mxu0 0.0
        %5004 = vmatprep.subr.mxu0 0.0
        %5005 = vmatpush2.xpose.msra.mxu0 0.0
        %5006 = vmatprep.subr.mxu0 0.0
        %5007 = vmatpush2.xpose.msra.mxu0 0.0
        %5008 = vmatprep.subr.mxu0 0.0
        %5009 = vmatpush2.xpose.msra.mxu0 0.0
        %5010 = vmatprep.subr.mxu0 0.0
        %5011 = vmatpush2.xpose.msra.mxu0 0.0
        %5012 = vmatprep.subr.mxu0 0.0
        %5013 = vmatpush2.xpose.msra.mxu0 0.0
        %5014 = vmatprep.subr.mxu0 0.0
        %5015 = vmatpush2.xpose.msra.mxu0 0.0
        %5016 = vmatprep.subr.mxu0 0.0
        %5017 = vmatpush2.xpose.msra.mxu0 0.0
        %5018 = vmatprep.subr.mxu0 0.0
        %5019 = vmatpush2.xpose.msra.mxu0 0.0
        %5020 = vmatprep.subr.mxu0 0.0
        %5021 = vmatpush2.xpose.msra.mxu0 0.0
        %5022 = vmatprep.subr.mxu0 0.0
        %5023 = vmatpush2.xpose.msra.mxu0 0.0
        %5024 = vmatprep.mubr.f32.mxu0 0.0
        %5025 = vmatmul.mubr.f32.gmra.mxu0 %v3802
        %v5026 = vpop.f32.mrf.mxu0
        %v5027 = vadd.f32 0.0, %v5026
        %v5028 = vpop.f32.mrf.mxu0
        %5029 = vdwg.mxu0
        %v5030 = vsel %vm483, %v4774, 0
        %v5032 = vsel %vm483, %v4776, 0
        %5034 = vmatprep.subr.mxu0 0.0
        %5035 = vmatpush1.xpose.msra.mxu0 0.0
        %5036 = vmatprep.subr.mxu0 0.0
        %5037 = vmatpush1.xpose.msra.mxu0 0.0
        %5038 = vmatprep.subr.mxu0 0.0
        %5039 = vmatpush1.xpose.msra.mxu0 0.0
        %5040 = vmatprep.subr.mxu0 0.0
        %5041 = vmatpush1.xpose.msra.mxu0 0.0
        %5042 = vmatprep.subr.mxu0 0.0
        %5043 = vmatpush1.xpose.msra.mxu0 0.0
        %5044 = vmatprep.subr.mxu0 0.0
        %5045 = vmatpush1.xpose.msra.mxu0 0.0
        %5046 = vmatprep.subr.mxu0 0.0
        %5047 = vmatpush1.xpose.msra.mxu0 0.0
        %5048 = vmatprep.subr.mxu0 0.0
        %5049 = vmatpush1.xpose.msra.mxu0 0.0
        %5050 = vmatprep.subr.mxu0 0.0
        %5051 = vmatpush1.xpose.msra.mxu0 0.0
        %5052 = vmatprep.subr.mxu0 0.0
        %5053 = vmatpush1.xpose.msra.mxu0 0.0
        %5054 = vmatprep.subr.mxu0 0.0
        %5055 = vmatpush1.xpose.msra.mxu0 0.0
        %5056 = vmatprep.subr.mxu0 0.0
        %5057 = vmatpush1.xpose.msra.mxu0 0.0
        %5058 = vmatprep.subr.mxu0 0.0
        %5059 = vmatpush1.xpose.msra.mxu0 0.0
        %5060 = vmatprep.subr.mxu0 0.0
        %5061 = vmatpush1.xpose.msra.mxu0 0.0
        %5062 = vmatprep.subr.mxu0 0.0
        %5063 = vmatpush1.xpose.msra.mxu0 %v5032
        %5064 = vmatprep.subr.mxu0 0.0
        %5065 = vmatpush1.xpose.msra.mxu0 %v5030
        %5066 = vmatprep.subr.mxu0 0.0
        %5067 = vmatpush2.xpose.msra.mxu0 0.0
        %5068 = vmatprep.subr.mxu0 0.0
        %5069 = vmatpush2.xpose.msra.mxu0 0.0
        %5070 = vmatprep.subr.mxu0 0.0
        %5071 = vmatpush2.xpose.msra.mxu0 0.0
        %5072 = vmatprep.subr.mxu0 0.0
        %5073 = vmatpush2.xpose.msra.mxu0 0.0
        %5074 = vmatprep.subr.mxu0 0.0
        %5075 = vmatpush2.xpose.msra.mxu0 0.0
        %5076 = vmatprep.subr.mxu0 0.0
        %5077 = vmatpush2.xpose.msra.mxu0 0.0
        %5078 = vmatprep.subr.mxu0 0.0
        %5079 = vmatpush2.xpose.msra.mxu0 0.0
        %5080 = vmatprep.subr.mxu0 0.0
        %5081 = vmatpush2.xpose.msra.mxu0 0.0
        %5082 = vmatprep.subr.mxu0 0.0
        %5083 = vmatpush2.xpose.msra.mxu0 0.0
        %5084 = vmatprep.subr.mxu0 0.0
        %5085 = vmatpush2.xpose.msra.mxu0 0.0
        %5086 = vmatprep.subr.mxu0 0.0
        %5087 = vmatpush2.xpose.msra.mxu0 0.0
        %5088 = vmatprep.subr.mxu0 0.0
        %5089 = vmatpush2.xpose.msra.mxu0 0.0
        %5090 = vmatprep.subr.mxu0 0.0
        %5091 = vmatpush2.xpose.msra.mxu0 0.0
        %5092 = vmatprep.subr.mxu0 0.0
        %5093 = vmatpush2.xpose.msra.mxu0 0.0
        %5094 = vmatprep.subr.mxu0 0.0
        %5095 = vmatpush2.xpose.msra.mxu0 0.0
        %5096 = vmatprep.subr.mxu0 0.0
        %5097 = vmatpush2.xpose.msra.mxu0 0.0
        %5098 = vmatprep.mubr.f32.mxu0 0.0
        %5099 = vmatmul.mubr.f32.gmra.mxu0 %v3876
        %v5100 = vpop.f32.mrf.mxu0
        %v5101 = vadd.f32 0.0, %v5100
        %v5102 = vpop.f32.mrf.mxu0
        %5103 = vdwg.mxu0
        %v5104 = vsel %vm483, %v4778, 0
        %v5106 = vsel %vm483, %v4780, 0
        %5108 = vmatprep.subr.mxu0 0.0
        %5109 = vmatpush1.xpose.msra.mxu0 0.0
        %5110 = vmatprep.subr.mxu0 0.0
        %5111 = vmatpush1.xpose.msra.mxu0 0.0
        %5112 = vmatprep.subr.mxu0 0.0
        %5113 = vmatpush1.xpose.msra.mxu0 0.0
        %5114 = vmatprep.subr.mxu0 0.0
        %5115 = vmatpush1.xpose.msra.mxu0 0.0
        %5116 = vmatprep.subr.mxu0 0.0
        %5117 = vmatpush1.xpose.msra.mxu0 0.0
        %5118 = vmatprep.subr.mxu0 0.0
        %5119 = vmatpush1.xpose.msra.mxu0 0.0
        %5120 = vmatprep.subr.mxu0 0.0
        %5121 = vmatpush1.xpose.msra.mxu0 0.0
        %5122 = vmatprep.subr.mxu0 0.0
        %5123 = vmatpush1.xpose.msra.mxu0 0.0
        %5124 = vmatprep.subr.mxu0 0.0
        %5125 = vmatpush1.xpose.msra.mxu0 0.0
        %5126 = vmatprep.subr.mxu0 0.0
        %5127 = vmatpush1.xpose.msra.mxu0 0.0
        %5128 = vmatprep.subr.mxu0 0.0
        %5129 = vmatpush1.xpose.msra.mxu0 0.0
        %5130 = vmatprep.subr.mxu0 0.0
        %5131 = vmatpush1.xpose.msra.mxu0 0.0
        %5132 = vmatprep.subr.mxu0 0.0
        %5133 = vmatpush1.xpose.msra.mxu0 0.0
        %5134 = vmatprep.subr.mxu0 0.0
        %5135 = vmatpush1.xpose.msra.mxu0 0.0
        %5136 = vmatprep.subr.mxu0 0.0
        %5137 = vmatpush1.xpose.msra.mxu0 %v5106
        %5138 = vmatprep.subr.mxu0 0.0
        %5139 = vmatpush1.xpose.msra.mxu0 %v5104
        %5140 = vmatprep.subr.mxu0 0.0
        %5141 = vmatpush2.xpose.msra.mxu0 0.0
        %5142 = vmatprep.subr.mxu0 0.0
        %5143 = vmatpush2.xpose.msra.mxu0 0.0
        %5144 = vmatprep.subr.mxu0 0.0
        %5145 = vmatpush2.xpose.msra.mxu0 0.0
        %5146 = vmatprep.subr.mxu0 0.0
        %5147 = vmatpush2.xpose.msra.mxu0 0.0
        %5148 = vmatprep.subr.mxu0 0.0
        %5149 = vmatpush2.xpose.msra.mxu0 0.0
        %5150 = vmatprep.subr.mxu0 0.0
        %5151 = vmatpush2.xpose.msra.mxu0 0.0
        %5152 = vmatprep.subr.mxu0 0.0
        %5153 = vmatpush2.xpose.msra.mxu0 0.0
        %5154 = vmatprep.subr.mxu0 0.0
        %5155 = vmatpush2.xpose.msra.mxu0 0.0
        %5156 = vmatprep.subr.mxu0 0.0
        %5157 = vmatpush2.xpose.msra.mxu0 0.0
        %5158 = vmatprep.subr.mxu0 0.0
        %5159 = vmatpush2.xpose.msra.mxu0 0.0
        %5160 = vmatprep.subr.mxu0 0.0
        %5161 = vmatpush2.xpose.msra.mxu0 0.0
        %5162 = vmatprep.subr.mxu0 0.0
        %5163 = vmatpush2.xpose.msra.mxu0 0.0
        %5164 = vmatprep.subr.mxu0 0.0
        %5165 = vmatpush2.xpose.msra.mxu0 0.0
        %5166 = vmatprep.subr.mxu0 0.0
        %5167 = vmatpush2.xpose.msra.mxu0 0.0
        %5168 = vmatprep.subr.mxu0 0.0
        %5169 = vmatpush2.xpose.msra.mxu0 0.0
        %5170 = vmatprep.subr.mxu0 0.0
        %5171 = vmatpush2.xpose.msra.mxu0 0.0
        %5172 = vmatprep.mubr.f32.mxu0 0.0
        %5173 = vmatmul.mubr.f32.gmra.mxu0 %v3950
        %v5174 = vpop.f32.mrf.mxu0
        %v5175 = vadd.f32 0.0, %v5174
        %v5176 = vpop.f32.mrf.mxu0
        %5177 = vdwg.mxu0
        %v5178 = vsel %vm483, %v4953, -inf
        %5179 = vmax.xlane.f32.xlu0 %v5178
        %v5180 = vpop.xlane.xlu0 %5179
        %v5181 = vsel %vm483, %v5027, -inf
        %5182 = vmax.xlane.f32.xlu0 %v5181
        %v5183 = vpop.xlane.xlu0 %5182
        %v5184 = vsel %vm483, %v5101, -inf
        %5185 = vmax.xlane.f32.xlu0 %v5184
        %v5186 = vpop.xlane.xlu0 %5185
        %v5187 = vsel %vm483, %v5175, -inf
        %5188 = vmax.xlane.f32.xlu0 %v5187
        %v5189 = vpop.xlane.xlu0 %5188
        %v5190 = vsub.f32 %v4953, %v5180
        %v5191 = vsub.f32 %v5027, %v5183
        %v5192 = vsub.f32 %v5101, %v5186
        %v5193 = vsub.f32 %v5175, %v5189
        %v5194 = vmul.f32 %v5190, 1.442695
        %v5195 = vpow.pop %v5194
        %v5196 = vmul.f32 %v5191, 1.442695
        %v5197 = vpow.pop %v5196
        %v5198 = vmul.f32 %v5192, 1.442695
        %v5199 = vpow.pop %v5198
        %v5200 = vmul.f32 %v5193, 1.442695
        %v5201 = vpow.pop %v5200
        %v5202 = vsel %vm483, %v5195, 0.0
        %5203 = vadd.xlane.f32.xlu0 %v5202
        %v5204 = vpop.xlane.xlu0 %5203
        %v5205 = vsel %vm483, %v5197, 0.0
        %5206 = vadd.xlane.f32.xlu0 %v5205
        %v5207 = vpop.xlane.xlu0 %5206
        %v5208 = vsel %vm483, %v5199, 0.0
        %5209 = vadd.xlane.f32.xlu0 %v5208
        %v5210 = vpop.xlane.xlu0 %5209
        %v5211 = vsel %vm483, %v5201, 0.0
        %5212 = vadd.xlane.f32.xlu0 %v5211
        %v5213 = vpop.xlane.xlu0 %5212
        %v5214 = vrcp.pop %v5204
        %v5215 = vrcp.pop %v5207
        %v5216 = vrcp.pop %v5210
        %v5217 = vrcp.pop %v5213
        %v5218 = vmul.f32 %v5195, %v5214
        %v5219 = vmul.f32 %v5197, %v5215
        %v5220 = vmul.f32 %v5199, %v5216
        %v5221 = vmul.f32 %v5201, %v5217
        %v5223 = vsel %vm483, %v5218, 0
        %5225 = vmatprep.subr.mxu0 0.0
        %5226 = vmatpush1.msra.mxu0 0.0
        %5227 = vmatprep.subr.mxu0 0.0
        %5228 = vmatpush1.msra.mxu0 0.0
        %5229 = vmatprep.subr.mxu0 0.0
        %5230 = vmatpush1.msra.mxu0 0.0
        %5231 = vmatprep.subr.mxu0 0.0
        %5232 = vmatpush1.msra.mxu0 0.0
        %5233 = vmatprep.subr.mxu0 0.0
        %5234 = vmatpush1.msra.mxu0 0.0
        %5235 = vmatprep.subr.mxu0 0.0
        %5236 = vmatpush1.msra.mxu0 0.0
        %5237 = vmatprep.subr.mxu0 0.0
        %5238 = vmatpush1.msra.mxu0 0.0
        %5239 = vmatprep.subr.mxu0 0.0
        %5240 = vmatpush1.msra.mxu0 0.0
        %5241 = vmatprep.subr.mxu0 0.0
        %5242 = vmatpush1.msra.mxu0 0.0
        %5243 = vmatprep.subr.mxu0 0.0
        %5244 = vmatpush1.msra.mxu0 0.0
        %5245 = vmatprep.subr.mxu0 0.0
        %5246 = vmatpush1.msra.mxu0 0.0
        %5247 = vmatprep.subr.mxu0 0.0
        %5248 = vmatpush1.msra.mxu0 0.0
        %5249 = vmatprep.subr.mxu0 0.0
        %5250 = vmatpush1.msra.mxu0 0.0
        %5251 = vmatprep.subr.mxu0 0.0
        %5252 = vmatpush1.msra.mxu0 0.0
        %5253 = vmatprep.subr.mxu0 0.0
        %5254 = vmatpush1.msra.mxu0 %v4859
        %5255 = vmatprep.subr.mxu0 0.0
        %5256 = vmatpush1.msra.mxu0 %v4854
        %5257 = vmatprep.subr.mxu0 0.0
        %5258 = vmatpush2.msra.mxu0 0.0
        %5259 = vmatprep.subr.mxu0 0.0
        %5260 = vmatpush2.msra.mxu0 0.0
        %5261 = vmatprep.subr.mxu0 0.0
        %5262 = vmatpush2.msra.mxu0 0.0
        %5263 = vmatprep.subr.mxu0 0.0
        %5264 = vmatpush2.msra.mxu0 0.0
        %5265 = vmatprep.subr.mxu0 0.0
        %5266 = vmatpush2.msra.mxu0 0.0
        %5267 = vmatprep.subr.mxu0 0.0
        %5268 = vmatpush2.msra.mxu0 0.0
        %5269 = vmatprep.subr.mxu0 0.0
        %5270 = vmatpush2.msra.mxu0 0.0
        %5271 = vmatprep.subr.mxu0 0.0
        %5272 = vmatpush2.msra.mxu0 0.0
        %5273 = vmatprep.subr.mxu0 0.0
        %5274 = vmatpush2.msra.mxu0 0.0
        %5275 = vmatprep.subr.mxu0 0.0
        %5276 = vmatpush2.msra.mxu0 0.0
        %5277 = vmatprep.subr.mxu0 0.0
        %5278 = vmatpush2.msra.mxu0 0.0
        %5279 = vmatprep.subr.mxu0 0.0
        %5280 = vmatpush2.msra.mxu0 0.0
        %5281 = vmatprep.subr.mxu0 0.0
        %5282 = vmatpush2.msra.mxu0 0.0
        %5283 = vmatprep.subr.mxu0 0.0
        %5284 = vmatpush2.msra.mxu0 0.0
        %5285 = vmatprep.subr.mxu0 0.0
        %5286 = vmatpush2.msra.mxu0 0.0
        %5287 = vmatprep.subr.mxu0 0.0
        %5288 = vmatpush2.msra.mxu0 0.0
        %5289 = vmatprep.mubr.f32.mxu0 0.0
        %5290 = vmatmul.mubr.f32.gmra.mxu0 %v5223
        %v5291 = vpop.f32.mrf.mxu0
        %v5292 = vadd.f32 0.0, %v5291
        %v5293 = vpop.f32.mrf.mxu0
        %5294 = vdwg.mxu0
        %v5296 = vsel %vm483, %v5219, 0
        %5298 = vmatprep.subr.mxu0 0.0
        %5299 = vmatpush1.msra.mxu0 0.0
        %5300 = vmatprep.subr.mxu0 0.0
        %5301 = vmatpush1.msra.mxu0 0.0
        %5302 = vmatprep.subr.mxu0 0.0
        %5303 = vmatpush1.msra.mxu0 0.0
        %5304 = vmatprep.subr.mxu0 0.0
        %5305 = vmatpush1.msra.mxu0 0.0
        %5306 = vmatprep.subr.mxu0 0.0
        %5307 = vmatpush1.msra.mxu0 0.0
        %5308 = vmatprep.subr.mxu0 0.0
        %5309 = vmatpush1.msra.mxu0 0.0
        %5310 = vmatprep.subr.mxu0 0.0
        %5311 = vmatpush1.msra.mxu0 0.0
        %5312 = vmatprep.subr.mxu0 0.0
        %5313 = vmatpush1.msra.mxu0 0.0
        %5314 = vmatprep.subr.mxu0 0.0
        %5315 = vmatpush1.msra.mxu0 0.0
        %5316 = vmatprep.subr.mxu0 0.0
        %5317 = vmatpush1.msra.mxu0 0.0
        %5318 = vmatprep.subr.mxu0 0.0
        %5319 = vmatpush1.msra.mxu0 0.0
        %5320 = vmatprep.subr.mxu0 0.0
        %5321 = vmatpush1.msra.mxu0 0.0
        %5322 = vmatprep.subr.mxu0 0.0
        %5323 = vmatpush1.msra.mxu0 0.0
        %5324 = vmatprep.subr.mxu0 0.0
        %5325 = vmatpush1.msra.mxu0 0.0
        %5326 = vmatprep.subr.mxu0 0.0
        %5327 = vmatpush1.msra.mxu0 %v4867
        %5328 = vmatprep.subr.mxu0 0.0
        %5329 = vmatpush1.msra.mxu0 %v4865
        %5330 = vmatprep.subr.mxu0 0.0
        %5331 = vmatpush2.msra.mxu0 0.0
        %5332 = vmatprep.subr.mxu0 0.0
        %5333 = vmatpush2.msra.mxu0 0.0
        %5334 = vmatprep.subr.mxu0 0.0
        %5335 = vmatpush2.msra.mxu0 0.0
        %5336 = vmatprep.subr.mxu0 0.0
        %5337 = vmatpush2.msra.mxu0 0.0
        %5338 = vmatprep.subr.mxu0 0.0
        %5339 = vmatpush2.msra.mxu0 0.0
        %5340 = vmatprep.subr.mxu0 0.0
        %5341 = vmatpush2.msra.mxu0 0.0
        %5342 = vmatprep.subr.mxu0 0.0
        %5343 = vmatpush2.msra.mxu0 0.0
        %5344 = vmatprep.subr.mxu0 0.0
        %5345 = vmatpush2.msra.mxu0 0.0
        %5346 = vmatprep.subr.mxu0 0.0
        %5347 = vmatpush2.msra.mxu0 0.0
        %5348 = vmatprep.subr.mxu0 0.0
        %5349 = vmatpush2.msra.mxu0 0.0
        %5350 = vmatprep.subr.mxu0 0.0
        %5351 = vmatpush2.msra.mxu0 0.0
        %5352 = vmatprep.subr.mxu0 0.0
        %5353 = vmatpush2.msra.mxu0 0.0
        %5354 = vmatprep.subr.mxu0 0.0
        %5355 = vmatpush2.msra.mxu0 0.0
        %5356 = vmatprep.subr.mxu0 0.0
        %5357 = vmatpush2.msra.mxu0 0.0
        %5358 = vmatprep.subr.mxu0 0.0
        %5359 = vmatpush2.msra.mxu0 0.0
        %5360 = vmatprep.subr.mxu0 0.0
        %5361 = vmatpush2.msra.mxu0 0.0
        %5362 = vmatprep.mubr.f32.mxu0 0.0
        %5363 = vmatmul.mubr.f32.gmra.mxu0 %v5296
        %v5364 = vpop.f32.mrf.mxu0
        %v5365 = vadd.f32 0.0, %v5364
        %v5366 = vpop.f32.mrf.mxu0
        %5367 = vdwg.mxu0
        %v5369 = vsel %vm483, %v5220, 0
        %5371 = vmatprep.subr.mxu0 0.0
        %5372 = vmatpush1.msra.mxu0 0.0
        %5373 = vmatprep.subr.mxu0 0.0
        %5374 = vmatpush1.msra.mxu0 0.0
        %5375 = vmatprep.subr.mxu0 0.0
        %5376 = vmatpush1.msra.mxu0 0.0
        %5377 = vmatprep.subr.mxu0 0.0
        %5378 = vmatpush1.msra.mxu0 0.0
        %5379 = vmatprep.subr.mxu0 0.0
        %5380 = vmatpush1.msra.mxu0 0.0
        %5381 = vmatprep.subr.mxu0 0.0
        %5382 = vmatpush1.msra.mxu0 0.0
        %5383 = vmatprep.subr.mxu0 0.0
        %5384 = vmatpush1.msra.mxu0 0.0
        %5385 = vmatprep.subr.mxu0 0.0
        %5386 = vmatpush1.msra.mxu0 0.0
        %5387 = vmatprep.subr.mxu0 0.0
        %5388 = vmatpush1.msra.mxu0 0.0
        %5389 = vmatprep.subr.mxu0 0.0
        %5390 = vmatpush1.msra.mxu0 0.0
        %5391 = vmatprep.subr.mxu0 0.0
        %5392 = vmatpush1.msra.mxu0 0.0
        %5393 = vmatprep.subr.mxu0 0.0
        %5394 = vmatpush1.msra.mxu0 0.0
        %5395 = vmatprep.subr.mxu0 0.0
        %5396 = vmatpush1.msra.mxu0 0.0
        %5397 = vmatprep.subr.mxu0 0.0
        %5398 = vmatpush1.msra.mxu0 0.0
        %5399 = vmatprep.subr.mxu0 0.0
        %5400 = vmatpush1.msra.mxu0 %v4873
        %5401 = vmatprep.subr.mxu0 0.0
        %5402 = vmatpush1.msra.mxu0 %v4871
        %5403 = vmatprep.subr.mxu0 0.0
        %5404 = vmatpush2.msra.mxu0 0.0
        %5405 = vmatprep.subr.mxu0 0.0
        %5406 = vmatpush2.msra.mxu0 0.0
        %5407 = vmatprep.subr.mxu0 0.0
        %5408 = vmatpush2.msra.mxu0 0.0
        %5409 = vmatprep.subr.mxu0 0.0
        %5410 = vmatpush2.msra.mxu0 0.0
        %5411 = vmatprep.subr.mxu0 0.0
        %5412 = vmatpush2.msra.mxu0 0.0
        %5413 = vmatprep.subr.mxu0 0.0
        %5414 = vmatpush2.msra.mxu0 0.0
        %5415 = vmatprep.subr.mxu0 0.0
        %5416 = vmatpush2.msra.mxu0 0.0
        %5417 = vmatprep.subr.mxu0 0.0
        %5418 = vmatpush2.msra.mxu0 0.0
        %5419 = vmatprep.subr.mxu0 0.0
        %5420 = vmatpush2.msra.mxu0 0.0
        %5421 = vmatprep.subr.mxu0 0.0
        %5422 = vmatpush2.msra.mxu0 0.0
        %5423 = vmatprep.subr.mxu0 0.0
        %5424 = vmatpush2.msra.mxu0 0.0
        %5425 = vmatprep.subr.mxu0 0.0
        %5426 = vmatpush2.msra.mxu0 0.0
        %5427 = vmatprep.subr.mxu0 0.0
        %5428 = vmatpush2.msra.mxu0 0.0
        %5429 = vmatprep.subr.mxu0 0.0
        %5430 = vmatpush2.msra.mxu0 0.0
        %5431 = vmatprep.subr.mxu0 0.0
        %5432 = vmatpush2.msra.mxu0 0.0
        %5433 = vmatprep.subr.mxu0 0.0
        %5434 = vmatpush2.msra.mxu0 0.0
        %5435 = vmatprep.mubr.f32.mxu0 0.0
        %5436 = vmatmul.mubr.f32.gmra.mxu0 %v5369
        %v5437 = vpop.f32.mrf.mxu0
        %v5438 = vadd.f32 0.0, %v5437
        %v5439 = vpop.f32.mrf.mxu0
        %5440 = vdwg.mxu0
        %v5442 = vsel %vm483, %v5221, 0
        %5444 = vmatprep.subr.mxu0 0.0
        %5445 = vmatpush1.msra.mxu0 0.0
        %5446 = vmatprep.subr.mxu0 0.0
        %5447 = vmatpush1.msra.mxu0 0.0
        %5448 = vmatprep.subr.mxu0 0.0
        %5449 = vmatpush1.msra.mxu0 0.0
        %5450 = vmatprep.subr.mxu0 0.0
        %5451 = vmatpush1.msra.mxu0 0.0
        %5452 = vmatprep.subr.mxu0 0.0
        %5453 = vmatpush1.msra.mxu0 0.0
        %5454 = vmatprep.subr.mxu0 0.0
        %5455 = vmatpush1.msra.mxu0 0.0
        %5456 = vmatprep.subr.mxu0 0.0
        %5457 = vmatpush1.msra.mxu0 0.0
        %5458 = vmatprep.subr.mxu0 0.0
        %5459 = vmatpush1.msra.mxu0 0.0
        %5460 = vmatprep.subr.mxu0 0.0
        %5461 = vmatpush1.msra.mxu0 0.0
        %5462 = vmatprep.subr.mxu0 0.0
        %5463 = vmatpush1.msra.mxu0 0.0
        %5464 = vmatprep.subr.mxu0 0.0
        %5465 = vmatpush1.msra.mxu0 0.0
        %5466 = vmatprep.subr.mxu0 0.0
        %5467 = vmatpush1.msra.mxu0 0.0
        %5468 = vmatprep.subr.mxu0 0.0
        %5469 = vmatpush1.msra.mxu0 0.0
        %5470 = vmatprep.subr.mxu0 0.0
        %5471 = vmatpush1.msra.mxu0 0.0
        %5472 = vmatprep.subr.mxu0 0.0
        %5473 = vmatpush1.msra.mxu0 %v4879
        %5474 = vmatprep.subr.mxu0 0.0
        %5475 = vmatpush1.msra.mxu0 %v4877
        %5476 = vmatprep.subr.mxu0 0.0
        %5477 = vmatpush2.msra.mxu0 0.0
        %5478 = vmatprep.subr.mxu0 0.0
        %5479 = vmatpush2.msra.mxu0 0.0
        %5480 = vmatprep.subr.mxu0 0.0
        %5481 = vmatpush2.msra.mxu0 0.0
        %5482 = vmatprep.subr.mxu0 0.0
        %5483 = vmatpush2.msra.mxu0 0.0
        %5484 = vmatprep.subr.mxu0 0.0
        %5485 = vmatpush2.msra.mxu0 0.0
        %5486 = vmatprep.subr.mxu0 0.0
        %5487 = vmatpush2.msra.mxu0 0.0
        %5488 = vmatprep.subr.mxu0 0.0
        %5489 = vmatpush2.msra.mxu0 0.0
        %5490 = vmatprep.subr.mxu0 0.0
        %5491 = vmatpush2.msra.mxu0 0.0
        %5492 = vmatprep.subr.mxu0 0.0
        %5493 = vmatpush2.msra.mxu0 0.0
        %5494 = vmatprep.subr.mxu0 0.0
        %5495 = vmatpush2.msra.mxu0 0.0
        %5496 = vmatprep.subr.mxu0 0.0
        %5497 = vmatpush2.msra.mxu0 0.0
        %5498 = vmatprep.subr.mxu0 0.0
        %5499 = vmatpush2.msra.mxu0 0.0
        %5500 = vmatprep.subr.mxu0 0.0
        %5501 = vmatpush2.msra.mxu0 0.0
        %5502 = vmatprep.subr.mxu0 0.0
        %5503 = vmatpush2.msra.mxu0 0.0
        %5504 = vmatprep.subr.mxu0 0.0
        %5505 = vmatpush2.msra.mxu0 0.0
        %5506 = vmatprep.subr.mxu0 0.0
        %5507 = vmatpush2.msra.mxu0 0.0
        %5508 = vmatprep.mubr.f32.mxu0 0.0
        %5509 = vmatmul.mubr.f32.gmra.mxu0 %v5442
        %v5510 = vpop.f32.mrf.mxu0
        %v5511 = vadd.f32 0.0, %v5510
        %v5512 = vpop.f32.mrf.mxu0
        %5513 = vdwg.mxu0
        %v5515 = vsel %vm483, %v5292, 0
        %5517 = vmatprep.subr.mxu0 0.0
        %5518 = vmatpush1.msra.mxu0 0.0
        %5519 = vmatprep.subr.mxu0 0.0
        %5520 = vmatpush1.msra.mxu0 0.0
        %5521 = vmatprep.subr.mxu0 0.0
        %5522 = vmatpush1.msra.mxu0 0.0
        %5523 = vmatprep.subr.mxu0 0.0
        %5524 = vmatpush1.msra.mxu0 0.0
        %5525 = vmatprep.subr.mxu0 0.0
        %5526 = vmatpush1.msra.mxu0 0.0
        %5527 = vmatprep.subr.mxu0 0.0
        %5528 = vmatpush1.msra.mxu0 0.0
        %5529 = vmatprep.subr.mxu0 0.0
        %5530 = vmatpush1.msra.mxu0 0.0
        %5531 = vmatprep.subr.mxu0 0.0
        %5532 = vmatpush1.msra.mxu0 0.0
        %5533 = vmatprep.subr.mxu0 0.0
        %5534 = vmatpush1.msra.mxu0 0.0
        %5535 = vmatprep.subr.mxu0 0.0
        %5536 = vmatpush1.msra.mxu0 0.0
        %5537 = vmatprep.subr.mxu0 0.0
        %5538 = vmatpush1.msra.mxu0 0.0
        %5539 = vmatprep.subr.mxu0 0.0
        %5540 = vmatpush1.msra.mxu0 0.0
        %5541 = vmatprep.subr.mxu0 0.0
        %5542 = vmatpush1.msra.mxu0 0.0
        %5543 = vmatprep.subr.mxu0 0.0
        %5544 = vmatpush1.msra.mxu0 0.0
        %5545 = vmatprep.subr.mxu0 0.0
        %5546 = vmatpush1.msra.mxu0 %v3464
        %5547 = vmatprep.subr.mxu0 0.0
        %5548 = vmatpush1.msra.mxu0 %v3463
        %5549 = vmatprep.subr.mxu0 0.0
        %5550 = vmatpush2.msra.mxu0 0.0
        %5551 = vmatprep.subr.mxu0 0.0
        %5552 = vmatpush2.msra.mxu0 0.0
        %5553 = vmatprep.subr.mxu0 0.0
        %5554 = vmatpush2.msra.mxu0 0.0
        %5555 = vmatprep.subr.mxu0 0.0
        %5556 = vmatpush2.msra.mxu0 0.0
        %5557 = vmatprep.subr.mxu0 0.0
        %5558 = vmatpush2.msra.mxu0 0.0
        %5559 = vmatprep.subr.mxu0 0.0
        %5560 = vmatpush2.msra.mxu0 0.0
        %5561 = vmatprep.subr.mxu0 0.0
        %5562 = vmatpush2.msra.mxu0 0.0
        %5563 = vmatprep.subr.mxu0 0.0
        %5564 = vmatpush2.msra.mxu0 0.0
        %5565 = vmatprep.subr.mxu0 0.0
        %5566 = vmatpush2.msra.mxu0 0.0
        %5567 = vmatprep.subr.mxu0 0.0
        %5568 = vmatpush2.msra.mxu0 0.0
        %5569 = vmatprep.subr.mxu0 0.0
        %5570 = vmatpush2.msra.mxu0 0.0
        %5571 = vmatprep.subr.mxu0 0.0
        %5572 = vmatpush2.msra.mxu0 0.0
        %5573 = vmatprep.subr.mxu0 0.0
        %5574 = vmatpush2.msra.mxu0 0.0
        %5575 = vmatprep.subr.mxu0 0.0
        %5576 = vmatpush2.msra.mxu0 0.0
        %5577 = vmatprep.subr.mxu0 0.0
        %5578 = vmatpush2.msra.mxu0 0.0
        %5579 = vmatprep.subr.mxu0 0.0
        %5580 = vmatpush2.msra.mxu0 0.0
        %5581 = vmatprep.mubr.f32.mxu0 0.0
        %5582 = vmatmul.mubr.f32.gmra.mxu0 %v5515
        %v5583 = vpop.f32.mrf.mxu0
        %v5584 = vadd.f32 0.0, %v5583
        %v5585 = vpop.f32.mrf.mxu0
        %5586 = vdwg.mxu0
        %v5588 = vsel %vm483, %v5365, 0
        %5590 = vmatprep.subr.mxu0 0.0
        %5591 = vmatpush1.msra.mxu0 0.0
        %5592 = vmatprep.subr.mxu0 0.0
        %5593 = vmatpush1.msra.mxu0 0.0
        %5594 = vmatprep.subr.mxu0 0.0
        %5595 = vmatpush1.msra.mxu0 0.0
        %5596 = vmatprep.subr.mxu0 0.0
        %5597 = vmatpush1.msra.mxu0 0.0
        %5598 = vmatprep.subr.mxu0 0.0
        %5599 = vmatpush1.msra.mxu0 0.0
        %5600 = vmatprep.subr.mxu0 0.0
        %5601 = vmatpush1.msra.mxu0 0.0
        %5602 = vmatprep.subr.mxu0 0.0
        %5603 = vmatpush1.msra.mxu0 0.0
        %5604 = vmatprep.subr.mxu0 0.0
        %5605 = vmatpush1.msra.mxu0 0.0
        %5606 = vmatprep.subr.mxu0 0.0
        %5607 = vmatpush1.msra.mxu0 0.0
        %5608 = vmatprep.subr.mxu0 0.0
        %5609 = vmatpush1.msra.mxu0 0.0
        %5610 = vmatprep.subr.mxu0 0.0
        %5611 = vmatpush1.msra.mxu0 0.0
        %5612 = vmatprep.subr.mxu0 0.0
        %5613 = vmatpush1.msra.mxu0 0.0
        %5614 = vmatprep.subr.mxu0 0.0
        %5615 = vmatpush1.msra.mxu0 0.0
        %5616 = vmatprep.subr.mxu0 0.0
        %5617 = vmatpush1.msra.mxu0 0.0
        %5618 = vmatprep.subr.mxu0 0.0
        %5619 = vmatpush1.msra.mxu0 %v3466
        %5620 = vmatprep.subr.mxu0 0.0
        %5621 = vmatpush1.msra.mxu0 %v3465
        %5622 = vmatprep.subr.mxu0 0.0
        %5623 = vmatpush2.msra.mxu0 0.0
        %5624 = vmatprep.subr.mxu0 0.0
        %5625 = vmatpush2.msra.mxu0 0.0
        %5626 = vmatprep.subr.mxu0 0.0
        %5627 = vmatpush2.msra.mxu0 0.0
        %5628 = vmatprep.subr.mxu0 0.0
        %5629 = vmatpush2.msra.mxu0 0.0
        %5630 = vmatprep.subr.mxu0 0.0
        %5631 = vmatpush2.msra.mxu0 0.0
        %5632 = vmatprep.subr.mxu0 0.0
        %5633 = vmatpush2.msra.mxu0 0.0
        %5634 = vmatprep.subr.mxu0 0.0
        %5635 = vmatpush2.msra.mxu0 0.0
        %5636 = vmatprep.subr.mxu0 0.0
        %5637 = vmatpush2.msra.mxu0 0.0
        %5638 = vmatprep.subr.mxu0 0.0
        %5639 = vmatpush2.msra.mxu0 0.0
        %5640 = vmatprep.subr.mxu0 0.0
        %5641 = vmatpush2.msra.mxu0 0.0
        %5642 = vmatprep.subr.mxu0 0.0
        %5643 = vmatpush2.msra.mxu0 0.0
        %5644 = vmatprep.subr.mxu0 0.0
        %5645 = vmatpush2.msra.mxu0 0.0
        %5646 = vmatprep.subr.mxu0 0.0
        %5647 = vmatpush2.msra.mxu0 0.0
        %5648 = vmatprep.subr.mxu0 0.0
        %5649 = vmatpush2.msra.mxu0 0.0
        %5650 = vmatprep.subr.mxu0 0.0
        %5651 = vmatpush2.msra.mxu0 0.0
        %5652 = vmatprep.subr.mxu0 0.0
        %5653 = vmatpush2.msra.mxu0 0.0
        %5654 = vmatprep.mubr.f32.mxu0 0.0
        %5655 = vmatmul.mubr.f32.gmra.mxu0 %v5588
        %v5656 = vpop.f32.mrf.mxu0
        %v5657 = vadd.f32 0.0, %v5656
        %v5658 = vpop.f32.mrf.mxu0
        %5659 = vdwg.mxu0
        %v5661 = vsel %vm483, %v5438, 0
        %5663 = vmatprep.subr.mxu0 0.0
        %5664 = vmatpush1.msra.mxu0 0.0
        %5665 = vmatprep.subr.mxu0 0.0
        %5666 = vmatpush1.msra.mxu0 0.0
        %5667 = vmatprep.subr.mxu0 0.0
        %5668 = vmatpush1.msra.mxu0 0.0
        %5669 = vmatprep.subr.mxu0 0.0
        %5670 = vmatpush1.msra.mxu0 0.0
        %5671 = vmatprep.subr.mxu0 0.0
        %5672 = vmatpush1.msra.mxu0 0.0
        %5673 = vmatprep.subr.mxu0 0.0
        %5674 = vmatpush1.msra.mxu0 0.0
        %5675 = vmatprep.subr.mxu0 0.0
        %5676 = vmatpush1.msra.mxu0 0.0
        %5677 = vmatprep.subr.mxu0 0.0
        %5678 = vmatpush1.msra.mxu0 0.0
        %5679 = vmatprep.subr.mxu0 0.0
        %5680 = vmatpush1.msra.mxu0 0.0
        %5681 = vmatprep.subr.mxu0 0.0
        %5682 = vmatpush1.msra.mxu0 0.0
        %5683 = vmatprep.subr.mxu0 0.0
        %5684 = vmatpush1.msra.mxu0 0.0
        %5685 = vmatprep.subr.mxu0 0.0
        %5686 = vmatpush1.msra.mxu0 0.0
        %5687 = vmatprep.subr.mxu0 0.0
        %5688 = vmatpush1.msra.mxu0 0.0
        %5689 = vmatprep.subr.mxu0 0.0
        %5690 = vmatpush1.msra.mxu0 0.0
        %5691 = vmatprep.subr.mxu0 0.0
        %5692 = vmatpush1.msra.mxu0 %v3468
        %5693 = vmatprep.subr.mxu0 0.0
        %5694 = vmatpush1.msra.mxu0 %v3467
        %5695 = vmatprep.subr.mxu0 0.0
        %5696 = vmatpush2.msra.mxu0 0.0
        %5697 = vmatprep.subr.mxu0 0.0
        %5698 = vmatpush2.msra.mxu0 0.0
        %5699 = vmatprep.subr.mxu0 0.0
        %5700 = vmatpush2.msra.mxu0 0.0
        %5701 = vmatprep.subr.mxu0 0.0
        %5702 = vmatpush2.msra.mxu0 0.0
        %5703 = vmatprep.subr.mxu0 0.0
        %5704 = vmatpush2.msra.mxu0 0.0
        %5705 = vmatprep.subr.mxu0 0.0
        %5706 = vmatpush2.msra.mxu0 0.0
        %5707 = vmatprep.subr.mxu0 0.0
        %5708 = vmatpush2.msra.mxu0 0.0
        %5709 = vmatprep.subr.mxu0 0.0
        %5710 = vmatpush2.msra.mxu0 0.0
        %5711 = vmatprep.subr.mxu0 0.0
        %5712 = vmatpush2.msra.mxu0 0.0
        %5713 = vmatprep.subr.mxu0 0.0
        %5714 = vmatpush2.msra.mxu0 0.0
        %5715 = vmatprep.subr.mxu0 0.0
        %5716 = vmatpush2.msra.mxu0 0.0
        %5717 = vmatprep.subr.mxu0 0.0
        %5718 = vmatpush2.msra.mxu0 0.0
        %5719 = vmatprep.subr.mxu0 0.0
        %5720 = vmatpush2.msra.mxu0 0.0
        %5721 = vmatprep.subr.mxu0 0.0
        %5722 = vmatpush2.msra.mxu0 0.0
        %5723 = vmatprep.subr.mxu0 0.0
        %5724 = vmatpush2.msra.mxu0 0.0
        %5725 = vmatprep.subr.mxu0 0.0
        %5726 = vmatpush2.msra.mxu0 0.0
        %5727 = vmatprep.mubr.f32.mxu0 0.0
        %5728 = vmatmul.mubr.f32.gmra.mxu0 %v5661
        %v5729 = vpop.f32.mrf.mxu0
        %v5730 = vadd.f32 0.0, %v5729
        %v5731 = vpop.f32.mrf.mxu0
        %5732 = vdwg.mxu0
        %v5734 = vsel %vm483, %v5511, 0
        %5736 = vmatprep.subr.mxu0 0.0
        %5737 = vmatpush1.msra.mxu0 0.0
        %5738 = vmatprep.subr.mxu0 0.0
        %5739 = vmatpush1.msra.mxu0 0.0
        %5740 = vmatprep.subr.mxu0 0.0
        %5741 = vmatpush1.msra.mxu0 0.0
        %5742 = vmatprep.subr.mxu0 0.0
        %5743 = vmatpush1.msra.mxu0 0.0
        %5744 = vmatprep.subr.mxu0 0.0
        %5745 = vmatpush1.msra.mxu0 0.0
        %5746 = vmatprep.subr.mxu0 0.0
        %5747 = vmatpush1.msra.mxu0 0.0
        %5748 = vmatprep.subr.mxu0 0.0
        %5749 = vmatpush1.msra.mxu0 0.0
        %5750 = vmatprep.subr.mxu0 0.0
        %5751 = vmatpush1.msra.mxu0 0.0
        %5752 = vmatprep.subr.mxu0 0.0
        %5753 = vmatpush1.msra.mxu0 0.0
        %5754 = vmatprep.subr.mxu0 0.0
        %5755 = vmatpush1.msra.mxu0 0.0
        %5756 = vmatprep.subr.mxu0 0.0
        %5757 = vmatpush1.msra.mxu0 0.0
        %5758 = vmatprep.subr.mxu0 0.0
        %5759 = vmatpush1.msra.mxu0 0.0
        %5760 = vmatprep.subr.mxu0 0.0
        %5761 = vmatpush1.msra.mxu0 0.0
        %5762 = vmatprep.subr.mxu0 0.0
        %5763 = vmatpush1.msra.mxu0 0.0
        %5764 = vmatprep.subr.mxu0 0.0
        %5765 = vmatpush1.msra.mxu0 %v3470
        %5766 = vmatprep.subr.mxu0 0.0
        %5767 = vmatpush1.msra.mxu0 %v3469
        %5768 = vmatprep.subr.mxu0 0.0
        %5769 = vmatpush2.msra.mxu0 0.0
        %5770 = vmatprep.subr.mxu0 0.0
        %5771 = vmatpush2.msra.mxu0 0.0
        %5772 = vmatprep.subr.mxu0 0.0
        %5773 = vmatpush2.msra.mxu0 0.0
        %5774 = vmatprep.subr.mxu0 0.0
        %5775 = vmatpush2.msra.mxu0 0.0
        %5776 = vmatprep.subr.mxu0 0.0
        %5777 = vmatpush2.msra.mxu0 0.0
        %5778 = vmatprep.subr.mxu0 0.0
        %5779 = vmatpush2.msra.mxu0 0.0
        %5780 = vmatprep.subr.mxu0 0.0
        %5781 = vmatpush2.msra.mxu0 0.0
        %5782 = vmatprep.subr.mxu0 0.0
        %5783 = vmatpush2.msra.mxu0 0.0
        %5784 = vmatprep.subr.mxu0 0.0
        %5785 = vmatpush2.msra.mxu0 0.0
        %5786 = vmatprep.subr.mxu0 0.0
        %5787 = vmatpush2.msra.mxu0 0.0
        %5788 = vmatprep.subr.mxu0 0.0
        %5789 = vmatpush2.msra.mxu0 0.0
        %5790 = vmatprep.subr.mxu0 0.0
        %5791 = vmatpush2.msra.mxu0 0.0
        %5792 = vmatprep.subr.mxu0 0.0
        %5793 = vmatpush2.msra.mxu0 0.0
        %5794 = vmatprep.subr.mxu0 0.0
        %5795 = vmatpush2.msra.mxu0 0.0
        %5796 = vmatprep.subr.mxu0 0.0
        %5797 = vmatpush2.msra.mxu0 0.0
        %5798 = vmatprep.subr.mxu0 0.0
        %5799 = vmatpush2.msra.mxu0 0.0
        %5800 = vmatprep.mubr.f32.mxu0 0.0
        %5801 = vmatmul.mubr.f32.gmra.mxu0 %v5734
        %v5802 = vpop.f32.mrf.mxu0
        %v5803 = vadd.f32 0.0, %v5802
        %v5804 = vpop.f32.mrf.mxu0
        %5805 = vdwg.mxu0
        %v5806 = vsel %vm322, %v5584, 0.0
        %v5807 = vsel %vm322, %v5657, 0.0
        %v5808 = vadd.f32 %v5806, %v5807
        %v5809 = vsel %vm322, %v5730, 0.0
        %v5810 = vadd.f32 %v5808, %v5809
        %v5811 = vsel %vm322, %v5803, 0.0
        %v5812 = vadd.f32 %v5810, %v5811
        %v5813 = vadd.f32 %v4685, %v5812
        %v5814 = vld [vmem:[%s5 + $0xe] sm:$0x1]
        %v5815 = vld [vmem:[%s5 + $0xf] sm:$0x1]
        %v5816 = vsel %vm322, %v5813, 0.0
        %5817 = vadd.xlane.f32.xlu0 %v5816
        %v5818 = vpop.xlane.xlu0 %5817
        %v5819 = vmul.f32 %v5818, %v329
        %v5820 = vsub.f32 %v5813, %v5819
        %v5821 = vmul.f32 %v5820, %v5820
        %v5822 = vsel %vm322, %v5821, 0.0
        %5823 = vadd.xlane.f32.xlu0 %v5822
        %v5824 = vpop.xlane.xlu0 %5823
        %v5825 = vmul.f32 %v5824, %v329
        %v5826 = vadd.f32 %v5825, 1e-05
        %v5827 = vrsqrt.pop %v5826
        %v5828 = vmul.f32 %v5820, %v5827
        %v5829 = vlaneseq
        %v5830 = vshrl.u32 %v5829, 7
        %v5831 = vsub.s32 0, %v5830
        %v5832 = vrot.slane %v5814, %v5831
        %v5833 = vmul.f32 %v5828, %v5832
        %v5834 = vlaneseq
        %v5835 = vshrl.u32 %v5834, 7
        %v5836 = vsub.s32 0, %v5835
        %v5837 = vrot.slane %v5815, %v5836
        %v5838 = vadd.f32 %v5833, %v5837
        %v5839 = vld [vmem:[%s5 + $0x13] sm:$0x1]
        %v5840 = vlaneseq
        %v5841 = vshrl.u32 %v5840, 7
        %v5842 = vsub.s32 0, %v5841
        %v5843 = vrot.slane %v5839, %v5842
        %5848 = vrot.lane.b32.xlu0 %v3456, 64
        %v5849 = vpop.permute.xlu0 %5848
        %5850 = vrot.lane.b32.xlu0 %v3458, 64
        %v5851 = vpop.permute.xlu0 %5850
        %5852 = vrot.lane.b32.xlu0 %v3460, 64
        %v5853 = vpop.permute.xlu0 %5852
        %5854 = vrot.lane.b32.xlu0 %v3462, 64
        %v5855 = vpop.permute.xlu0 %5854
        %v5861 = vsel %vm322, %v5838, 0
        %5863 = vmatprep.subr.mxu0 0.0
        %5864 = vmatpush1.msra.mxu0 0.0
        %5865 = vmatprep.subr.mxu0 0.0
        %5866 = vmatpush1.msra.mxu0 0.0
        %5867 = vmatprep.subr.mxu0 0.0
        %5868 = vmatpush1.msra.mxu0 0.0
        %5869 = vmatprep.subr.mxu0 0.0
        %5870 = vmatpush1.msra.mxu0 0.0
        %5871 = vmatprep.subr.mxu0 0.0
        %5872 = vmatpush1.msra.mxu0 0.0
        %5873 = vmatprep.subr.mxu0 0.0
        %5874 = vmatpush1.msra.mxu0 0.0
        %5875 = vmatprep.subr.mxu0 0.0
        %5876 = vmatpush1.msra.mxu0 0.0
        %5877 = vmatprep.subr.mxu0 0.0
        %5878 = vmatpush1.msra.mxu0 0.0
        %5879 = vmatprep.subr.mxu0 0.0
        %5880 = vmatpush1.msra.mxu0 0.0
        %5881 = vmatprep.subr.mxu0 0.0
        %5882 = vmatpush1.msra.mxu0 0.0
        %5883 = vmatprep.subr.mxu0 0.0
        %5884 = vmatpush1.msra.mxu0 0.0
        %5885 = vmatprep.subr.mxu0 0.0
        %5886 = vmatpush1.msra.mxu0 0.0
        %5887 = vmatprep.subr.mxu0 0.0
        %5888 = vmatpush1.msra.mxu0 %v5855
        %5889 = vmatprep.subr.mxu0 0.0
        %5890 = vmatpush1.msra.mxu0 %v5853
        %5891 = vmatprep.subr.mxu0 0.0
        %5892 = vmatpush1.msra.mxu0 %v5851
        %5893 = vmatprep.subr.mxu0 0.0
        %5894 = vmatpush1.msra.mxu0 %v5849
        %5895 = vmatprep.subr.mxu0 0.0
        %5896 = vmatpush2.msra.mxu0 0.0
        %5897 = vmatprep.subr.mxu0 0.0
        %5898 = vmatpush2.msra.mxu0 0.0
        %5899 = vmatprep.subr.mxu0 0.0
        %5900 = vmatpush2.msra.mxu0 0.0
        %5901 = vmatprep.subr.mxu0 0.0
        %5902 = vmatpush2.msra.mxu0 0.0
        %5903 = vmatprep.subr.mxu0 0.0
        %5904 = vmatpush2.msra.mxu0 0.0
        %5905 = vmatprep.subr.mxu0 0.0
        %5906 = vmatpush2.msra.mxu0 0.0
        %5907 = vmatprep.subr.mxu0 0.0
        %5908 = vmatpush2.msra.mxu0 0.0
        %5909 = vmatprep.subr.mxu0 0.0
        %5910 = vmatpush2.msra.mxu0 0.0
        %5911 = vmatprep.subr.mxu0 0.0
        %5912 = vmatpush2.msra.mxu0 0.0
        %5913 = vmatprep.subr.mxu0 0.0
        %5914 = vmatpush2.msra.mxu0 0.0
        %5915 = vmatprep.subr.mxu0 0.0
        %5916 = vmatpush2.msra.mxu0 0.0
        %5917 = vmatprep.subr.mxu0 0.0
        %5918 = vmatpush2.msra.mxu0 0.0
        %5919 = vmatprep.subr.mxu0 0.0
        %5920 = vmatpush2.msra.mxu0 0.0
        %5921 = vmatprep.subr.mxu0 0.0
        %5922 = vmatpush2.msra.mxu0 0.0
        %5923 = vmatprep.subr.mxu0 0.0
        %5924 = vmatpush2.msra.mxu0 0.0
        %5925 = vmatprep.subr.mxu0 0.0
        %5926 = vmatpush2.msra.mxu0 0.0
        %5927 = vmatprep.mubr.f32.mxu0 0.0
        %5928 = vmatmul.mubr.f32.gmra.mxu0 %v5861
        %v5929 = vpop.f32.mrf.mxu0
        %v5930 = vadd.f32 %v5843, %v5929
        %v5931 = vpop.f32.mrf.mxu0
        %5932 = vdwg.mxu0
        %v5933 = vmax.f32 %v5930, 0.0
        %5942 = vrot.lane.b32.xlu0 %v3463, 96
        %v5943 = vpop.permute.xlu0 %5942
        %5944 = vrot.lane.b32.xlu0 %v3464, 96
        %v5945 = vpop.permute.xlu0 %5944
        %5946 = vrot.lane.b32.xlu0 %v3465, 96
        %v5947 = vpop.permute.xlu0 %5946
        %5948 = vrot.lane.b32.xlu0 %v3466, 96
        %v5949 = vpop.permute.xlu0 %5948
        %5950 = vrot.lane.b32.xlu0 %v3467, 96
        %v5951 = vpop.permute.xlu0 %5950
        %5952 = vrot.lane.b32.xlu0 %v3468, 96
        %v5953 = vpop.permute.xlu0 %5952
        %5954 = vrot.lane.b32.xlu0 %v3469, 96
        %v5955 = vpop.permute.xlu0 %5954
        %5956 = vrot.lane.b32.xlu0 %v3470, 96
        %v5957 = vpop.permute.xlu0 %5956
        %v5967 = vsel %vm1756, %v5933, 0
        %5969 = vmatprep.subr.mxu0 0.0
        %5970 = vmatpush1.msra.mxu0 0.0
        %5971 = vmatprep.subr.mxu0 0.0
        %5972 = vmatpush1.msra.mxu0 0.0
        %5973 = vmatprep.subr.mxu0 0.0
        %5974 = vmatpush1.msra.mxu0 0.0
        %5975 = vmatprep.subr.mxu0 0.0
        %5976 = vmatpush1.msra.mxu0 0.0
        %5977 = vmatprep.subr.mxu0 0.0
        %5978 = vmatpush1.msra.mxu0 0.0
        %5979 = vmatprep.subr.mxu0 0.0
        %5980 = vmatpush1.msra.mxu0 0.0
        %5981 = vmatprep.subr.mxu0 0.0
        %5982 = vmatpush1.msra.mxu0 0.0
        %5983 = vmatprep.subr.mxu0 0.0
        %5984 = vmatpush1.msra.mxu0 0.0
        %5985 = vmatprep.subr.mxu0 0.0
        %5986 = vmatpush1.msra.mxu0 %v5957
        %5987 = vmatprep.subr.mxu0 0.0
        %5988 = vmatpush1.msra.mxu0 %v5955
        %5989 = vmatprep.subr.mxu0 0.0
        %5990 = vmatpush1.msra.mxu0 %v5953
        %5991 = vmatprep.subr.mxu0 0.0
        %5992 = vmatpush1.msra.mxu0 %v5951
        %5993 = vmatprep.subr.mxu0 0.0
        %5994 = vmatpush1.msra.mxu0 %v5949
        %5995 = vmatprep.subr.mxu0 0.0
        %5996 = vmatpush1.msra.mxu0 %v5947
        %5997 = vmatprep.subr.mxu0 0.0
        %5998 = vmatpush1.msra.mxu0 %v5945
        %5999 = vmatprep.subr.mxu0 0.0
        %6000 = vmatpush1.msra.mxu0 %v5943
        %6001 = vmatprep.subr.mxu0 0.0
        %6002 = vmatpush2.msra.mxu0 0.0
        %6003 = vmatprep.subr.mxu0 0.0
        %6004 = vmatpush2.msra.mxu0 0.0
        %6005 = vmatprep.subr.mxu0 0.0
        %6006 = vmatpush2.msra.mxu0 0.0
        %6007 = vmatprep.subr.mxu0 0.0
        %6008 = vmatpush2.msra.mxu0 0.0
        %6009 = vmatprep.subr.mxu0 0.0
        %6010 = vmatpush2.msra.mxu0 0.0
        %6011 = vmatprep.subr.mxu0 0.0
        %6012 = vmatpush2.msra.mxu0 0.0
        %6013 = vmatprep.subr.mxu0 0.0
        %6014 = vmatpush2.msra.mxu0 0.0
        %6015 = vmatprep.subr.mxu0 0.0
        %6016 = vmatpush2.msra.mxu0 0.0
        %6017 = vmatprep.subr.mxu0 0.0
        %6018 = vmatpush2.msra.mxu0 0.0
        %6019 = vmatprep.subr.mxu0 0.0
        %6020 = vmatpush2.msra.mxu0 0.0
        %6021 = vmatprep.subr.mxu0 0.0
        %6022 = vmatpush2.msra.mxu0 0.0
        %6023 = vmatprep.subr.mxu0 0.0
        %6024 = vmatpush2.msra.mxu0 0.0
        %6025 = vmatprep.subr.mxu0 0.0
        %6026 = vmatpush2.msra.mxu0 0.0
        %6027 = vmatprep.subr.mxu0 0.0
        %6028 = vmatpush2.msra.mxu0 0.0
        %6029 = vmatprep.subr.mxu0 0.0
        %6030 = vmatpush2.msra.mxu0 0.0
        %6031 = vmatprep.subr.mxu0 0.0
        %6032 = vmatpush2.msra.mxu0 0.0
        %6033 = vmatprep.mubr.f32.mxu0 0.0
        %6034 = vmatmul.mubr.f32.gmra.mxu0 %v5967
        %v6035 = vpop.f32.mrf.mxu0
        %v6036 = vadd.f32 0.0, %v6035
        %v6037 = vpop.f32.mrf.mxu0
        %6038 = vdwg.mxu0
        %v6039 = vadd.f32 %v5838, %v6036
        %v6040 = vld [vmem:[%s5 + $0x12] sm:$0x1]
        %v6041 = vlaneseq
        %v6042 = vshrl.u32 %v6041, 7
        %v6043 = vsub.s32 0, %v6042
        %v6044 = vrot.slane %v6040, %v6043
        %v6045 = vadd.f32 %v6039, %v6044
        %v6046 = vld [vmem:[%s5 + $0x10] sm:$0x1]
        %v6047 = vld [vmem:[%s5 + $0x11] sm:$0x1]
        %v6048 = vsel %vm322, %v6045, 0.0
        %6049 = vadd.xlane.f32.xlu0 %v6048
        %v6050 = vpop.xlane.xlu0 %6049
        %v6051 = vmul.f32 %v6050, %v329
        %v6052 = vsub.f32 %v6045, %v6051
        %v6053 = vmul.f32 %v6052, %v6052
        %v6054 = vsel %vm322, %v6053, 0.0
        %6055 = vadd.xlane.f32.xlu0 %v6054
        %v6056 = vpop.xlane.xlu0 %6055
        %v6057 = vmul.f32 %v6056, %v329
        %v6058 = vadd.f32 %v6057, 1e-05
        %v6059 = vrsqrt.pop %v6058
        %v6060 = vmul.f32 %v6052, %v6059
        %v6061 = vlaneseq
        %v6062 = vshrl.u32 %v6061, 7
        %v6063 = vsub.s32 0, %v6062
        %v6064 = vrot.slane %v6046, %v6063
        %v6065 = vmul.f32 %v6060, %v6064
        %v6066 = vlaneseq
        %v6067 = vshrl.u32 %v6066, 7
        %v6068 = vsub.s32 0, %v6067
        %v6069 = vrot.slane %v6047, %v6068
        %v6070 = vadd.f32 %v6065, %v6069
        %v6071 = vld [vmem:[%s5 + $0x1e] sm:$0x1]
        %v6072 = vld [vmem:[%s5 + $0x1f] sm:$0x1]
        %v6073 = vsel %vm322, %v6070, 0.0
        %6074 = vadd.xlane.f32.xlu0 %v6073
        %v6075 = vpop.xlane.xlu0 %6074
        %v6076 = vmul.f32 %v6075, %v329
        %v6077 = vsub.f32 %v6070, %v6076
        %v6078 = vmul.f32 %v6077, %v6077
        %v6079 = vsel %vm322, %v6078, 0.0
        %6080 = vadd.xlane.f32.xlu0 %v6079
        %v6081 = vpop.xlane.xlu0 %6080
        %v6082 = vmul.f32 %v6081, %v329
        %v6083 = vadd.f32 %v6082, 1e-05
        %v6084 = vrsqrt.pop %v6083
        %v6085 = vmul.f32 %v6077, %v6084
        %v6086 = vlaneseq
        %v6087 = vshrl.u32 %v6086, 7
        %v6088 = vsub.s32 0, %v6087
        %v6089 = vrot.slane %v6071, %v6088
        %v6090 = vmul.f32 %v6085, %v6089
        %v6091 = vlaneseq
        %v6092 = vshrl.u32 %v6091, 7
        %v6093 = vsub.s32 0, %v6092
        %v6094 = vrot.slane %v6072, %v6093
        %v6095 = vadd.f32 %v6090, %v6094
        %v6097 = vrot.slane %v6095, 1
        %6098 = vrot.lane.b32.xlu0 %v6097, 32
        %v6099 = vpop.permute.xlu0 %6098
        %v6101 = vrot.slane %v6095, 2
        %6102 = vrot.lane.b32.xlu0 %v6101, 64
        %v6103 = vpop.permute.xlu0 %6102
        %v6105 = vrot.slane %v6095, 3
        %6106 = vrot.lane.b32.xlu0 %v6105, 96
        %v6107 = vpop.permute.xlu0 %6106
        %v6109 = vrot.slane %v6095, 4
        %v6111 = vrot.slane %v6095, 5
        %6112 = vrot.lane.b32.xlu0 %v6111, 32
        %v6113 = vpop.permute.xlu0 %6112
        %v6115 = vrot.slane %v6095, 6
        %6116 = vrot.lane.b32.xlu0 %v6115, 64
        %v6117 = vpop.permute.xlu0 %6116
        %v6119 = vrot.slane %v6095, 7
        %6120 = vrot.lane.b32.xlu0 %v6119, 96
        %v6121 = vpop.permute.xlu0 %6120
        %v6123 = vsel %vm322, %v6095, %v6099
        %v6124 = vsel %vm1756, %v6123, %v6103
        %vm6125 = vcmask 785408
        %v6126 = vsel %vm6125, %v6124, %v6107
        %v6127 = vsel %vm322, %v6109, %v6113
        %v6128 = vsel %vm1756, %v6127, %v6117
        %v6129 = vsel %vm6125, %v6128, %v6121
        %v6132 = vcombine.low %v6126, %v6129
        %v6134 = vunpack.c.l.s4 1966171168
        %v6135 = vunpack.c.0.s8 %v6134
        %v6136 = vlaneseq
        %v6137 = vshrl.u32 %v6136, 7
        %v6138 = vsub.s32 %v6135, %v6137
        %v6139 = vrot.slane %v6132, %v6138
        %v6141 = vunpack.c.l.s4 1966171168
        %v6142 = vunpack.c.0.s8 %v6141
        %v6143 = vlaneseq
        %v6144 = vshrl.u32 %v6143, 7
        %v6145 = vsub.s32 %v6142, %v6144
        %v6146 = vrot.slane %v6139, %v6145
        %v6148 = vlaneseq
        %vm6149 = vcmp.ge.s32.totalorder %v6148, 0
        %vm6150 = vcmp.lt.s32.totalorder %v6148, 256
        %vm6151 = vmand %vm6149, %vm6150
        %6152 = vst.msk [vmem:[%s301] ss:$2 sm:$0x3] %vm6151, %v6146
        %v6153 = vld [vmem:[#allocation2 + $0x30] sm:$0xff]
        %v6154 = vld [vmem:[#allocation2 + $0x38] sm:$0xff]
        %v6155 = vld [vmem:[#allocation2 + $0x70] sm:$0xff]
        %v6156 = vld [vmem:[#allocation2 + $0x78] sm:$0xff]
        %v6157 = vld [vmem:[#allocation2 + $0xb0] sm:$0xff]
        %v6158 = vld [vmem:[#allocation2 + $0xb8] sm:$0xff]
        %v6159 = vld [vmem:[#allocation2 + $0xf0] sm:$0xff]
        %v6160 = vld [vmem:[#allocation2 + $0xf8] sm:$0xff]
        %v6161 = vld [vmem:[#allocation4 + $0x8] sm:$0xff]
        %v6162 = vld [vmem:[#allocation4 + $0x18] sm:$0xff]
        %v6163 = vld [vmem:[#allocation4 + $0x28] sm:$0xff]
        %v6164 = vld [vmem:[#allocation4 + $0x38] sm:$0xff]
        %v6165 = vld [vmem:[#allocation4 + $0x48] sm:$0xff]
        %v6166 = vld [vmem:[#allocation4 + $0x58] sm:$0xff]
        %v6167 = vld [vmem:[#allocation4 + $0x68] sm:$0xff]
        %v6168 = vld [vmem:[#allocation4 + $0x78] sm:$0xff]
        %v6169 = vadd.f32 %v6070, %v3454
        %v6171 = vsel %vm322, %v6169, 0
        %6173 = vmatprep.subr.mxu0 0.0
        %6174 = vmatpush1.msra.mxu0 0.0
        %6175 = vmatprep.subr.mxu0 0.0
        %6176 = vmatpush1.msra.mxu0 0.0
        %6177 = vmatprep.subr.mxu0 0.0
        %6178 = vmatpush1.msra.mxu0 0.0
        %6179 = vmatprep.subr.mxu0 0.0
        %6180 = vmatpush1.msra.mxu0 0.0
        %6181 = vmatprep.subr.mxu0 0.0
        %6182 = vmatpush1.msra.mxu0 0.0
        %6183 = vmatprep.subr.mxu0 0.0
        %6184 = vmatpush1.msra.mxu0 0.0
        %6185 = vmatprep.subr.mxu0 0.0
        %6186 = vmatpush1.msra.mxu0 0.0
        %6187 = vmatprep.subr.mxu0 0.0
        %6188 = vmatpush1.msra.mxu0 0.0
        %6189 = vmatprep.subr.mxu0 0.0
        %6190 = vmatpush1.msra.mxu0 0.0
        %6191 = vmatprep.subr.mxu0 0.0
        %6192 = vmatpush1.msra.mxu0 0.0
        %6193 = vmatprep.subr.mxu0 0.0
        %6194 = vmatpush1.msra.mxu0 0.0
        %6195 = vmatprep.subr.mxu0 0.0
        %6196 = vmatpush1.msra.mxu0 0.0
        %6197 = vmatprep.subr.mxu0 0.0
        %6198 = vmatpush1.msra.mxu0 %v6159
        %6199 = vmatprep.subr.mxu0 0.0
        %6200 = vmatpush1.msra.mxu0 %v6157
        %6201 = vmatprep.subr.mxu0 0.0
        %6202 = vmatpush1.msra.mxu0 %v6155
        %6203 = vmatprep.subr.mxu0 0.0
        %6204 = vmatpush1.msra.mxu0 %v6153
        %6205 = vmatprep.subr.mxu0 0.0
        %6206 = vmatpush2.msra.mxu0 0.0
        %6207 = vmatprep.subr.mxu0 0.0
        %6208 = vmatpush2.msra.mxu0 0.0
        %6209 = vmatprep.subr.mxu0 0.0
        %6210 = vmatpush2.msra.mxu0 0.0
        %6211 = vmatprep.subr.mxu0 0.0
        %6212 = vmatpush2.msra.mxu0 0.0
        %6213 = vmatprep.subr.mxu0 0.0
        %6214 = vmatpush2.msra.mxu0 0.0
        %6215 = vmatprep.subr.mxu0 0.0
        %6216 = vmatpush2.msra.mxu0 0.0
        %6217 = vmatprep.subr.mxu0 0.0
        %6218 = vmatpush2.msra.mxu0 0.0
        %6219 = vmatprep.subr.mxu0 0.0
        %6220 = vmatpush2.msra.mxu0 0.0
        %6221 = vmatprep.subr.mxu0 0.0
        %6222 = vmatpush2.msra.mxu0 0.0
        %6223 = vmatprep.subr.mxu0 0.0
        %6224 = vmatpush2.msra.mxu0 0.0
        %6225 = vmatprep.subr.mxu0 0.0
        %6226 = vmatpush2.msra.mxu0 0.0
        %6227 = vmatprep.subr.mxu0 0.0
        %6228 = vmatpush2.msra.mxu0 0.0
        %6229 = vmatprep.subr.mxu0 0.0
        %6230 = vmatpush2.msra.mxu0 0.0
        %6231 = vmatprep.subr.mxu0 0.0
        %6232 = vmatpush2.msra.mxu0 0.0
        %6233 = vmatprep.subr.mxu0 0.0
        %6234 = vmatpush2.msra.mxu0 0.0
        %6235 = vmatprep.subr.mxu0 0.0
        %6236 = vmatpush2.msra.mxu0 0.0
        %6237 = vmatprep.mubr.f32.mxu0 0.0
        %6238 = vmatmul.mubr.f32.gmra.mxu0 %v6171
        %v6239 = vpop.f32.mrf.mxu0
        %v6240 = vadd.f32 0.0, %v6239
        %v6241 = vpop.f32.mrf.mxu0
        %6242 = vdwg.mxu0
        %6244 = vrot.lane.b32.xlu0 %v6240, 112
        %v6245 = vpop.permute.xlu0 %6244
        %6246 = vrot.lane.b32.xlu0 %v6240, 96
        %v6247 = vpop.permute.xlu0 %6246
        %6248 = vrot.lane.b32.xlu0 %v6240, 80
        %v6249 = vpop.permute.xlu0 %6248
        %6254 = vrot.lane.b32.xlu0 %v6153, 64
        %v6255 = vpop.permute.xlu0 %6254
        %6256 = vrot.lane.b32.xlu0 %v6155, 64
        %v6257 = vpop.permute.xlu0 %6256
        %6258 = vrot.lane.b32.xlu0 %v6157, 64
        %v6259 = vpop.permute.xlu0 %6258
        %6260 = vrot.lane.b32.xlu0 %v6159, 64
        %v6261 = vpop.permute.xlu0 %6260
        %6266 = vmatprep.subr.mxu0 0.0
        %6267 = vmatpush1.msra.mxu0 0.0
        %6268 = vmatprep.subr.mxu0 0.0
        %6269 = vmatpush1.msra.mxu0 0.0
        %6270 = vmatprep.subr.mxu0 0.0
        %6271 = vmatpush1.msra.mxu0 0.0
        %6272 = vmatprep.subr.mxu0 0.0
        %6273 = vmatpush1.msra.mxu0 0.0
        %6274 = vmatprep.subr.mxu0 0.0
        %6275 = vmatpush1.msra.mxu0 0.0
        %6276 = vmatprep.subr.mxu0 0.0
        %6277 = vmatpush1.msra.mxu0 0.0
        %6278 = vmatprep.subr.mxu0 0.0
        %6279 = vmatpush1.msra.mxu0 0.0
        %6280 = vmatprep.subr.mxu0 0.0
        %6281 = vmatpush1.msra.mxu0 0.0
        %6282 = vmatprep.subr.mxu0 0.0
        %6283 = vmatpush1.msra.mxu0 0.0
        %6284 = vmatprep.subr.mxu0 0.0
        %6285 = vmatpush1.msra.mxu0 0.0
        %6286 = vmatprep.subr.mxu0 0.0
        %6287 = vmatpush1.msra.mxu0 0.0
        %6288 = vmatprep.subr.mxu0 0.0
        %6289 = vmatpush1.msra.mxu0 0.0
        %6290 = vmatprep.subr.mxu0 0.0
        %6291 = vmatpush1.msra.mxu0 %v6261
        %6292 = vmatprep.subr.mxu0 0.0
        %6293 = vmatpush1.msra.mxu0 %v6259
        %6294 = vmatprep.subr.mxu0 0.0
        %6295 = vmatpush1.msra.mxu0 %v6257
        %6296 = vmatprep.subr.mxu0 0.0
        %6297 = vmatpush1.msra.mxu0 %v6255
        %6298 = vmatprep.subr.mxu0 0.0
        %6299 = vmatpush2.msra.mxu0 0.0
        %6300 = vmatprep.subr.mxu0 0.0
        %6301 = vmatpush2.msra.mxu0 0.0
        %6302 = vmatprep.subr.mxu0 0.0
        %6303 = vmatpush2.msra.mxu0 0.0
        %6304 = vmatprep.subr.mxu0 0.0
        %6305 = vmatpush2.msra.mxu0 0.0
        %6306 = vmatprep.subr.mxu0 0.0
        %6307 = vmatpush2.msra.mxu0 0.0
        %6308 = vmatprep.subr.mxu0 0.0
        %6309 = vmatpush2.msra.mxu0 0.0
        %6310 = vmatprep.subr.mxu0 0.0
        %6311 = vmatpush2.msra.mxu0 0.0
        %6312 = vmatprep.subr.mxu0 0.0
        %6313 = vmatpush2.msra.mxu0 0.0
        %6314 = vmatprep.subr.mxu0 0.0
        %6315 = vmatpush2.msra.mxu0 0.0
        %6316 = vmatprep.subr.mxu0 0.0
        %6317 = vmatpush2.msra.mxu0 0.0
        %6318 = vmatprep.subr.mxu0 0.0
        %6319 = vmatpush2.msra.mxu0 0.0
        %6320 = vmatprep.subr.mxu0 0.0
        %6321 = vmatpush2.msra.mxu0 0.0
        %6322 = vmatprep.subr.mxu0 0.0
        %6323 = vmatpush2.msra.mxu0 0.0
        %6324 = vmatprep.subr.mxu0 0.0
        %6325 = vmatpush2.msra.mxu0 0.0
        %6326 = vmatprep.subr.mxu0 0.0
        %6327 = vmatpush2.msra.mxu0 0.0
        %6328 = vmatprep.subr.mxu0 0.0
        %6329 = vmatpush2.msra.mxu0 0.0
        %6330 = vmatprep.mubr.f32.mxu0 0.0
        %6331 = vmatmul.mubr.f32.gmra.mxu0 %v6171
        %v6332 = vpop.f32.mrf.mxu0
        %v6333 = vadd.f32 0.0, %v6332
        %v6334 = vpop.f32.mrf.mxu0
        %6335 = vdwg.mxu0
        %6337 = vrot.lane.b32.xlu0 %v6333, 112
        %v6338 = vpop.permute.xlu0 %6337
        %6339 = vrot.lane.b32.xlu0 %v6333, 96
        %v6340 = vpop.permute.xlu0 %6339
        %6341 = vrot.lane.b32.xlu0 %v6333, 80
        %v6342 = vpop.permute.xlu0 %6341
        %v6344 = vsel %vm322, %v6070, 0
        %6346 = vmatprep.subr.mxu0 0.0
        %6347 = vmatpush1.msra.mxu0 0.0
        %6348 = vmatprep.subr.mxu0 0.0
        %6349 = vmatpush1.msra.mxu0 0.0
        %6350 = vmatprep.subr.mxu0 0.0
        %6351 = vmatpush1.msra.mxu0 0.0
        %6352 = vmatprep.subr.mxu0 0.0
        %6353 = vmatpush1.msra.mxu0 0.0
        %6354 = vmatprep.subr.mxu0 0.0
        %6355 = vmatpush1.msra.mxu0 0.0
        %6356 = vmatprep.subr.mxu0 0.0
        %6357 = vmatpush1.msra.mxu0 0.0
        %6358 = vmatprep.subr.mxu0 0.0
        %6359 = vmatpush1.msra.mxu0 0.0
        %6360 = vmatprep.subr.mxu0 0.0
        %6361 = vmatpush1.msra.mxu0 0.0
        %6362 = vmatprep.subr.mxu0 0.0
        %6363 = vmatpush1.msra.mxu0 0.0
        %6364 = vmatprep.subr.mxu0 0.0
        %6365 = vmatpush1.msra.mxu0 0.0
        %6366 = vmatprep.subr.mxu0 0.0
        %6367 = vmatpush1.msra.mxu0 0.0
        %6368 = vmatprep.subr.mxu0 0.0
        %6369 = vmatpush1.msra.mxu0 0.0
        %6370 = vmatprep.subr.mxu0 0.0
        %6371 = vmatpush1.msra.mxu0 %v6160
        %6372 = vmatprep.subr.mxu0 0.0
        %6373 = vmatpush1.msra.mxu0 %v6158
        %6374 = vmatprep.subr.mxu0 0.0
        %6375 = vmatpush1.msra.mxu0 %v6156
        %6376 = vmatprep.subr.mxu0 0.0
        %6377 = vmatpush1.msra.mxu0 %v6154
        %6378 = vmatprep.subr.mxu0 0.0
        %6379 = vmatpush2.msra.mxu0 0.0
        %6380 = vmatprep.subr.mxu0 0.0
        %6381 = vmatpush2.msra.mxu0 0.0
        %6382 = vmatprep.subr.mxu0 0.0
        %6383 = vmatpush2.msra.mxu0 0.0
        %6384 = vmatprep.subr.mxu0 0.0
        %6385 = vmatpush2.msra.mxu0 0.0
        %6386 = vmatprep.subr.mxu0 0.0
        %6387 = vmatpush2.msra.mxu0 0.0
        %6388 = vmatprep.subr.mxu0 0.0
        %6389 = vmatpush2.msra.mxu0 0.0
        %6390 = vmatprep.subr.mxu0 0.0
        %6391 = vmatpush2.msra.mxu0 0.0
        %6392 = vmatprep.subr.mxu0 0.0
        %6393 = vmatpush2.msra.mxu0 0.0
        %6394 = vmatprep.subr.mxu0 0.0
        %6395 = vmatpush2.msra.mxu0 0.0
        %6396 = vmatprep.subr.mxu0 0.0
        %6397 = vmatpush2.msra.mxu0 0.0
        %6398 = vmatprep.subr.mxu0 0.0
        %6399 = vmatpush2.msra.mxu0 0.0
        %6400 = vmatprep.subr.mxu0 0.0
        %6401 = vmatpush2.msra.mxu0 0.0
        %6402 = vmatprep.subr.mxu0 0.0
        %6403 = vmatpush2.msra.mxu0 0.0
        %6404 = vmatprep.subr.mxu0 0.0
        %6405 = vmatpush2.msra.mxu0 0.0
        %6406 = vmatprep.subr.mxu0 0.0
        %6407 = vmatpush2.msra.mxu0 0.0
        %6408 = vmatprep.subr.mxu0 0.0
        %6409 = vmatpush2.msra.mxu0 0.0
        %6410 = vmatprep.mubr.f32.mxu0 0.0
        %6411 = vmatmul.mubr.f32.gmra.mxu0 %v6344
        %v6412 = vpop.f32.mrf.mxu0
        %v6413 = vadd.f32 0.0, %v6412
        %v6414 = vpop.f32.mrf.mxu0
        %6415 = vdwg.mxu0
        %6417 = vrot.lane.b32.xlu0 %v6413, 112
        %v6418 = vpop.permute.xlu0 %6417
        %6420 = vrot.lane.b32.xlu0 %v6413, 96
        %v6421 = vpop.permute.xlu0 %6420
        %6423 = vrot.lane.b32.xlu0 %v6413, 80
        %v6424 = vpop.permute.xlu0 %6423
        %v6426 = vsel %vm483, %v6240, 0
        %v6428 = vsel %vm483, %v6333, 0
        %6430 = vmatprep.subr.mxu0 0.0
        %6431 = vmatpush1.xpose.msra.mxu0 0.0
        %6432 = vmatprep.subr.mxu0 0.0
        %6433 = vmatpush1.xpose.msra.mxu0 0.0
        %6434 = vmatprep.subr.mxu0 0.0
        %6435 = vmatpush1.xpose.msra.mxu0 0.0
        %6436 = vmatprep.subr.mxu0 0.0
        %6437 = vmatpush1.xpose.msra.mxu0 0.0
        %6438 = vmatprep.subr.mxu0 0.0
        %6439 = vmatpush1.xpose.msra.mxu0 0.0
        %6440 = vmatprep.subr.mxu0 0.0
        %6441 = vmatpush1.xpose.msra.mxu0 0.0
        %6442 = vmatprep.subr.mxu0 0.0
        %6443 = vmatpush1.xpose.msra.mxu0 0.0
        %6444 = vmatprep.subr.mxu0 0.0
        %6445 = vmatpush1.xpose.msra.mxu0 0.0
        %6446 = vmatprep.subr.mxu0 0.0
        %6447 = vmatpush1.xpose.msra.mxu0 0.0
        %6448 = vmatprep.subr.mxu0 0.0
        %6449 = vmatpush1.xpose.msra.mxu0 0.0
        %6450 = vmatprep.subr.mxu0 0.0
        %6451 = vmatpush1.xpose.msra.mxu0 0.0
        %6452 = vmatprep.subr.mxu0 0.0
        %6453 = vmatpush1.xpose.msra.mxu0 0.0
        %6454 = vmatprep.subr.mxu0 0.0
        %6455 = vmatpush1.xpose.msra.mxu0 0.0
        %6456 = vmatprep.subr.mxu0 0.0
        %6457 = vmatpush1.xpose.msra.mxu0 0.0
        %6458 = vmatprep.subr.mxu0 0.0
        %6459 = vmatpush1.xpose.msra.mxu0 0.0
        %6460 = vmatprep.subr.mxu0 0.0
        %6461 = vmatpush1.xpose.msra.mxu0 %v6428
        %6462 = vmatprep.subr.mxu0 0.0
        %6463 = vmatpush2.xpose.msra.mxu0 0.0
        %6464 = vmatprep.subr.mxu0 0.0
        %6465 = vmatpush2.xpose.msra.mxu0 0.0
        %6466 = vmatprep.subr.mxu0 0.0
        %6467 = vmatpush2.xpose.msra.mxu0 0.0
        %6468 = vmatprep.subr.mxu0 0.0
        %6469 = vmatpush2.xpose.msra.mxu0 0.0
        %6470 = vmatprep.subr.mxu0 0.0
        %6471 = vmatpush2.xpose.msra.mxu0 0.0
        %6472 = vmatprep.subr.mxu0 0.0
        %6473 = vmatpush2.xpose.msra.mxu0 0.0
        %6474 = vmatprep.subr.mxu0 0.0
        %6475 = vmatpush2.xpose.msra.mxu0 0.0
        %6476 = vmatprep.subr.mxu0 0.0
        %6477 = vmatpush2.xpose.msra.mxu0 0.0
        %6478 = vmatprep.subr.mxu0 0.0
        %6479 = vmatpush2.xpose.msra.mxu0 0.0
        %6480 = vmatprep.subr.mxu0 0.0
        %6481 = vmatpush2.xpose.msra.mxu0 0.0
        %6482 = vmatprep.subr.mxu0 0.0
        %6483 = vmatpush2.xpose.msra.mxu0 0.0
        %6484 = vmatprep.subr.mxu0 0.0
        %6485 = vmatpush2.xpose.msra.mxu0 0.0
        %6486 = vmatprep.subr.mxu0 0.0
        %6487 = vmatpush2.xpose.msra.mxu0 0.0
        %6488 = vmatprep.subr.mxu0 0.0
        %6489 = vmatpush2.xpose.msra.mxu0 0.0
        %6490 = vmatprep.subr.mxu0 0.0
        %6491 = vmatpush2.xpose.msra.mxu0 0.0
        %6492 = vmatprep.subr.mxu0 0.0
        %6493 = vmatpush2.xpose.msra.mxu0 0.0
        %6494 = vmatprep.mubr.f32.mxu0 0.0
        %6495 = vmatmul.mubr.f32.gmra.mxu0 %v6426
        %v6496 = vpop.f32.mrf.mxu0
        %v6497 = vadd.f32 0.0, %v6496
        %v6498 = vpop.f32.mrf.mxu0
        %6499 = vdwg.mxu0
        %v6500 = vsel %vm483, %v6245, 0
        %v6502 = vsel %vm483, %v6338, 0
        %6504 = vmatprep.subr.mxu0 0.0
        %6505 = vmatpush1.xpose.msra.mxu0 0.0
        %6506 = vmatprep.subr.mxu0 0.0
        %6507 = vmatpush1.xpose.msra.mxu0 0.0
        %6508 = vmatprep.subr.mxu0 0.0
        %6509 = vmatpush1.xpose.msra.mxu0 0.0
        %6510 = vmatprep.subr.mxu0 0.0
        %6511 = vmatpush1.xpose.msra.mxu0 0.0
        %6512 = vmatprep.subr.mxu0 0.0
        %6513 = vmatpush1.xpose.msra.mxu0 0.0
        %6514 = vmatprep.subr.mxu0 0.0
        %6515 = vmatpush1.xpose.msra.mxu0 0.0
        %6516 = vmatprep.subr.mxu0 0.0
        %6517 = vmatpush1.xpose.msra.mxu0 0.0
        %6518 = vmatprep.subr.mxu0 0.0
        %6519 = vmatpush1.xpose.msra.mxu0 0.0
        %6520 = vmatprep.subr.mxu0 0.0
        %6521 = vmatpush1.xpose.msra.mxu0 0.0
        %6522 = vmatprep.subr.mxu0 0.0
        %6523 = vmatpush1.xpose.msra.mxu0 0.0
        %6524 = vmatprep.subr.mxu0 0.0
        %6525 = vmatpush1.xpose.msra.mxu0 0.0
        %6526 = vmatprep.subr.mxu0 0.0
        %6527 = vmatpush1.xpose.msra.mxu0 0.0
        %6528 = vmatprep.subr.mxu0 0.0
        %6529 = vmatpush1.xpose.msra.mxu0 0.0
        %6530 = vmatprep.subr.mxu0 0.0
        %6531 = vmatpush1.xpose.msra.mxu0 0.0
        %6532 = vmatprep.subr.mxu0 0.0
        %6533 = vmatpush1.xpose.msra.mxu0 0.0
        %6534 = vmatprep.subr.mxu0 0.0
        %6535 = vmatpush1.xpose.msra.mxu0 %v6502
        %6536 = vmatprep.subr.mxu0 0.0
        %6537 = vmatpush2.xpose.msra.mxu0 0.0
        %6538 = vmatprep.subr.mxu0 0.0
        %6539 = vmatpush2.xpose.msra.mxu0 0.0
        %6540 = vmatprep.subr.mxu0 0.0
        %6541 = vmatpush2.xpose.msra.mxu0 0.0
        %6542 = vmatprep.subr.mxu0 0.0
        %6543 = vmatpush2.xpose.msra.mxu0 0.0
        %6544 = vmatprep.subr.mxu0 0.0
        %6545 = vmatpush2.xpose.msra.mxu0 0.0
        %6546 = vmatprep.subr.mxu0 0.0
        %6547 = vmatpush2.xpose.msra.mxu0 0.0
        %6548 = vmatprep.subr.mxu0 0.0
        %6549 = vmatpush2.xpose.msra.mxu0 0.0
        %6550 = vmatprep.subr.mxu0 0.0
        %6551 = vmatpush2.xpose.msra.mxu0 0.0
        %6552 = vmatprep.subr.mxu0 0.0
        %6553 = vmatpush2.xpose.msra.mxu0 0.0
        %6554 = vmatprep.subr.mxu0 0.0
        %6555 = vmatpush2.xpose.msra.mxu0 0.0
        %6556 = vmatprep.subr.mxu0 0.0
        %6557 = vmatpush2.xpose.msra.mxu0 0.0
        %6558 = vmatprep.subr.mxu0 0.0
        %6559 = vmatpush2.xpose.msra.mxu0 0.0
        %6560 = vmatprep.subr.mxu0 0.0
        %6561 = vmatpush2.xpose.msra.mxu0 0.0
        %6562 = vmatprep.subr.mxu0 0.0
        %6563 = vmatpush2.xpose.msra.mxu0 0.0
        %6564 = vmatprep.subr.mxu0 0.0
        %6565 = vmatpush2.xpose.msra.mxu0 0.0
        %6566 = vmatprep.subr.mxu0 0.0
        %6567 = vmatpush2.xpose.msra.mxu0 0.0
        %6568 = vmatprep.mubr.f32.mxu0 0.0
        %6569 = vmatmul.mubr.f32.gmra.mxu0 %v6500
        %v6570 = vpop.f32.mrf.mxu0
        %v6571 = vadd.f32 0.0, %v6570
        %v6572 = vpop.f32.mrf.mxu0
        %6573 = vdwg.mxu0
        %v6574 = vsel %vm483, %v6247, 0
        %v6576 = vsel %vm483, %v6340, 0
        %6578 = vmatprep.subr.mxu0 0.0
        %6579 = vmatpush1.xpose.msra.mxu0 0.0
        %6580 = vmatprep.subr.mxu0 0.0
        %6581 = vmatpush1.xpose.msra.mxu0 0.0
        %6582 = vmatprep.subr.mxu0 0.0
        %6583 = vmatpush1.xpose.msra.mxu0 0.0
        %6584 = vmatprep.subr.mxu0 0.0
        %6585 = vmatpush1.xpose.msra.mxu0 0.0
        %6586 = vmatprep.subr.mxu0 0.0
        %6587 = vmatpush1.xpose.msra.mxu0 0.0
        %6588 = vmatprep.subr.mxu0 0.0
        %6589 = vmatpush1.xpose.msra.mxu0 0.0
        %6590 = vmatprep.subr.mxu0 0.0
        %6591 = vmatpush1.xpose.msra.mxu0 0.0
        %6592 = vmatprep.subr.mxu0 0.0
        %6593 = vmatpush1.xpose.msra.mxu0 0.0
        %6594 = vmatprep.subr.mxu0 0.0
        %6595 = vmatpush1.xpose.msra.mxu0 0.0
        %6596 = vmatprep.subr.mxu0 0.0
        %6597 = vmatpush1.xpose.msra.mxu0 0.0
        %6598 = vmatprep.subr.mxu0 0.0
        %6599 = vmatpush1.xpose.msra.mxu0 0.0
        %6600 = vmatprep.subr.mxu0 0.0
        %6601 = vmatpush1.xpose.msra.mxu0 0.0
        %6602 = vmatprep.subr.mxu0 0.0
        %6603 = vmatpush1.xpose.msra.mxu0 0.0
        %6604 = vmatprep.subr.mxu0 0.0
        %6605 = vmatpush1.xpose.msra.mxu0 0.0
        %6606 = vmatprep.subr.mxu0 0.0
        %6607 = vmatpush1.xpose.msra.mxu0 0.0
        %6608 = vmatprep.subr.mxu0 0.0
        %6609 = vmatpush1.xpose.msra.mxu0 %v6576
        %6610 = vmatprep.subr.mxu0 0.0
        %6611 = vmatpush2.xpose.msra.mxu0 0.0
        %6612 = vmatprep.subr.mxu0 0.0
        %6613 = vmatpush2.xpose.msra.mxu0 0.0
        %6614 = vmatprep.subr.mxu0 0.0
        %6615 = vmatpush2.xpose.msra.mxu0 0.0
        %6616 = vmatprep.subr.mxu0 0.0
        %6617 = vmatpush2.xpose.msra.mxu0 0.0
        %6618 = vmatprep.subr.mxu0 0.0
        %6619 = vmatpush2.xpose.msra.mxu0 0.0
        %6620 = vmatprep.subr.mxu0 0.0
        %6621 = vmatpush2.xpose.msra.mxu0 0.0
        %6622 = vmatprep.subr.mxu0 0.0
        %6623 = vmatpush2.xpose.msra.mxu0 0.0
        %6624 = vmatprep.subr.mxu0 0.0
        %6625 = vmatpush2.xpose.msra.mxu0 0.0
        %6626 = vmatprep.subr.mxu0 0.0
        %6627 = vmatpush2.xpose.msra.mxu0 0.0
        %6628 = vmatprep.subr.mxu0 0.0
        %6629 = vmatpush2.xpose.msra.mxu0 0.0
        %6630 = vmatprep.subr.mxu0 0.0
        %6631 = vmatpush2.xpose.msra.mxu0 0.0
        %6632 = vmatprep.subr.mxu0 0.0
        %6633 = vmatpush2.xpose.msra.mxu0 0.0
        %6634 = vmatprep.subr.mxu0 0.0
        %6635 = vmatpush2.xpose.msra.mxu0 0.0
        %6636 = vmatprep.subr.mxu0 0.0
        %6637 = vmatpush2.xpose.msra.mxu0 0.0
        %6638 = vmatprep.subr.mxu0 0.0
        %6639 = vmatpush2.xpose.msra.mxu0 0.0
        %6640 = vmatprep.subr.mxu0 0.0
        %6641 = vmatpush2.xpose.msra.mxu0 0.0
        %6642 = vmatprep.mubr.f32.mxu0 0.0
        %6643 = vmatmul.mubr.f32.gmra.mxu0 %v6574
        %v6644 = vpop.f32.mrf.mxu0
        %v6645 = vadd.f32 0.0, %v6644
        %v6646 = vpop.f32.mrf.mxu0
        %6647 = vdwg.mxu0
        %v6648 = vsel %vm483, %v6249, 0
        %v6650 = vsel %vm483, %v6342, 0
        %6652 = vmatprep.subr.mxu0 0.0
        %6653 = vmatpush1.xpose.msra.mxu0 0.0
        %6654 = vmatprep.subr.mxu0 0.0
        %6655 = vmatpush1.xpose.msra.mxu0 0.0
        %6656 = vmatprep.subr.mxu0 0.0
        %6657 = vmatpush1.xpose.msra.mxu0 0.0
        %6658 = vmatprep.subr.mxu0 0.0
        %6659 = vmatpush1.xpose.msra.mxu0 0.0
        %6660 = vmatprep.subr.mxu0 0.0
        %6661 = vmatpush1.xpose.msra.mxu0 0.0
        %6662 = vmatprep.subr.mxu0 0.0
        %6663 = vmatpush1.xpose.msra.mxu0 0.0
        %6664 = vmatprep.subr.mxu0 0.0
        %6665 = vmatpush1.xpose.msra.mxu0 0.0
        %6666 = vmatprep.subr.mxu0 0.0
        %6667 = vmatpush1.xpose.msra.mxu0 0.0
        %6668 = vmatprep.subr.mxu0 0.0
        %6669 = vmatpush1.xpose.msra.mxu0 0.0
        %6670 = vmatprep.subr.mxu0 0.0
        %6671 = vmatpush1.xpose.msra.mxu0 0.0
        %6672 = vmatprep.subr.mxu0 0.0
        %6673 = vmatpush1.xpose.msra.mxu0 0.0
        %6674 = vmatprep.subr.mxu0 0.0
        %6675 = vmatpush1.xpose.msra.mxu0 0.0
        %6676 = vmatprep.subr.mxu0 0.0
        %6677 = vmatpush1.xpose.msra.mxu0 0.0
        %6678 = vmatprep.subr.mxu0 0.0
        %6679 = vmatpush1.xpose.msra.mxu0 0.0
        %6680 = vmatprep.subr.mxu0 0.0
        %6681 = vmatpush1.xpose.msra.mxu0 0.0
        %6682 = vmatprep.subr.mxu0 0.0
        %6683 = vmatpush1.xpose.msra.mxu0 %v6650
        %6684 = vmatprep.subr.mxu0 0.0
        %6685 = vmatpush2.xpose.msra.mxu0 0.0
        %6686 = vmatprep.subr.mxu0 0.0
        %6687 = vmatpush2.xpose.msra.mxu0 0.0
        %6688 = vmatprep.subr.mxu0 0.0
        %6689 = vmatpush2.xpose.msra.mxu0 0.0
        %6690 = vmatprep.subr.mxu0 0.0
        %6691 = vmatpush2.xpose.msra.mxu0 0.0
        %6692 = vmatprep.subr.mxu0 0.0
        %6693 = vmatpush2.xpose.msra.mxu0 0.0
        %6694 = vmatprep.subr.mxu0 0.0
        %6695 = vmatpush2.xpose.msra.mxu0 0.0
        %6696 = vmatprep.subr.mxu0 0.0
        %6697 = vmatpush2.xpose.msra.mxu0 0.0
        %6698 = vmatprep.subr.mxu0 0.0
        %6699 = vmatpush2.xpose.msra.mxu0 0.0
        %6700 = vmatprep.subr.mxu0 0.0
        %6701 = vmatpush2.xpose.msra.mxu0 0.0
        %6702 = vmatprep.subr.mxu0 0.0
        %6703 = vmatpush2.xpose.msra.mxu0 0.0
        %6704 = vmatprep.subr.mxu0 0.0
        %6705 = vmatpush2.xpose.msra.mxu0 0.0
        %6706 = vmatprep.subr.mxu0 0.0
        %6707 = vmatpush2.xpose.msra.mxu0 0.0
        %6708 = vmatprep.subr.mxu0 0.0
        %6709 = vmatpush2.xpose.msra.mxu0 0.0
        %6710 = vmatprep.subr.mxu0 0.0
        %6711 = vmatpush2.xpose.msra.mxu0 0.0
        %6712 = vmatprep.subr.mxu0 0.0
        %6713 = vmatpush2.xpose.msra.mxu0 0.0
        %6714 = vmatprep.subr.mxu0 0.0
        %6715 = vmatpush2.xpose.msra.mxu0 0.0
        %6716 = vmatprep.mubr.f32.mxu0 0.0
        %6717 = vmatmul.mubr.f32.gmra.mxu0 %v6648
        %v6718 = vpop.f32.mrf.mxu0
        %v6719 = vadd.f32 0.0, %v6718
        %v6720 = vpop.f32.mrf.mxu0
        %6721 = vdwg.mxu0
        %v6722 = vsel %vm4024, %v6497, -inf
        %6723 = vmax.xlane.f32.xlu0 %v6722
        %v6724 = vpop.xlane.xlu0 %6723
        %v6725 = vsel %vm4024, %v6571, -inf
        %6726 = vmax.xlane.f32.xlu0 %v6725
        %v6727 = vpop.xlane.xlu0 %6726
        %v6728 = vsel %vm4024, %v6645, -inf
        %6729 = vmax.xlane.f32.xlu0 %v6728
        %v6730 = vpop.xlane.xlu0 %6729
        %v6731 = vsel %vm4024, %v6719, -inf
        %6732 = vmax.xlane.f32.xlu0 %v6731
        %v6733 = vpop.xlane.xlu0 %6732
        %v6734 = vsub.f32 %v6497, %v6724
        %v6735 = vsub.f32 %v6571, %v6727
        %v6736 = vsub.f32 %v6645, %v6730
        %v6737 = vsub.f32 %v6719, %v6733
        %v6738 = vmul.f32 %v6734, 1.442695
        %v6739 = vpow.pop %v6738
        %v6740 = vmul.f32 %v6735, 1.442695
        %v6741 = vpow.pop %v6740
        %v6742 = vmul.f32 %v6736, 1.442695
        %v6743 = vpow.pop %v6742
        %v6744 = vmul.f32 %v6737, 1.442695
        %v6745 = vpow.pop %v6744
        %v6746 = vsel %vm4024, %v6739, 0.0
        %6747 = vadd.xlane.f32.xlu0 %v6746
        %v6748 = vpop.xlane.xlu0 %6747
        %v6749 = vsel %vm4024, %v6741, 0.0
        %6750 = vadd.xlane.f32.xlu0 %v6749
        %v6751 = vpop.xlane.xlu0 %6750
        %v6752 = vsel %vm4024, %v6743, 0.0
        %6753 = vadd.xlane.f32.xlu0 %v6752
        %v6754 = vpop.xlane.xlu0 %6753
        %v6755 = vsel %vm4024, %v6745, 0.0
        %6756 = vadd.xlane.f32.xlu0 %v6755
        %v6757 = vpop.xlane.xlu0 %6756
        %v6758 = vrcp.pop %v6748
        %v6759 = vrcp.pop %v6751
        %v6760 = vrcp.pop %v6754
        %v6761 = vrcp.pop %v6757
        %v6762 = vmul.f32 %v6739, %v6758
        %v6763 = vmul.f32 %v6741, %v6759
        %v6764 = vmul.f32 %v6743, %v6760
        %v6765 = vmul.f32 %v6745, %v6761
        %v6767 = vsel %vm4024, %v6762, 0
        %6769 = vmatprep.subr.mxu0 0.0
        %6770 = vmatpush1.msra.mxu0 0.0
        %6771 = vmatprep.subr.mxu0 0.0
        %6772 = vmatpush1.msra.mxu0 0.0
        %6773 = vmatprep.subr.mxu0 0.0
        %6774 = vmatpush1.msra.mxu0 0.0
        %6775 = vmatprep.subr.mxu0 0.0
        %6776 = vmatpush1.msra.mxu0 0.0
        %6777 = vmatprep.subr.mxu0 0.0
        %6778 = vmatpush1.msra.mxu0 0.0
        %6779 = vmatprep.subr.mxu0 0.0
        %6780 = vmatpush1.msra.mxu0 0.0
        %6781 = vmatprep.subr.mxu0 0.0
        %6782 = vmatpush1.msra.mxu0 0.0
        %6783 = vmatprep.subr.mxu0 0.0
        %6784 = vmatpush1.msra.mxu0 0.0
        %6785 = vmatprep.subr.mxu0 0.0
        %6786 = vmatpush1.msra.mxu0 0.0
        %6787 = vmatprep.subr.mxu0 0.0
        %6788 = vmatpush1.msra.mxu0 0.0
        %6789 = vmatprep.subr.mxu0 0.0
        %6790 = vmatpush1.msra.mxu0 0.0
        %6791 = vmatprep.subr.mxu0 0.0
        %6792 = vmatpush1.msra.mxu0 0.0
        %6793 = vmatprep.subr.mxu0 0.0
        %6794 = vmatpush1.msra.mxu0 0.0
        %6795 = vmatprep.subr.mxu0 0.0
        %6796 = vmatpush1.msra.mxu0 0.0
        %6797 = vmatprep.subr.mxu0 0.0
        %6798 = vmatpush1.msra.mxu0 0.0
        %6799 = vmatprep.subr.mxu0 0.0
        %6800 = vmatpush1.msra.mxu0 %v6413
        %6801 = vmatprep.subr.mxu0 0.0
        %6802 = vmatpush2.msra.mxu0 0.0
        %6803 = vmatprep.subr.mxu0 0.0
        %6804 = vmatpush2.msra.mxu0 0.0
        %6805 = vmatprep.subr.mxu0 0.0
        %6806 = vmatpush2.msra.mxu0 0.0
        %6807 = vmatprep.subr.mxu0 0.0
        %6808 = vmatpush2.msra.mxu0 0.0
        %6809 = vmatprep.subr.mxu0 0.0
        %6810 = vmatpush2.msra.mxu0 0.0
        %6811 = vmatprep.subr.mxu0 0.0
        %6812 = vmatpush2.msra.mxu0 0.0
        %6813 = vmatprep.subr.mxu0 0.0
        %6814 = vmatpush2.msra.mxu0 0.0
        %6815 = vmatprep.subr.mxu0 0.0
        %6816 = vmatpush2.msra.mxu0 0.0
        %6817 = vmatprep.subr.mxu0 0.0
        %6818 = vmatpush2.msra.mxu0 0.0
        %6819 = vmatprep.subr.mxu0 0.0
        %6820 = vmatpush2.msra.mxu0 0.0
        %6821 = vmatprep.subr.mxu0 0.0
        %6822 = vmatpush2.msra.mxu0 0.0
        %6823 = vmatprep.subr.mxu0 0.0
        %6824 = vmatpush2.msra.mxu0 0.0
        %6825 = vmatprep.subr.mxu0 0.0
        %6826 = vmatpush2.msra.mxu0 0.0
        %6827 = vmatprep.subr.mxu0 0.0
        %6828 = vmatpush2.msra.mxu0 0.0
        %6829 = vmatprep.subr.mxu0 0.0
        %6830 = vmatpush2.msra.mxu0 0.0
        %6831 = vmatprep.subr.mxu0 0.0
        %6832 = vmatpush2.msra.mxu0 0.0
        %6833 = vmatprep.mubr.f32.mxu0 0.0
        %6834 = vmatmul.mubr.f32.gmra.mxu0 %v6767
        %v6835 = vpop.f32.mrf.mxu0
        %v6836 = vadd.f32 0.0, %v6835
        %v6837 = vpop.f32.mrf.mxu0
        %6838 = vdwg.mxu0
        %v6840 = vsel %vm4024, %v6763, 0
        %6842 = vmatprep.subr.mxu0 0.0
        %6843 = vmatpush1.msra.mxu0 0.0
        %6844 = vmatprep.subr.mxu0 0.0
        %6845 = vmatpush1.msra.mxu0 0.0
        %6846 = vmatprep.subr.mxu0 0.0
        %6847 = vmatpush1.msra.mxu0 0.0
        %6848 = vmatprep.subr.mxu0 0.0
        %6849 = vmatpush1.msra.mxu0 0.0
        %6850 = vmatprep.subr.mxu0 0.0
        %6851 = vmatpush1.msra.mxu0 0.0
        %6852 = vmatprep.subr.mxu0 0.0
        %6853 = vmatpush1.msra.mxu0 0.0
        %6854 = vmatprep.subr.mxu0 0.0
        %6855 = vmatpush1.msra.mxu0 0.0
        %6856 = vmatprep.subr.mxu0 0.0
        %6857 = vmatpush1.msra.mxu0 0.0
        %6858 = vmatprep.subr.mxu0 0.0
        %6859 = vmatpush1.msra.mxu0 0.0
        %6860 = vmatprep.subr.mxu0 0.0
        %6861 = vmatpush1.msra.mxu0 0.0
        %6862 = vmatprep.subr.mxu0 0.0
        %6863 = vmatpush1.msra.mxu0 0.0
        %6864 = vmatprep.subr.mxu0 0.0
        %6865 = vmatpush1.msra.mxu0 0.0
        %6866 = vmatprep.subr.mxu0 0.0
        %6867 = vmatpush1.msra.mxu0 0.0
        %6868 = vmatprep.subr.mxu0 0.0
        %6869 = vmatpush1.msra.mxu0 0.0
        %6870 = vmatprep.subr.mxu0 0.0
        %6871 = vmatpush1.msra.mxu0 0.0
        %6872 = vmatprep.subr.mxu0 0.0
        %6873 = vmatpush1.msra.mxu0 %v6418
        %6874 = vmatprep.subr.mxu0 0.0
        %6875 = vmatpush2.msra.mxu0 0.0
        %6876 = vmatprep.subr.mxu0 0.0
        %6877 = vmatpush2.msra.mxu0 0.0
        %6878 = vmatprep.subr.mxu0 0.0
        %6879 = vmatpush2.msra.mxu0 0.0
        %6880 = vmatprep.subr.mxu0 0.0
        %6881 = vmatpush2.msra.mxu0 0.0
        %6882 = vmatprep.subr.mxu0 0.0
        %6883 = vmatpush2.msra.mxu0 0.0
        %6884 = vmatprep.subr.mxu0 0.0
        %6885 = vmatpush2.msra.mxu0 0.0
        %6886 = vmatprep.subr.mxu0 0.0
        %6887 = vmatpush2.msra.mxu0 0.0
        %6888 = vmatprep.subr.mxu0 0.0
        %6889 = vmatpush2.msra.mxu0 0.0
        %6890 = vmatprep.subr.mxu0 0.0
        %6891 = vmatpush2.msra.mxu0 0.0
        %6892 = vmatprep.subr.mxu0 0.0
        %6893 = vmatpush2.msra.mxu0 0.0
        %6894 = vmatprep.subr.mxu0 0.0
        %6895 = vmatpush2.msra.mxu0 0.0
        %6896 = vmatprep.subr.mxu0 0.0
        %6897 = vmatpush2.msra.mxu0 0.0
        %6898 = vmatprep.subr.mxu0 0.0
        %6899 = vmatpush2.msra.mxu0 0.0
        %6900 = vmatprep.subr.mxu0 0.0
        %6901 = vmatpush2.msra.mxu0 0.0
        %6902 = vmatprep.subr.mxu0 0.0
        %6903 = vmatpush2.msra.mxu0 0.0
        %6904 = vmatprep.subr.mxu0 0.0
        %6905 = vmatpush2.msra.mxu0 0.0
        %6906 = vmatprep.mubr.f32.mxu0 0.0
        %6907 = vmatmul.mubr.f32.gmra.mxu0 %v6840
        %v6908 = vpop.f32.mrf.mxu0
        %v6909 = vadd.f32 0.0, %v6908
        %v6910 = vpop.f32.mrf.mxu0
        %6911 = vdwg.mxu0
        %v6913 = vsel %vm4024, %v6764, 0
        %6915 = vmatprep.subr.mxu0 0.0
        %6916 = vmatpush1.msra.mxu0 0.0
        %6917 = vmatprep.subr.mxu0 0.0
        %6918 = vmatpush1.msra.mxu0 0.0
        %6919 = vmatprep.subr.mxu0 0.0
        %6920 = vmatpush1.msra.mxu0 0.0
        %6921 = vmatprep.subr.mxu0 0.0
        %6922 = vmatpush1.msra.mxu0 0.0
        %6923 = vmatprep.subr.mxu0 0.0
        %6924 = vmatpush1.msra.mxu0 0.0
        %6925 = vmatprep.subr.mxu0 0.0
        %6926 = vmatpush1.msra.mxu0 0.0
        %6927 = vmatprep.subr.mxu0 0.0
        %6928 = vmatpush1.msra.mxu0 0.0
        %6929 = vmatprep.subr.mxu0 0.0
        %6930 = vmatpush1.msra.mxu0 0.0
        %6931 = vmatprep.subr.mxu0 0.0
        %6932 = vmatpush1.msra.mxu0 0.0
        %6933 = vmatprep.subr.mxu0 0.0
        %6934 = vmatpush1.msra.mxu0 0.0
        %6935 = vmatprep.subr.mxu0 0.0
        %6936 = vmatpush1.msra.mxu0 0.0
        %6937 = vmatprep.subr.mxu0 0.0
        %6938 = vmatpush1.msra.mxu0 0.0
        %6939 = vmatprep.subr.mxu0 0.0
        %6940 = vmatpush1.msra.mxu0 0.0
        %6941 = vmatprep.subr.mxu0 0.0
        %6942 = vmatpush1.msra.mxu0 0.0
        %6943 = vmatprep.subr.mxu0 0.0
        %6944 = vmatpush1.msra.mxu0 0.0
        %6945 = vmatprep.subr.mxu0 0.0
        %6946 = vmatpush1.msra.mxu0 %v6421
        %6947 = vmatprep.subr.mxu0 0.0
        %6948 = vmatpush2.msra.mxu0 0.0
        %6949 = vmatprep.subr.mxu0 0.0
        %6950 = vmatpush2.msra.mxu0 0.0
        %6951 = vmatprep.subr.mxu0 0.0
        %6952 = vmatpush2.msra.mxu0 0.0
        %6953 = vmatprep.subr.mxu0 0.0
        %6954 = vmatpush2.msra.mxu0 0.0
        %6955 = vmatprep.subr.mxu0 0.0
        %6956 = vmatpush2.msra.mxu0 0.0
        %6957 = vmatprep.subr.mxu0 0.0
        %6958 = vmatpush2.msra.mxu0 0.0
        %6959 = vmatprep.subr.mxu0 0.0
        %6960 = vmatpush2.msra.mxu0 0.0
        %6961 = vmatprep.subr.mxu0 0.0
        %6962 = vmatpush2.msra.mxu0 0.0
        %6963 = vmatprep.subr.mxu0 0.0
        %6964 = vmatpush2.msra.mxu0 0.0
        %6965 = vmatprep.subr.mxu0 0.0
        %6966 = vmatpush2.msra.mxu0 0.0
        %6967 = vmatprep.subr.mxu0 0.0
        %6968 = vmatpush2.msra.mxu0 0.0
        %6969 = vmatprep.subr.mxu0 0.0
        %6970 = vmatpush2.msra.mxu0 0.0
        %6971 = vmatprep.subr.mxu0 0.0
        %6972 = vmatpush2.msra.mxu0 0.0
        %6973 = vmatprep.subr.mxu0 0.0
        %6974 = vmatpush2.msra.mxu0 0.0
        %6975 = vmatprep.subr.mxu0 0.0
        %6976 = vmatpush2.msra.mxu0 0.0
        %6977 = vmatprep.subr.mxu0 0.0
        %6978 = vmatpush2.msra.mxu0 0.0
        %6979 = vmatprep.mubr.f32.mxu0 0.0
        %6980 = vmatmul.mubr.f32.gmra.mxu0 %v6913
        %v6981 = vpop.f32.mrf.mxu0
        %v6982 = vadd.f32 0.0, %v6981
        %v6983 = vpop.f32.mrf.mxu0
        %6984 = vdwg.mxu0
        %v6986 = vsel %vm4024, %v6765, 0
        %6988 = vmatprep.subr.mxu0 0.0
        %6989 = vmatpush1.msra.mxu0 0.0
        %6990 = vmatprep.subr.mxu0 0.0
        %6991 = vmatpush1.msra.mxu0 0.0
        %6992 = vmatprep.subr.mxu0 0.0
        %6993 = vmatpush1.msra.mxu0 0.0
        %6994 = vmatprep.subr.mxu0 0.0
        %6995 = vmatpush1.msra.mxu0 0.0
        %6996 = vmatprep.subr.mxu0 0.0
        %6997 = vmatpush1.msra.mxu0 0.0
        %6998 = vmatprep.subr.mxu0 0.0
        %6999 = vmatpush1.msra.mxu0 0.0
        %7000 = vmatprep.subr.mxu0 0.0
        %7001 = vmatpush1.msra.mxu0 0.0
        %7002 = vmatprep.subr.mxu0 0.0
        %7003 = vmatpush1.msra.mxu0 0.0
        %7004 = vmatprep.subr.mxu0 0.0
        %7005 = vmatpush1.msra.mxu0 0.0
        %7006 = vmatprep.subr.mxu0 0.0
        %7007 = vmatpush1.msra.mxu0 0.0
        %7008 = vmatprep.subr.mxu0 0.0
        %7009 = vmatpush1.msra.mxu0 0.0
        %7010 = vmatprep.subr.mxu0 0.0
        %7011 = vmatpush1.msra.mxu0 0.0
        %7012 = vmatprep.subr.mxu0 0.0
        %7013 = vmatpush1.msra.mxu0 0.0
        %7014 = vmatprep.subr.mxu0 0.0
        %7015 = vmatpush1.msra.mxu0 0.0
        %7016 = vmatprep.subr.mxu0 0.0
        %7017 = vmatpush1.msra.mxu0 0.0
        %7018 = vmatprep.subr.mxu0 0.0
        %7019 = vmatpush1.msra.mxu0 %v6424
        %7020 = vmatprep.subr.mxu0 0.0
        %7021 = vmatpush2.msra.mxu0 0.0
        %7022 = vmatprep.subr.mxu0 0.0
        %7023 = vmatpush2.msra.mxu0 0.0
        %7024 = vmatprep.subr.mxu0 0.0
        %7025 = vmatpush2.msra.mxu0 0.0
        %7026 = vmatprep.subr.mxu0 0.0
        %7027 = vmatpush2.msra.mxu0 0.0
        %7028 = vmatprep.subr.mxu0 0.0
        %7029 = vmatpush2.msra.mxu0 0.0
        %7030 = vmatprep.subr.mxu0 0.0
        %7031 = vmatpush2.msra.mxu0 0.0
        %7032 = vmatprep.subr.mxu0 0.0
        %7033 = vmatpush2.msra.mxu0 0.0
        %7034 = vmatprep.subr.mxu0 0.0
        %7035 = vmatpush2.msra.mxu0 0.0
        %7036 = vmatprep.subr.mxu0 0.0
        %7037 = vmatpush2.msra.mxu0 0.0
        %7038 = vmatprep.subr.mxu0 0.0
        %7039 = vmatpush2.msra.mxu0 0.0
        %7040 = vmatprep.subr.mxu0 0.0
        %7041 = vmatpush2.msra.mxu0 0.0
        %7042 = vmatprep.subr.mxu0 0.0
        %7043 = vmatpush2.msra.mxu0 0.0
        %7044 = vmatprep.subr.mxu0 0.0
        %7045 = vmatpush2.msra.mxu0 0.0
        %7046 = vmatprep.subr.mxu0 0.0
        %7047 = vmatpush2.msra.mxu0 0.0
        %7048 = vmatprep.subr.mxu0 0.0
        %7049 = vmatpush2.msra.mxu0 0.0
        %7050 = vmatprep.subr.mxu0 0.0
        %7051 = vmatpush2.msra.mxu0 0.0
        %7052 = vmatprep.mubr.f32.mxu0 0.0
        %7053 = vmatmul.mubr.f32.gmra.mxu0 %v6986
        %v7054 = vpop.f32.mrf.mxu0
        %v7055 = vadd.f32 0.0, %v7054
        %v7056 = vpop.f32.mrf.mxu0
        %7057 = vdwg.mxu0
        %7060 = vrot.lane.b32.xlu0 %v6161, 64
        %v7061 = vpop.permute.xlu0 %7060
        %7062 = vrot.lane.b32.xlu0 %v6162, 64
        %v7063 = vpop.permute.xlu0 %7062
        %v7067 = vsel %vm483, %v6836, 0
        %7069 = vmatprep.subr.mxu0 0.0
        %7070 = vmatpush1.msra.mxu0 0.0
        %7071 = vmatprep.subr.mxu0 0.0
        %7072 = vmatpush1.msra.mxu0 0.0
        %7073 = vmatprep.subr.mxu0 0.0
        %7074 = vmatpush1.msra.mxu0 0.0
        %7075 = vmatprep.subr.mxu0 0.0
        %7076 = vmatpush1.msra.mxu0 0.0
        %7077 = vmatprep.subr.mxu0 0.0
        %7078 = vmatpush1.msra.mxu0 0.0
        %7079 = vmatprep.subr.mxu0 0.0
        %7080 = vmatpush1.msra.mxu0 0.0
        %7081 = vmatprep.subr.mxu0 0.0
        %7082 = vmatpush1.msra.mxu0 0.0
        %7083 = vmatprep.subr.mxu0 0.0
        %7084 = vmatpush1.msra.mxu0 0.0
        %7085 = vmatprep.subr.mxu0 0.0
        %7086 = vmatpush1.msra.mxu0 0.0
        %7087 = vmatprep.subr.mxu0 0.0
        %7088 = vmatpush1.msra.mxu0 0.0
        %7089 = vmatprep.subr.mxu0 0.0
        %7090 = vmatpush1.msra.mxu0 0.0
        %7091 = vmatprep.subr.mxu0 0.0
        %7092 = vmatpush1.msra.mxu0 0.0
        %7093 = vmatprep.subr.mxu0 0.0
        %7094 = vmatpush1.msra.mxu0 0.0
        %7095 = vmatprep.subr.mxu0 0.0
        %7096 = vmatpush1.msra.mxu0 0.0
        %7097 = vmatprep.subr.mxu0 0.0
        %7098 = vmatpush1.msra.mxu0 %v7063
        %7099 = vmatprep.subr.mxu0 0.0
        %7100 = vmatpush1.msra.mxu0 %v7061
        %7101 = vmatprep.subr.mxu0 0.0
        %7102 = vmatpush2.msra.mxu0 0.0
        %7103 = vmatprep.subr.mxu0 0.0
        %7104 = vmatpush2.msra.mxu0 0.0
        %7105 = vmatprep.subr.mxu0 0.0
        %7106 = vmatpush2.msra.mxu0 0.0
        %7107 = vmatprep.subr.mxu0 0.0
        %7108 = vmatpush2.msra.mxu0 0.0
        %7109 = vmatprep.subr.mxu0 0.0
        %7110 = vmatpush2.msra.mxu0 0.0
        %7111 = vmatprep.subr.mxu0 0.0
        %7112 = vmatpush2.msra.mxu0 0.0
        %7113 = vmatprep.subr.mxu0 0.0
        %7114 = vmatpush2.msra.mxu0 0.0
        %7115 = vmatprep.subr.mxu0 0.0
        %7116 = vmatpush2.msra.mxu0 0.0
        %7117 = vmatprep.subr.mxu0 0.0
        %7118 = vmatpush2.msra.mxu0 0.0
        %7119 = vmatprep.subr.mxu0 0.0
        %7120 = vmatpush2.msra.mxu0 0.0
        %7121 = vmatprep.subr.mxu0 0.0
        %7122 = vmatpush2.msra.mxu0 0.0
        %7123 = vmatprep.subr.mxu0 0.0
        %7124 = vmatpush2.msra.mxu0 0.0
        %7125 = vmatprep.subr.mxu0 0.0
        %7126 = vmatpush2.msra.mxu0 0.0
        %7127 = vmatprep.subr.mxu0 0.0
        %7128 = vmatpush2.msra.mxu0 0.0
        %7129 = vmatprep.subr.mxu0 0.0
        %7130 = vmatpush2.msra.mxu0 0.0
        %7131 = vmatprep.subr.mxu0 0.0
        %7132 = vmatpush2.msra.mxu0 0.0
        %7133 = vmatprep.mubr.f32.mxu0 0.0
        %7134 = vmatmul.mubr.f32.gmra.mxu0 %v7067
        %v7135 = vpop.f32.mrf.mxu0
        %v7136 = vadd.f32 0.0, %v7135
        %v7137 = vpop.f32.mrf.mxu0
        %7138 = vdwg.mxu0
        %7141 = vrot.lane.b32.xlu0 %v6163, 64
        %v7142 = vpop.permute.xlu0 %7141
        %7143 = vrot.lane.b32.xlu0 %v6164, 64
        %v7144 = vpop.permute.xlu0 %7143
        %v7148 = vsel %vm483, %v6909, 0
        %7150 = vmatprep.subr.mxu0 0.0
        %7151 = vmatpush1.msra.mxu0 0.0
        %7152 = vmatprep.subr.mxu0 0.0
        %7153 = vmatpush1.msra.mxu0 0.0
        %7154 = vmatprep.subr.mxu0 0.0
        %7155 = vmatpush1.msra.mxu0 0.0
        %7156 = vmatprep.subr.mxu0 0.0
        %7157 = vmatpush1.msra.mxu0 0.0
        %7158 = vmatprep.subr.mxu0 0.0
        %7159 = vmatpush1.msra.mxu0 0.0
        %7160 = vmatprep.subr.mxu0 0.0
        %7161 = vmatpush1.msra.mxu0 0.0
        %7162 = vmatprep.subr.mxu0 0.0
        %7163 = vmatpush1.msra.mxu0 0.0
        %7164 = vmatprep.subr.mxu0 0.0
        %7165 = vmatpush1.msra.mxu0 0.0
        %7166 = vmatprep.subr.mxu0 0.0
        %7167 = vmatpush1.msra.mxu0 0.0
        %7168 = vmatprep.subr.mxu0 0.0
        %7169 = vmatpush1.msra.mxu0 0.0
        %7170 = vmatprep.subr.mxu0 0.0
        %7171 = vmatpush1.msra.mxu0 0.0
        %7172 = vmatprep.subr.mxu0 0.0
        %7173 = vmatpush1.msra.mxu0 0.0
        %7174 = vmatprep.subr.mxu0 0.0
        %7175 = vmatpush1.msra.mxu0 0.0
        %7176 = vmatprep.subr.mxu0 0.0
        %7177 = vmatpush1.msra.mxu0 0.0
        %7178 = vmatprep.subr.mxu0 0.0
        %7179 = vmatpush1.msra.mxu0 %v7144
        %7180 = vmatprep.subr.mxu0 0.0
        %7181 = vmatpush1.msra.mxu0 %v7142
        %7182 = vmatprep.subr.mxu0 0.0
        %7183 = vmatpush2.msra.mxu0 0.0
        %7184 = vmatprep.subr.mxu0 0.0
        %7185 = vmatpush2.msra.mxu0 0.0
        %7186 = vmatprep.subr.mxu0 0.0
        %7187 = vmatpush2.msra.mxu0 0.0
        %7188 = vmatprep.subr.mxu0 0.0
        %7189 = vmatpush2.msra.mxu0 0.0
        %7190 = vmatprep.subr.mxu0 0.0
        %7191 = vmatpush2.msra.mxu0 0.0
        %7192 = vmatprep.subr.mxu0 0.0
        %7193 = vmatpush2.msra.mxu0 0.0
        %7194 = vmatprep.subr.mxu0 0.0
        %7195 = vmatpush2.msra.mxu0 0.0
        %7196 = vmatprep.subr.mxu0 0.0
        %7197 = vmatpush2.msra.mxu0 0.0
        %7198 = vmatprep.subr.mxu0 0.0
        %7199 = vmatpush2.msra.mxu0 0.0
        %7200 = vmatprep.subr.mxu0 0.0
        %7201 = vmatpush2.msra.mxu0 0.0
        %7202 = vmatprep.subr.mxu0 0.0
        %7203 = vmatpush2.msra.mxu0 0.0
        %7204 = vmatprep.subr.mxu0 0.0
        %7205 = vmatpush2.msra.mxu0 0.0
        %7206 = vmatprep.subr.mxu0 0.0
        %7207 = vmatpush2.msra.mxu0 0.0
        %7208 = vmatprep.subr.mxu0 0.0
        %7209 = vmatpush2.msra.mxu0 0.0
        %7210 = vmatprep.subr.mxu0 0.0
        %7211 = vmatpush2.msra.mxu0 0.0
        %7212 = vmatprep.subr.mxu0 0.0
        %7213 = vmatpush2.msra.mxu0 0.0
        %7214 = vmatprep.mubr.f32.mxu0 0.0
        %7215 = vmatmul.mubr.f32.gmra.mxu0 %v7148
        %v7216 = vpop.f32.mrf.mxu0
        %v7217 = vadd.f32 0.0, %v7216
        %v7218 = vpop.f32.mrf.mxu0
        %7219 = vdwg.mxu0
        %7222 = vrot.lane.b32.xlu0 %v6165, 64
        %v7223 = vpop.permute.xlu0 %7222
        %7224 = vrot.lane.b32.xlu0 %v6166, 64
        %v7225 = vpop.permute.xlu0 %7224
        %v7229 = vsel %vm483, %v6982, 0
        %7231 = vmatprep.subr.mxu0 0.0
        %7232 = vmatpush1.msra.mxu0 0.0
        %7233 = vmatprep.subr.mxu0 0.0
        %7234 = vmatpush1.msra.mxu0 0.0
        %7235 = vmatprep.subr.mxu0 0.0
        %7236 = vmatpush1.msra.mxu0 0.0
        %7237 = vmatprep.subr.mxu0 0.0
        %7238 = vmatpush1.msra.mxu0 0.0
        %7239 = vmatprep.subr.mxu0 0.0
        %7240 = vmatpush1.msra.mxu0 0.0
        %7241 = vmatprep.subr.mxu0 0.0
        %7242 = vmatpush1.msra.mxu0 0.0
        %7243 = vmatprep.subr.mxu0 0.0
        %7244 = vmatpush1.msra.mxu0 0.0
        %7245 = vmatprep.subr.mxu0 0.0
        %7246 = vmatpush1.msra.mxu0 0.0
        %7247 = vmatprep.subr.mxu0 0.0
        %7248 = vmatpush1.msra.mxu0 0.0
        %7249 = vmatprep.subr.mxu0 0.0
        %7250 = vmatpush1.msra.mxu0 0.0
        %7251 = vmatprep.subr.mxu0 0.0
        %7252 = vmatpush1.msra.mxu0 0.0
        %7253 = vmatprep.subr.mxu0 0.0
        %7254 = vmatpush1.msra.mxu0 0.0
        %7255 = vmatprep.subr.mxu0 0.0
        %7256 = vmatpush1.msra.mxu0 0.0
        %7257 = vmatprep.subr.mxu0 0.0
        %7258 = vmatpush1.msra.mxu0 0.0
        %7259 = vmatprep.subr.mxu0 0.0
        %7260 = vmatpush1.msra.mxu0 %v7225
        %7261 = vmatprep.subr.mxu0 0.0
        %7262 = vmatpush1.msra.mxu0 %v7223
        %7263 = vmatprep.subr.mxu0 0.0
        %7264 = vmatpush2.msra.mxu0 0.0
        %7265 = vmatprep.subr.mxu0 0.0
        %7266 = vmatpush2.msra.mxu0 0.0
        %7267 = vmatprep.subr.mxu0 0.0
        %7268 = vmatpush2.msra.mxu0 0.0
        %7269 = vmatprep.subr.mxu0 0.0
        %7270 = vmatpush2.msra.mxu0 0.0
        %7271 = vmatprep.subr.mxu0 0.0
        %7272 = vmatpush2.msra.mxu0 0.0
        %7273 = vmatprep.subr.mxu0 0.0
        %7274 = vmatpush2.msra.mxu0 0.0
        %7275 = vmatprep.subr.mxu0 0.0
        %7276 = vmatpush2.msra.mxu0 0.0
        %7277 = vmatprep.subr.mxu0 0.0
        %7278 = vmatpush2.msra.mxu0 0.0
        %7279 = vmatprep.subr.mxu0 0.0
        %7280 = vmatpush2.msra.mxu0 0.0
        %7281 = vmatprep.subr.mxu0 0.0
        %7282 = vmatpush2.msra.mxu0 0.0
        %7283 = vmatprep.subr.mxu0 0.0
        %7284 = vmatpush2.msra.mxu0 0.0
        %7285 = vmatprep.subr.mxu0 0.0
        %7286 = vmatpush2.msra.mxu0 0.0
        %7287 = vmatprep.subr.mxu0 0.0
        %7288 = vmatpush2.msra.mxu0 0.0
        %7289 = vmatprep.subr.mxu0 0.0
        %7290 = vmatpush2.msra.mxu0 0.0
        %7291 = vmatprep.subr.mxu0 0.0
        %7292 = vmatpush2.msra.mxu0 0.0
        %7293 = vmatprep.subr.mxu0 0.0
        %7294 = vmatpush2.msra.mxu0 0.0
        %7295 = vmatprep.mubr.f32.mxu0 0.0
        %7296 = vmatmul.mubr.f32.gmra.mxu0 %v7229
        %v7297 = vpop.f32.mrf.mxu0
        %v7298 = vadd.f32 0.0, %v7297
        %v7299 = vpop.f32.mrf.mxu0
        %7300 = vdwg.mxu0
        %7303 = vrot.lane.b32.xlu0 %v6167, 64
        %v7304 = vpop.permute.xlu0 %7303
        %7305 = vrot.lane.b32.xlu0 %v6168, 64
        %v7306 = vpop.permute.xlu0 %7305
        %v7310 = vsel %vm483, %v7055, 0
        %7312 = vmatprep.subr.mxu0 0.0
        %7313 = vmatpush1.msra.mxu0 0.0
        %7314 = vmatprep.subr.mxu0 0.0
        %7315 = vmatpush1.msra.mxu0 0.0
        %7316 = vmatprep.subr.mxu0 0.0
        %7317 = vmatpush1.msra.mxu0 0.0
        %7318 = vmatprep.subr.mxu0 0.0
        %7319 = vmatpush1.msra.mxu0 0.0
        %7320 = vmatprep.subr.mxu0 0.0
        %7321 = vmatpush1.msra.mxu0 0.0
        %7322 = vmatprep.subr.mxu0 0.0
        %7323 = vmatpush1.msra.mxu0 0.0
        %7324 = vmatprep.subr.mxu0 0.0
        %7325 = vmatpush1.msra.mxu0 0.0
        %7326 = vmatprep.subr.mxu0 0.0
        %7327 = vmatpush1.msra.mxu0 0.0
        %7328 = vmatprep.subr.mxu0 0.0
        %7329 = vmatpush1.msra.mxu0 0.0
        %7330 = vmatprep.subr.mxu0 0.0
        %7331 = vmatpush1.msra.mxu0 0.0
        %7332 = vmatprep.subr.mxu0 0.0
        %7333 = vmatpush1.msra.mxu0 0.0
        %7334 = vmatprep.subr.mxu0 0.0
        %7335 = vmatpush1.msra.mxu0 0.0
        %7336 = vmatprep.subr.mxu0 0.0
        %7337 = vmatpush1.msra.mxu0 0.0
        %7338 = vmatprep.subr.mxu0 0.0
        %7339 = vmatpush1.msra.mxu0 0.0
        %7340 = vmatprep.subr.mxu0 0.0
        %7341 = vmatpush1.msra.mxu0 %v7306
        %7342 = vmatprep.subr.mxu0 0.0
        %7343 = vmatpush1.msra.mxu0 %v7304
        %7344 = vmatprep.subr.mxu0 0.0
        %7345 = vmatpush2.msra.mxu0 0.0
        %7346 = vmatprep.subr.mxu0 0.0
        %7347 = vmatpush2.msra.mxu0 0.0
        %7348 = vmatprep.subr.mxu0 0.0
        %7349 = vmatpush2.msra.mxu0 0.0
        %7350 = vmatprep.subr.mxu0 0.0
        %7351 = vmatpush2.msra.mxu0 0.0
        %7352 = vmatprep.subr.mxu0 0.0
        %7353 = vmatpush2.msra.mxu0 0.0
        %7354 = vmatprep.subr.mxu0 0.0
        %7355 = vmatpush2.msra.mxu0 0.0
        %7356 = vmatprep.subr.mxu0 0.0
        %7357 = vmatpush2.msra.mxu0 0.0
        %7358 = vmatprep.subr.mxu0 0.0
        %7359 = vmatpush2.msra.mxu0 0.0
        %7360 = vmatprep.subr.mxu0 0.0
        %7361 = vmatpush2.msra.mxu0 0.0
        %7362 = vmatprep.subr.mxu0 0.0
        %7363 = vmatpush2.msra.mxu0 0.0
        %7364 = vmatprep.subr.mxu0 0.0
        %7365 = vmatpush2.msra.mxu0 0.0
        %7366 = vmatprep.subr.mxu0 0.0
        %7367 = vmatpush2.msra.mxu0 0.0
        %7368 = vmatprep.subr.mxu0 0.0
        %7369 = vmatpush2.msra.mxu0 0.0
        %7370 = vmatprep.subr.mxu0 0.0
        %7371 = vmatpush2.msra.mxu0 0.0
        %7372 = vmatprep.subr.mxu0 0.0
        %7373 = vmatpush2.msra.mxu0 0.0
        %7374 = vmatprep.subr.mxu0 0.0
        %7375 = vmatpush2.msra.mxu0 0.0
        %7376 = vmatprep.mubr.f32.mxu0 0.0
        %7377 = vmatmul.mubr.f32.gmra.mxu0 %v7310
        %v7378 = vpop.f32.mrf.mxu0
        %v7379 = vadd.f32 0.0, %v7378
        %v7380 = vpop.f32.mrf.mxu0
        %7381 = vdwg.mxu0
        %v7382 = vsel %vm322, %v7136, 0.0
        %v7383 = vsel %vm322, %v7217, 0.0
        %v7384 = vadd.f32 %v7382, %v7383
        %v7385 = vsel %vm322, %v7298, 0.0
        %v7386 = vadd.f32 %v7384, %v7385
        %v7387 = vsel %vm322, %v7379, 0.0
        %v7388 = vadd.f32 %v7386, %v7387
        %v7389 = vadd.f32 %v6070, %v7388
        %v7390 = vld [vmem:[%s5 + $0x14] sm:$0x1]
        %v7391 = vld [vmem:[%s5 + $0x15] sm:$0x1]
        %v7392 = vsel %vm322, %v7389, 0.0
        %7393 = vadd.xlane.f32.xlu0 %v7392
        %v7394 = vpop.xlane.xlu0 %7393
        %v7395 = vmul.f32 %v7394, %v329
        %v7396 = vsub.f32 %v7389, %v7395
        %v7397 = vmul.f32 %v7396, %v7396
        %v7398 = vsel %vm322, %v7397, 0.0
        %7399 = vadd.xlane.f32.xlu0 %v7398
        %v7400 = vpop.xlane.xlu0 %7399
        %v7401 = vmul.f32 %v7400, %v329
        %v7402 = vadd.f32 %v7401, 1e-05
        %v7403 = vrsqrt.pop %v7402
        %v7404 = vmul.f32 %v7396, %v7403
        %v7405 = vlaneseq
        %v7406 = vshrl.u32 %v7405, 7
        %v7407 = vsub.s32 0, %v7406
        %v7408 = vrot.slane %v7390, %v7407
        %v7409 = vmul.f32 %v7404, %v7408
        %v7410 = vlaneseq
        %v7411 = vshrl.u32 %v7410, 7
        %v7412 = vsub.s32 0, %v7411
        %v7413 = vrot.slane %v7391, %v7412
        %v7414 = vadd.f32 %v7409, %v7413
        %7415 = vmatprep.subr.mxu0 0.0
        %7416 = vmatpush1.msra.mxu0 0.0
        %7417 = vmatprep.subr.mxu0 0.0
        %7418 = vmatpush1.msra.mxu0 0.0
        %7419 = vmatprep.subr.mxu0 0.0
        %7420 = vmatpush1.msra.mxu0 0.0
        %7421 = vmatprep.subr.mxu0 0.0
        %7422 = vmatpush1.msra.mxu0 0.0
        %7423 = vmatprep.subr.mxu0 0.0
        %7424 = vmatpush1.msra.mxu0 0.0
        %7425 = vmatprep.subr.mxu0 0.0
        %7426 = vmatpush1.msra.mxu0 0.0
        %7427 = vmatprep.subr.mxu0 0.0
        %7428 = vmatpush1.msra.mxu0 0.0
        %7429 = vmatprep.subr.mxu0 0.0
        %7430 = vmatpush1.msra.mxu0 0.0
        %7431 = vmatprep.subr.mxu0 0.0
        %7432 = vmatpush1.msra.mxu0 0.0
        %7433 = vmatprep.subr.mxu0 0.0
        %7434 = vmatpush1.msra.mxu0 0.0
        %7435 = vmatprep.subr.mxu0 0.0
        %7436 = vmatpush1.msra.mxu0 0.0
        %7437 = vmatprep.subr.mxu0 0.0
        %7438 = vmatpush1.msra.mxu0 0.0
        %7439 = vmatprep.subr.mxu0 0.0
        %7440 = vmatpush1.msra.mxu0 %v6261
        %7441 = vmatprep.subr.mxu0 0.0
        %7442 = vmatpush1.msra.mxu0 %v6259
        %7443 = vmatprep.subr.mxu0 0.0
        %7444 = vmatpush1.msra.mxu0 %v6257
        %7445 = vmatprep.subr.mxu0 0.0
        %7446 = vmatpush1.msra.mxu0 %v6255
        %7447 = vmatprep.subr.mxu0 0.0
        %7448 = vmatpush2.msra.mxu0 0.0
        %7449 = vmatprep.subr.mxu0 0.0
        %7450 = vmatpush2.msra.mxu0 0.0
        %7451 = vmatprep.subr.mxu0 0.0
        %7452 = vmatpush2.msra.mxu0 0.0
        %7453 = vmatprep.subr.mxu0 0.0
        %7454 = vmatpush2.msra.mxu0 0.0
        %7455 = vmatprep.subr.mxu0 0.0
        %7456 = vmatpush2.msra.mxu0 0.0
        %7457 = vmatprep.subr.mxu0 0.0
        %7458 = vmatpush2.msra.mxu0 0.0
        %7459 = vmatprep.subr.mxu0 0.0
        %7460 = vmatpush2.msra.mxu0 0.0
        %7461 = vmatprep.subr.mxu0 0.0
        %7462 = vmatpush2.msra.mxu0 0.0
        %7463 = vmatprep.subr.mxu0 0.0
        %7464 = vmatpush2.msra.mxu0 0.0
        %7465 = vmatprep.subr.mxu0 0.0
        %7466 = vmatpush2.msra.mxu0 0.0
        %7467 = vmatprep.subr.mxu0 0.0
        %7468 = vmatpush2.msra.mxu0 0.0
        %7469 = vmatprep.subr.mxu0 0.0
        %7470 = vmatpush2.msra.mxu0 0.0
        %7471 = vmatprep.subr.mxu0 0.0
        %7472 = vmatpush2.msra.mxu0 0.0
        %7473 = vmatprep.subr.mxu0 0.0
        %7474 = vmatpush2.msra.mxu0 0.0
        %7475 = vmatprep.subr.mxu0 0.0
        %7476 = vmatpush2.msra.mxu0 0.0
        %7477 = vmatprep.subr.mxu0 0.0
        %7478 = vmatpush2.msra.mxu0 0.0
        %7479 = vmatprep.mubr.f32.mxu0 0.0
        %7480 = vmatmul.mubr.f32.gmra.mxu0 %v4687
        %v7481 = vpop.f32.mrf.mxu0
        %v7482 = vadd.f32 0.0, %v7481
        %v7483 = vpop.f32.mrf.mxu0
        %7484 = vmatprep.mubr.f32.mxu0 0.0
        %7485 = vmatmul.mubr.f32.gmra.mxu0 %v4690
        %v7486 = vpop.f32.mrf.mxu0
        %v7487 = vadd.f32 0.0, %v7486
        %v7488 = vpop.f32.mrf.mxu0
        %7489 = vdwg.mxu0
        %7492 = vrot.lane.b32.xlu0 %v7482, 112
        %v7493 = vpop.permute.xlu0 %7492
        %7494 = vrot.lane.b32.xlu0 %v7487, 112
        %v7495 = vpop.permute.xlu0 %7494
        %7496 = vrot.lane.b32.xlu0 %v7482, 96
        %v7497 = vpop.permute.xlu0 %7496
        %7498 = vrot.lane.b32.xlu0 %v7487, 96
        %v7499 = vpop.permute.xlu0 %7498
        %7500 = vrot.lane.b32.xlu0 %v7482, 80
        %v7501 = vpop.permute.xlu0 %7500
        %7502 = vrot.lane.b32.xlu0 %v7487, 80
        %v7503 = vpop.permute.xlu0 %7502
        %7504 = vmatprep.subr.mxu0 0.0
        %7505 = vmatpush1.msra.mxu0 0.0
        %7506 = vmatprep.subr.mxu0 0.0
        %7507 = vmatpush1.msra.mxu0 0.0
        %7508 = vmatprep.subr.mxu0 0.0
        %7509 = vmatpush1.msra.mxu0 0.0
        %7510 = vmatprep.subr.mxu0 0.0
        %7511 = vmatpush1.msra.mxu0 0.0
        %7512 = vmatprep.subr.mxu0 0.0
        %7513 = vmatpush1.msra.mxu0 0.0
        %7514 = vmatprep.subr.mxu0 0.0
        %7515 = vmatpush1.msra.mxu0 0.0
        %7516 = vmatprep.subr.mxu0 0.0
        %7517 = vmatpush1.msra.mxu0 0.0
        %7518 = vmatprep.subr.mxu0 0.0
        %7519 = vmatpush1.msra.mxu0 0.0
        %7520 = vmatprep.subr.mxu0 0.0
        %7521 = vmatpush1.msra.mxu0 0.0
        %7522 = vmatprep.subr.mxu0 0.0
        %7523 = vmatpush1.msra.mxu0 0.0
        %7524 = vmatprep.subr.mxu0 0.0
        %7525 = vmatpush1.msra.mxu0 0.0
        %7526 = vmatprep.subr.mxu0 0.0
        %7527 = vmatpush1.msra.mxu0 0.0
        %7528 = vmatprep.subr.mxu0 0.0
        %7529 = vmatpush1.msra.mxu0 %v6160
        %7530 = vmatprep.subr.mxu0 0.0
        %7531 = vmatpush1.msra.mxu0 %v6158
        %7532 = vmatprep.subr.mxu0 0.0
        %7533 = vmatpush1.msra.mxu0 %v6156
        %7534 = vmatprep.subr.mxu0 0.0
        %7535 = vmatpush1.msra.mxu0 %v6154
        %7536 = vmatprep.subr.mxu0 0.0
        %7537 = vmatpush2.msra.mxu0 0.0
        %7538 = vmatprep.subr.mxu0 0.0
        %7539 = vmatpush2.msra.mxu0 0.0
        %7540 = vmatprep.subr.mxu0 0.0
        %7541 = vmatpush2.msra.mxu0 0.0
        %7542 = vmatprep.subr.mxu0 0.0
        %7543 = vmatpush2.msra.mxu0 0.0
        %7544 = vmatprep.subr.mxu0 0.0
        %7545 = vmatpush2.msra.mxu0 0.0
        %7546 = vmatprep.subr.mxu0 0.0
        %7547 = vmatpush2.msra.mxu0 0.0
        %7548 = vmatprep.subr.mxu0 0.0
        %7549 = vmatpush2.msra.mxu0 0.0
        %7550 = vmatprep.subr.mxu0 0.0
        %7551 = vmatpush2.msra.mxu0 0.0
        %7552 = vmatprep.subr.mxu0 0.0
        %7553 = vmatpush2.msra.mxu0 0.0
        %7554 = vmatprep.subr.mxu0 0.0
        %7555 = vmatpush2.msra.mxu0 0.0
        %7556 = vmatprep.subr.mxu0 0.0
        %7557 = vmatpush2.msra.mxu0 0.0
        %7558 = vmatprep.subr.mxu0 0.0
        %7559 = vmatpush2.msra.mxu0 0.0
        %7560 = vmatprep.subr.mxu0 0.0
        %7561 = vmatpush2.msra.mxu0 0.0
        %7562 = vmatprep.subr.mxu0 0.0
        %7563 = vmatpush2.msra.mxu0 0.0
        %7564 = vmatprep.subr.mxu0 0.0
        %7565 = vmatpush2.msra.mxu0 0.0
        %7566 = vmatprep.subr.mxu0 0.0
        %7567 = vmatpush2.msra.mxu0 0.0
        %7568 = vmatprep.mubr.f32.mxu0 0.0
        %7569 = vmatmul.mubr.f32.gmra.mxu0 %v4782
        %v7570 = vpop.f32.mrf.mxu0
        %v7571 = vadd.f32 0.0, %v7570
        %v7572 = vpop.f32.mrf.mxu0
        %7573 = vmatprep.mubr.f32.mxu0 0.0
        %7574 = vmatmul.mubr.f32.gmra.mxu0 %v4785
        %v7575 = vpop.f32.mrf.mxu0
        %v7576 = vadd.f32 0.0, %v7575
        %v7577 = vpop.f32.mrf.mxu0
        %7578 = vdwg.mxu0
        %7581 = vrot.lane.b32.xlu0 %v7571, 112
        %v7582 = vpop.permute.xlu0 %7581
        %7583 = vrot.lane.b32.xlu0 %v7576, 112
        %v7584 = vpop.permute.xlu0 %7583
        %7587 = vrot.lane.b32.xlu0 %v7571, 96
        %v7588 = vpop.permute.xlu0 %7587
        %7589 = vrot.lane.b32.xlu0 %v7576, 96
        %v7590 = vpop.permute.xlu0 %7589
        %7593 = vrot.lane.b32.xlu0 %v7571, 80
        %v7594 = vpop.permute.xlu0 %7593
        %7595 = vrot.lane.b32.xlu0 %v7576, 80
        %v7596 = vpop.permute.xlu0 %7595
        %v7599 = vsel %vm483, %v7482, 0
        %v7601 = vsel %vm483, %v7487, 0
        %7603 = vmatprep.subr.mxu0 0.0
        %7604 = vmatpush1.xpose.msra.mxu0 0.0
        %7605 = vmatprep.subr.mxu0 0.0
        %7606 = vmatpush1.xpose.msra.mxu0 0.0
        %7607 = vmatprep.subr.mxu0 0.0
        %7608 = vmatpush1.xpose.msra.mxu0 0.0
        %7609 = vmatprep.subr.mxu0 0.0
        %7610 = vmatpush1.xpose.msra.mxu0 0.0
        %7611 = vmatprep.subr.mxu0 0.0
        %7612 = vmatpush1.xpose.msra.mxu0 0.0
        %7613 = vmatprep.subr.mxu0 0.0
        %7614 = vmatpush1.xpose.msra.mxu0 0.0
        %7615 = vmatprep.subr.mxu0 0.0
        %7616 = vmatpush1.xpose.msra.mxu0 0.0
        %7617 = vmatprep.subr.mxu0 0.0
        %7618 = vmatpush1.xpose.msra.mxu0 0.0
        %7619 = vmatprep.subr.mxu0 0.0
        %7620 = vmatpush1.xpose.msra.mxu0 0.0
        %7621 = vmatprep.subr.mxu0 0.0
        %7622 = vmatpush1.xpose.msra.mxu0 0.0
        %7623 = vmatprep.subr.mxu0 0.0
        %7624 = vmatpush1.xpose.msra.mxu0 0.0
        %7625 = vmatprep.subr.mxu0 0.0
        %7626 = vmatpush1.xpose.msra.mxu0 0.0
        %7627 = vmatprep.subr.mxu0 0.0
        %7628 = vmatpush1.xpose.msra.mxu0 0.0
        %7629 = vmatprep.subr.mxu0 0.0
        %7630 = vmatpush1.xpose.msra.mxu0 0.0
        %7631 = vmatprep.subr.mxu0 0.0
        %7632 = vmatpush1.xpose.msra.mxu0 %v7601
        %7633 = vmatprep.subr.mxu0 0.0
        %7634 = vmatpush1.xpose.msra.mxu0 %v7599
        %7635 = vmatprep.subr.mxu0 0.0
        %7636 = vmatpush2.xpose.msra.mxu0 0.0
        %7637 = vmatprep.subr.mxu0 0.0
        %7638 = vmatpush2.xpose.msra.mxu0 0.0
        %7639 = vmatprep.subr.mxu0 0.0
        %7640 = vmatpush2.xpose.msra.mxu0 0.0
        %7641 = vmatprep.subr.mxu0 0.0
        %7642 = vmatpush2.xpose.msra.mxu0 0.0
        %7643 = vmatprep.subr.mxu0 0.0
        %7644 = vmatpush2.xpose.msra.mxu0 0.0
        %7645 = vmatprep.subr.mxu0 0.0
        %7646 = vmatpush2.xpose.msra.mxu0 0.0
        %7647 = vmatprep.subr.mxu0 0.0
        %7648 = vmatpush2.xpose.msra.mxu0 0.0
        %7649 = vmatprep.subr.mxu0 0.0
        %7650 = vmatpush2.xpose.msra.mxu0 0.0
        %7651 = vmatprep.subr.mxu0 0.0
        %7652 = vmatpush2.xpose.msra.mxu0 0.0
        %7653 = vmatprep.subr.mxu0 0.0
        %7654 = vmatpush2.xpose.msra.mxu0 0.0
        %7655 = vmatprep.subr.mxu0 0.0
        %7656 = vmatpush2.xpose.msra.mxu0 0.0
        %7657 = vmatprep.subr.mxu0 0.0
        %7658 = vmatpush2.xpose.msra.mxu0 0.0
        %7659 = vmatprep.subr.mxu0 0.0
        %7660 = vmatpush2.xpose.msra.mxu0 0.0
        %7661 = vmatprep.subr.mxu0 0.0
        %7662 = vmatpush2.xpose.msra.mxu0 0.0
        %7663 = vmatprep.subr.mxu0 0.0
        %7664 = vmatpush2.xpose.msra.mxu0 0.0
        %7665 = vmatprep.subr.mxu0 0.0
        %7666 = vmatpush2.xpose.msra.mxu0 0.0
        %7667 = vmatprep.mubr.f32.mxu0 0.0
        %7668 = vmatmul.mubr.f32.gmra.mxu0 %v6426
        %v7669 = vpop.f32.mrf.mxu0
        %v7670 = vadd.f32 0.0, %v7669
        %v7671 = vpop.f32.mrf.mxu0
        %7672 = vdwg.mxu0
        %v7673 = vsel %vm483, %v7493, 0
        %v7675 = vsel %vm483, %v7495, 0
        %7677 = vmatprep.subr.mxu0 0.0
        %7678 = vmatpush1.xpose.msra.mxu0 0.0
        %7679 = vmatprep.subr.mxu0 0.0
        %7680 = vmatpush1.xpose.msra.mxu0 0.0
        %7681 = vmatprep.subr.mxu0 0.0
        %7682 = vmatpush1.xpose.msra.mxu0 0.0
        %7683 = vmatprep.subr.mxu0 0.0
        %7684 = vmatpush1.xpose.msra.mxu0 0.0
        %7685 = vmatprep.subr.mxu0 0.0
        %7686 = vmatpush1.xpose.msra.mxu0 0.0
        %7687 = vmatprep.subr.mxu0 0.0
        %7688 = vmatpush1.xpose.msra.mxu0 0.0
        %7689 = vmatprep.subr.mxu0 0.0
        %7690 = vmatpush1.xpose.msra.mxu0 0.0
        %7691 = vmatprep.subr.mxu0 0.0
        %7692 = vmatpush1.xpose.msra.mxu0 0.0
        %7693 = vmatprep.subr.mxu0 0.0
        %7694 = vmatpush1.xpose.msra.mxu0 0.0
        %7695 = vmatprep.subr.mxu0 0.0
        %7696 = vmatpush1.xpose.msra.mxu0 0.0
        %7697 = vmatprep.subr.mxu0 0.0
        %7698 = vmatpush1.xpose.msra.mxu0 0.0
        %7699 = vmatprep.subr.mxu0 0.0
        %7700 = vmatpush1.xpose.msra.mxu0 0.0
        %7701 = vmatprep.subr.mxu0 0.0
        %7702 = vmatpush1.xpose.msra.mxu0 0.0
        %7703 = vmatprep.subr.mxu0 0.0
        %7704 = vmatpush1.xpose.msra.mxu0 0.0
        %7705 = vmatprep.subr.mxu0 0.0
        %7706 = vmatpush1.xpose.msra.mxu0 %v7675
        %7707 = vmatprep.subr.mxu0 0.0
        %7708 = vmatpush1.xpose.msra.mxu0 %v7673
        %7709 = vmatprep.subr.mxu0 0.0
        %7710 = vmatpush2.xpose.msra.mxu0 0.0
        %7711 = vmatprep.subr.mxu0 0.0
        %7712 = vmatpush2.xpose.msra.mxu0 0.0
        %7713 = vmatprep.subr.mxu0 0.0
        %7714 = vmatpush2.xpose.msra.mxu0 0.0
        %7715 = vmatprep.subr.mxu0 0.0
        %7716 = vmatpush2.xpose.msra.mxu0 0.0
        %7717 = vmatprep.subr.mxu0 0.0
        %7718 = vmatpush2.xpose.msra.mxu0 0.0
        %7719 = vmatprep.subr.mxu0 0.0
        %7720 = vmatpush2.xpose.msra.mxu0 0.0
        %7721 = vmatprep.subr.mxu0 0.0
        %7722 = vmatpush2.xpose.msra.mxu0 0.0
        %7723 = vmatprep.subr.mxu0 0.0
        %7724 = vmatpush2.xpose.msra.mxu0 0.0
        %7725 = vmatprep.subr.mxu0 0.0
        %7726 = vmatpush2.xpose.msra.mxu0 0.0
        %7727 = vmatprep.subr.mxu0 0.0
        %7728 = vmatpush2.xpose.msra.mxu0 0.0
        %7729 = vmatprep.subr.mxu0 0.0
        %7730 = vmatpush2.xpose.msra.mxu0 0.0
        %7731 = vmatprep.subr.mxu0 0.0
        %7732 = vmatpush2.xpose.msra.mxu0 0.0
        %7733 = vmatprep.subr.mxu0 0.0
        %7734 = vmatpush2.xpose.msra.mxu0 0.0
        %7735 = vmatprep.subr.mxu0 0.0
        %7736 = vmatpush2.xpose.msra.mxu0 0.0
        %7737 = vmatprep.subr.mxu0 0.0
        %7738 = vmatpush2.xpose.msra.mxu0 0.0
        %7739 = vmatprep.subr.mxu0 0.0
        %7740 = vmatpush2.xpose.msra.mxu0 0.0
        %7741 = vmatprep.mubr.f32.mxu0 0.0
        %7742 = vmatmul.mubr.f32.gmra.mxu0 %v6500
        %v7743 = vpop.f32.mrf.mxu0
        %v7744 = vadd.f32 0.0, %v7743
        %v7745 = vpop.f32.mrf.mxu0
        %7746 = vdwg.mxu0
        %v7747 = vsel %vm483, %v7497, 0
        %v7749 = vsel %vm483, %v7499, 0
        %7751 = vmatprep.subr.mxu0 0.0
        %7752 = vmatpush1.xpose.msra.mxu0 0.0
        %7753 = vmatprep.subr.mxu0 0.0
        %7754 = vmatpush1.xpose.msra.mxu0 0.0
        %7755 = vmatprep.subr.mxu0 0.0
        %7756 = vmatpush1.xpose.msra.mxu0 0.0
        %7757 = vmatprep.subr.mxu0 0.0
        %7758 = vmatpush1.xpose.msra.mxu0 0.0
        %7759 = vmatprep.subr.mxu0 0.0
        %7760 = vmatpush1.xpose.msra.mxu0 0.0
        %7761 = vmatprep.subr.mxu0 0.0
        %7762 = vmatpush1.xpose.msra.mxu0 0.0
        %7763 = vmatprep.subr.mxu0 0.0
        %7764 = vmatpush1.xpose.msra.mxu0 0.0
        %7765 = vmatprep.subr.mxu0 0.0
        %7766 = vmatpush1.xpose.msra.mxu0 0.0
        %7767 = vmatprep.subr.mxu0 0.0
        %7768 = vmatpush1.xpose.msra.mxu0 0.0
        %7769 = vmatprep.subr.mxu0 0.0
        %7770 = vmatpush1.xpose.msra.mxu0 0.0
        %7771 = vmatprep.subr.mxu0 0.0
        %7772 = vmatpush1.xpose.msra.mxu0 0.0
        %7773 = vmatprep.subr.mxu0 0.0
        %7774 = vmatpush1.xpose.msra.mxu0 0.0
        %7775 = vmatprep.subr.mxu0 0.0
        %7776 = vmatpush1.xpose.msra.mxu0 0.0
        %7777 = vmatprep.subr.mxu0 0.0
        %7778 = vmatpush1.xpose.msra.mxu0 0.0
        %7779 = vmatprep.subr.mxu0 0.0
        %7780 = vmatpush1.xpose.msra.mxu0 %v7749
        %7781 = vmatprep.subr.mxu0 0.0
        %7782 = vmatpush1.xpose.msra.mxu0 %v7747
        %7783 = vmatprep.subr.mxu0 0.0
        %7784 = vmatpush2.xpose.msra.mxu0 0.0
        %7785 = vmatprep.subr.mxu0 0.0
        %7786 = vmatpush2.xpose.msra.mxu0 0.0
        %7787 = vmatprep.subr.mxu0 0.0
        %7788 = vmatpush2.xpose.msra.mxu0 0.0
        %7789 = vmatprep.subr.mxu0 0.0
        %7790 = vmatpush2.xpose.msra.mxu0 0.0
        %7791 = vmatprep.subr.mxu0 0.0
        %7792 = vmatpush2.xpose.msra.mxu0 0.0
        %7793 = vmatprep.subr.mxu0 0.0
        %7794 = vmatpush2.xpose.msra.mxu0 0.0
        %7795 = vmatprep.subr.mxu0 0.0
        %7796 = vmatpush2.xpose.msra.mxu0 0.0
        %7797 = vmatprep.subr.mxu0 0.0
        %7798 = vmatpush2.xpose.msra.mxu0 0.0
        %7799 = vmatprep.subr.mxu0 0.0
        %7800 = vmatpush2.xpose.msra.mxu0 0.0
        %7801 = vmatprep.subr.mxu0 0.0
        %7802 = vmatpush2.xpose.msra.mxu0 0.0
        %7803 = vmatprep.subr.mxu0 0.0
        %7804 = vmatpush2.xpose.msra.mxu0 0.0
        %7805 = vmatprep.subr.mxu0 0.0
        %7806 = vmatpush2.xpose.msra.mxu0 0.0
        %7807 = vmatprep.subr.mxu0 0.0
        %7808 = vmatpush2.xpose.msra.mxu0 0.0
        %7809 = vmatprep.subr.mxu0 0.0
        %7810 = vmatpush2.xpose.msra.mxu0 0.0
        %7811 = vmatprep.subr.mxu0 0.0
        %7812 = vmatpush2.xpose.msra.mxu0 0.0
        %7813 = vmatprep.subr.mxu0 0.0
        %7814 = vmatpush2.xpose.msra.mxu0 0.0
        %7815 = vmatprep.mubr.f32.mxu0 0.0
        %7816 = vmatmul.mubr.f32.gmra.mxu0 %v6574
        %v7817 = vpop.f32.mrf.mxu0
        %v7818 = vadd.f32 0.0, %v7817
        %v7819 = vpop.f32.mrf.mxu0
        %7820 = vdwg.mxu0
        %v7821 = vsel %vm483, %v7501, 0
        %v7823 = vsel %vm483, %v7503, 0
        %7825 = vmatprep.subr.mxu0 0.0
        %7826 = vmatpush1.xpose.msra.mxu0 0.0
        %7827 = vmatprep.subr.mxu0 0.0
        %7828 = vmatpush1.xpose.msra.mxu0 0.0
        %7829 = vmatprep.subr.mxu0 0.0
        %7830 = vmatpush1.xpose.msra.mxu0 0.0
        %7831 = vmatprep.subr.mxu0 0.0
        %7832 = vmatpush1.xpose.msra.mxu0 0.0
        %7833 = vmatprep.subr.mxu0 0.0
        %7834 = vmatpush1.xpose.msra.mxu0 0.0
        %7835 = vmatprep.subr.mxu0 0.0
        %7836 = vmatpush1.xpose.msra.mxu0 0.0
        %7837 = vmatprep.subr.mxu0 0.0
        %7838 = vmatpush1.xpose.msra.mxu0 0.0
        %7839 = vmatprep.subr.mxu0 0.0
        %7840 = vmatpush1.xpose.msra.mxu0 0.0
        %7841 = vmatprep.subr.mxu0 0.0
        %7842 = vmatpush1.xpose.msra.mxu0 0.0
        %7843 = vmatprep.subr.mxu0 0.0
        %7844 = vmatpush1.xpose.msra.mxu0 0.0
        %7845 = vmatprep.subr.mxu0 0.0
        %7846 = vmatpush1.xpose.msra.mxu0 0.0
        %7847 = vmatprep.subr.mxu0 0.0
        %7848 = vmatpush1.xpose.msra.mxu0 0.0
        %7849 = vmatprep.subr.mxu0 0.0
        %7850 = vmatpush1.xpose.msra.mxu0 0.0
        %7851 = vmatprep.subr.mxu0 0.0
        %7852 = vmatpush1.xpose.msra.mxu0 0.0
        %7853 = vmatprep.subr.mxu0 0.0
        %7854 = vmatpush1.xpose.msra.mxu0 %v7823
        %7855 = vmatprep.subr.mxu0 0.0
        %7856 = vmatpush1.xpose.msra.mxu0 %v7821
        %7857 = vmatprep.subr.mxu0 0.0
        %7858 = vmatpush2.xpose.msra.mxu0 0.0
        %7859 = vmatprep.subr.mxu0 0.0
        %7860 = vmatpush2.xpose.msra.mxu0 0.0
        %7861 = vmatprep.subr.mxu0 0.0
        %7862 = vmatpush2.xpose.msra.mxu0 0.0
        %7863 = vmatprep.subr.mxu0 0.0
        %7864 = vmatpush2.xpose.msra.mxu0 0.0
        %7865 = vmatprep.subr.mxu0 0.0
        %7866 = vmatpush2.xpose.msra.mxu0 0.0
        %7867 = vmatprep.subr.mxu0 0.0
        %7868 = vmatpush2.xpose.msra.mxu0 0.0
        %7869 = vmatprep.subr.mxu0 0.0
        %7870 = vmatpush2.xpose.msra.mxu0 0.0
        %7871 = vmatprep.subr.mxu0 0.0
        %7872 = vmatpush2.xpose.msra.mxu0 0.0
        %7873 = vmatprep.subr.mxu0 0.0
        %7874 = vmatpush2.xpose.msra.mxu0 0.0
        %7875 = vmatprep.subr.mxu0 0.0
        %7876 = vmatpush2.xpose.msra.mxu0 0.0
        %7877 = vmatprep.subr.mxu0 0.0
        %7878 = vmatpush2.xpose.msra.mxu0 0.0
        %7879 = vmatprep.subr.mxu0 0.0
        %7880 = vmatpush2.xpose.msra.mxu0 0.0
        %7881 = vmatprep.subr.mxu0 0.0
        %7882 = vmatpush2.xpose.msra.mxu0 0.0
        %7883 = vmatprep.subr.mxu0 0.0
        %7884 = vmatpush2.xpose.msra.mxu0 0.0
        %7885 = vmatprep.subr.mxu0 0.0
        %7886 = vmatpush2.xpose.msra.mxu0 0.0
        %7887 = vmatprep.subr.mxu0 0.0
        %7888 = vmatpush2.xpose.msra.mxu0 0.0
        %7889 = vmatprep.mubr.f32.mxu0 0.0
        %7890 = vmatmul.mubr.f32.gmra.mxu0 %v6648
        %v7891 = vpop.f32.mrf.mxu0
        %v7892 = vadd.f32 0.0, %v7891
        %v7893 = vpop.f32.mrf.mxu0
        %7894 = vdwg.mxu0
        %v7895 = vsel %vm483, %v7670, -inf
        %7896 = vmax.xlane.f32.xlu0 %v7895
        %v7897 = vpop.xlane.xlu0 %7896
        %v7898 = vsel %vm483, %v7744, -inf
        %7899 = vmax.xlane.f32.xlu0 %v7898
        %v7900 = vpop.xlane.xlu0 %7899
        %v7901 = vsel %vm483, %v7818, -inf
        %7902 = vmax.xlane.f32.xlu0 %v7901
        %v7903 = vpop.xlane.xlu0 %7902
        %v7904 = vsel %vm483, %v7892, -inf
        %7905 = vmax.xlane.f32.xlu0 %v7904
        %v7906 = vpop.xlane.xlu0 %7905
        %v7907 = vsub.f32 %v7670, %v7897
        %v7908 = vsub.f32 %v7744, %v7900
        %v7909 = vsub.f32 %v7818, %v7903
        %v7910 = vsub.f32 %v7892, %v7906
        %v7911 = vmul.f32 %v7907, 1.442695
        %v7912 = vpow.pop %v7911
        %v7913 = vmul.f32 %v7908, 1.442695
        %v7914 = vpow.pop %v7913
        %v7915 = vmul.f32 %v7909, 1.442695
        %v7916 = vpow.pop %v7915
        %v7917 = vmul.f32 %v7910, 1.442695
        %v7918 = vpow.pop %v7917
        %v7919 = vsel %vm483, %v7912, 0.0
        %7920 = vadd.xlane.f32.xlu0 %v7919
        %v7921 = vpop.xlane.xlu0 %7920
        %v7922 = vsel %vm483, %v7914, 0.0
        %7923 = vadd.xlane.f32.xlu0 %v7922
        %v7924 = vpop.xlane.xlu0 %7923
        %v7925 = vsel %vm483, %v7916, 0.0
        %7926 = vadd.xlane.f32.xlu0 %v7925
        %v7927 = vpop.xlane.xlu0 %7926
        %v7928 = vsel %vm483, %v7918, 0.0
        %7929 = vadd.xlane.f32.xlu0 %v7928
        %v7930 = vpop.xlane.xlu0 %7929
        %v7931 = vrcp.pop %v7921
        %v7932 = vrcp.pop %v7924
        %v7933 = vrcp.pop %v7927
        %v7934 = vrcp.pop %v7930
        %v7935 = vmul.f32 %v7912, %v7931
        %v7936 = vmul.f32 %v7914, %v7932
        %v7937 = vmul.f32 %v7916, %v7933
        %v7938 = vmul.f32 %v7918, %v7934
        %v7940 = vsel %vm483, %v7935, 0
        %7942 = vmatprep.subr.mxu0 0.0
        %7943 = vmatpush1.msra.mxu0 0.0
        %7944 = vmatprep.subr.mxu0 0.0
        %7945 = vmatpush1.msra.mxu0 0.0
        %7946 = vmatprep.subr.mxu0 0.0
        %7947 = vmatpush1.msra.mxu0 0.0
        %7948 = vmatprep.subr.mxu0 0.0
        %7949 = vmatpush1.msra.mxu0 0.0
        %7950 = vmatprep.subr.mxu0 0.0
        %7951 = vmatpush1.msra.mxu0 0.0
        %7952 = vmatprep.subr.mxu0 0.0
        %7953 = vmatpush1.msra.mxu0 0.0
        %7954 = vmatprep.subr.mxu0 0.0
        %7955 = vmatpush1.msra.mxu0 0.0
        %7956 = vmatprep.subr.mxu0 0.0
        %7957 = vmatpush1.msra.mxu0 0.0
        %7958 = vmatprep.subr.mxu0 0.0
        %7959 = vmatpush1.msra.mxu0 0.0
        %7960 = vmatprep.subr.mxu0 0.0
        %7961 = vmatpush1.msra.mxu0 0.0
        %7962 = vmatprep.subr.mxu0 0.0
        %7963 = vmatpush1.msra.mxu0 0.0
        %7964 = vmatprep.subr.mxu0 0.0
        %7965 = vmatpush1.msra.mxu0 0.0
        %7966 = vmatprep.subr.mxu0 0.0
        %7967 = vmatpush1.msra.mxu0 0.0
        %7968 = vmatprep.subr.mxu0 0.0
        %7969 = vmatpush1.msra.mxu0 0.0
        %7970 = vmatprep.subr.mxu0 0.0
        %7971 = vmatpush1.msra.mxu0 %v7576
        %7972 = vmatprep.subr.mxu0 0.0
        %7973 = vmatpush1.msra.mxu0 %v7571
        %7974 = vmatprep.subr.mxu0 0.0
        %7975 = vmatpush2.msra.mxu0 0.0
        %7976 = vmatprep.subr.mxu0 0.0
        %7977 = vmatpush2.msra.mxu0 0.0
        %7978 = vmatprep.subr.mxu0 0.0
        %7979 = vmatpush2.msra.mxu0 0.0
        %7980 = vmatprep.subr.mxu0 0.0
        %7981 = vmatpush2.msra.mxu0 0.0
        %7982 = vmatprep.subr.mxu0 0.0
        %7983 = vmatpush2.msra.mxu0 0.0
        %7984 = vmatprep.subr.mxu0 0.0
        %7985 = vmatpush2.msra.mxu0 0.0
        %7986 = vmatprep.subr.mxu0 0.0
        %7987 = vmatpush2.msra.mxu0 0.0
        %7988 = vmatprep.subr.mxu0 0.0
        %7989 = vmatpush2.msra.mxu0 0.0
        %7990 = vmatprep.subr.mxu0 0.0
        %7991 = vmatpush2.msra.mxu0 0.0
        %7992 = vmatprep.subr.mxu0 0.0
        %7993 = vmatpush2.msra.mxu0 0.0
        %7994 = vmatprep.subr.mxu0 0.0
        %7995 = vmatpush2.msra.mxu0 0.0
        %7996 = vmatprep.subr.mxu0 0.0
        %7997 = vmatpush2.msra.mxu0 0.0
        %7998 = vmatprep.subr.mxu0 0.0
        %7999 = vmatpush2.msra.mxu0 0.0
        %8000 = vmatprep.subr.mxu0 0.0
        %8001 = vmatpush2.msra.mxu0 0.0
        %8002 = vmatprep.subr.mxu0 0.0
        %8003 = vmatpush2.msra.mxu0 0.0
        %8004 = vmatprep.subr.mxu0 0.0
        %8005 = vmatpush2.msra.mxu0 0.0
        %8006 = vmatprep.mubr.f32.mxu0 0.0
        %8007 = vmatmul.mubr.f32.gmra.mxu0 %v7940
        %v8008 = vpop.f32.mrf.mxu0
        %v8009 = vadd.f32 0.0, %v8008
        %v8010 = vpop.f32.mrf.mxu0
        %8011 = vdwg.mxu0
        %v8013 = vsel %vm483, %v7936, 0
        %8015 = vmatprep.subr.mxu0 0.0
        %8016 = vmatpush1.msra.mxu0 0.0
        %8017 = vmatprep.subr.mxu0 0.0
        %8018 = vmatpush1.msra.mxu0 0.0
        %8019 = vmatprep.subr.mxu0 0.0
        %8020 = vmatpush1.msra.mxu0 0.0
        %8021 = vmatprep.subr.mxu0 0.0
        %8022 = vmatpush1.msra.mxu0 0.0
        %8023 = vmatprep.subr.mxu0 0.0
        %8024 = vmatpush1.msra.mxu0 0.0
        %8025 = vmatprep.subr.mxu0 0.0
        %8026 = vmatpush1.msra.mxu0 0.0
        %8027 = vmatprep.subr.mxu0 0.0
        %8028 = vmatpush1.msra.mxu0 0.0
        %8029 = vmatprep.subr.mxu0 0.0
        %8030 = vmatpush1.msra.mxu0 0.0
        %8031 = vmatprep.subr.mxu0 0.0
        %8032 = vmatpush1.msra.mxu0 0.0
        %8033 = vmatprep.subr.mxu0 0.0
        %8034 = vmatpush1.msra.mxu0 0.0
        %8035 = vmatprep.subr.mxu0 0.0
        %8036 = vmatpush1.msra.mxu0 0.0
        %8037 = vmatprep.subr.mxu0 0.0
        %8038 = vmatpush1.msra.mxu0 0.0
        %8039 = vmatprep.subr.mxu0 0.0
        %8040 = vmatpush1.msra.mxu0 0.0
        %8041 = vmatprep.subr.mxu0 0.0
        %8042 = vmatpush1.msra.mxu0 0.0
        %8043 = vmatprep.subr.mxu0 0.0
        %8044 = vmatpush1.msra.mxu0 %v7584
        %8045 = vmatprep.subr.mxu0 0.0
        %8046 = vmatpush1.msra.mxu0 %v7582
        %8047 = vmatprep.subr.mxu0 0.0
        %8048 = vmatpush2.msra.mxu0 0.0
        %8049 = vmatprep.subr.mxu0 0.0
        %8050 = vmatpush2.msra.mxu0 0.0
        %8051 = vmatprep.subr.mxu0 0.0
        %8052 = vmatpush2.msra.mxu0 0.0
        %8053 = vmatprep.subr.mxu0 0.0
        %8054 = vmatpush2.msra.mxu0 0.0
        %8055 = vmatprep.subr.mxu0 0.0
        %8056 = vmatpush2.msra.mxu0 0.0
        %8057 = vmatprep.subr.mxu0 0.0
        %8058 = vmatpush2.msra.mxu0 0.0
        %8059 = vmatprep.subr.mxu0 0.0
        %8060 = vmatpush2.msra.mxu0 0.0
        %8061 = vmatprep.subr.mxu0 0.0
        %8062 = vmatpush2.msra.mxu0 0.0
        %8063 = vmatprep.subr.mxu0 0.0
        %8064 = vmatpush2.msra.mxu0 0.0
        %8065 = vmatprep.subr.mxu0 0.0
        %8066 = vmatpush2.msra.mxu0 0.0
        %8067 = vmatprep.subr.mxu0 0.0
        %8068 = vmatpush2.msra.mxu0 0.0
        %8069 = vmatprep.subr.mxu0 0.0
        %8070 = vmatpush2.msra.mxu0 0.0
        %8071 = vmatprep.subr.mxu0 0.0
        %8072 = vmatpush2.msra.mxu0 0.0
        %8073 = vmatprep.subr.mxu0 0.0
        %8074 = vmatpush2.msra.mxu0 0.0
        %8075 = vmatprep.subr.mxu0 0.0
        %8076 = vmatpush2.msra.mxu0 0.0
        %8077 = vmatprep.subr.mxu0 0.0
        %8078 = vmatpush2.msra.mxu0 0.0
        %8079 = vmatprep.mubr.f32.mxu0 0.0
        %8080 = vmatmul.mubr.f32.gmra.mxu0 %v8013
        %v8081 = vpop.f32.mrf.mxu0
        %v8082 = vadd.f32 0.0, %v8081
        %v8083 = vpop.f32.mrf.mxu0
        %8084 = vdwg.mxu0
        %v8086 = vsel %vm483, %v7937, 0
        %8088 = vmatprep.subr.mxu0 0.0
        %8089 = vmatpush1.msra.mxu0 0.0
        %8090 = vmatprep.subr.mxu0 0.0
        %8091 = vmatpush1.msra.mxu0 0.0
        %8092 = vmatprep.subr.mxu0 0.0
        %8093 = vmatpush1.msra.mxu0 0.0
        %8094 = vmatprep.subr.mxu0 0.0
        %8095 = vmatpush1.msra.mxu0 0.0
        %8096 = vmatprep.subr.mxu0 0.0
        %8097 = vmatpush1.msra.mxu0 0.0
        %8098 = vmatprep.subr.mxu0 0.0
        %8099 = vmatpush1.msra.mxu0 0.0
        %8100 = vmatprep.subr.mxu0 0.0
        %8101 = vmatpush1.msra.mxu0 0.0
        %8102 = vmatprep.subr.mxu0 0.0
        %8103 = vmatpush1.msra.mxu0 0.0
        %8104 = vmatprep.subr.mxu0 0.0
        %8105 = vmatpush1.msra.mxu0 0.0
        %8106 = vmatprep.subr.mxu0 0.0
        %8107 = vmatpush1.msra.mxu0 0.0
        %8108 = vmatprep.subr.mxu0 0.0
        %8109 = vmatpush1.msra.mxu0 0.0
        %8110 = vmatprep.subr.mxu0 0.0
        %8111 = vmatpush1.msra.mxu0 0.0
        %8112 = vmatprep.subr.mxu0 0.0
        %8113 = vmatpush1.msra.mxu0 0.0
        %8114 = vmatprep.subr.mxu0 0.0
        %8115 = vmatpush1.msra.mxu0 0.0
        %8116 = vmatprep.subr.mxu0 0.0
        %8117 = vmatpush1.msra.mxu0 %v7590
        %8118 = vmatprep.subr.mxu0 0.0
        %8119 = vmatpush1.msra.mxu0 %v7588
        %8120 = vmatprep.subr.mxu0 0.0
        %8121 = vmatpush2.msra.mxu0 0.0
        %8122 = vmatprep.subr.mxu0 0.0
        %8123 = vmatpush2.msra.mxu0 0.0
        %8124 = vmatprep.subr.mxu0 0.0
        %8125 = vmatpush2.msra.mxu0 0.0
        %8126 = vmatprep.subr.mxu0 0.0
        %8127 = vmatpush2.msra.mxu0 0.0
        %8128 = vmatprep.subr.mxu0 0.0
        %8129 = vmatpush2.msra.mxu0 0.0
        %8130 = vmatprep.subr.mxu0 0.0
        %8131 = vmatpush2.msra.mxu0 0.0
        %8132 = vmatprep.subr.mxu0 0.0
        %8133 = vmatpush2.msra.mxu0 0.0
        %8134 = vmatprep.subr.mxu0 0.0
        %8135 = vmatpush2.msra.mxu0 0.0
        %8136 = vmatprep.subr.mxu0 0.0
        %8137 = vmatpush2.msra.mxu0 0.0
        %8138 = vmatprep.subr.mxu0 0.0
        %8139 = vmatpush2.msra.mxu0 0.0
        %8140 = vmatprep.subr.mxu0 0.0
        %8141 = vmatpush2.msra.mxu0 0.0
        %8142 = vmatprep.subr.mxu0 0.0
        %8143 = vmatpush2.msra.mxu0 0.0
        %8144 = vmatprep.subr.mxu0 0.0
        %8145 = vmatpush2.msra.mxu0 0.0
        %8146 = vmatprep.subr.mxu0 0.0
        %8147 = vmatpush2.msra.mxu0 0.0
        %8148 = vmatprep.subr.mxu0 0.0
        %8149 = vmatpush2.msra.mxu0 0.0
        %8150 = vmatprep.subr.mxu0 0.0
        %8151 = vmatpush2.msra.mxu0 0.0
        %8152 = vmatprep.mubr.f32.mxu0 0.0
        %8153 = vmatmul.mubr.f32.gmra.mxu0 %v8086
        %v8154 = vpop.f32.mrf.mxu0
        %v8155 = vadd.f32 0.0, %v8154
        %v8156 = vpop.f32.mrf.mxu0
        %8157 = vdwg.mxu0
        %v8159 = vsel %vm483, %v7938, 0
        %8161 = vmatprep.subr.mxu0 0.0
        %8162 = vmatpush1.msra.mxu0 0.0
        %8163 = vmatprep.subr.mxu0 0.0
        %8164 = vmatpush1.msra.mxu0 0.0
        %8165 = vmatprep.subr.mxu0 0.0
        %8166 = vmatpush1.msra.mxu0 0.0
        %8167 = vmatprep.subr.mxu0 0.0
        %8168 = vmatpush1.msra.mxu0 0.0
        %8169 = vmatprep.subr.mxu0 0.0
        %8170 = vmatpush1.msra.mxu0 0.0
        %8171 = vmatprep.subr.mxu0 0.0
        %8172 = vmatpush1.msra.mxu0 0.0
        %8173 = vmatprep.subr.mxu0 0.0
        %8174 = vmatpush1.msra.mxu0 0.0
        %8175 = vmatprep.subr.mxu0 0.0
        %8176 = vmatpush1.msra.mxu0 0.0
        %8177 = vmatprep.subr.mxu0 0.0
        %8178 = vmatpush1.msra.mxu0 0.0
        %8179 = vmatprep.subr.mxu0 0.0
        %8180 = vmatpush1.msra.mxu0 0.0
        %8181 = vmatprep.subr.mxu0 0.0
        %8182 = vmatpush1.msra.mxu0 0.0
        %8183 = vmatprep.subr.mxu0 0.0
        %8184 = vmatpush1.msra.mxu0 0.0
        %8185 = vmatprep.subr.mxu0 0.0
        %8186 = vmatpush1.msra.mxu0 0.0
        %8187 = vmatprep.subr.mxu0 0.0
        %8188 = vmatpush1.msra.mxu0 0.0
        %8189 = vmatprep.subr.mxu0 0.0
        %8190 = vmatpush1.msra.mxu0 %v7596
        %8191 = vmatprep.subr.mxu0 0.0
        %8192 = vmatpush1.msra.mxu0 %v7594
        %8193 = vmatprep.subr.mxu0 0.0
        %8194 = vmatpush2.msra.mxu0 0.0
        %8195 = vmatprep.subr.mxu0 0.0
        %8196 = vmatpush2.msra.mxu0 0.0
        %8197 = vmatprep.subr.mxu0 0.0
        %8198 = vmatpush2.msra.mxu0 0.0
        %8199 = vmatprep.subr.mxu0 0.0
        %8200 = vmatpush2.msra.mxu0 0.0
        %8201 = vmatprep.subr.mxu0 0.0
        %8202 = vmatpush2.msra.mxu0 0.0
        %8203 = vmatprep.subr.mxu0 0.0
        %8204 = vmatpush2.msra.mxu0 0.0
        %8205 = vmatprep.subr.mxu0 0.0
        %8206 = vmatpush2.msra.mxu0 0.0
        %8207 = vmatprep.subr.mxu0 0.0
        %8208 = vmatpush2.msra.mxu0 0.0
        %8209 = vmatprep.subr.mxu0 0.0
        %8210 = vmatpush2.msra.mxu0 0.0
        %8211 = vmatprep.subr.mxu0 0.0
        %8212 = vmatpush2.msra.mxu0 0.0
        %8213 = vmatprep.subr.mxu0 0.0
        %8214 = vmatpush2.msra.mxu0 0.0
        %8215 = vmatprep.subr.mxu0 0.0
        %8216 = vmatpush2.msra.mxu0 0.0
        %8217 = vmatprep.subr.mxu0 0.0
        %8218 = vmatpush2.msra.mxu0 0.0
        %8219 = vmatprep.subr.mxu0 0.0
        %8220 = vmatpush2.msra.mxu0 0.0
        %8221 = vmatprep.subr.mxu0 0.0
        %8222 = vmatpush2.msra.mxu0 0.0
        %8223 = vmatprep.subr.mxu0 0.0
        %8224 = vmatpush2.msra.mxu0 0.0
        %8225 = vmatprep.mubr.f32.mxu0 0.0
        %8226 = vmatmul.mubr.f32.gmra.mxu0 %v8159
        %v8227 = vpop.f32.mrf.mxu0
        %v8228 = vadd.f32 0.0, %v8227
        %v8229 = vpop.f32.mrf.mxu0
        %8230 = vdwg.mxu0
        %v8232 = vsel %vm483, %v8009, 0
        %8234 = vmatprep.subr.mxu0 0.0
        %8235 = vmatpush1.msra.mxu0 0.0
        %8236 = vmatprep.subr.mxu0 0.0
        %8237 = vmatpush1.msra.mxu0 0.0
        %8238 = vmatprep.subr.mxu0 0.0
        %8239 = vmatpush1.msra.mxu0 0.0
        %8240 = vmatprep.subr.mxu0 0.0
        %8241 = vmatpush1.msra.mxu0 0.0
        %8242 = vmatprep.subr.mxu0 0.0
        %8243 = vmatpush1.msra.mxu0 0.0
        %8244 = vmatprep.subr.mxu0 0.0
        %8245 = vmatpush1.msra.mxu0 0.0
        %8246 = vmatprep.subr.mxu0 0.0
        %8247 = vmatpush1.msra.mxu0 0.0
        %8248 = vmatprep.subr.mxu0 0.0
        %8249 = vmatpush1.msra.mxu0 0.0
        %8250 = vmatprep.subr.mxu0 0.0
        %8251 = vmatpush1.msra.mxu0 0.0
        %8252 = vmatprep.subr.mxu0 0.0
        %8253 = vmatpush1.msra.mxu0 0.0
        %8254 = vmatprep.subr.mxu0 0.0
        %8255 = vmatpush1.msra.mxu0 0.0
        %8256 = vmatprep.subr.mxu0 0.0
        %8257 = vmatpush1.msra.mxu0 0.0
        %8258 = vmatprep.subr.mxu0 0.0
        %8259 = vmatpush1.msra.mxu0 0.0
        %8260 = vmatprep.subr.mxu0 0.0
        %8261 = vmatpush1.msra.mxu0 0.0
        %8262 = vmatprep.subr.mxu0 0.0
        %8263 = vmatpush1.msra.mxu0 %v7063
        %8264 = vmatprep.subr.mxu0 0.0
        %8265 = vmatpush1.msra.mxu0 %v7061
        %8266 = vmatprep.subr.mxu0 0.0
        %8267 = vmatpush2.msra.mxu0 0.0
        %8268 = vmatprep.subr.mxu0 0.0
        %8269 = vmatpush2.msra.mxu0 0.0
        %8270 = vmatprep.subr.mxu0 0.0
        %8271 = vmatpush2.msra.mxu0 0.0
        %8272 = vmatprep.subr.mxu0 0.0
        %8273 = vmatpush2.msra.mxu0 0.0
        %8274 = vmatprep.subr.mxu0 0.0
        %8275 = vmatpush2.msra.mxu0 0.0
        %8276 = vmatprep.subr.mxu0 0.0
        %8277 = vmatpush2.msra.mxu0 0.0
        %8278 = vmatprep.subr.mxu0 0.0
        %8279 = vmatpush2.msra.mxu0 0.0
        %8280 = vmatprep.subr.mxu0 0.0
        %8281 = vmatpush2.msra.mxu0 0.0
        %8282 = vmatprep.subr.mxu0 0.0
        %8283 = vmatpush2.msra.mxu0 0.0
        %8284 = vmatprep.subr.mxu0 0.0
        %8285 = vmatpush2.msra.mxu0 0.0
        %8286 = vmatprep.subr.mxu0 0.0
        %8287 = vmatpush2.msra.mxu0 0.0
        %8288 = vmatprep.subr.mxu0 0.0
        %8289 = vmatpush2.msra.mxu0 0.0
        %8290 = vmatprep.subr.mxu0 0.0
        %8291 = vmatpush2.msra.mxu0 0.0
        %8292 = vmatprep.subr.mxu0 0.0
        %8293 = vmatpush2.msra.mxu0 0.0
        %8294 = vmatprep.subr.mxu0 0.0
        %8295 = vmatpush2.msra.mxu0 0.0
        %8296 = vmatprep.subr.mxu0 0.0
        %8297 = vmatpush2.msra.mxu0 0.0
        %8298 = vmatprep.mubr.f32.mxu0 0.0
        %8299 = vmatmul.mubr.f32.gmra.mxu0 %v8232
        %v8300 = vpop.f32.mrf.mxu0
        %v8301 = vadd.f32 0.0, %v8300
        %v8302 = vpop.f32.mrf.mxu0
        %8303 = vdwg.mxu0
        %v8305 = vsel %vm483, %v8082, 0
        %8307 = vmatprep.subr.mxu0 0.0
        %8308 = vmatpush1.msra.mxu0 0.0
        %8309 = vmatprep.subr.mxu0 0.0
        %8310 = vmatpush1.msra.mxu0 0.0
        %8311 = vmatprep.subr.mxu0 0.0
        %8312 = vmatpush1.msra.mxu0 0.0
        %8313 = vmatprep.subr.mxu0 0.0
        %8314 = vmatpush1.msra.mxu0 0.0
        %8315 = vmatprep.subr.mxu0 0.0
        %8316 = vmatpush1.msra.mxu0 0.0
        %8317 = vmatprep.subr.mxu0 0.0
        %8318 = vmatpush1.msra.mxu0 0.0
        %8319 = vmatprep.subr.mxu0 0.0
        %8320 = vmatpush1.msra.mxu0 0.0
        %8321 = vmatprep.subr.mxu0 0.0
        %8322 = vmatpush1.msra.mxu0 0.0
        %8323 = vmatprep.subr.mxu0 0.0
        %8324 = vmatpush1.msra.mxu0 0.0
        %8325 = vmatprep.subr.mxu0 0.0
        %8326 = vmatpush1.msra.mxu0 0.0
        %8327 = vmatprep.subr.mxu0 0.0
        %8328 = vmatpush1.msra.mxu0 0.0
        %8329 = vmatprep.subr.mxu0 0.0
        %8330 = vmatpush1.msra.mxu0 0.0
        %8331 = vmatprep.subr.mxu0 0.0
        %8332 = vmatpush1.msra.mxu0 0.0
        %8333 = vmatprep.subr.mxu0 0.0
        %8334 = vmatpush1.msra.mxu0 0.0
        %8335 = vmatprep.subr.mxu0 0.0
        %8336 = vmatpush1.msra.mxu0 %v7144
        %8337 = vmatprep.subr.mxu0 0.0
        %8338 = vmatpush1.msra.mxu0 %v7142
        %8339 = vmatprep.subr.mxu0 0.0
        %8340 = vmatpush2.msra.mxu0 0.0
        %8341 = vmatprep.subr.mxu0 0.0
        %8342 = vmatpush2.msra.mxu0 0.0
        %8343 = vmatprep.subr.mxu0 0.0
        %8344 = vmatpush2.msra.mxu0 0.0
        %8345 = vmatprep.subr.mxu0 0.0
        %8346 = vmatpush2.msra.mxu0 0.0
        %8347 = vmatprep.subr.mxu0 0.0
        %8348 = vmatpush2.msra.mxu0 0.0
        %8349 = vmatprep.subr.mxu0 0.0
        %8350 = vmatpush2.msra.mxu0 0.0
        %8351 = vmatprep.subr.mxu0 0.0
        %8352 = vmatpush2.msra.mxu0 0.0
        %8353 = vmatprep.subr.mxu0 0.0
        %8354 = vmatpush2.msra.mxu0 0.0
        %8355 = vmatprep.subr.mxu0 0.0
        %8356 = vmatpush2.msra.mxu0 0.0
        %8357 = vmatprep.subr.mxu0 0.0
        %8358 = vmatpush2.msra.mxu0 0.0
        %8359 = vmatprep.subr.mxu0 0.0
        %8360 = vmatpush2.msra.mxu0 0.0
        %8361 = vmatprep.subr.mxu0 0.0
        %8362 = vmatpush2.msra.mxu0 0.0
        %8363 = vmatprep.subr.mxu0 0.0
        %8364 = vmatpush2.msra.mxu0 0.0
        %8365 = vmatprep.subr.mxu0 0.0
        %8366 = vmatpush2.msra.mxu0 0.0
        %8367 = vmatprep.subr.mxu0 0.0
        %8368 = vmatpush2.msra.mxu0 0.0
        %8369 = vmatprep.subr.mxu0 0.0
        %8370 = vmatpush2.msra.mxu0 0.0
        %8371 = vmatprep.mubr.f32.mxu0 0.0
        %8372 = vmatmul.mubr.f32.gmra.mxu0 %v8305
        %v8373 = vpop.f32.mrf.mxu0
        %v8374 = vadd.f32 0.0, %v8373
        %v8375 = vpop.f32.mrf.mxu0
        %8376 = vdwg.mxu0
        %v8378 = vsel %vm483, %v8155, 0
        %8380 = vmatprep.subr.mxu0 0.0
        %8381 = vmatpush1.msra.mxu0 0.0
        %8382 = vmatprep.subr.mxu0 0.0
        %8383 = vmatpush1.msra.mxu0 0.0
        %8384 = vmatprep.subr.mxu0 0.0
        %8385 = vmatpush1.msra.mxu0 0.0
        %8386 = vmatprep.subr.mxu0 0.0
        %8387 = vmatpush1.msra.mxu0 0.0
        %8388 = vmatprep.subr.mxu0 0.0
        %8389 = vmatpush1.msra.mxu0 0.0
        %8390 = vmatprep.subr.mxu0 0.0
        %8391 = vmatpush1.msra.mxu0 0.0
        %8392 = vmatprep.subr.mxu0 0.0
        %8393 = vmatpush1.msra.mxu0 0.0
        %8394 = vmatprep.subr.mxu0 0.0
        %8395 = vmatpush1.msra.mxu0 0.0
        %8396 = vmatprep.subr.mxu0 0.0
        %8397 = vmatpush1.msra.mxu0 0.0
        %8398 = vmatprep.subr.mxu0 0.0
        %8399 = vmatpush1.msra.mxu0 0.0
        %8400 = vmatprep.subr.mxu0 0.0
        %8401 = vmatpush1.msra.mxu0 0.0
        %8402 = vmatprep.subr.mxu0 0.0
        %8403 = vmatpush1.msra.mxu0 0.0
        %8404 = vmatprep.subr.mxu0 0.0
        %8405 = vmatpush1.msra.mxu0 0.0
        %8406 = vmatprep.subr.mxu0 0.0
        %8407 = vmatpush1.msra.mxu0 0.0
        %8408 = vmatprep.subr.mxu0 0.0
        %8409 = vmatpush1.msra.mxu0 %v7225
        %8410 = vmatprep.subr.mxu0 0.0
        %8411 = vmatpush1.msra.mxu0 %v7223
        %8412 = vmatprep.subr.mxu0 0.0
        %8413 = vmatpush2.msra.mxu0 0.0
        %8414 = vmatprep.subr.mxu0 0.0
        %8415 = vmatpush2.msra.mxu0 0.0
        %8416 = vmatprep.subr.mxu0 0.0
        %8417 = vmatpush2.msra.mxu0 0.0
        %8418 = vmatprep.subr.mxu0 0.0
        %8419 = vmatpush2.msra.mxu0 0.0
        %8420 = vmatprep.subr.mxu0 0.0
        %8421 = vmatpush2.msra.mxu0 0.0
        %8422 = vmatprep.subr.mxu0 0.0
        %8423 = vmatpush2.msra.mxu0 0.0
        %8424 = vmatprep.subr.mxu0 0.0
        %8425 = vmatpush2.msra.mxu0 0.0
        %8426 = vmatprep.subr.mxu0 0.0
        %8427 = vmatpush2.msra.mxu0 0.0
        %8428 = vmatprep.subr.mxu0 0.0
        %8429 = vmatpush2.msra.mxu0 0.0
        %8430 = vmatprep.subr.mxu0 0.0
        %8431 = vmatpush2.msra.mxu0 0.0
        %8432 = vmatprep.subr.mxu0 0.0
        %8433 = vmatpush2.msra.mxu0 0.0
        %8434 = vmatprep.subr.mxu0 0.0
        %8435 = vmatpush2.msra.mxu0 0.0
        %8436 = vmatprep.subr.mxu0 0.0
        %8437 = vmatpush2.msra.mxu0 0.0
        %8438 = vmatprep.subr.mxu0 0.0
        %8439 = vmatpush2.msra.mxu0 0.0
        %8440 = vmatprep.subr.mxu0 0.0
        %8441 = vmatpush2.msra.mxu0 0.0
        %8442 = vmatprep.subr.mxu0 0.0
        %8443 = vmatpush2.msra.mxu0 0.0
        %8444 = vmatprep.mubr.f32.mxu0 0.0
        %8445 = vmatmul.mubr.f32.gmra.mxu0 %v8378
        %v8446 = vpop.f32.mrf.mxu0
        %v8447 = vadd.f32 0.0, %v8446
        %v8448 = vpop.f32.mrf.mxu0
        %8449 = vdwg.mxu0
        %v8451 = vsel %vm483, %v8228, 0
        %8453 = vmatprep.subr.mxu0 0.0
        %8454 = vmatpush1.msra.mxu0 0.0
        %8455 = vmatprep.subr.mxu0 0.0
        %8456 = vmatpush1.msra.mxu0 0.0
        %8457 = vmatprep.subr.mxu0 0.0
        %8458 = vmatpush1.msra.mxu0 0.0
        %8459 = vmatprep.subr.mxu0 0.0
        %8460 = vmatpush1.msra.mxu0 0.0
        %8461 = vmatprep.subr.mxu0 0.0
        %8462 = vmatpush1.msra.mxu0 0.0
        %8463 = vmatprep.subr.mxu0 0.0
        %8464 = vmatpush1.msra.mxu0 0.0
        %8465 = vmatprep.subr.mxu0 0.0
        %8466 = vmatpush1.msra.mxu0 0.0
        %8467 = vmatprep.subr.mxu0 0.0
        %8468 = vmatpush1.msra.mxu0 0.0
        %8469 = vmatprep.subr.mxu0 0.0
        %8470 = vmatpush1.msra.mxu0 0.0
        %8471 = vmatprep.subr.mxu0 0.0
        %8472 = vmatpush1.msra.mxu0 0.0
        %8473 = vmatprep.subr.mxu0 0.0
        %8474 = vmatpush1.msra.mxu0 0.0
        %8475 = vmatprep.subr.mxu0 0.0
        %8476 = vmatpush1.msra.mxu0 0.0
        %8477 = vmatprep.subr.mxu0 0.0
        %8478 = vmatpush1.msra.mxu0 0.0
        %8479 = vmatprep.subr.mxu0 0.0
        %8480 = vmatpush1.msra.mxu0 0.0
        %8481 = vmatprep.subr.mxu0 0.0
        %8482 = vmatpush1.msra.mxu0 %v7306
        %8483 = vmatprep.subr.mxu0 0.0
        %8484 = vmatpush1.msra.mxu0 %v7304
        %8485 = vmatprep.subr.mxu0 0.0
        %8486 = vmatpush2.msra.mxu0 0.0
        %8487 = vmatprep.subr.mxu0 0.0
        %8488 = vmatpush2.msra.mxu0 0.0
        %8489 = vmatprep.subr.mxu0 0.0
        %8490 = vmatpush2.msra.mxu0 0.0
        %8491 = vmatprep.subr.mxu0 0.0
        %8492 = vmatpush2.msra.mxu0 0.0
        %8493 = vmatprep.subr.mxu0 0.0
        %8494 = vmatpush2.msra.mxu0 0.0
        %8495 = vmatprep.subr.mxu0 0.0
        %8496 = vmatpush2.msra.mxu0 0.0
        %8497 = vmatprep.subr.mxu0 0.0
        %8498 = vmatpush2.msra.mxu0 0.0
        %8499 = vmatprep.subr.mxu0 0.0
        %8500 = vmatpush2.msra.mxu0 0.0
        %8501 = vmatprep.subr.mxu0 0.0
        %8502 = vmatpush2.msra.mxu0 0.0
        %8503 = vmatprep.subr.mxu0 0.0
        %8504 = vmatpush2.msra.mxu0 0.0
        %8505 = vmatprep.subr.mxu0 0.0
        %8506 = vmatpush2.msra.mxu0 0.0
        %8507 = vmatprep.subr.mxu0 0.0
        %8508 = vmatpush2.msra.mxu0 0.0
        %8509 = vmatprep.subr.mxu0 0.0
        %8510 = vmatpush2.msra.mxu0 0.0
        %8511 = vmatprep.subr.mxu0 0.0
        %8512 = vmatpush2.msra.mxu0 0.0
        %8513 = vmatprep.subr.mxu0 0.0
        %8514 = vmatpush2.msra.mxu0 0.0
        %8515 = vmatprep.subr.mxu0 0.0
        %8516 = vmatpush2.msra.mxu0 0.0
        %8517 = vmatprep.mubr.f32.mxu0 0.0
        %8518 = vmatmul.mubr.f32.gmra.mxu0 %v8451
        %v8519 = vpop.f32.mrf.mxu0
        %v8520 = vadd.f32 0.0, %v8519
        %v8521 = vpop.f32.mrf.mxu0
        %8522 = vdwg.mxu0
        %v8523 = vsel %vm322, %v8301, 0.0
        %v8524 = vsel %vm322, %v8374, 0.0
        %v8525 = vadd.f32 %v8523, %v8524
        %v8526 = vsel %vm322, %v8447, 0.0
        %v8527 = vadd.f32 %v8525, %v8526
        %v8528 = vsel %vm322, %v8520, 0.0
        %v8529 = vadd.f32 %v8527, %v8528
        %v8530 = vadd.f32 %v7414, %v8529
        %v8531 = vld [vmem:[%s5 + $0x16] sm:$0x1]
        %v8532 = vld [vmem:[%s5 + $0x17] sm:$0x1]
        %v8533 = vsel %vm322, %v8530, 0.0
        %8534 = vadd.xlane.f32.xlu0 %v8533
        %v8535 = vpop.xlane.xlu0 %8534
        %v8536 = vmul.f32 %v8535, %v329
        %v8537 = vsub.f32 %v8530, %v8536
        %v8538 = vmul.f32 %v8537, %v8537
        %v8539 = vsel %vm322, %v8538, 0.0
        %8540 = vadd.xlane.f32.xlu0 %v8539
        %v8541 = vpop.xlane.xlu0 %8540
        %v8542 = vmul.f32 %v8541, %v329
        %v8543 = vadd.f32 %v8542, 1e-05
        %v8544 = vrsqrt.pop %v8543
        %v8545 = vmul.f32 %v8537, %v8544
        %v8546 = vlaneseq
        %v8547 = vshrl.u32 %v8546, 7
        %v8548 = vsub.s32 0, %v8547
        %v8549 = vrot.slane %v8531, %v8548
        %v8550 = vmul.f32 %v8545, %v8549
        %v8551 = vlaneseq
        %v8552 = vshrl.u32 %v8551, 7
        %v8553 = vsub.s32 0, %v8552
        %v8554 = vrot.slane %v8532, %v8553
        %v8555 = vadd.f32 %v8550, %v8554
        %v8556 = vld [vmem:[%s5 + $0x1b] sm:$0x1]
        %v8557 = vlaneseq
        %v8558 = vshrl.u32 %v8557, 7
        %v8559 = vsub.s32 0, %v8558
        %v8560 = vrot.slane %v8556, %v8559
        %8565 = vrot.lane.b32.xlu0 %v6154, 64
        %v8566 = vpop.permute.xlu0 %8565
        %8567 = vrot.lane.b32.xlu0 %v6156, 64
        %v8568 = vpop.permute.xlu0 %8567
        %8569 = vrot.lane.b32.xlu0 %v6158, 64
        %v8570 = vpop.permute.xlu0 %8569
        %8571 = vrot.lane.b32.xlu0 %v6160, 64
        %v8572 = vpop.permute.xlu0 %8571
        %v8578 = vsel %vm322, %v8555, 0
        %8580 = vmatprep.subr.mxu0 0.0
        %8581 = vmatpush1.msra.mxu0 0.0
        %8582 = vmatprep.subr.mxu0 0.0
        %8583 = vmatpush1.msra.mxu0 0.0
        %8584 = vmatprep.subr.mxu0 0.0
        %8585 = vmatpush1.msra.mxu0 0.0
        %8586 = vmatprep.subr.mxu0 0.0
        %8587 = vmatpush1.msra.mxu0 0.0
        %8588 = vmatprep.subr.mxu0 0.0
        %8589 = vmatpush1.msra.mxu0 0.0
        %8590 = vmatprep.subr.mxu0 0.0
        %8591 = vmatpush1.msra.mxu0 0.0
        %8592 = vmatprep.subr.mxu0 0.0
        %8593 = vmatpush1.msra.mxu0 0.0
        %8594 = vmatprep.subr.mxu0 0.0
        %8595 = vmatpush1.msra.mxu0 0.0
        %8596 = vmatprep.subr.mxu0 0.0
        %8597 = vmatpush1.msra.mxu0 0.0
        %8598 = vmatprep.subr.mxu0 0.0
        %8599 = vmatpush1.msra.mxu0 0.0
        %8600 = vmatprep.subr.mxu0 0.0
        %8601 = vmatpush1.msra.mxu0 0.0
        %8602 = vmatprep.subr.mxu0 0.0
        %8603 = vmatpush1.msra.mxu0 0.0
        %8604 = vmatprep.subr.mxu0 0.0
        %8605 = vmatpush1.msra.mxu0 %v8572
        %8606 = vmatprep.subr.mxu0 0.0
        %8607 = vmatpush1.msra.mxu0 %v8570
        %8608 = vmatprep.subr.mxu0 0.0
        %8609 = vmatpush1.msra.mxu0 %v8568
        %8610 = vmatprep.subr.mxu0 0.0
        %8611 = vmatpush1.msra.mxu0 %v8566
        %8612 = vmatprep.subr.mxu0 0.0
        %8613 = vmatpush2.msra.mxu0 0.0
        %8614 = vmatprep.subr.mxu0 0.0
        %8615 = vmatpush2.msra.mxu0 0.0
        %8616 = vmatprep.subr.mxu0 0.0
        %8617 = vmatpush2.msra.mxu0 0.0
        %8618 = vmatprep.subr.mxu0 0.0
        %8619 = vmatpush2.msra.mxu0 0.0
        %8620 = vmatprep.subr.mxu0 0.0
        %8621 = vmatpush2.msra.mxu0 0.0
        %8622 = vmatprep.subr.mxu0 0.0
        %8623 = vmatpush2.msra.mxu0 0.0
        %8624 = vmatprep.subr.mxu0 0.0
        %8625 = vmatpush2.msra.mxu0 0.0
        %8626 = vmatprep.subr.mxu0 0.0
        %8627 = vmatpush2.msra.mxu0 0.0
        %8628 = vmatprep.subr.mxu0 0.0
        %8629 = vmatpush2.msra.mxu0 0.0
        %8630 = vmatprep.subr.mxu0 0.0
        %8631 = vmatpush2.msra.mxu0 0.0
        %8632 = vmatprep.subr.mxu0 0.0
        %8633 = vmatpush2.msra.mxu0 0.0
        %8634 = vmatprep.subr.mxu0 0.0
        %8635 = vmatpush2.msra.mxu0 0.0
        %8636 = vmatprep.subr.mxu0 0.0
        %8637 = vmatpush2.msra.mxu0 0.0
        %8638 = vmatprep.subr.mxu0 0.0
        %8639 = vmatpush2.msra.mxu0 0.0
        %8640 = vmatprep.subr.mxu0 0.0
        %8641 = vmatpush2.msra.mxu0 0.0
        %8642 = vmatprep.subr.mxu0 0.0
        %8643 = vmatpush2.msra.mxu0 0.0
        %8644 = vmatprep.mubr.f32.mxu0 0.0
        %8645 = vmatmul.mubr.f32.gmra.mxu0 %v8578
        %v8646 = vpop.f32.mrf.mxu0
        %v8647 = vadd.f32 %v8560, %v8646
        %v8648 = vpop.f32.mrf.mxu0
        %8649 = vdwg.mxu0
        %v8650 = vmax.f32 %v8647, 0.0
        %8651 = vrot.lane.b32.xlu0 %v6161, 32
        %v8652 = vpop.permute.xlu0 %8651
        %8653 = vrot.lane.b32.xlu0 %v6162, 32
        %v8654 = vpop.permute.xlu0 %8653
        %8655 = vrot.lane.b32.xlu0 %v6163, 32
        %v8656 = vpop.permute.xlu0 %8655
        %8657 = vrot.lane.b32.xlu0 %v6164, 32
        %v8658 = vpop.permute.xlu0 %8657
        %8659 = vrot.lane.b32.xlu0 %v6165, 32
        %v8660 = vpop.permute.xlu0 %8659
        %8661 = vrot.lane.b32.xlu0 %v6166, 32
        %v8662 = vpop.permute.xlu0 %8661
        %8663 = vrot.lane.b32.xlu0 %v6167, 32
        %v8664 = vpop.permute.xlu0 %8663
        %8665 = vrot.lane.b32.xlu0 %v6168, 32
        %v8666 = vpop.permute.xlu0 %8665
        %v8676 = vsel %vm1756, %v8650, 0
        %8678 = vmatprep.subr.mxu0 0.0
        %8679 = vmatpush1.msra.mxu0 0.0
        %8680 = vmatprep.subr.mxu0 0.0
        %8681 = vmatpush1.msra.mxu0 0.0
        %8682 = vmatprep.subr.mxu0 0.0
        %8683 = vmatpush1.msra.mxu0 0.0
        %8684 = vmatprep.subr.mxu0 0.0
        %8685 = vmatpush1.msra.mxu0 0.0
        %8686 = vmatprep.subr.mxu0 0.0
        %8687 = vmatpush1.msra.mxu0 0.0
        %8688 = vmatprep.subr.mxu0 0.0
        %8689 = vmatpush1.msra.mxu0 0.0
        %8690 = vmatprep.subr.mxu0 0.0
        %8691 = vmatpush1.msra.mxu0 0.0
        %8692 = vmatprep.subr.mxu0 0.0
        %8693 = vmatpush1.msra.mxu0 0.0
        %8694 = vmatprep.subr.mxu0 0.0
        %8695 = vmatpush1.msra.mxu0 %v8666
        %8696 = vmatprep.subr.mxu0 0.0
        %8697 = vmatpush1.msra.mxu0 %v8664
        %8698 = vmatprep.subr.mxu0 0.0
        %8699 = vmatpush1.msra.mxu0 %v8662
        %8700 = vmatprep.subr.mxu0 0.0
        %8701 = vmatpush1.msra.mxu0 %v8660
        %8702 = vmatprep.subr.mxu0 0.0
        %8703 = vmatpush1.msra.mxu0 %v8658
        %8704 = vmatprep.subr.mxu0 0.0
        %8705 = vmatpush1.msra.mxu0 %v8656
        %8706 = vmatprep.subr.mxu0 0.0
        %8707 = vmatpush1.msra.mxu0 %v8654
        %8708 = vmatprep.subr.mxu0 0.0
        %8709 = vmatpush1.msra.mxu0 %v8652
        %8710 = vmatprep.subr.mxu0 0.0
        %8711 = vmatpush2.msra.mxu0 0.0
        %8712 = vmatprep.subr.mxu0 0.0
        %8713 = vmatpush2.msra.mxu0 0.0
        %8714 = vmatprep.subr.mxu0 0.0
        %8715 = vmatpush2.msra.mxu0 0.0
        %8716 = vmatprep.subr.mxu0 0.0
        %8717 = vmatpush2.msra.mxu0 0.0
        %8718 = vmatprep.subr.mxu0 0.0
        %8719 = vmatpush2.msra.mxu0 0.0
        %8720 = vmatprep.subr.mxu0 0.0
        %8721 = vmatpush2.msra.mxu0 0.0
        %8722 = vmatprep.subr.mxu0 0.0
        %8723 = vmatpush2.msra.mxu0 0.0
        %8724 = vmatprep.subr.mxu0 0.0
        %8725 = vmatpush2.msra.mxu0 0.0
        %8726 = vmatprep.subr.mxu0 0.0
        %8727 = vmatpush2.msra.mxu0 0.0
        %8728 = vmatprep.subr.mxu0 0.0
        %8729 = vmatpush2.msra.mxu0 0.0
        %8730 = vmatprep.subr.mxu0 0.0
        %8731 = vmatpush2.msra.mxu0 0.0
        %8732 = vmatprep.subr.mxu0 0.0
        %8733 = vmatpush2.msra.mxu0 0.0
        %8734 = vmatprep.subr.mxu0 0.0
        %8735 = vmatpush2.msra.mxu0 0.0
        %8736 = vmatprep.subr.mxu0 0.0
        %8737 = vmatpush2.msra.mxu0 0.0
        %8738 = vmatprep.subr.mxu0 0.0
        %8739 = vmatpush2.msra.mxu0 0.0
        %8740 = vmatprep.subr.mxu0 0.0
        %8741 = vmatpush2.msra.mxu0 0.0
        %8742 = vmatprep.mubr.f32.mxu0 0.0
        %8743 = vmatmul.mubr.f32.gmra.mxu0 %v8676
        %v8744 = vpop.f32.mrf.mxu0
        %v8745 = vadd.f32 0.0, %v8744
        %v8746 = vpop.f32.mrf.mxu0
        %8747 = vdwg.mxu0
        %v8748 = vadd.f32 %v8555, %v8745
        %v8749 = vld [vmem:[%s5 + $0x1a] sm:$0x1]
        %v8750 = vlaneseq
        %v8751 = vshrl.u32 %v8750, 7
        %v8752 = vsub.s32 0, %v8751
        %v8753 = vrot.slane %v8749, %v8752
        %v8754 = vadd.f32 %v8748, %v8753
        %v8755 = vld [vmem:[%s5 + $0x18] sm:$0x1]
        %v8756 = vld [vmem:[%s5 + $0x19] sm:$0x1]
        %v8757 = vsel %vm322, %v8754, 0.0
        %8758 = vadd.xlane.f32.xlu0 %v8757
        %v8759 = vpop.xlane.xlu0 %8758
        %v8760 = vmul.f32 %v8759, %v329
        %v8761 = vsub.f32 %v8754, %v8760
        %v8762 = vmul.f32 %v8761, %v8761
        %v8763 = vsel %vm322, %v8762, 0.0
        %8764 = vadd.xlane.f32.xlu0 %v8763
        %v8765 = vpop.xlane.xlu0 %8764
        %v8766 = vmul.f32 %v8765, %v329
        %v8767 = vadd.f32 %v8766, 1e-05
        %v8768 = vrsqrt.pop %v8767
        %v8769 = vmul.f32 %v8761, %v8768
        %v8770 = vlaneseq
        %v8771 = vshrl.u32 %v8770, 7
        %v8772 = vsub.s32 0, %v8771
        %v8773 = vrot.slane %v8755, %v8772
        %v8774 = vmul.f32 %v8769, %v8773
        %v8775 = vlaneseq
        %v8776 = vshrl.u32 %v8775, 7
        %v8777 = vsub.s32 0, %v8776
        %v8778 = vrot.slane %v8756, %v8777
        %v8779 = vadd.f32 %v8774, %v8778
        %v8780 = vld [vmem:[%s5 + $0x1e] sm:$0x1]
        %v8781 = vld [vmem:[%s5 + $0x1f] sm:$0x1]
        %v8782 = vsel %vm322, %v8779, 0.0
        %8783 = vadd.xlane.f32.xlu0 %v8782
        %v8784 = vpop.xlane.xlu0 %8783
        %v8785 = vmul.f32 %v8784, %v329
        %v8786 = vsub.f32 %v8779, %v8785
        %v8787 = vmul.f32 %v8786, %v8786
        %v8788 = vsel %vm322, %v8787, 0.0
        %8789 = vadd.xlane.f32.xlu0 %v8788
        %v8790 = vpop.xlane.xlu0 %8789
        %v8791 = vmul.f32 %v8790, %v329
        %v8792 = vadd.f32 %v8791, 1e-05
        %v8793 = vrsqrt.pop %v8792
        %v8794 = vmul.f32 %v8786, %v8793
        %v8795 = vlaneseq
        %v8796 = vshrl.u32 %v8795, 7
        %v8797 = vsub.s32 0, %v8796
        %v8798 = vrot.slane %v8780, %v8797
        %v8799 = vmul.f32 %v8794, %v8798
        %v8800 = vlaneseq
        %v8801 = vshrl.u32 %v8800, 7
        %v8802 = vsub.s32 0, %v8801
        %v8803 = vrot.slane %v8781, %v8802
        %v8804 = vadd.f32 %v8799, %v8803
        %v8806 = vrot.slane %v8804, 1
        %8807 = vrot.lane.b32.xlu0 %v8806, 32
        %v8808 = vpop.permute.xlu0 %8807
        %v8810 = vrot.slane %v8804, 2
        %8811 = vrot.lane.b32.xlu0 %v8810, 64
        %v8812 = vpop.permute.xlu0 %8811
        %v8814 = vrot.slane %v8804, 3
        %8815 = vrot.lane.b32.xlu0 %v8814, 96
        %v8816 = vpop.permute.xlu0 %8815
        %v8818 = vrot.slane %v8804, 4
        %v8820 = vrot.slane %v8804, 5
        %8821 = vrot.lane.b32.xlu0 %v8820, 32
        %v8822 = vpop.permute.xlu0 %8821
        %v8824 = vrot.slane %v8804, 6
        %8825 = vrot.lane.b32.xlu0 %v8824, 64
        %v8826 = vpop.permute.xlu0 %8825
        %v8828 = vrot.slane %v8804, 7
        %8829 = vrot.lane.b32.xlu0 %v8828, 96
        %v8830 = vpop.permute.xlu0 %8829
        %v8832 = vsel %vm322, %v8804, %v8808
        %v8833 = vsel %vm1756, %v8832, %v8812
        %v8834 = vsel %vm6125, %v8833, %v8816
        %v8835 = vsel %vm322, %v8818, %v8822
        %v8836 = vsel %vm1756, %v8835, %v8826
        %v8837 = vsel %vm6125, %v8836, %v8830
        %v8840 = vcombine.low %v8834, %v8837
        %v8842 = vunpack.c.l.s4 1966171168
        %v8843 = vunpack.c.0.s8 %v8842
        %v8844 = vlaneseq
        %v8845 = vshrl.u32 %v8844, 7
        %v8846 = vsub.s32 %v8843, %v8845
        %v8847 = vrot.slane %v8840, %v8846
        %v8849 = vunpack.c.l.s4 1966171168
        %v8850 = vunpack.c.0.s8 %v8849
        %v8851 = vlaneseq
        %v8852 = vshrl.u32 %v8851, 7
        %v8853 = vsub.s32 %v8850, %v8852
        %v8854 = vrot.slane %v8847, %v8853
        %s8856 = scalar_lea.vmem %s301, 1
        %8857 = vst.msk [vmem:[%s8856] ss:$2 sm:$0x3] %vm6151, %v8854
        %p8858 = scmp.lt.s32.totalorder %s19, 1
        %s8859 = scalar_select %p8858, %s19, 1
        %s8860 = smul.addr %s8859, 2
        %s8861 = smul.addr %s8860, 2
        %s8862 = scalar_lea.vmem %s6, %s8861
        // Predicated region
        $region53: #{transformer_forward.1} parent=43 // pred_check
          %p8863 = pneg %p173
        $region54: #{transformer_forward.1} parent=43 // pred_check_branch
          %8865 = sbr.rel (%p8863) target = $region56
        $region55: #{transformer_forward.1} parent=43 // pred_region
          _
        $region56: #{transformer_forward.1} parent=43 // pred_fallthru
          _
      $region44: #{transformer_forward.1} parent=5 // pred_fallthru
        _
      %p8866 = scmp.le.s32.totalorder 2, %s14
      // Predicated region
      $region57: #{transformer_forward.1} parent=5 // pred_check
        %p8867 = pneg %p8866
      $region58: #{transformer_forward.1} parent=5 // pred_check_branch
        %8869 = sbr.rel (%p8867) target = $region60
      $region59: #{transformer_forward.1} parent=5 // pred_region
        %s8870 = ssub.s32 %s14, 2
        // Predicated region
        $region61: #{transformer_forward.1} parent=59 // pred_check
          %p8871 = pneg %p179
        $region62: #{transformer_forward.1} parent=59 // pred_check_branch
          %8873 = sbr.rel (%p8871) target = $region64
        $region63: #{transformer_forward.1} parent=59 // pred_region
          %p8874 = scmp.lt.s32.totalorder %s20, 1
          %s8875 = scalar_select %p8874, %s20, 1
          %s8876 = smul.addr %s8875, 2
          %s8877 = smul.addr %s8876, 2
          %s8878 = scalar_lea.vmem %s6, %s8877
        $region64: #{transformer_forward.1} parent=59 // pred_fallthru
          _
      $region60: #{transformer_forward.1} parent=5 // pred_fallthru
        _
    $region6: #{transformer_forward.1} parent=1 // loop_footer
      %s18 = sadd.s32 1, %s14
    $region7: #{transformer_forward.1} parent=1 // loop_footer_branch
      %13 = sbr.rel target = $region3
    $region8: #{transformer_forward.1} parent=1 // loop_exit
      _
    %8879 = vsyncpa [#allocation3], 1
    %s8880 = scalar_lea.sflag [#allocation3], 1
    %8881 = vsyncpa %s8880, 1
    %8882 = vsyncpa [#allocation5], 1

</llo_original>
